<compile_context>
chip_gen: v7x
topology: tpu7x:2x2x1
jax: 0.10.0
libtpu: 0.0.40
codegen_flags: <defaults>
</compile_context>

<pallas_src>
import functools
import math

import jax
import jax.numpy as jnp
from jax.experimental import pallas as pl
from jax.experimental.pallas import tpu as pltpu

# ----------------------------- model config ---------------------------------
D_MODEL = 32
D_FF = 64
N_HEADS = 4
D_K = D_MODEL // N_HEADS
N_LAYERS = 2
VOCAB_SRC = 11
VOCAB_TGT = 11
VOCAB_PAD = 128          # lane-dense generator output (sliced to VOCAB_TGT outside)
MAX_LEN = 64
LN_EPS = 1e-6
NEG_INF = -1e9


# ------------------------------ fused kernel ---------------------------------
def _fused_kernel(src_ref, tgt_ref, encb_ref, decb_ref, crossb_ref, *rest):
    """Whole EncoderDecoder forward in one kernel.

    rest = 70 weight refs (flat, order produced by _prep_flat_weights) + out_ref.
    All activations are 2-D (B*T, D) values resident in vregs/VMEM.
    """
    out_ref = rest[-1]
    ws = rest[:-1]
    pos = [0]

    def pop():
        r = ws[pos[0]]
        pos[0] += 1
        return r[...]

    def layer_norm(x, a, b):
        # Annotated-Transformer LayerNorm: a * (x - mean) / (std + eps) + b,
        # torch unbiased std (ddof=1).
        mean = jnp.mean(x, axis=-1, keepdims=True)
        xc = x - mean
        var = jnp.sum(xc * xc, axis=-1, keepdims=True) * (1.0 / (D_MODEL - 1))
        inv = pl.reciprocal(jnp.sqrt(var) + LN_EPS, approx=True)
        return a * xc * inv + b

    def core_attn(q, k, v, bias, wo, bo):
        # q: (Nq, D) with 1/sqrt(d_k) already folded into the Q projection.
        # bias: (Nq, Nk) additive mask (0 / -1e9) that also block-diagonalizes
        # the batch, so everything stays 2-D.
        out = None
        for h in range(N_HEADS):
            sl = slice(h * D_K, (h + 1) * D_K)
            s = jnp.dot(q[:, sl], k[:, sl].T,
                        preferred_element_type=jnp.float32) + bias
            s = s - jnp.max(s, axis=-1, keepdims=True)
            p = jnp.exp(s)
            p = p * pl.reciprocal(jnp.sum(p, axis=-1, keepdims=True), approx=True)
            oh = jnp.dot(p, v[:, sl], preferred_element_type=jnp.float32)
            # output projection fused per-head: concat_h(oh) @ Wo^T == sum_h oh @ Wo^T[rows h]
            c = jnp.dot(oh, wo[sl, :], preferred_element_type=jnp.float32)
            out = c if out is None else out + c
        return out + bo

    def self_attn(x, bias, wqkv, bqkv, wo, bo):
        qkv = jnp.dot(x, wqkv, preferred_element_type=jnp.float32) + bqkv
        return core_attn(qkv[:, :D_MODEL],
                         qkv[:, D_MODEL:2 * D_MODEL],
                         qkv[:, 2 * D_MODEL:],
                         bias, wo, bo)

    def cross_attn(x, mem, bias, wq, bq, wkv, bkv, wo, bo):
        q = jnp.dot(x, wq, preferred_element_type=jnp.float32) + bq
        kv = jnp.dot(mem, wkv, preferred_element_type=jnp.float32) + bkv
        return core_attn(q, kv[:, :D_MODEL], kv[:, D_MODEL:], bias, wo, bo)

    def ffn(x, w1, b1, w2, b2):
        h = jnp.maximum(
            jnp.dot(x, w1, preferred_element_type=jnp.float32) + b1, 0.0)
        return jnp.dot(h, w2, preferred_element_type=jnp.float32) + b2

    enc_bias = encb_ref[...]
    dec_bias = decb_ref[...]
    cross_bias = crossb_ref[...]

    # ---------------- encoder ----------------
    x = src_ref[...]
    for _ in range(N_LAYERS):
        ln0a, ln0b = pop(), pop()
        wqkv, bqkv, wo, bo = pop(), pop(), pop(), pop()
        ln1a, ln1b = pop(), pop()
        w1, b1, w2, b2 = pop(), pop(), pop(), pop()
        x = x + self_attn(layer_norm(x, ln0a, ln0b), enc_bias, wqkv, bqkv, wo, bo)
        x = x + ffn(layer_norm(x, ln1a, ln1b), w1, b1, w2, b2)
    memory = layer_norm(x, pop(), pop())

    # ---------------- decoder ----------------
    y = tgt_ref[...]
    for _ in range(N_LAYERS):
        ln0a, ln0b = pop(), pop()
        s_wqkv, s_bqkv, s_wo, s_bo = pop(), pop(), pop(), pop()
        ln1a, ln1b = pop(), pop()
        c_wq, c_bq, c_wkv, c_bkv, c_wo, c_bo = (pop(), pop(), pop(),
                                                pop(), pop(), pop())
        ln2a, ln2b = pop(), pop()
        w1, b1, w2, b2 = pop(), pop(), pop(), pop()
        y = y + self_attn(layer_norm(y, ln0a, ln0b), dec_bias,
                          s_wqkv, s_bqkv, s_wo, s_bo)
        y = y + cross_attn(layer_norm(y, ln1a, ln1b), memory, cross_bias,
                           c_wq, c_bq, c_wkv, c_bkv, c_wo, c_bo)
        y = y + ffn(layer_norm(y, ln2a, ln2b), w1, b1, w2, b2)
    y = layer_norm(y, pop(), pop())

    # ---------------- generator (lane-dense, padded vocab) ----------------
    gw, gb = pop(), pop()          # (D, 128), (1, 128) with -1e9 bias on padding
    logits = jnp.dot(y, gw, preferred_element_type=jnp.float32) + gb
    z = logits - jnp.max(logits, axis=-1, keepdims=True)
    lse = jnp.log(jnp.sum(jnp.exp(z), axis=-1, keepdims=True))
    out_ref[...] = z - lse


# ------------------------------ glue (JAX side) -------------------------------
def _prep_flat_weights(params):
    """Flatten PyTorch-convention params into the kernel's weight order:
    pre-transposed (Din, Dout), fused QKV, 1/sqrt(d_k) folded into Q, padded generator."""
    scale = 1.0 / math.sqrt(D_K)
    flat = []

    def add_ln(a, b):
        flat.append(a.reshape(1, D_MODEL))
        flat.append(b.reshape(1, D_MODEL))

    def add_self_attn(p):
        wq = p["wq"].T * scale
        bq = p["bq"] * scale
        flat.append(jnp.concatenate([wq, p["wk"].T, p["wv"].T], axis=1))   # (D, 3D)
        flat.append(jnp.concatenate([bq, p["bk"], p["bv"]]).reshape(1, 3 * D_MODEL))
        flat.append(p["wo"].T)                                             # (D, D)
        flat.append(p["bo"].reshape(1, D_MODEL))

    def add_cross_attn(p):
        flat.append(p["wq"].T * scale)
        flat.append((p["bq"] * scale).reshape(1, D_MODEL))
        flat.append(jnp.concatenate([p["wk"].T, p["wv"].T], axis=1))       # (D, 2D)
        flat.append(jnp.concatenate([p["bk"], p["bv"]]).reshape(1, 2 * D_MODEL))
        flat.append(p["wo"].T)
        flat.append(p["bo"].reshape(1, D_MODEL))

    def add_ffn(p):
        flat.append(p["w1"].T)                                             # (D, D_FF)
        flat.append(p["b1"].reshape(1, D_FF))
        flat.append(p["w2"].T)                                             # (D_FF, D)
        flat.append(p["b2"].reshape(1, D_MODEL))

    for lp in params["enc_layers"]:
        add_ln(lp["ln0_a"], lp["ln0_b"])
        add_self_attn(lp["self_attn"])
        add_ln(lp["ln1_a"], lp["ln1_b"])
        add_ffn(lp["ffn"])
    add_ln(params["enc_norm_a"], params["enc_norm_b"])

    for lp in params["dec_layers"]:
        add_ln(lp["ln0_a"], lp["ln0_b"])
        add_self_attn(lp["self_attn"])
        add_ln(lp["ln1_a"], lp["ln1_b"])
        add_cross_attn(lp["src_attn"])
        add_ln(lp["ln2_a"], lp["ln2_b"])
        add_ffn(lp["ffn"])
    add_ln(params["dec_norm_a"], params["dec_norm_b"])

    gen_w = jnp.zeros((D_MODEL, VOCAB_PAD), jnp.float32).at[:, :VOCAB_TGT].set(
        params["gen_w"].T)
    gen_b = jnp.full((VOCAB_PAD,), NEG_INF, jnp.float32).at[:VOCAB_TGT].set(
        params["gen_b"]).reshape(1, VOCAB_PAD)
    flat.append(gen_w)
    flat.append(gen_b)
    return flat


def _make_attn_bias(mask, B, Tq, Tk):
    """(B, 1|Tq, Tk) 0/1 mask -> (B*Tq, B*Tk) additive bias (0 allowed, -1e9 blocked),
    with cross-batch pairs blocked so attention can stay fully 2-D in-kernel."""
    m = jnp.broadcast_to(mask.astype(jnp.float32), (B, Tq, Tk))
    eye = jnp.eye(B, dtype=jnp.float32)
    full = (m[:, :, None, :] * eye[:, None, :, None]).reshape(B * Tq, B * Tk)
    return jnp.where(full > 0.0, jnp.float32(0.0), jnp.float32(NEG_INF))


def positional_encoding(max_len, d_model):
    pos = jnp.arange(max_len, dtype=jnp.float32)[:, None]
    div = jnp.exp(
        jnp.arange(0, d_model, 2, dtype=jnp.float32) * (-math.log(10000.0) / d_model)
    )
    pe = jnp.zeros((max_len, d_model), jnp.float32)
    pe = pe.at[:, 0::2].set(jnp.sin(pos * div))
    pe = pe.at[:, 1::2].set(jnp.cos(pos * div))
    return pe


def encoder_decoder_forward(params, src, tgt, src_mask, tgt_mask,
                            generate_last_only=False):
    B, Ts = src.shape
    Tt = tgt.shape[1]

    # embeddings + positional encoding (dropout = identity): JAX glue (gather)
    src_x = (jnp.take(params["src_emb"], src, axis=0) * math.sqrt(D_MODEL)
             + params["pe"][:Ts][None]).reshape(B * Ts, D_MODEL).astype(jnp.float32)
    tgt_x = (jnp.take(params["tgt_emb"], tgt, axis=0) * math.sqrt(D_MODEL)
             + params["pe"][:Tt][None]).reshape(B * Tt, D_MODEL).astype(jnp.float32)

    enc_bias = _make_attn_bias(src_mask, B, Ts, Ts)    # encoder self-attn
    dec_bias = _make_attn_bias(tgt_mask, B, Tt, Tt)    # decoder self-attn (causal)
    cross_bias = _make_attn_bias(src_mask, B, Tt, Ts)  # decoder cross-attn

    flat = _prep_flat_weights(params)
    n_in = 5 + len(flat)

    out = pl.pallas_call(
        _fused_kernel,
        out_shape=jax.ShapeDtypeStruct((B * Tt, VOCAB_PAD), jnp.float32),
        in_specs=[pl.BlockSpec(memory_space=pltpu.MemorySpace.VMEM)] * n_in,
        out_specs=pl.BlockSpec(memory_space=pltpu.MemorySpace.VMEM),
    )(src_x, tgt_x, enc_bias, dec_bias, cross_bias, *flat)

    logp = out.reshape(B, Tt, VOCAB_PAD)[:, :, :VOCAB_TGT]
    if generate_last_only:
        # generator is position-wise, so slicing after is identical to slicing before
        logp = logp[:, -1]
    return logp


# TODO(synk): greedy_decode (host-side autoregressive loop) is plain Python control
# flow over this same fused forward; K/V caching of `memory` for the cross-attn
# would be the next structural win but is not kernelized here.

# ------------------------------ parameter init -------------------------------
def init_params(key):
    kit = iter(jax.random.split(key, 256))

    def dense(dout, din):
        w = jax.random.normal(next(kit), (dout, din), jnp.float32) / math.sqrt(din)
        b = jnp.zeros((dout,), jnp.float32)
        return w, b

    def attn_params():
        p = {}
        for name in ("q", "k", "v", "o"):
            w, b = dense(D_MODEL, D_MODEL)
            p["w" + name] = w
            p["b" + name] = b
        return p

    def ffn_params():
        w1, b1 = dense(D_FF, D_MODEL)
        w2, b2 = dense(D_MODEL, D_FF)
        return dict(w1=w1, b1=b1, w2=w2, b2=b2)

    def ln():
        return jnp.ones((D_MODEL,), jnp.float32), jnp.zeros((D_MODEL,), jnp.float32)

    enc_layers = []
    for _ in range(N_LAYERS):
        l = dict(self_attn=attn_params(), ffn=ffn_params())
        l["ln0_a"], l["ln0_b"] = ln()
        l["ln1_a"], l["ln1_b"] = ln()
        enc_layers.append(l)

    dec_layers = []
    for _ in range(N_LAYERS):
        l = dict(self_attn=attn_params(), src_attn=attn_params(), ffn=ffn_params())
        l["ln0_a"], l["ln0_b"] = ln()
        l["ln1_a"], l["ln1_b"] = ln()
        l["ln2_a"], l["ln2_b"] = ln()
        dec_layers.append(l)

    gen_w, gen_b = dense(VOCAB_TGT, D_MODEL)
    enc_na, enc_nb = ln()
    dec_na, dec_nb = ln()

    return dict(
        src_emb=jax.random.normal(next(kit), (VOCAB_SRC, D_MODEL), jnp.float32),
        tgt_emb=jax.random.normal(next(kit), (VOCAB_TGT, D_MODEL), jnp.float32),
        pe=positional_encoding(MAX_LEN, D_MODEL),
        enc_layers=enc_layers,
        dec_layers=dec_layers,
        enc_norm_a=enc_na,
        enc_norm_b=enc_nb,
        dec_norm_a=dec_na,
        dec_norm_b=dec_nb,
        gen_w=gen_w,
        gen_b=gen_b,
    )


# ----------------------------------- main -------------------------------------
if __name__ == "__main__":
    key = jax.random.PRNGKey(0)
    kp, ks, kt = jax.random.split(key, 3)
    params = init_params(kp)

    B, T_SRC, T_TGT = 2, 8, 8
    src = jax.random.randint(ks, (B, T_SRC), 1, VOCAB_SRC, dtype=jnp.int32)
    tgt = jax.random.randint(kt, (B, T_TGT), 1, VOCAB_TGT, dtype=jnp.int32)
    src_mask = jnp.ones((B, 1, T_SRC), jnp.float32)                      # (B, 1, T_src)
    tgt_mask = jnp.broadcast_to(                                         # causal (B, T, T)
        jnp.tril(jnp.ones((T_TGT, T_TGT), jnp.float32))[None], (B, T_TGT, T_TGT)
    )

    fwd = jax.jit(functools.partial(encoder_decoder_forward, generate_last_only=False))
    out = jax.block_until_ready(fwd(params, src, tgt, src_mask, tgt_mask))

    assert out.shape == (B, T_TGT, VOCAB_TGT), out.shape
    assert bool(jnp.all(jnp.isfinite(out)))
    # generator emits log-probabilities: exp(out) must sum to 1 over vocab
    assert bool(jnp.allclose(jnp.exp(out).sum(-1), 1.0, atol=1e-4))
    print("KERNEL_OK")
</pallas_src>

<mosaic_0001>
module attributes {stable_mosaic.version = 11 : i64} {
  func.func @_fused_kernel(%arg0: memref<16x32xf32, #tpu.memory_space<vmem>>, %arg1: memref<16x32xf32, #tpu.memory_space<vmem>>, %arg2: memref<16x16xf32, #tpu.memory_space<vmem>>, %arg3: memref<16x16xf32, #tpu.memory_space<vmem>>, %arg4: memref<16x16xf32, #tpu.memory_space<vmem>>, %arg5: memref<1x32xf32, #tpu.memory_space<vmem>>, %arg6: memref<1x32xf32, #tpu.memory_space<vmem>>, %arg7: memref<32x96xf32, #tpu.memory_space<vmem>>, %arg8: memref<1x96xf32, #tpu.memory_space<vmem>>, %arg9: memref<32x32xf32, #tpu.memory_space<vmem>>, %arg10: memref<1x32xf32, #tpu.memory_space<vmem>>, %arg11: memref<1x32xf32, #tpu.memory_space<vmem>>, %arg12: memref<1x32xf32, #tpu.memory_space<vmem>>, %arg13: memref<32x64xf32, #tpu.memory_space<vmem>>, %arg14: memref<1x64xf32, #tpu.memory_space<vmem>>, %arg15: memref<64x32xf32, #tpu.memory_space<vmem>>, %arg16: memref<1x32xf32, #tpu.memory_space<vmem>>, %arg17: memref<1x32xf32, #tpu.memory_space<vmem>>, %arg18: memref<1x32xf32, #tpu.memory_space<vmem>>, %arg19: memref<32x96xf32, #tpu.memory_space<vmem>>, %arg20: memref<1x96xf32, #tpu.memory_space<vmem>>, %arg21: memref<32x32xf32, #tpu.memory_space<vmem>>, %arg22: memref<1x32xf32, #tpu.memory_space<vmem>>, %arg23: memref<1x32xf32, #tpu.memory_space<vmem>>, %arg24: memref<1x32xf32, #tpu.memory_space<vmem>>, %arg25: memref<32x64xf32, #tpu.memory_space<vmem>>, %arg26: memref<1x64xf32, #tpu.memory_space<vmem>>, %arg27: memref<64x32xf32, #tpu.memory_space<vmem>>, %arg28: memref<1x32xf32, #tpu.memory_space<vmem>>, %arg29: memref<1x32xf32, #tpu.memory_space<vmem>>, %arg30: memref<1x32xf32, #tpu.memory_space<vmem>>, %arg31: memref<1x32xf32, #tpu.memory_space<vmem>>, %arg32: memref<1x32xf32, #tpu.memory_space<vmem>>, %arg33: memref<32x96xf32, #tpu.memory_space<vmem>>, %arg34: memref<1x96xf32, #tpu.memory_space<vmem>>, %arg35: memref<32x32xf32, #tpu.memory_space<vmem>>, %arg36: memref<1x32xf32, #tpu.memory_space<vmem>>, %arg37: memref<1x32xf32, #tpu.memory_space<vmem>>, %arg38: memref<1x32xf32, #tpu.memory_space<vmem>>, %arg39: memref<32x32xf32, #tpu.memory_space<vmem>>, %arg40: memref<1x32xf32, #tpu.memory_space<vmem>>, %arg41: memref<32x64xf32, #tpu.memory_space<vmem>>, %arg42: memref<1x64xf32, #tpu.memory_space<vmem>>, %arg43: memref<32x32xf32, #tpu.memory_space<vmem>>, %arg44: memref<1x32xf32, #tpu.memory_space<vmem>>, %arg45: memref<1x32xf32, #tpu.memory_space<vmem>>, %arg46: memref<1x32xf32, #tpu.memory_space<vmem>>, %arg47: memref<32x64xf32, #tpu.memory_space<vmem>>, %arg48: memref<1x64xf32, #tpu.memory_space<vmem>>, %arg49: memref<64x32xf32, #tpu.memory_space<vmem>>, %arg50: memref<1x32xf32, #tpu.memory_space<vmem>>, %arg51: memref<1x32xf32, #tpu.memory_space<vmem>>, %arg52: memref<1x32xf32, #tpu.memory_space<vmem>>, %arg53: memref<32x96xf32, #tpu.memory_space<vmem>>, %arg54: memref<1x96xf32, #tpu.memory_space<vmem>>, %arg55: memref<32x32xf32, #tpu.memory_space<vmem>>, %arg56: memref<1x32xf32, #tpu.memory_space<vmem>>, %arg57: memref<1x32xf32, #tpu.memory_space<vmem>>, %arg58: memref<1x32xf32, #tpu.memory_space<vmem>>, %arg59: memref<32x32xf32, #tpu.memory_space<vmem>>, %arg60: memref<1x32xf32, #tpu.memory_space<vmem>>, %arg61: memref<32x64xf32, #tpu.memory_space<vmem>>, %arg62: memref<1x64xf32, #tpu.memory_space<vmem>>, %arg63: memref<32x32xf32, #tpu.memory_space<vmem>>, %arg64: memref<1x32xf32, #tpu.memory_space<vmem>>, %arg65: memref<1x32xf32, #tpu.memory_space<vmem>>, %arg66: memref<1x32xf32, #tpu.memory_space<vmem>>, %arg67: memref<32x64xf32, #tpu.memory_space<vmem>>, %arg68: memref<1x64xf32, #tpu.memory_space<vmem>>, %arg69: memref<64x32xf32, #tpu.memory_space<vmem>>, %arg70: memref<1x32xf32, #tpu.memory_space<vmem>>, %arg71: memref<1x32xf32, #tpu.memory_space<vmem>>, %arg72: memref<1x32xf32, #tpu.memory_space<vmem>>, %arg73: memref<32x128xf32, #tpu.memory_space<vmem>>, %arg74: memref<1x128xf32, #tpu.memory_space<vmem>>, %arg75: memref<16x128xf32, #tpu.memory_space<vmem>>) attributes {dimension_semantics = [], scalar_prefetch = 0 : i64, scratch_operands = 0 : i64, tpu.core_type = #tpu.core_type<tc>} {
    %c0 = arith.constant 0 : index
    %c0_0 = arith.constant 0 : index
    %0 = vector.load %arg2[%c0, %c0_0] : memref<16x16xf32, #tpu.memory_space<vmem>>, vector<16x16xf32>
    %c0_1 = arith.constant 0 : index
    %c0_2 = arith.constant 0 : index
    %1 = vector.load %arg3[%c0_1, %c0_2] : memref<16x16xf32, #tpu.memory_space<vmem>>, vector<16x16xf32>
    %c0_3 = arith.constant 0 : index
    %c0_4 = arith.constant 0 : index
    %2 = vector.load %arg4[%c0_3, %c0_4] : memref<16x16xf32, #tpu.memory_space<vmem>>, vector<16x16xf32>
    %c0_5 = arith.constant 0 : index
    %c0_6 = arith.constant 0 : index
    %3 = vector.load %arg0[%c0_5, %c0_6] : memref<16x32xf32, #tpu.memory_space<vmem>>, vector<16x32xf32>
    %c0_7 = arith.constant 0 : index
    %c0_8 = arith.constant 0 : index
    %4 = vector.load %arg5[%c0_7, %c0_8] : memref<1x32xf32, #tpu.memory_space<vmem>>, vector<1x32xf32>
    %c0_9 = arith.constant 0 : index
    %c0_10 = arith.constant 0 : index
    %5 = vector.load %arg6[%c0_9, %c0_10] : memref<1x32xf32, #tpu.memory_space<vmem>>, vector<1x32xf32>
    %c0_11 = arith.constant 0 : index
    %c0_12 = arith.constant 0 : index
    %6 = vector.load %arg7[%c0_11, %c0_12] : memref<32x96xf32, #tpu.memory_space<vmem>>, vector<32x96xf32>
    %c0_13 = arith.constant 0 : index
    %c0_14 = arith.constant 0 : index
    %7 = vector.load %arg8[%c0_13, %c0_14] : memref<1x96xf32, #tpu.memory_space<vmem>>, vector<1x96xf32>
    %c0_15 = arith.constant 0 : index
    %c0_16 = arith.constant 0 : index
    %8 = vector.load %arg9[%c0_15, %c0_16] : memref<32x32xf32, #tpu.memory_space<vmem>>, vector<32x32xf32>
    %c0_17 = arith.constant 0 : index
    %c0_18 = arith.constant 0 : index
    %9 = vector.load %arg10[%c0_17, %c0_18] : memref<1x32xf32, #tpu.memory_space<vmem>>, vector<1x32xf32>
    %c0_19 = arith.constant 0 : index
    %c0_20 = arith.constant 0 : index
    %10 = vector.load %arg11[%c0_19, %c0_20] : memref<1x32xf32, #tpu.memory_space<vmem>>, vector<1x32xf32>
    %c0_21 = arith.constant 0 : index
    %c0_22 = arith.constant 0 : index
    %11 = vector.load %arg12[%c0_21, %c0_22] : memref<1x32xf32, #tpu.memory_space<vmem>>, vector<1x32xf32>
    %c0_23 = arith.constant 0 : index
    %c0_24 = arith.constant 0 : index
    %12 = vector.load %arg13[%c0_23, %c0_24] : memref<32x64xf32, #tpu.memory_space<vmem>>, vector<32x64xf32>
    %c0_25 = arith.constant 0 : index
    %c0_26 = arith.constant 0 : index
    %13 = vector.load %arg14[%c0_25, %c0_26] : memref<1x64xf32, #tpu.memory_space<vmem>>, vector<1x64xf32>
    %c0_27 = arith.constant 0 : index
    %c0_28 = arith.constant 0 : index
    %14 = vector.load %arg15[%c0_27, %c0_28] : memref<64x32xf32, #tpu.memory_space<vmem>>, vector<64x32xf32>
    %c0_29 = arith.constant 0 : index
    %c0_30 = arith.constant 0 : index
    %15 = vector.load %arg16[%c0_29, %c0_30] : memref<1x32xf32, #tpu.memory_space<vmem>>, vector<1x32xf32>
    %cst = arith.constant dense<0.000000e+00> : vector<16xf32>
    %16 = vector.multi_reduction <add>, %3, %cst [1] : vector<16x32xf32> to vector<16xf32>
    %17 = vector.shape_cast %16 : vector<16xf32> to vector<16x1xf32>
    %cst_31 = arith.constant 3.200000e+01 : f32
    %18 = vector.broadcast %cst_31 : f32 to vector<16x1xf32>
    %19 = arith.divf %17, %18 : vector<16x1xf32>
    %20 = vector.broadcast %19 : vector<16x1xf32> to vector<16x32xf32>
    %21 = arith.subf %3, %20 : vector<16x32xf32>
    %22 = arith.mulf %21, %21 : vector<16x32xf32>
    %cst_32 = arith.constant dense<0.000000e+00> : vector<16xf32>
    %23 = vector.multi_reduction <add>, %22, %cst_32 [1] : vector<16x32xf32> to vector<16xf32>
    %24 = vector.shape_cast %23 : vector<16xf32> to vector<16x1xf32>
    %cst_33 = arith.constant 0.0322580636 : f32
    %25 = vector.broadcast %cst_33 : f32 to vector<16x1xf32>
    %26 = arith.mulf %24, %25 : vector<16x1xf32>
    %27 = math.sqrt %26 : vector<16x1xf32>
    %cst_34 = arith.constant 9.99999997E-7 : f32
    %28 = vector.broadcast %cst_34 : f32 to vector<16x1xf32>
    %29 = arith.addf %27, %28 : vector<16x1xf32>
    %30 = tpu.reciprocal %29 {approx = true} : vector<16x1xf32> -> vector<16x1xf32>
    %31 = vector.broadcast %4 : vector<1x32xf32> to vector<16x32xf32>
    %32 = arith.mulf %31, %21 : vector<16x32xf32>
    %33 = vector.broadcast %30 : vector<16x1xf32> to vector<16x32xf32>
    %34 = arith.mulf %32, %33 : vector<16x32xf32>
    %35 = vector.broadcast %5 : vector<1x32xf32> to vector<16x32xf32>
    %36 = arith.addf %34, %35 : vector<16x32xf32>
    %cst_35 = arith.constant dense<0.000000e+00> : vector<16x96xf32>
    %37 = tpu.matmul %36, %6, %cst_35 {dimension_numbers = #tpu.dot_dimension_numbers<[1], [0], [0], [1], [0, 0, 1, 1], [], []>} : vector<16x32xf32>, vector<32x96xf32>, vector<16x96xf32> -> vector<16x96xf32>
    %38 = vector.broadcast %7 : vector<1x96xf32> to vector<16x96xf32>
    %39 = arith.addf %37, %38 : vector<16x96xf32>
    %40 = vector.extract_strided_slice %39 {offsets = [0, 0], sizes = [16, 32], strides = [1, 1]} : vector<16x96xf32> to vector<16x32xf32>
    %41 = vector.extract_strided_slice %39 {offsets = [0, 32], sizes = [16, 32], strides = [1, 1]} : vector<16x96xf32> to vector<16x32xf32>
    %42 = vector.extract_strided_slice %39 {offsets = [0, 64], sizes = [16, 32], strides = [1, 1]} : vector<16x96xf32> to vector<16x32xf32>
    %43 = vector.extract_strided_slice %40 {offsets = [0, 0], sizes = [16, 8], strides = [1, 1]} : vector<16x32xf32> to vector<16x8xf32>
    %44 = vector.extract_strided_slice %41 {offsets = [0, 0], sizes = [16, 8], strides = [1, 1]} : vector<16x32xf32> to vector<16x8xf32>
    %45 = tpu.transpose %44, [1, 0] : vector<16x8xf32> -> vector<8x16xf32>
    %cst_36 = arith.constant dense<0.000000e+00> : vector<16x16xf32>
    %46 = tpu.matmul %43, %45, %cst_36 {dimension_numbers = #tpu.dot_dimension_numbers<[1], [0], [0], [1], [0, 0, 1, 1], [], []>} : vector<16x8xf32>, vector<8x16xf32>, vector<16x16xf32> -> vector<16x16xf32>
    %47 = arith.addf %46, %0 : vector<16x16xf32>
    %cst_37 = arith.constant dense<0xFF800000> : vector<16xf32>
    %48 = vector.multi_reduction <maximumf>, %47, %cst_37 [1] : vector<16x16xf32> to vector<16xf32>
    %49 = vector.shape_cast %48 : vector<16xf32> to vector<16x1xf32>
    %50 = vector.broadcast %49 : vector<16x1xf32> to vector<16x16xf32>
    %51 = arith.subf %47, %50 : vector<16x16xf32>
    %52 = math.exp %51 : vector<16x16xf32>
    %cst_38 = arith.constant dense<0.000000e+00> : vector<16xf32>
    %53 = vector.multi_reduction <add>, %52, %cst_38 [1] : vector<16x16xf32> to vector<16xf32>
    %54 = vector.shape_cast %53 : vector<16xf32> to vector<16x1xf32>
    %55 = tpu.reciprocal %54 {approx = true} : vector<16x1xf32> -> vector<16x1xf32>
    %56 = vector.broadcast %55 : vector<16x1xf32> to vector<16x16xf32>
    %57 = arith.mulf %52, %56 : vector<16x16xf32>
    %58 = vector.extract_strided_slice %42 {offsets = [0, 0], sizes = [16, 8], strides = [1, 1]} : vector<16x32xf32> to vector<16x8xf32>
    %cst_39 = arith.constant dense<0.000000e+00> : vector<16x8xf32>
    %59 = tpu.matmul %57, %58, %cst_39 {dimension_numbers = #tpu.dot_dimension_numbers<[1], [0], [0], [1], [0, 0, 1, 1], [], []>} : vector<16x16xf32>, vector<16x8xf32>, vector<16x8xf32> -> vector<16x8xf32>
    %60 = vector.extract_strided_slice %8 {offsets = [0, 0], sizes = [8, 32], strides = [1, 1]} : vector<32x32xf32> to vector<8x32xf32>
    %cst_40 = arith.constant dense<0.000000e+00> : vector<16x32xf32>
    %61 = tpu.matmul %59, %60, %cst_40 {dimension_numbers = #tpu.dot_dimension_numbers<[1], [0], [0], [1], [0, 0, 1, 1], [], []>} : vector<16x8xf32>, vector<8x32xf32>, vector<16x32xf32> -> vector<16x32xf32>
    %62 = vector.extract_strided_slice %40 {offsets = [0, 8], sizes = [16, 8], strides = [1, 1]} : vector<16x32xf32> to vector<16x8xf32>
    %63 = vector.extract_strided_slice %41 {offsets = [0, 8], sizes = [16, 8], strides = [1, 1]} : vector<16x32xf32> to vector<16x8xf32>
    %64 = tpu.transpose %63, [1, 0] : vector<16x8xf32> -> vector<8x16xf32>
    %cst_41 = arith.constant dense<0.000000e+00> : vector<16x16xf32>
    %65 = tpu.matmul %62, %64, %cst_41 {dimension_numbers = #tpu.dot_dimension_numbers<[1], [0], [0], [1], [0, 0, 1, 1], [], []>} : vector<16x8xf32>, vector<8x16xf32>, vector<16x16xf32> -> vector<16x16xf32>
    %66 = arith.addf %65, %0 : vector<16x16xf32>
    %cst_42 = arith.constant dense<0xFF800000> : vector<16xf32>
    %67 = vector.multi_reduction <maximumf>, %66, %cst_42 [1] : vector<16x16xf32> to vector<16xf32>
    %68 = vector.shape_cast %67 : vector<16xf32> to vector<16x1xf32>
    %69 = vector.broadcast %68 : vector<16x1xf32> to vector<16x16xf32>
    %70 = arith.subf %66, %69 : vector<16x16xf32>
    %71 = math.exp %70 : vector<16x16xf32>
    %cst_43 = arith.constant dense<0.000000e+00> : vector<16xf32>
    %72 = vector.multi_reduction <add>, %71, %cst_43 [1] : vector<16x16xf32> to vector<16xf32>
    %73 = vector.shape_cast %72 : vector<16xf32> to vector<16x1xf32>
    %74 = tpu.reciprocal %73 {approx = true} : vector<16x1xf32> -> vector<16x1xf32>
    %75 = vector.broadcast %74 : vector<16x1xf32> to vector<16x16xf32>
    %76 = arith.mulf %71, %75 : vector<16x16xf32>
    %77 = vector.extract_strided_slice %42 {offsets = [0, 8], sizes = [16, 8], strides = [1, 1]} : vector<16x32xf32> to vector<16x8xf32>
    %cst_44 = arith.constant dense<0.000000e+00> : vector<16x8xf32>
    %78 = tpu.matmul %76, %77, %cst_44 {dimension_numbers = #tpu.dot_dimension_numbers<[1], [0], [0], [1], [0, 0, 1, 1], [], []>} : vector<16x16xf32>, vector<16x8xf32>, vector<16x8xf32> -> vector<16x8xf32>
    %79 = vector.extract_strided_slice %8 {offsets = [8, 0], sizes = [8, 32], strides = [1, 1]} : vector<32x32xf32> to vector<8x32xf32>
    %cst_45 = arith.constant dense<0.000000e+00> : vector<16x32xf32>
    %80 = tpu.matmul %78, %79, %cst_45 {dimension_numbers = #tpu.dot_dimension_numbers<[1], [0], [0], [1], [0, 0, 1, 1], [], []>} : vector<16x8xf32>, vector<8x32xf32>, vector<16x32xf32> -> vector<16x32xf32>
    %81 = arith.addf %61, %80 : vector<16x32xf32>
    %82 = vector.extract_strided_slice %40 {offsets = [0, 16], sizes = [16, 8], strides = [1, 1]} : vector<16x32xf32> to vector<16x8xf32>
    %83 = vector.extract_strided_slice %41 {offsets = [0, 16], sizes = [16, 8], strides = [1, 1]} : vector<16x32xf32> to vector<16x8xf32>
    %84 = tpu.transpose %83, [1, 0] : vector<16x8xf32> -> vector<8x16xf32>
    %cst_46 = arith.constant dense<0.000000e+00> : vector<16x16xf32>
    %85 = tpu.matmul %82, %84, %cst_46 {dimension_numbers = #tpu.dot_dimension_numbers<[1], [0], [0], [1], [0, 0, 1, 1], [], []>} : vector<16x8xf32>, vector<8x16xf32>, vector<16x16xf32> -> vector<16x16xf32>
    %86 = arith.addf %85, %0 : vector<16x16xf32>
    %cst_47 = arith.constant dense<0xFF800000> : vector<16xf32>
    %87 = vector.multi_reduction <maximumf>, %86, %cst_47 [1] : vector<16x16xf32> to vector<16xf32>
    %88 = vector.shape_cast %87 : vector<16xf32> to vector<16x1xf32>
    %89 = vector.broadcast %88 : vector<16x1xf32> to vector<16x16xf32>
    %90 = arith.subf %86, %89 : vector<16x16xf32>
    %91 = math.exp %90 : vector<16x16xf32>
    %cst_48 = arith.constant dense<0.000000e+00> : vector<16xf32>
    %92 = vector.multi_reduction <add>, %91, %cst_48 [1] : vector<16x16xf32> to vector<16xf32>
    %93 = vector.shape_cast %92 : vector<16xf32> to vector<16x1xf32>
    %94 = tpu.reciprocal %93 {approx = true} : vector<16x1xf32> -> vector<16x1xf32>
    %95 = vector.broadcast %94 : vector<16x1xf32> to vector<16x16xf32>
    %96 = arith.mulf %91, %95 : vector<16x16xf32>
    %97 = vector.extract_strided_slice %42 {offsets = [0, 16], sizes = [16, 8], strides = [1, 1]} : vector<16x32xf32> to vector<16x8xf32>
    %cst_49 = arith.constant dense<0.000000e+00> : vector<16x8xf32>
    %98 = tpu.matmul %96, %97, %cst_49 {dimension_numbers = #tpu.dot_dimension_numbers<[1], [0], [0], [1], [0, 0, 1, 1], [], []>} : vector<16x16xf32>, vector<16x8xf32>, vector<16x8xf32> -> vector<16x8xf32>
    %99 = vector.extract_strided_slice %8 {offsets = [16, 0], sizes = [8, 32], strides = [1, 1]} : vector<32x32xf32> to vector<8x32xf32>
    %cst_50 = arith.constant dense<0.000000e+00> : vector<16x32xf32>
    %100 = tpu.matmul %98, %99, %cst_50 {dimension_numbers = #tpu.dot_dimension_numbers<[1], [0], [0], [1], [0, 0, 1, 1], [], []>} : vector<16x8xf32>, vector<8x32xf32>, vector<16x32xf32> -> vector<16x32xf32>
    %101 = arith.addf %81, %100 : vector<16x32xf32>
    %102 = vector.extract_strided_slice %40 {offsets = [0, 24], sizes = [16, 8], strides = [1, 1]} : vector<16x32xf32> to vector<16x8xf32>
    %103 = vector.extract_strided_slice %41 {offsets = [0, 24], sizes = [16, 8], strides = [1, 1]} : vector<16x32xf32> to vector<16x8xf32>
    %104 = tpu.transpose %103, [1, 0] : vector<16x8xf32> -> vector<8x16xf32>
    %cst_51 = arith.constant dense<0.000000e+00> : vector<16x16xf32>
    %105 = tpu.matmul %102, %104, %cst_51 {dimension_numbers = #tpu.dot_dimension_numbers<[1], [0], [0], [1], [0, 0, 1, 1], [], []>} : vector<16x8xf32>, vector<8x16xf32>, vector<16x16xf32> -> vector<16x16xf32>
    %106 = arith.addf %105, %0 : vector<16x16xf32>
    %cst_52 = arith.constant dense<0xFF800000> : vector<16xf32>
    %107 = vector.multi_reduction <maximumf>, %106, %cst_52 [1] : vector<16x16xf32> to vector<16xf32>
    %108 = vector.shape_cast %107 : vector<16xf32> to vector<16x1xf32>
    %109 = vector.broadcast %108 : vector<16x1xf32> to vector<16x16xf32>
    %110 = arith.subf %106, %109 : vector<16x16xf32>
    %111 = math.exp %110 : vector<16x16xf32>
    %cst_53 = arith.constant dense<0.000000e+00> : vector<16xf32>
    %112 = vector.multi_reduction <add>, %111, %cst_53 [1] : vector<16x16xf32> to vector<16xf32>
    %113 = vector.shape_cast %112 : vector<16xf32> to vector<16x1xf32>
    %114 = tpu.reciprocal %113 {approx = true} : vector<16x1xf32> -> vector<16x1xf32>
    %115 = vector.broadcast %114 : vector<16x1xf32> to vector<16x16xf32>
    %116 = arith.mulf %111, %115 : vector<16x16xf32>
    %117 = vector.extract_strided_slice %42 {offsets = [0, 24], sizes = [16, 8], strides = [1, 1]} : vector<16x32xf32> to vector<16x8xf32>
    %cst_54 = arith.constant dense<0.000000e+00> : vector<16x8xf32>
    %118 = tpu.matmul %116, %117, %cst_54 {dimension_numbers = #tpu.dot_dimension_numbers<[1], [0], [0], [1], [0, 0, 1, 1], [], []>} : vector<16x16xf32>, vector<16x8xf32>, vector<16x8xf32> -> vector<16x8xf32>
    %119 = vector.extract_strided_slice %8 {offsets = [24, 0], sizes = [8, 32], strides = [1, 1]} : vector<32x32xf32> to vector<8x32xf32>
    %cst_55 = arith.constant dense<0.000000e+00> : vector<16x32xf32>
    %120 = tpu.matmul %118, %119, %cst_55 {dimension_numbers = #tpu.dot_dimension_numbers<[1], [0], [0], [1], [0, 0, 1, 1], [], []>} : vector<16x8xf32>, vector<8x32xf32>, vector<16x32xf32> -> vector<16x32xf32>
    %121 = arith.addf %101, %120 : vector<16x32xf32>
    %122 = vector.broadcast %9 : vector<1x32xf32> to vector<16x32xf32>
    %123 = arith.addf %121, %122 : vector<16x32xf32>
    %124 = arith.addf %3, %123 : vector<16x32xf32>
    %cst_56 = arith.constant dense<0.000000e+00> : vector<16xf32>
    %125 = vector.multi_reduction <add>, %124, %cst_56 [1] : vector<16x32xf32> to vector<16xf32>
    %126 = vector.shape_cast %125 : vector<16xf32> to vector<16x1xf32>
    %cst_57 = arith.constant 3.200000e+01 : f32
    %127 = vector.broadcast %cst_57 : f32 to vector<16x1xf32>
    %128 = arith.divf %126, %127 : vector<16x1xf32>
    %129 = vector.broadcast %128 : vector<16x1xf32> to vector<16x32xf32>
    %130 = arith.subf %124, %129 : vector<16x32xf32>
    %131 = arith.mulf %130, %130 : vector<16x32xf32>
    %cst_58 = arith.constant dense<0.000000e+00> : vector<16xf32>
    %132 = vector.multi_reduction <add>, %131, %cst_58 [1] : vector<16x32xf32> to vector<16xf32>
    %133 = vector.shape_cast %132 : vector<16xf32> to vector<16x1xf32>
    %cst_59 = arith.constant 0.0322580636 : f32
    %134 = vector.broadcast %cst_59 : f32 to vector<16x1xf32>
    %135 = arith.mulf %133, %134 : vector<16x1xf32>
    %136 = math.sqrt %135 : vector<16x1xf32>
    %cst_60 = arith.constant 9.99999997E-7 : f32
    %137 = vector.broadcast %cst_60 : f32 to vector<16x1xf32>
    %138 = arith.addf %136, %137 : vector<16x1xf32>
    %139 = tpu.reciprocal %138 {approx = true} : vector<16x1xf32> -> vector<16x1xf32>
    %140 = vector.broadcast %10 : vector<1x32xf32> to vector<16x32xf32>
    %141 = arith.mulf %140, %130 : vector<16x32xf32>
    %142 = vector.broadcast %139 : vector<16x1xf32> to vector<16x32xf32>
    %143 = arith.mulf %141, %142 : vector<16x32xf32>
    %144 = vector.broadcast %11 : vector<1x32xf32> to vector<16x32xf32>
    %145 = arith.addf %143, %144 : vector<16x32xf32>
    %cst_61 = arith.constant dense<0.000000e+00> : vector<16x64xf32>
    %146 = tpu.matmul %145, %12, %cst_61 {dimension_numbers = #tpu.dot_dimension_numbers<[1], [0], [0], [1], [0, 0, 1, 1], [], []>} : vector<16x32xf32>, vector<32x64xf32>, vector<16x64xf32> -> vector<16x64xf32>
    %147 = vector.broadcast %13 : vector<1x64xf32> to vector<16x64xf32>
    %148 = arith.addf %146, %147 : vector<16x64xf32>
    %cst_62 = arith.constant 0.000000e+00 : f32
    %149 = vector.broadcast %cst_62 : f32 to vector<16x64xf32>
    %150 = arith.maximumf %148, %149 : vector<16x64xf32>
    %cst_63 = arith.constant dense<0.000000e+00> : vector<16x32xf32>
    %151 = tpu.matmul %150, %14, %cst_63 {dimension_numbers = #tpu.dot_dimension_numbers<[1], [0], [0], [1], [0, 0, 1, 1], [], []>} : vector<16x64xf32>, vector<64x32xf32>, vector<16x32xf32> -> vector<16x32xf32>
    %152 = vector.broadcast %15 : vector<1x32xf32> to vector<16x32xf32>
    %153 = arith.addf %151, %152 : vector<16x32xf32>
    %154 = arith.addf %124, %153 : vector<16x32xf32>
    %c0_64 = arith.constant 0 : index
    %c0_65 = arith.constant 0 : index
    %155 = vector.load %arg17[%c0_64, %c0_65] : memref<1x32xf32, #tpu.memory_space<vmem>>, vector<1x32xf32>
    %c0_66 = arith.constant 0 : index
    %c0_67 = arith.constant 0 : index
    %156 = vector.load %arg18[%c0_66, %c0_67] : memref<1x32xf32, #tpu.memory_space<vmem>>, vector<1x32xf32>
    %c0_68 = arith.constant 0 : index
    %c0_69 = arith.constant 0 : index
    %157 = vector.load %arg19[%c0_68, %c0_69] : memref<32x96xf32, #tpu.memory_space<vmem>>, vector<32x96xf32>
    %c0_70 = arith.constant 0 : index
    %c0_71 = arith.constant 0 : index
    %158 = vector.load %arg20[%c0_70, %c0_71] : memref<1x96xf32, #tpu.memory_space<vmem>>, vector<1x96xf32>
    %c0_72 = arith.constant 0 : index
    %c0_73 = arith.constant 0 : index
    %159 = vector.load %arg21[%c0_72, %c0_73] : memref<32x32xf32, #tpu.memory_space<vmem>>, vector<32x32xf32>
    %c0_74 = arith.constant 0 : index
    %c0_75 = arith.constant 0 : index
    %160 = vector.load %arg22[%c0_74, %c0_75] : memref<1x32xf32, #tpu.memory_space<vmem>>, vector<1x32xf32>
    %c0_76 = arith.constant 0 : index
    %c0_77 = arith.constant 0 : index
    %161 = vector.load %arg23[%c0_76, %c0_77] : memref<1x32xf32, #tpu.memory_space<vmem>>, vector<1x32xf32>
    %c0_78 = arith.constant 0 : index
    %c0_79 = arith.constant 0 : index
    %162 = vector.load %arg24[%c0_78, %c0_79] : memref<1x32xf32, #tpu.memory_space<vmem>>, vector<1x32xf32>
    %c0_80 = arith.constant 0 : index
    %c0_81 = arith.constant 0 : index
    %163 = vector.load %arg25[%c0_80, %c0_81] : memref<32x64xf32, #tpu.memory_space<vmem>>, vector<32x64xf32>
    %c0_82 = arith.constant 0 : index
    %c0_83 = arith.constant 0 : index
    %164 = vector.load %arg26[%c0_82, %c0_83] : memref<1x64xf32, #tpu.memory_space<vmem>>, vector<1x64xf32>
    %c0_84 = arith.constant 0 : index
    %c0_85 = arith.constant 0 : index
    %165 = vector.load %arg27[%c0_84, %c0_85] : memref<64x32xf32, #tpu.memory_space<vmem>>, vector<64x32xf32>
    %c0_86 = arith.constant 0 : index
    %c0_87 = arith.constant 0 : index
    %166 = vector.load %arg28[%c0_86, %c0_87] : memref<1x32xf32, #tpu.memory_space<vmem>>, vector<1x32xf32>
    %cst_88 = arith.constant dense<0.000000e+00> : vector<16xf32>
    %167 = vector.multi_reduction <add>, %154, %cst_88 [1] : vector<16x32xf32> to vector<16xf32>
    %168 = vector.shape_cast %167 : vector<16xf32> to vector<16x1xf32>
    %cst_89 = arith.constant 3.200000e+01 : f32
    %169 = vector.broadcast %cst_89 : f32 to vector<16x1xf32>
    %170 = arith.divf %168, %169 : vector<16x1xf32>
    %171 = vector.broadcast %170 : vector<16x1xf32> to vector<16x32xf32>
    %172 = arith.subf %154, %171 : vector<16x32xf32>
    %173 = arith.mulf %172, %172 : vector<16x32xf32>
    %cst_90 = arith.constant dense<0.000000e+00> : vector<16xf32>
    %174 = vector.multi_reduction <add>, %173, %cst_90 [1] : vector<16x32xf32> to vector<16xf32>
    %175 = vector.shape_cast %174 : vector<16xf32> to vector<16x1xf32>
    %cst_91 = arith.constant 0.0322580636 : f32
    %176 = vector.broadcast %cst_91 : f32 to vector<16x1xf32>
    %177 = arith.mulf %175, %176 : vector<16x1xf32>
    %178 = math.sqrt %177 : vector<16x1xf32>
    %cst_92 = arith.constant 9.99999997E-7 : f32
    %179 = vector.broadcast %cst_92 : f32 to vector<16x1xf32>
    %180 = arith.addf %178, %179 : vector<16x1xf32>
    %181 = tpu.reciprocal %180 {approx = true} : vector<16x1xf32> -> vector<16x1xf32>
    %182 = vector.broadcast %155 : vector<1x32xf32> to vector<16x32xf32>
    %183 = arith.mulf %182, %172 : vector<16x32xf32>
    %184 = vector.broadcast %181 : vector<16x1xf32> to vector<16x32xf32>
    %185 = arith.mulf %183, %184 : vector<16x32xf32>
    %186 = vector.broadcast %156 : vector<1x32xf32> to vector<16x32xf32>
    %187 = arith.addf %185, %186 : vector<16x32xf32>
    %cst_93 = arith.constant dense<0.000000e+00> : vector<16x96xf32>
    %188 = tpu.matmul %187, %157, %cst_93 {dimension_numbers = #tpu.dot_dimension_numbers<[1], [0], [0], [1], [0, 0, 1, 1], [], []>} : vector<16x32xf32>, vector<32x96xf32>, vector<16x96xf32> -> vector<16x96xf32>
    %189 = vector.broadcast %158 : vector<1x96xf32> to vector<16x96xf32>
    %190 = arith.addf %188, %189 : vector<16x96xf32>
    %191 = vector.extract_strided_slice %190 {offsets = [0, 0], sizes = [16, 32], strides = [1, 1]} : vector<16x96xf32> to vector<16x32xf32>
    %192 = vector.extract_strided_slice %190 {offsets = [0, 32], sizes = [16, 32], strides = [1, 1]} : vector<16x96xf32> to vector<16x32xf32>
    %193 = vector.extract_strided_slice %190 {offsets = [0, 64], sizes = [16, 32], strides = [1, 1]} : vector<16x96xf32> to vector<16x32xf32>
    %194 = vector.extract_strided_slice %191 {offsets = [0, 0], sizes = [16, 8], strides = [1, 1]} : vector<16x32xf32> to vector<16x8xf32>
    %195 = vector.extract_strided_slice %192 {offsets = [0, 0], sizes = [16, 8], strides = [1, 1]} : vector<16x32xf32> to vector<16x8xf32>
    %196 = tpu.transpose %195, [1, 0] : vector<16x8xf32> -> vector<8x16xf32>
    %cst_94 = arith.constant dense<0.000000e+00> : vector<16x16xf32>
    %197 = tpu.matmul %194, %196, %cst_94 {dimension_numbers = #tpu.dot_dimension_numbers<[1], [0], [0], [1], [0, 0, 1, 1], [], []>} : vector<16x8xf32>, vector<8x16xf32>, vector<16x16xf32> -> vector<16x16xf32>
    %198 = arith.addf %197, %0 : vector<16x16xf32>
    %cst_95 = arith.constant dense<0xFF800000> : vector<16xf32>
    %199 = vector.multi_reduction <maximumf>, %198, %cst_95 [1] : vector<16x16xf32> to vector<16xf32>
    %200 = vector.shape_cast %199 : vector<16xf32> to vector<16x1xf32>
    %201 = vector.broadcast %200 : vector<16x1xf32> to vector<16x16xf32>
    %202 = arith.subf %198, %201 : vector<16x16xf32>
    %203 = math.exp %202 : vector<16x16xf32>
    %cst_96 = arith.constant dense<0.000000e+00> : vector<16xf32>
    %204 = vector.multi_reduction <add>, %203, %cst_96 [1] : vector<16x16xf32> to vector<16xf32>
    %205 = vector.shape_cast %204 : vector<16xf32> to vector<16x1xf32>
    %206 = tpu.reciprocal %205 {approx = true} : vector<16x1xf32> -> vector<16x1xf32>
    %207 = vector.broadcast %206 : vector<16x1xf32> to vector<16x16xf32>
    %208 = arith.mulf %203, %207 : vector<16x16xf32>
    %209 = vector.extract_strided_slice %193 {offsets = [0, 0], sizes = [16, 8], strides = [1, 1]} : vector<16x32xf32> to vector<16x8xf32>
    %cst_97 = arith.constant dense<0.000000e+00> : vector<16x8xf32>
    %210 = tpu.matmul %208, %209, %cst_97 {dimension_numbers = #tpu.dot_dimension_numbers<[1], [0], [0], [1], [0, 0, 1, 1], [], []>} : vector<16x16xf32>, vector<16x8xf32>, vector<16x8xf32> -> vector<16x8xf32>
    %211 = vector.extract_strided_slice %159 {offsets = [0, 0], sizes = [8, 32], strides = [1, 1]} : vector<32x32xf32> to vector<8x32xf32>
    %cst_98 = arith.constant dense<0.000000e+00> : vector<16x32xf32>
    %212 = tpu.matmul %210, %211, %cst_98 {dimension_numbers = #tpu.dot_dimension_numbers<[1], [0], [0], [1], [0, 0, 1, 1], [], []>} : vector<16x8xf32>, vector<8x32xf32>, vector<16x32xf32> -> vector<16x32xf32>
    %213 = vector.extract_strided_slice %191 {offsets = [0, 8], sizes = [16, 8], strides = [1, 1]} : vector<16x32xf32> to vector<16x8xf32>
    %214 = vector.extract_strided_slice %192 {offsets = [0, 8], sizes = [16, 8], strides = [1, 1]} : vector<16x32xf32> to vector<16x8xf32>
    %215 = tpu.transpose %214, [1, 0] : vector<16x8xf32> -> vector<8x16xf32>
    %cst_99 = arith.constant dense<0.000000e+00> : vector<16x16xf32>
    %216 = tpu.matmul %213, %215, %cst_99 {dimension_numbers = #tpu.dot_dimension_numbers<[1], [0], [0], [1], [0, 0, 1, 1], [], []>} : vector<16x8xf32>, vector<8x16xf32>, vector<16x16xf32> -> vector<16x16xf32>
    %217 = arith.addf %216, %0 : vector<16x16xf32>
    %cst_100 = arith.constant dense<0xFF800000> : vector<16xf32>
    %218 = vector.multi_reduction <maximumf>, %217, %cst_100 [1] : vector<16x16xf32> to vector<16xf32>
    %219 = vector.shape_cast %218 : vector<16xf32> to vector<16x1xf32>
    %220 = vector.broadcast %219 : vector<16x1xf32> to vector<16x16xf32>
    %221 = arith.subf %217, %220 : vector<16x16xf32>
    %222 = math.exp %221 : vector<16x16xf32>
    %cst_101 = arith.constant dense<0.000000e+00> : vector<16xf32>
    %223 = vector.multi_reduction <add>, %222, %cst_101 [1] : vector<16x16xf32> to vector<16xf32>
    %224 = vector.shape_cast %223 : vector<16xf32> to vector<16x1xf32>
    %225 = tpu.reciprocal %224 {approx = true} : vector<16x1xf32> -> vector<16x1xf32>
    %226 = vector.broadcast %225 : vector<16x1xf32> to vector<16x16xf32>
    %227 = arith.mulf %222, %226 : vector<16x16xf32>
    %228 = vector.extract_strided_slice %193 {offsets = [0, 8], sizes = [16, 8], strides = [1, 1]} : vector<16x32xf32> to vector<16x8xf32>
    %cst_102 = arith.constant dense<0.000000e+00> : vector<16x8xf32>
    %229 = tpu.matmul %227, %228, %cst_102 {dimension_numbers = #tpu.dot_dimension_numbers<[1], [0], [0], [1], [0, 0, 1, 1], [], []>} : vector<16x16xf32>, vector<16x8xf32>, vector<16x8xf32> -> vector<16x8xf32>
    %230 = vector.extract_strided_slice %159 {offsets = [8, 0], sizes = [8, 32], strides = [1, 1]} : vector<32x32xf32> to vector<8x32xf32>
    %cst_103 = arith.constant dense<0.000000e+00> : vector<16x32xf32>
    %231 = tpu.matmul %229, %230, %cst_103 {dimension_numbers = #tpu.dot_dimension_numbers<[1], [0], [0], [1], [0, 0, 1, 1], [], []>} : vector<16x8xf32>, vector<8x32xf32>, vector<16x32xf32> -> vector<16x32xf32>
    %232 = arith.addf %212, %231 : vector<16x32xf32>
    %233 = vector.extract_strided_slice %191 {offsets = [0, 16], sizes = [16, 8], strides = [1, 1]} : vector<16x32xf32> to vector<16x8xf32>
    %234 = vector.extract_strided_slice %192 {offsets = [0, 16], sizes = [16, 8], strides = [1, 1]} : vector<16x32xf32> to vector<16x8xf32>
    %235 = tpu.transpose %234, [1, 0] : vector<16x8xf32> -> vector<8x16xf32>
    %cst_104 = arith.constant dense<0.000000e+00> : vector<16x16xf32>
    %236 = tpu.matmul %233, %235, %cst_104 {dimension_numbers = #tpu.dot_dimension_numbers<[1], [0], [0], [1], [0, 0, 1, 1], [], []>} : vector<16x8xf32>, vector<8x16xf32>, vector<16x16xf32> -> vector<16x16xf32>
    %237 = arith.addf %236, %0 : vector<16x16xf32>
    %cst_105 = arith.constant dense<0xFF800000> : vector<16xf32>
    %238 = vector.multi_reduction <maximumf>, %237, %cst_105 [1] : vector<16x16xf32> to vector<16xf32>
    %239 = vector.shape_cast %238 : vector<16xf32> to vector<16x1xf32>
    %240 = vector.broadcast %239 : vector<16x1xf32> to vector<16x16xf32>
    %241 = arith.subf %237, %240 : vector<16x16xf32>
    %242 = math.exp %241 : vector<16x16xf32>
    %cst_106 = arith.constant dense<0.000000e+00> : vector<16xf32>
    %243 = vector.multi_reduction <add>, %242, %cst_106 [1] : vector<16x16xf32> to vector<16xf32>
    %244 = vector.shape_cast %243 : vector<16xf32> to vector<16x1xf32>
    %245 = tpu.reciprocal %244 {approx = true} : vector<16x1xf32> -> vector<16x1xf32>
    %246 = vector.broadcast %245 : vector<16x1xf32> to vector<16x16xf32>
    %247 = arith.mulf %242, %246 : vector<16x16xf32>
    %248 = vector.extract_strided_slice %193 {offsets = [0, 16], sizes = [16, 8], strides = [1, 1]} : vector<16x32xf32> to vector<16x8xf32>
    %cst_107 = arith.constant dense<0.000000e+00> : vector<16x8xf32>
    %249 = tpu.matmul %247, %248, %cst_107 {dimension_numbers = #tpu.dot_dimension_numbers<[1], [0], [0], [1], [0, 0, 1, 1], [], []>} : vector<16x16xf32>, vector<16x8xf32>, vector<16x8xf32> -> vector<16x8xf32>
    %250 = vector.extract_strided_slice %159 {offsets = [16, 0], sizes = [8, 32], strides = [1, 1]} : vector<32x32xf32> to vector<8x32xf32>
    %cst_108 = arith.constant dense<0.000000e+00> : vector<16x32xf32>
    %251 = tpu.matmul %249, %250, %cst_108 {dimension_numbers = #tpu.dot_dimension_numbers<[1], [0], [0], [1], [0, 0, 1, 1], [], []>} : vector<16x8xf32>, vector<8x32xf32>, vector<16x32xf32> -> vector<16x32xf32>
    %252 = arith.addf %232, %251 : vector<16x32xf32>
    %253 = vector.extract_strided_slice %191 {offsets = [0, 24], sizes = [16, 8], strides = [1, 1]} : vector<16x32xf32> to vector<16x8xf32>
    %254 = vector.extract_strided_slice %192 {offsets = [0, 24], sizes = [16, 8], strides = [1, 1]} : vector<16x32xf32> to vector<16x8xf32>
    %255 = tpu.transpose %254, [1, 0] : vector<16x8xf32> -> vector<8x16xf32>
    %cst_109 = arith.constant dense<0.000000e+00> : vector<16x16xf32>
    %256 = tpu.matmul %253, %255, %cst_109 {dimension_numbers = #tpu.dot_dimension_numbers<[1], [0], [0], [1], [0, 0, 1, 1], [], []>} : vector<16x8xf32>, vector<8x16xf32>, vector<16x16xf32> -> vector<16x16xf32>
    %257 = arith.addf %256, %0 : vector<16x16xf32>
    %cst_110 = arith.constant dense<0xFF800000> : vector<16xf32>
    %258 = vector.multi_reduction <maximumf>, %257, %cst_110 [1] : vector<16x16xf32> to vector<16xf32>
    %259 = vector.shape_cast %258 : vector<16xf32> to vector<16x1xf32>
    %260 = vector.broadcast %259 : vector<16x1xf32> to vector<16x16xf32>
    %261 = arith.subf %257, %260 : vector<16x16xf32>
    %262 = math.exp %261 : vector<16x16xf32>
    %cst_111 = arith.constant dense<0.000000e+00> : vector<16xf32>
    %263 = vector.multi_reduction <add>, %262, %cst_111 [1] : vector<16x16xf32> to vector<16xf32>
    %264 = vector.shape_cast %263 : vector<16xf32> to vector<16x1xf32>
    %265 = tpu.reciprocal %264 {approx = true} : vector<16x1xf32> -> vector<16x1xf32>
    %266 = vector.broadcast %265 : vector<16x1xf32> to vector<16x16xf32>
    %267 = arith.mulf %262, %266 : vector<16x16xf32>
    %268 = vector.extract_strided_slice %193 {offsets = [0, 24], sizes = [16, 8], strides = [1, 1]} : vector<16x32xf32> to vector<16x8xf32>
    %cst_112 = arith.constant dense<0.000000e+00> : vector<16x8xf32>
    %269 = tpu.matmul %267, %268, %cst_112 {dimension_numbers = #tpu.dot_dimension_numbers<[1], [0], [0], [1], [0, 0, 1, 1], [], []>} : vector<16x16xf32>, vector<16x8xf32>, vector<16x8xf32> -> vector<16x8xf32>
    %270 = vector.extract_strided_slice %159 {offsets = [24, 0], sizes = [8, 32], strides = [1, 1]} : vector<32x32xf32> to vector<8x32xf32>
    %cst_113 = arith.constant dense<0.000000e+00> : vector<16x32xf32>
    %271 = tpu.matmul %269, %270, %cst_113 {dimension_numbers = #tpu.dot_dimension_numbers<[1], [0], [0], [1], [0, 0, 1, 1], [], []>} : vector<16x8xf32>, vector<8x32xf32>, vector<16x32xf32> -> vector<16x32xf32>
    %272 = arith.addf %252, %271 : vector<16x32xf32>
    %273 = vector.broadcast %160 : vector<1x32xf32> to vector<16x32xf32>
    %274 = arith.addf %272, %273 : vector<16x32xf32>
    %275 = arith.addf %154, %274 : vector<16x32xf32>
    %cst_114 = arith.constant dense<0.000000e+00> : vector<16xf32>
    %276 = vector.multi_reduction <add>, %275, %cst_114 [1] : vector<16x32xf32> to vector<16xf32>
    %277 = vector.shape_cast %276 : vector<16xf32> to vector<16x1xf32>
    %cst_115 = arith.constant 3.200000e+01 : f32
    %278 = vector.broadcast %cst_115 : f32 to vector<16x1xf32>
    %279 = arith.divf %277, %278 : vector<16x1xf32>
    %280 = vector.broadcast %279 : vector<16x1xf32> to vector<16x32xf32>
    %281 = arith.subf %275, %280 : vector<16x32xf32>
    %282 = arith.mulf %281, %281 : vector<16x32xf32>
    %cst_116 = arith.constant dense<0.000000e+00> : vector<16xf32>
    %283 = vector.multi_reduction <add>, %282, %cst_116 [1] : vector<16x32xf32> to vector<16xf32>
    %284 = vector.shape_cast %283 : vector<16xf32> to vector<16x1xf32>
    %cst_117 = arith.constant 0.0322580636 : f32
    %285 = vector.broadcast %cst_117 : f32 to vector<16x1xf32>
    %286 = arith.mulf %284, %285 : vector<16x1xf32>
    %287 = math.sqrt %286 : vector<16x1xf32>
    %cst_118 = arith.constant 9.99999997E-7 : f32
    %288 = vector.broadcast %cst_118 : f32 to vector<16x1xf32>
    %289 = arith.addf %287, %288 : vector<16x1xf32>
    %290 = tpu.reciprocal %289 {approx = true} : vector<16x1xf32> -> vector<16x1xf32>
    %291 = vector.broadcast %161 : vector<1x32xf32> to vector<16x32xf32>
    %292 = arith.mulf %291, %281 : vector<16x32xf32>
    %293 = vector.broadcast %290 : vector<16x1xf32> to vector<16x32xf32>
    %294 = arith.mulf %292, %293 : vector<16x32xf32>
    %295 = vector.broadcast %162 : vector<1x32xf32> to vector<16x32xf32>
    %296 = arith.addf %294, %295 : vector<16x32xf32>
    %cst_119 = arith.constant dense<0.000000e+00> : vector<16x64xf32>
    %297 = tpu.matmul %296, %163, %cst_119 {dimension_numbers = #tpu.dot_dimension_numbers<[1], [0], [0], [1], [0, 0, 1, 1], [], []>} : vector<16x32xf32>, vector<32x64xf32>, vector<16x64xf32> -> vector<16x64xf32>
    %298 = vector.broadcast %164 : vector<1x64xf32> to vector<16x64xf32>
    %299 = arith.addf %297, %298 : vector<16x64xf32>
    %cst_120 = arith.constant 0.000000e+00 : f32
    %300 = vector.broadcast %cst_120 : f32 to vector<16x64xf32>
    %301 = arith.maximumf %299, %300 : vector<16x64xf32>
    %cst_121 = arith.constant dense<0.000000e+00> : vector<16x32xf32>
    %302 = tpu.matmul %301, %165, %cst_121 {dimension_numbers = #tpu.dot_dimension_numbers<[1], [0], [0], [1], [0, 0, 1, 1], [], []>} : vector<16x64xf32>, vector<64x32xf32>, vector<16x32xf32> -> vector<16x32xf32>
    %303 = vector.broadcast %166 : vector<1x32xf32> to vector<16x32xf32>
    %304 = arith.addf %302, %303 : vector<16x32xf32>
    %305 = arith.addf %275, %304 : vector<16x32xf32>
    %c0_122 = arith.constant 0 : index
    %c0_123 = arith.constant 0 : index
    %306 = vector.load %arg29[%c0_122, %c0_123] : memref<1x32xf32, #tpu.memory_space<vmem>>, vector<1x32xf32>
    %c0_124 = arith.constant 0 : index
    %c0_125 = arith.constant 0 : index
    %307 = vector.load %arg30[%c0_124, %c0_125] : memref<1x32xf32, #tpu.memory_space<vmem>>, vector<1x32xf32>
    %cst_126 = arith.constant dense<0.000000e+00> : vector<16xf32>
    %308 = vector.multi_reduction <add>, %305, %cst_126 [1] : vector<16x32xf32> to vector<16xf32>
    %309 = vector.shape_cast %308 : vector<16xf32> to vector<16x1xf32>
    %cst_127 = arith.constant 3.200000e+01 : f32
    %310 = vector.broadcast %cst_127 : f32 to vector<16x1xf32>
    %311 = arith.divf %309, %310 : vector<16x1xf32>
    %312 = vector.broadcast %311 : vector<16x1xf32> to vector<16x32xf32>
    %313 = arith.subf %305, %312 : vector<16x32xf32>
    %314 = arith.mulf %313, %313 : vector<16x32xf32>
    %cst_128 = arith.constant dense<0.000000e+00> : vector<16xf32>
    %315 = vector.multi_reduction <add>, %314, %cst_128 [1] : vector<16x32xf32> to vector<16xf32>
    %316 = vector.shape_cast %315 : vector<16xf32> to vector<16x1xf32>
    %cst_129 = arith.constant 0.0322580636 : f32
    %317 = vector.broadcast %cst_129 : f32 to vector<16x1xf32>
    %318 = arith.mulf %316, %317 : vector<16x1xf32>
    %319 = math.sqrt %318 : vector<16x1xf32>
    %cst_130 = arith.constant 9.99999997E-7 : f32
    %320 = vector.broadcast %cst_130 : f32 to vector<16x1xf32>
    %321 = arith.addf %319, %320 : vector<16x1xf32>
    %322 = tpu.reciprocal %321 {approx = true} : vector<16x1xf32> -> vector<16x1xf32>
    %323 = vector.broadcast %306 : vector<1x32xf32> to vector<16x32xf32>
    %324 = arith.mulf %323, %313 : vector<16x32xf32>
    %325 = vector.broadcast %322 : vector<16x1xf32> to vector<16x32xf32>
    %326 = arith.mulf %324, %325 : vector<16x32xf32>
    %327 = vector.broadcast %307 : vector<1x32xf32> to vector<16x32xf32>
    %328 = arith.addf %326, %327 : vector<16x32xf32>
    %c0_131 = arith.constant 0 : index
    %c0_132 = arith.constant 0 : index
    %329 = vector.load %arg1[%c0_131, %c0_132] : memref<16x32xf32, #tpu.memory_space<vmem>>, vector<16x32xf32>
    %c0_133 = arith.constant 0 : index
    %c0_134 = arith.constant 0 : index
    %330 = vector.load %arg31[%c0_133, %c0_134] : memref<1x32xf32, #tpu.memory_space<vmem>>, vector<1x32xf32>
    %c0_135 = arith.constant 0 : index
    %c0_136 = arith.constant 0 : index
    %331 = vector.load %arg32[%c0_135, %c0_136] : memref<1x32xf32, #tpu.memory_space<vmem>>, vector<1x32xf32>
    %c0_137 = arith.constant 0 : index
    %c0_138 = arith.constant 0 : index
    %332 = vector.load %arg33[%c0_137, %c0_138] : memref<32x96xf32, #tpu.memory_space<vmem>>, vector<32x96xf32>
    %c0_139 = arith.constant 0 : index
    %c0_140 = arith.constant 0 : index
    %333 = vector.load %arg34[%c0_139, %c0_140] : memref<1x96xf32, #tpu.memory_space<vmem>>, vector<1x96xf32>
    %c0_141 = arith.constant 0 : index
    %c0_142 = arith.constant 0 : index
    %334 = vector.load %arg35[%c0_141, %c0_142] : memref<32x32xf32, #tpu.memory_space<vmem>>, vector<32x32xf32>
    %c0_143 = arith.constant 0 : index
    %c0_144 = arith.constant 0 : index
    %335 = vector.load %arg36[%c0_143, %c0_144] : memref<1x32xf32, #tpu.memory_space<vmem>>, vector<1x32xf32>
    %c0_145 = arith.constant 0 : index
    %c0_146 = arith.constant 0 : index
    %336 = vector.load %arg37[%c0_145, %c0_146] : memref<1x32xf32, #tpu.memory_space<vmem>>, vector<1x32xf32>
    %c0_147 = arith.constant 0 : index
    %c0_148 = arith.constant 0 : index
    %337 = vector.load %arg38[%c0_147, %c0_148] : memref<1x32xf32, #tpu.memory_space<vmem>>, vector<1x32xf32>
    %c0_149 = arith.constant 0 : index
    %c0_150 = arith.constant 0 : index
    %338 = vector.load %arg39[%c0_149, %c0_150] : memref<32x32xf32, #tpu.memory_space<vmem>>, vector<32x32xf32>
    %c0_151 = arith.constant 0 : index
    %c0_152 = arith.constant 0 : index
    %339 = vector.load %arg40[%c0_151, %c0_152] : memref<1x32xf32, #tpu.memory_space<vmem>>, vector<1x32xf32>
    %c0_153 = arith.constant 0 : index
    %c0_154 = arith.constant 0 : index
    %340 = vector.load %arg41[%c0_153, %c0_154] : memref<32x64xf32, #tpu.memory_space<vmem>>, vector<32x64xf32>
    %c0_155 = arith.constant 0 : index
    %c0_156 = arith.constant 0 : index
    %341 = vector.load %arg42[%c0_155, %c0_156] : memref<1x64xf32, #tpu.memory_space<vmem>>, vector<1x64xf32>
    %c0_157 = arith.constant 0 : index
    %c0_158 = arith.constant 0 : index
    %342 = vector.load %arg43[%c0_157, %c0_158] : memref<32x32xf32, #tpu.memory_space<vmem>>, vector<32x32xf32>
    %c0_159 = arith.constant 0 : index
    %c0_160 = arith.constant 0 : index
    %343 = vector.load %arg44[%c0_159, %c0_160] : memref<1x32xf32, #tpu.memory_space<vmem>>, vector<1x32xf32>
    %c0_161 = arith.constant 0 : index
    %c0_162 = arith.constant 0 : index
    %344 = vector.load %arg45[%c0_161, %c0_162] : memref<1x32xf32, #tpu.memory_space<vmem>>, vector<1x32xf32>
    %c0_163 = arith.constant 0 : index
    %c0_164 = arith.constant 0 : index
    %345 = vector.load %arg46[%c0_163, %c0_164] : memref<1x32xf32, #tpu.memory_space<vmem>>, vector<1x32xf32>
    %c0_165 = arith.constant 0 : index
    %c0_166 = arith.constant 0 : index
    %346 = vector.load %arg47[%c0_165, %c0_166] : memref<32x64xf32, #tpu.memory_space<vmem>>, vector<32x64xf32>
    %c0_167 = arith.constant 0 : index
    %c0_168 = arith.constant 0 : index
    %347 = vector.load %arg48[%c0_167, %c0_168] : memref<1x64xf32, #tpu.memory_space<vmem>>, vector<1x64xf32>
    %c0_169 = arith.constant 0 : index
    %c0_170 = arith.constant 0 : index
    %348 = vector.load %arg49[%c0_169, %c0_170] : memref<64x32xf32, #tpu.memory_space<vmem>>, vector<64x32xf32>
    %c0_171 = arith.constant 0 : index
    %c0_172 = arith.constant 0 : index
    %349 = vector.load %arg50[%c0_171, %c0_172] : memref<1x32xf32, #tpu.memory_space<vmem>>, vector<1x32xf32>
    %cst_173 = arith.constant dense<0.000000e+00> : vector<16xf32>
    %350 = vector.multi_reduction <add>, %329, %cst_173 [1] : vector<16x32xf32> to vector<16xf32>
    %351 = vector.shape_cast %350 : vector<16xf32> to vector<16x1xf32>
    %cst_174 = arith.constant 3.200000e+01 : f32
    %352 = vector.broadcast %cst_174 : f32 to vector<16x1xf32>
    %353 = arith.divf %351, %352 : vector<16x1xf32>
    %354 = vector.broadcast %353 : vector<16x1xf32> to vector<16x32xf32>
    %355 = arith.subf %329, %354 : vector<16x32xf32>
    %356 = arith.mulf %355, %355 : vector<16x32xf32>
    %cst_175 = arith.constant dense<0.000000e+00> : vector<16xf32>
    %357 = vector.multi_reduction <add>, %356, %cst_175 [1] : vector<16x32xf32> to vector<16xf32>
    %358 = vector.shape_cast %357 : vector<16xf32> to vector<16x1xf32>
    %cst_176 = arith.constant 0.0322580636 : f32
    %359 = vector.broadcast %cst_176 : f32 to vector<16x1xf32>
    %360 = arith.mulf %358, %359 : vector<16x1xf32>
    %361 = math.sqrt %360 : vector<16x1xf32>
    %cst_177 = arith.constant 9.99999997E-7 : f32
    %362 = vector.broadcast %cst_177 : f32 to vector<16x1xf32>
    %363 = arith.addf %361, %362 : vector<16x1xf32>
    %364 = tpu.reciprocal %363 {approx = true} : vector<16x1xf32> -> vector<16x1xf32>
    %365 = vector.broadcast %330 : vector<1x32xf32> to vector<16x32xf32>
    %366 = arith.mulf %365, %355 : vector<16x32xf32>
    %367 = vector.broadcast %364 : vector<16x1xf32> to vector<16x32xf32>
    %368 = arith.mulf %366, %367 : vector<16x32xf32>
    %369 = vector.broadcast %331 : vector<1x32xf32> to vector<16x32xf32>
    %370 = arith.addf %368, %369 : vector<16x32xf32>
    %cst_178 = arith.constant dense<0.000000e+00> : vector<16x96xf32>
    %371 = tpu.matmul %370, %332, %cst_178 {dimension_numbers = #tpu.dot_dimension_numbers<[1], [0], [0], [1], [0, 0, 1, 1], [], []>} : vector<16x32xf32>, vector<32x96xf32>, vector<16x96xf32> -> vector<16x96xf32>
    %372 = vector.broadcast %333 : vector<1x96xf32> to vector<16x96xf32>
    %373 = arith.addf %371, %372 : vector<16x96xf32>
    %374 = vector.extract_strided_slice %373 {offsets = [0, 0], sizes = [16, 32], strides = [1, 1]} : vector<16x96xf32> to vector<16x32xf32>
    %375 = vector.extract_strided_slice %373 {offsets = [0, 32], sizes = [16, 32], strides = [1, 1]} : vector<16x96xf32> to vector<16x32xf32>
    %376 = vector.extract_strided_slice %373 {offsets = [0, 64], sizes = [16, 32], strides = [1, 1]} : vector<16x96xf32> to vector<16x32xf32>
    %377 = vector.extract_strided_slice %374 {offsets = [0, 0], sizes = [16, 8], strides = [1, 1]} : vector<16x32xf32> to vector<16x8xf32>
    %378 = vector.extract_strided_slice %375 {offsets = [0, 0], sizes = [16, 8], strides = [1, 1]} : vector<16x32xf32> to vector<16x8xf32>
    %379 = tpu.transpose %378, [1, 0] : vector<16x8xf32> -> vector<8x16xf32>
    %cst_179 = arith.constant dense<0.000000e+00> : vector<16x16xf32>
    %380 = tpu.matmul %377, %379, %cst_179 {dimension_numbers = #tpu.dot_dimension_numbers<[1], [0], [0], [1], [0, 0, 1, 1], [], []>} : vector<16x8xf32>, vector<8x16xf32>, vector<16x16xf32> -> vector<16x16xf32>
    %381 = arith.addf %380, %1 : vector<16x16xf32>
    %cst_180 = arith.constant dense<0xFF800000> : vector<16xf32>
    %382 = vector.multi_reduction <maximumf>, %381, %cst_180 [1] : vector<16x16xf32> to vector<16xf32>
    %383 = vector.shape_cast %382 : vector<16xf32> to vector<16x1xf32>
    %384 = vector.broadcast %383 : vector<16x1xf32> to vector<16x16xf32>
    %385 = arith.subf %381, %384 : vector<16x16xf32>
    %386 = math.exp %385 : vector<16x16xf32>
    %cst_181 = arith.constant dense<0.000000e+00> : vector<16xf32>
    %387 = vector.multi_reduction <add>, %386, %cst_181 [1] : vector<16x16xf32> to vector<16xf32>
    %388 = vector.shape_cast %387 : vector<16xf32> to vector<16x1xf32>
    %389 = tpu.reciprocal %388 {approx = true} : vector<16x1xf32> -> vector<16x1xf32>
    %390 = vector.broadcast %389 : vector<16x1xf32> to vector<16x16xf32>
    %391 = arith.mulf %386, %390 : vector<16x16xf32>
    %392 = vector.extract_strided_slice %376 {offsets = [0, 0], sizes = [16, 8], strides = [1, 1]} : vector<16x32xf32> to vector<16x8xf32>
    %cst_182 = arith.constant dense<0.000000e+00> : vector<16x8xf32>
    %393 = tpu.matmul %391, %392, %cst_182 {dimension_numbers = #tpu.dot_dimension_numbers<[1], [0], [0], [1], [0, 0, 1, 1], [], []>} : vector<16x16xf32>, vector<16x8xf32>, vector<16x8xf32> -> vector<16x8xf32>
    %394 = vector.extract_strided_slice %334 {offsets = [0, 0], sizes = [8, 32], strides = [1, 1]} : vector<32x32xf32> to vector<8x32xf32>
    %cst_183 = arith.constant dense<0.000000e+00> : vector<16x32xf32>
    %395 = tpu.matmul %393, %394, %cst_183 {dimension_numbers = #tpu.dot_dimension_numbers<[1], [0], [0], [1], [0, 0, 1, 1], [], []>} : vector<16x8xf32>, vector<8x32xf32>, vector<16x32xf32> -> vector<16x32xf32>
    %396 = vector.extract_strided_slice %374 {offsets = [0, 8], sizes = [16, 8], strides = [1, 1]} : vector<16x32xf32> to vector<16x8xf32>
    %397 = vector.extract_strided_slice %375 {offsets = [0, 8], sizes = [16, 8], strides = [1, 1]} : vector<16x32xf32> to vector<16x8xf32>
    %398 = tpu.transpose %397, [1, 0] : vector<16x8xf32> -> vector<8x16xf32>
    %cst_184 = arith.constant dense<0.000000e+00> : vector<16x16xf32>
    %399 = tpu.matmul %396, %398, %cst_184 {dimension_numbers = #tpu.dot_dimension_numbers<[1], [0], [0], [1], [0, 0, 1, 1], [], []>} : vector<16x8xf32>, vector<8x16xf32>, vector<16x16xf32> -> vector<16x16xf32>
    %400 = arith.addf %399, %1 : vector<16x16xf32>
    %cst_185 = arith.constant dense<0xFF800000> : vector<16xf32>
    %401 = vector.multi_reduction <maximumf>, %400, %cst_185 [1] : vector<16x16xf32> to vector<16xf32>
    %402 = vector.shape_cast %401 : vector<16xf32> to vector<16x1xf32>
    %403 = vector.broadcast %402 : vector<16x1xf32> to vector<16x16xf32>
    %404 = arith.subf %400, %403 : vector<16x16xf32>
    %405 = math.exp %404 : vector<16x16xf32>
    %cst_186 = arith.constant dense<0.000000e+00> : vector<16xf32>
    %406 = vector.multi_reduction <add>, %405, %cst_186 [1] : vector<16x16xf32> to vector<16xf32>
    %407 = vector.shape_cast %406 : vector<16xf32> to vector<16x1xf32>
    %408 = tpu.reciprocal %407 {approx = true} : vector<16x1xf32> -> vector<16x1xf32>
    %409 = vector.broadcast %408 : vector<16x1xf32> to vector<16x16xf32>
    %410 = arith.mulf %405, %409 : vector<16x16xf32>
    %411 = vector.extract_strided_slice %376 {offsets = [0, 8], sizes = [16, 8], strides = [1, 1]} : vector<16x32xf32> to vector<16x8xf32>
    %cst_187 = arith.constant dense<0.000000e+00> : vector<16x8xf32>
    %412 = tpu.matmul %410, %411, %cst_187 {dimension_numbers = #tpu.dot_dimension_numbers<[1], [0], [0], [1], [0, 0, 1, 1], [], []>} : vector<16x16xf32>, vector<16x8xf32>, vector<16x8xf32> -> vector<16x8xf32>
    %413 = vector.extract_strided_slice %334 {offsets = [8, 0], sizes = [8, 32], strides = [1, 1]} : vector<32x32xf32> to vector<8x32xf32>
    %cst_188 = arith.constant dense<0.000000e+00> : vector<16x32xf32>
    %414 = tpu.matmul %412, %413, %cst_188 {dimension_numbers = #tpu.dot_dimension_numbers<[1], [0], [0], [1], [0, 0, 1, 1], [], []>} : vector<16x8xf32>, vector<8x32xf32>, vector<16x32xf32> -> vector<16x32xf32>
    %415 = arith.addf %395, %414 : vector<16x32xf32>
    %416 = vector.extract_strided_slice %374 {offsets = [0, 16], sizes = [16, 8], strides = [1, 1]} : vector<16x32xf32> to vector<16x8xf32>
    %417 = vector.extract_strided_slice %375 {offsets = [0, 16], sizes = [16, 8], strides = [1, 1]} : vector<16x32xf32> to vector<16x8xf32>
    %418 = tpu.transpose %417, [1, 0] : vector<16x8xf32> -> vector<8x16xf32>
    %cst_189 = arith.constant dense<0.000000e+00> : vector<16x16xf32>
    %419 = tpu.matmul %416, %418, %cst_189 {dimension_numbers = #tpu.dot_dimension_numbers<[1], [0], [0], [1], [0, 0, 1, 1], [], []>} : vector<16x8xf32>, vector<8x16xf32>, vector<16x16xf32> -> vector<16x16xf32>
    %420 = arith.addf %419, %1 : vector<16x16xf32>
    %cst_190 = arith.constant dense<0xFF800000> : vector<16xf32>
    %421 = vector.multi_reduction <maximumf>, %420, %cst_190 [1] : vector<16x16xf32> to vector<16xf32>
    %422 = vector.shape_cast %421 : vector<16xf32> to vector<16x1xf32>
    %423 = vector.broadcast %422 : vector<16x1xf32> to vector<16x16xf32>
    %424 = arith.subf %420, %423 : vector<16x16xf32>
    %425 = math.exp %424 : vector<16x16xf32>
    %cst_191 = arith.constant dense<0.000000e+00> : vector<16xf32>
    %426 = vector.multi_reduction <add>, %425, %cst_191 [1] : vector<16x16xf32> to vector<16xf32>
    %427 = vector.shape_cast %426 : vector<16xf32> to vector<16x1xf32>
    %428 = tpu.reciprocal %427 {approx = true} : vector<16x1xf32> -> vector<16x1xf32>
    %429 = vector.broadcast %428 : vector<16x1xf32> to vector<16x16xf32>
    %430 = arith.mulf %425, %429 : vector<16x16xf32>
    %431 = vector.extract_strided_slice %376 {offsets = [0, 16], sizes = [16, 8], strides = [1, 1]} : vector<16x32xf32> to vector<16x8xf32>
    %cst_192 = arith.constant dense<0.000000e+00> : vector<16x8xf32>
    %432 = tpu.matmul %430, %431, %cst_192 {dimension_numbers = #tpu.dot_dimension_numbers<[1], [0], [0], [1], [0, 0, 1, 1], [], []>} : vector<16x16xf32>, vector<16x8xf32>, vector<16x8xf32> -> vector<16x8xf32>
    %433 = vector.extract_strided_slice %334 {offsets = [16, 0], sizes = [8, 32], strides = [1, 1]} : vector<32x32xf32> to vector<8x32xf32>
    %cst_193 = arith.constant dense<0.000000e+00> : vector<16x32xf32>
    %434 = tpu.matmul %432, %433, %cst_193 {dimension_numbers = #tpu.dot_dimension_numbers<[1], [0], [0], [1], [0, 0, 1, 1], [], []>} : vector<16x8xf32>, vector<8x32xf32>, vector<16x32xf32> -> vector<16x32xf32>
    %435 = arith.addf %415, %434 : vector<16x32xf32>
    %436 = vector.extract_strided_slice %374 {offsets = [0, 24], sizes = [16, 8], strides = [1, 1]} : vector<16x32xf32> to vector<16x8xf32>
    %437 = vector.extract_strided_slice %375 {offsets = [0, 24], sizes = [16, 8], strides = [1, 1]} : vector<16x32xf32> to vector<16x8xf32>
    %438 = tpu.transpose %437, [1, 0] : vector<16x8xf32> -> vector<8x16xf32>
    %cst_194 = arith.constant dense<0.000000e+00> : vector<16x16xf32>
    %439 = tpu.matmul %436, %438, %cst_194 {dimension_numbers = #tpu.dot_dimension_numbers<[1], [0], [0], [1], [0, 0, 1, 1], [], []>} : vector<16x8xf32>, vector<8x16xf32>, vector<16x16xf32> -> vector<16x16xf32>
    %440 = arith.addf %439, %1 : vector<16x16xf32>
    %cst_195 = arith.constant dense<0xFF800000> : vector<16xf32>
    %441 = vector.multi_reduction <maximumf>, %440, %cst_195 [1] : vector<16x16xf32> to vector<16xf32>
    %442 = vector.shape_cast %441 : vector<16xf32> to vector<16x1xf32>
    %443 = vector.broadcast %442 : vector<16x1xf32> to vector<16x16xf32>
    %444 = arith.subf %440, %443 : vector<16x16xf32>
    %445 = math.exp %444 : vector<16x16xf32>
    %cst_196 = arith.constant dense<0.000000e+00> : vector<16xf32>
    %446 = vector.multi_reduction <add>, %445, %cst_196 [1] : vector<16x16xf32> to vector<16xf32>
    %447 = vector.shape_cast %446 : vector<16xf32> to vector<16x1xf32>
    %448 = tpu.reciprocal %447 {approx = true} : vector<16x1xf32> -> vector<16x1xf32>
    %449 = vector.broadcast %448 : vector<16x1xf32> to vector<16x16xf32>
    %450 = arith.mulf %445, %449 : vector<16x16xf32>
    %451 = vector.extract_strided_slice %376 {offsets = [0, 24], sizes = [16, 8], strides = [1, 1]} : vector<16x32xf32> to vector<16x8xf32>
    %cst_197 = arith.constant dense<0.000000e+00> : vector<16x8xf32>
    %452 = tpu.matmul %450, %451, %cst_197 {dimension_numbers = #tpu.dot_dimension_numbers<[1], [0], [0], [1], [0, 0, 1, 1], [], []>} : vector<16x16xf32>, vector<16x8xf32>, vector<16x8xf32> -> vector<16x8xf32>
    %453 = vector.extract_strided_slice %334 {offsets = [24, 0], sizes = [8, 32], strides = [1, 1]} : vector<32x32xf32> to vector<8x32xf32>
    %cst_198 = arith.constant dense<0.000000e+00> : vector<16x32xf32>
    %454 = tpu.matmul %452, %453, %cst_198 {dimension_numbers = #tpu.dot_dimension_numbers<[1], [0], [0], [1], [0, 0, 1, 1], [], []>} : vector<16x8xf32>, vector<8x32xf32>, vector<16x32xf32> -> vector<16x32xf32>
    %455 = arith.addf %435, %454 : vector<16x32xf32>
    %456 = vector.broadcast %335 : vector<1x32xf32> to vector<16x32xf32>
    %457 = arith.addf %455, %456 : vector<16x32xf32>
    %458 = arith.addf %329, %457 : vector<16x32xf32>
    %cst_199 = arith.constant dense<0.000000e+00> : vector<16xf32>
    %459 = vector.multi_reduction <add>, %458, %cst_199 [1] : vector<16x32xf32> to vector<16xf32>
    %460 = vector.shape_cast %459 : vector<16xf32> to vector<16x1xf32>
    %cst_200 = arith.constant 3.200000e+01 : f32
    %461 = vector.broadcast %cst_200 : f32 to vector<16x1xf32>
    %462 = arith.divf %460, %461 : vector<16x1xf32>
    %463 = vector.broadcast %462 : vector<16x1xf32> to vector<16x32xf32>
    %464 = arith.subf %458, %463 : vector<16x32xf32>
    %465 = arith.mulf %464, %464 : vector<16x32xf32>
    %cst_201 = arith.constant dense<0.000000e+00> : vector<16xf32>
    %466 = vector.multi_reduction <add>, %465, %cst_201 [1] : vector<16x32xf32> to vector<16xf32>
    %467 = vector.shape_cast %466 : vector<16xf32> to vector<16x1xf32>
    %cst_202 = arith.constant 0.0322580636 : f32
    %468 = vector.broadcast %cst_202 : f32 to vector<16x1xf32>
    %469 = arith.mulf %467, %468 : vector<16x1xf32>
    %470 = math.sqrt %469 : vector<16x1xf32>
    %cst_203 = arith.constant 9.99999997E-7 : f32
    %471 = vector.broadcast %cst_203 : f32 to vector<16x1xf32>
    %472 = arith.addf %470, %471 : vector<16x1xf32>
    %473 = tpu.reciprocal %472 {approx = true} : vector<16x1xf32> -> vector<16x1xf32>
    %474 = vector.broadcast %336 : vector<1x32xf32> to vector<16x32xf32>
    %475 = arith.mulf %474, %464 : vector<16x32xf32>
    %476 = vector.broadcast %473 : vector<16x1xf32> to vector<16x32xf32>
    %477 = arith.mulf %475, %476 : vector<16x32xf32>
    %478 = vector.broadcast %337 : vector<1x32xf32> to vector<16x32xf32>
    %479 = arith.addf %477, %478 : vector<16x32xf32>
    %cst_204 = arith.constant dense<0.000000e+00> : vector<16x32xf32>
    %480 = tpu.matmul %479, %338, %cst_204 {dimension_numbers = #tpu.dot_dimension_numbers<[1], [0], [0], [1], [0, 0, 1, 1], [], []>} : vector<16x32xf32>, vector<32x32xf32>, vector<16x32xf32> -> vector<16x32xf32>
    %481 = vector.broadcast %339 : vector<1x32xf32> to vector<16x32xf32>
    %482 = arith.addf %480, %481 : vector<16x32xf32>
    %cst_205 = arith.constant dense<0.000000e+00> : vector<16x64xf32>
    %483 = tpu.matmul %328, %340, %cst_205 {dimension_numbers = #tpu.dot_dimension_numbers<[1], [0], [0], [1], [0, 0, 1, 1], [], []>} : vector<16x32xf32>, vector<32x64xf32>, vector<16x64xf32> -> vector<16x64xf32>
    %484 = vector.broadcast %341 : vector<1x64xf32> to vector<16x64xf32>
    %485 = arith.addf %483, %484 : vector<16x64xf32>
    %486 = vector.extract_strided_slice %485 {offsets = [0, 0], sizes = [16, 32], strides = [1, 1]} : vector<16x64xf32> to vector<16x32xf32>
    %487 = vector.extract_strided_slice %485 {offsets = [0, 32], sizes = [16, 32], strides = [1, 1]} : vector<16x64xf32> to vector<16x32xf32>
    %488 = vector.extract_strided_slice %482 {offsets = [0, 0], sizes = [16, 8], strides = [1, 1]} : vector<16x32xf32> to vector<16x8xf32>
    %489 = vector.extract_strided_slice %486 {offsets = [0, 0], sizes = [16, 8], strides = [1, 1]} : vector<16x32xf32> to vector<16x8xf32>
    %490 = tpu.transpose %489, [1, 0] : vector<16x8xf32> -> vector<8x16xf32>
    %cst_206 = arith.constant dense<0.000000e+00> : vector<16x16xf32>
    %491 = tpu.matmul %488, %490, %cst_206 {dimension_numbers = #tpu.dot_dimension_numbers<[1], [0], [0], [1], [0, 0, 1, 1], [], []>} : vector<16x8xf32>, vector<8x16xf32>, vector<16x16xf32> -> vector<16x16xf32>
    %492 = arith.addf %491, %2 : vector<16x16xf32>
    %cst_207 = arith.constant dense<0xFF800000> : vector<16xf32>
    %493 = vector.multi_reduction <maximumf>, %492, %cst_207 [1] : vector<16x16xf32> to vector<16xf32>
    %494 = vector.shape_cast %493 : vector<16xf32> to vector<16x1xf32>
    %495 = vector.broadcast %494 : vector<16x1xf32> to vector<16x16xf32>
    %496 = arith.subf %492, %495 : vector<16x16xf32>
    %497 = math.exp %496 : vector<16x16xf32>
    %cst_208 = arith.constant dense<0.000000e+00> : vector<16xf32>
    %498 = vector.multi_reduction <add>, %497, %cst_208 [1] : vector<16x16xf32> to vector<16xf32>
    %499 = vector.shape_cast %498 : vector<16xf32> to vector<16x1xf32>
    %500 = tpu.reciprocal %499 {approx = true} : vector<16x1xf32> -> vector<16x1xf32>
    %501 = vector.broadcast %500 : vector<16x1xf32> to vector<16x16xf32>
    %502 = arith.mulf %497, %501 : vector<16x16xf32>
    %503 = vector.extract_strided_slice %487 {offsets = [0, 0], sizes = [16, 8], strides = [1, 1]} : vector<16x32xf32> to vector<16x8xf32>
    %cst_209 = arith.constant dense<0.000000e+00> : vector<16x8xf32>
    %504 = tpu.matmul %502, %503, %cst_209 {dimension_numbers = #tpu.dot_dimension_numbers<[1], [0], [0], [1], [0, 0, 1, 1], [], []>} : vector<16x16xf32>, vector<16x8xf32>, vector<16x8xf32> -> vector<16x8xf32>
    %505 = vector.extract_strided_slice %342 {offsets = [0, 0], sizes = [8, 32], strides = [1, 1]} : vector<32x32xf32> to vector<8x32xf32>
    %cst_210 = arith.constant dense<0.000000e+00> : vector<16x32xf32>
    %506 = tpu.matmul %504, %505, %cst_210 {dimension_numbers = #tpu.dot_dimension_numbers<[1], [0], [0], [1], [0, 0, 1, 1], [], []>} : vector<16x8xf32>, vector<8x32xf32>, vector<16x32xf32> -> vector<16x32xf32>
    %507 = vector.extract_strided_slice %482 {offsets = [0, 8], sizes = [16, 8], strides = [1, 1]} : vector<16x32xf32> to vector<16x8xf32>
    %508 = vector.extract_strided_slice %486 {offsets = [0, 8], sizes = [16, 8], strides = [1, 1]} : vector<16x32xf32> to vector<16x8xf32>
    %509 = tpu.transpose %508, [1, 0] : vector<16x8xf32> -> vector<8x16xf32>
    %cst_211 = arith.constant dense<0.000000e+00> : vector<16x16xf32>
    %510 = tpu.matmul %507, %509, %cst_211 {dimension_numbers = #tpu.dot_dimension_numbers<[1], [0], [0], [1], [0, 0, 1, 1], [], []>} : vector<16x8xf32>, vector<8x16xf32>, vector<16x16xf32> -> vector<16x16xf32>
    %511 = arith.addf %510, %2 : vector<16x16xf32>
    %cst_212 = arith.constant dense<0xFF800000> : vector<16xf32>
    %512 = vector.multi_reduction <maximumf>, %511, %cst_212 [1] : vector<16x16xf32> to vector<16xf32>
    %513 = vector.shape_cast %512 : vector<16xf32> to vector<16x1xf32>
    %514 = vector.broadcast %513 : vector<16x1xf32> to vector<16x16xf32>
    %515 = arith.subf %511, %514 : vector<16x16xf32>
    %516 = math.exp %515 : vector<16x16xf32>
    %cst_213 = arith.constant dense<0.000000e+00> : vector<16xf32>
    %517 = vector.multi_reduction <add>, %516, %cst_213 [1] : vector<16x16xf32> to vector<16xf32>
    %518 = vector.shape_cast %517 : vector<16xf32> to vector<16x1xf32>
    %519 = tpu.reciprocal %518 {approx = true} : vector<16x1xf32> -> vector<16x1xf32>
    %520 = vector.broadcast %519 : vector<16x1xf32> to vector<16x16xf32>
    %521 = arith.mulf %516, %520 : vector<16x16xf32>
    %522 = vector.extract_strided_slice %487 {offsets = [0, 8], sizes = [16, 8], strides = [1, 1]} : vector<16x32xf32> to vector<16x8xf32>
    %cst_214 = arith.constant dense<0.000000e+00> : vector<16x8xf32>
    %523 = tpu.matmul %521, %522, %cst_214 {dimension_numbers = #tpu.dot_dimension_numbers<[1], [0], [0], [1], [0, 0, 1, 1], [], []>} : vector<16x16xf32>, vector<16x8xf32>, vector<16x8xf32> -> vector<16x8xf32>
    %524 = vector.extract_strided_slice %342 {offsets = [8, 0], sizes = [8, 32], strides = [1, 1]} : vector<32x32xf32> to vector<8x32xf32>
    %cst_215 = arith.constant dense<0.000000e+00> : vector<16x32xf32>
    %525 = tpu.matmul %523, %524, %cst_215 {dimension_numbers = #tpu.dot_dimension_numbers<[1], [0], [0], [1], [0, 0, 1, 1], [], []>} : vector<16x8xf32>, vector<8x32xf32>, vector<16x32xf32> -> vector<16x32xf32>
    %526 = arith.addf %506, %525 : vector<16x32xf32>
    %527 = vector.extract_strided_slice %482 {offsets = [0, 16], sizes = [16, 8], strides = [1, 1]} : vector<16x32xf32> to vector<16x8xf32>
    %528 = vector.extract_strided_slice %486 {offsets = [0, 16], sizes = [16, 8], strides = [1, 1]} : vector<16x32xf32> to vector<16x8xf32>
    %529 = tpu.transpose %528, [1, 0] : vector<16x8xf32> -> vector<8x16xf32>
    %cst_216 = arith.constant dense<0.000000e+00> : vector<16x16xf32>
    %530 = tpu.matmul %527, %529, %cst_216 {dimension_numbers = #tpu.dot_dimension_numbers<[1], [0], [0], [1], [0, 0, 1, 1], [], []>} : vector<16x8xf32>, vector<8x16xf32>, vector<16x16xf32> -> vector<16x16xf32>
    %531 = arith.addf %530, %2 : vector<16x16xf32>
    %cst_217 = arith.constant dense<0xFF800000> : vector<16xf32>
    %532 = vector.multi_reduction <maximumf>, %531, %cst_217 [1] : vector<16x16xf32> to vector<16xf32>
    %533 = vector.shape_cast %532 : vector<16xf32> to vector<16x1xf32>
    %534 = vector.broadcast %533 : vector<16x1xf32> to vector<16x16xf32>
    %535 = arith.subf %531, %534 : vector<16x16xf32>
    %536 = math.exp %535 : vector<16x16xf32>
    %cst_218 = arith.constant dense<0.000000e+00> : vector<16xf32>
    %537 = vector.multi_reduction <add>, %536, %cst_218 [1] : vector<16x16xf32> to vector<16xf32>
    %538 = vector.shape_cast %537 : vector<16xf32> to vector<16x1xf32>
    %539 = tpu.reciprocal %538 {approx = true} : vector<16x1xf32> -> vector<16x1xf32>
    %540 = vector.broadcast %539 : vector<16x1xf32> to vector<16x16xf32>
    %541 = arith.mulf %536, %540 : vector<16x16xf32>
    %542 = vector.extract_strided_slice %487 {offsets = [0, 16], sizes = [16, 8], strides = [1, 1]} : vector<16x32xf32> to vector<16x8xf32>
    %cst_219 = arith.constant dense<0.000000e+00> : vector<16x8xf32>
    %543 = tpu.matmul %541, %542, %cst_219 {dimension_numbers = #tpu.dot_dimension_numbers<[1], [0], [0], [1], [0, 0, 1, 1], [], []>} : vector<16x16xf32>, vector<16x8xf32>, vector<16x8xf32> -> vector<16x8xf32>
    %544 = vector.extract_strided_slice %342 {offsets = [16, 0], sizes = [8, 32], strides = [1, 1]} : vector<32x32xf32> to vector<8x32xf32>
    %cst_220 = arith.constant dense<0.000000e+00> : vector<16x32xf32>
    %545 = tpu.matmul %543, %544, %cst_220 {dimension_numbers = #tpu.dot_dimension_numbers<[1], [0], [0], [1], [0, 0, 1, 1], [], []>} : vector<16x8xf32>, vector<8x32xf32>, vector<16x32xf32> -> vector<16x32xf32>
    %546 = arith.addf %526, %545 : vector<16x32xf32>
    %547 = vector.extract_strided_slice %482 {offsets = [0, 24], sizes = [16, 8], strides = [1, 1]} : vector<16x32xf32> to vector<16x8xf32>
    %548 = vector.extract_strided_slice %486 {offsets = [0, 24], sizes = [16, 8], strides = [1, 1]} : vector<16x32xf32> to vector<16x8xf32>
    %549 = tpu.transpose %548, [1, 0] : vector<16x8xf32> -> vector<8x16xf32>
    %cst_221 = arith.constant dense<0.000000e+00> : vector<16x16xf32>
    %550 = tpu.matmul %547, %549, %cst_221 {dimension_numbers = #tpu.dot_dimension_numbers<[1], [0], [0], [1], [0, 0, 1, 1], [], []>} : vector<16x8xf32>, vector<8x16xf32>, vector<16x16xf32> -> vector<16x16xf32>
    %551 = arith.addf %550, %2 : vector<16x16xf32>
    %cst_222 = arith.constant dense<0xFF800000> : vector<16xf32>
    %552 = vector.multi_reduction <maximumf>, %551, %cst_222 [1] : vector<16x16xf32> to vector<16xf32>
    %553 = vector.shape_cast %552 : vector<16xf32> to vector<16x1xf32>
    %554 = vector.broadcast %553 : vector<16x1xf32> to vector<16x16xf32>
    %555 = arith.subf %551, %554 : vector<16x16xf32>
    %556 = math.exp %555 : vector<16x16xf32>
    %cst_223 = arith.constant dense<0.000000e+00> : vector<16xf32>
    %557 = vector.multi_reduction <add>, %556, %cst_223 [1] : vector<16x16xf32> to vector<16xf32>
    %558 = vector.shape_cast %557 : vector<16xf32> to vector<16x1xf32>
    %559 = tpu.reciprocal %558 {approx = true} : vector<16x1xf32> -> vector<16x1xf32>
    %560 = vector.broadcast %559 : vector<16x1xf32> to vector<16x16xf32>
    %561 = arith.mulf %556, %560 : vector<16x16xf32>
    %562 = vector.extract_strided_slice %487 {offsets = [0, 24], sizes = [16, 8], strides = [1, 1]} : vector<16x32xf32> to vector<16x8xf32>
    %cst_224 = arith.constant dense<0.000000e+00> : vector<16x8xf32>
    %563 = tpu.matmul %561, %562, %cst_224 {dimension_numbers = #tpu.dot_dimension_numbers<[1], [0], [0], [1], [0, 0, 1, 1], [], []>} : vector<16x16xf32>, vector<16x8xf32>, vector<16x8xf32> -> vector<16x8xf32>
    %564 = vector.extract_strided_slice %342 {offsets = [24, 0], sizes = [8, 32], strides = [1, 1]} : vector<32x32xf32> to vector<8x32xf32>
    %cst_225 = arith.constant dense<0.000000e+00> : vector<16x32xf32>
    %565 = tpu.matmul %563, %564, %cst_225 {dimension_numbers = #tpu.dot_dimension_numbers<[1], [0], [0], [1], [0, 0, 1, 1], [], []>} : vector<16x8xf32>, vector<8x32xf32>, vector<16x32xf32> -> vector<16x32xf32>
    %566 = arith.addf %546, %565 : vector<16x32xf32>
    %567 = vector.broadcast %343 : vector<1x32xf32> to vector<16x32xf32>
    %568 = arith.addf %566, %567 : vector<16x32xf32>
    %569 = arith.addf %458, %568 : vector<16x32xf32>
    %cst_226 = arith.constant dense<0.000000e+00> : vector<16xf32>
    %570 = vector.multi_reduction <add>, %569, %cst_226 [1] : vector<16x32xf32> to vector<16xf32>
    %571 = vector.shape_cast %570 : vector<16xf32> to vector<16x1xf32>
    %cst_227 = arith.constant 3.200000e+01 : f32
    %572 = vector.broadcast %cst_227 : f32 to vector<16x1xf32>
    %573 = arith.divf %571, %572 : vector<16x1xf32>
    %574 = vector.broadcast %573 : vector<16x1xf32> to vector<16x32xf32>
    %575 = arith.subf %569, %574 : vector<16x32xf32>
    %576 = arith.mulf %575, %575 : vector<16x32xf32>
    %cst_228 = arith.constant dense<0.000000e+00> : vector<16xf32>
    %577 = vector.multi_reduction <add>, %576, %cst_228 [1] : vector<16x32xf32> to vector<16xf32>
    %578 = vector.shape_cast %577 : vector<16xf32> to vector<16x1xf32>
    %cst_229 = arith.constant 0.0322580636 : f32
    %579 = vector.broadcast %cst_229 : f32 to vector<16x1xf32>
    %580 = arith.mulf %578, %579 : vector<16x1xf32>
    %581 = math.sqrt %580 : vector<16x1xf32>
    %cst_230 = arith.constant 9.99999997E-7 : f32
    %582 = vector.broadcast %cst_230 : f32 to vector<16x1xf32>
    %583 = arith.addf %581, %582 : vector<16x1xf32>
    %584 = tpu.reciprocal %583 {approx = true} : vector<16x1xf32> -> vector<16x1xf32>
    %585 = vector.broadcast %344 : vector<1x32xf32> to vector<16x32xf32>
    %586 = arith.mulf %585, %575 : vector<16x32xf32>
    %587 = vector.broadcast %584 : vector<16x1xf32> to vector<16x32xf32>
    %588 = arith.mulf %586, %587 : vector<16x32xf32>
    %589 = vector.broadcast %345 : vector<1x32xf32> to vector<16x32xf32>
    %590 = arith.addf %588, %589 : vector<16x32xf32>
    %cst_231 = arith.constant dense<0.000000e+00> : vector<16x64xf32>
    %591 = tpu.matmul %590, %346, %cst_231 {dimension_numbers = #tpu.dot_dimension_numbers<[1], [0], [0], [1], [0, 0, 1, 1], [], []>} : vector<16x32xf32>, vector<32x64xf32>, vector<16x64xf32> -> vector<16x64xf32>
    %592 = vector.broadcast %347 : vector<1x64xf32> to vector<16x64xf32>
    %593 = arith.addf %591, %592 : vector<16x64xf32>
    %cst_232 = arith.constant 0.000000e+00 : f32
    %594 = vector.broadcast %cst_232 : f32 to vector<16x64xf32>
    %595 = arith.maximumf %593, %594 : vector<16x64xf32>
    %cst_233 = arith.constant dense<0.000000e+00> : vector<16x32xf32>
    %596 = tpu.matmul %595, %348, %cst_233 {dimension_numbers = #tpu.dot_dimension_numbers<[1], [0], [0], [1], [0, 0, 1, 1], [], []>} : vector<16x64xf32>, vector<64x32xf32>, vector<16x32xf32> -> vector<16x32xf32>
    %597 = vector.broadcast %349 : vector<1x32xf32> to vector<16x32xf32>
    %598 = arith.addf %596, %597 : vector<16x32xf32>
    %599 = arith.addf %569, %598 : vector<16x32xf32>
    %c0_234 = arith.constant 0 : index
    %c0_235 = arith.constant 0 : index
    %600 = vector.load %arg51[%c0_234, %c0_235] : memref<1x32xf32, #tpu.memory_space<vmem>>, vector<1x32xf32>
    %c0_236 = arith.constant 0 : index
    %c0_237 = arith.constant 0 : index
    %601 = vector.load %arg52[%c0_236, %c0_237] : memref<1x32xf32, #tpu.memory_space<vmem>>, vector<1x32xf32>
    %c0_238 = arith.constant 0 : index
    %c0_239 = arith.constant 0 : index
    %602 = vector.load %arg53[%c0_238, %c0_239] : memref<32x96xf32, #tpu.memory_space<vmem>>, vector<32x96xf32>
    %c0_240 = arith.constant 0 : index
    %c0_241 = arith.constant 0 : index
    %603 = vector.load %arg54[%c0_240, %c0_241] : memref<1x96xf32, #tpu.memory_space<vmem>>, vector<1x96xf32>
    %c0_242 = arith.constant 0 : index
    %c0_243 = arith.constant 0 : index
    %604 = vector.load %arg55[%c0_242, %c0_243] : memref<32x32xf32, #tpu.memory_space<vmem>>, vector<32x32xf32>
    %c0_244 = arith.constant 0 : index
    %c0_245 = arith.constant 0 : index
    %605 = vector.load %arg56[%c0_244, %c0_245] : memref<1x32xf32, #tpu.memory_space<vmem>>, vector<1x32xf32>
    %c0_246 = arith.constant 0 : index
    %c0_247 = arith.constant 0 : index
    %606 = vector.load %arg57[%c0_246, %c0_247] : memref<1x32xf32, #tpu.memory_space<vmem>>, vector<1x32xf32>
    %c0_248 = arith.constant 0 : index
    %c0_249 = arith.constant 0 : index
    %607 = vector.load %arg58[%c0_248, %c0_249] : memref<1x32xf32, #tpu.memory_space<vmem>>, vector<1x32xf32>
    %c0_250 = arith.constant 0 : index
    %c0_251 = arith.constant 0 : index
    %608 = vector.load %arg59[%c0_250, %c0_251] : memref<32x32xf32, #tpu.memory_space<vmem>>, vector<32x32xf32>
    %c0_252 = arith.constant 0 : index
    %c0_253 = arith.constant 0 : index
    %609 = vector.load %arg60[%c0_252, %c0_253] : memref<1x32xf32, #tpu.memory_space<vmem>>, vector<1x32xf32>
    %c0_254 = arith.constant 0 : index
    %c0_255 = arith.constant 0 : index
    %610 = vector.load %arg61[%c0_254, %c0_255] : memref<32x64xf32, #tpu.memory_space<vmem>>, vector<32x64xf32>
    %c0_256 = arith.constant 0 : index
    %c0_257 = arith.constant 0 : index
    %611 = vector.load %arg62[%c0_256, %c0_257] : memref<1x64xf32, #tpu.memory_space<vmem>>, vector<1x64xf32>
    %c0_258 = arith.constant 0 : index
    %c0_259 = arith.constant 0 : index
    %612 = vector.load %arg63[%c0_258, %c0_259] : memref<32x32xf32, #tpu.memory_space<vmem>>, vector<32x32xf32>
    %c0_260 = arith.constant 0 : index
    %c0_261 = arith.constant 0 : index
    %613 = vector.load %arg64[%c0_260, %c0_261] : memref<1x32xf32, #tpu.memory_space<vmem>>, vector<1x32xf32>
    %c0_262 = arith.constant 0 : index
    %c0_263 = arith.constant 0 : index
    %614 = vector.load %arg65[%c0_262, %c0_263] : memref<1x32xf32, #tpu.memory_space<vmem>>, vector<1x32xf32>
    %c0_264 = arith.constant 0 : index
    %c0_265 = arith.constant 0 : index
    %615 = vector.load %arg66[%c0_264, %c0_265] : memref<1x32xf32, #tpu.memory_space<vmem>>, vector<1x32xf32>
    %c0_266 = arith.constant 0 : index
    %c0_267 = arith.constant 0 : index
    %616 = vector.load %arg67[%c0_266, %c0_267] : memref<32x64xf32, #tpu.memory_space<vmem>>, vector<32x64xf32>
    %c0_268 = arith.constant 0 : index
    %c0_269 = arith.constant 0 : index
    %617 = vector.load %arg68[%c0_268, %c0_269] : memref<1x64xf32, #tpu.memory_space<vmem>>, vector<1x64xf32>
    %c0_270 = arith.constant 0 : index
    %c0_271 = arith.constant 0 : index
    %618 = vector.load %arg69[%c0_270, %c0_271] : memref<64x32xf32, #tpu.memory_space<vmem>>, vector<64x32xf32>
    %c0_272 = arith.constant 0 : index
    %c0_273 = arith.constant 0 : index
    %619 = vector.load %arg70[%c0_272, %c0_273] : memref<1x32xf32, #tpu.memory_space<vmem>>, vector<1x32xf32>
    %cst_274 = arith.constant dense<0.000000e+00> : vector<16xf32>
    %620 = vector.multi_reduction <add>, %599, %cst_274 [1] : vector<16x32xf32> to vector<16xf32>
    %621 = vector.shape_cast %620 : vector<16xf32> to vector<16x1xf32>
    %cst_275 = arith.constant 3.200000e+01 : f32
    %622 = vector.broadcast %cst_275 : f32 to vector<16x1xf32>
    %623 = arith.divf %621, %622 : vector<16x1xf32>
    %624 = vector.broadcast %623 : vector<16x1xf32> to vector<16x32xf32>
    %625 = arith.subf %599, %624 : vector<16x32xf32>
    %626 = arith.mulf %625, %625 : vector<16x32xf32>
    %cst_276 = arith.constant dense<0.000000e+00> : vector<16xf32>
    %627 = vector.multi_reduction <add>, %626, %cst_276 [1] : vector<16x32xf32> to vector<16xf32>
    %628 = vector.shape_cast %627 : vector<16xf32> to vector<16x1xf32>
    %cst_277 = arith.constant 0.0322580636 : f32
    %629 = vector.broadcast %cst_277 : f32 to vector<16x1xf32>
    %630 = arith.mulf %628, %629 : vector<16x1xf32>
    %631 = math.sqrt %630 : vector<16x1xf32>
    %cst_278 = arith.constant 9.99999997E-7 : f32
    %632 = vector.broadcast %cst_278 : f32 to vector<16x1xf32>
    %633 = arith.addf %631, %632 : vector<16x1xf32>
    %634 = tpu.reciprocal %633 {approx = true} : vector<16x1xf32> -> vector<16x1xf32>
    %635 = vector.broadcast %600 : vector<1x32xf32> to vector<16x32xf32>
    %636 = arith.mulf %635, %625 : vector<16x32xf32>
    %637 = vector.broadcast %634 : vector<16x1xf32> to vector<16x32xf32>
    %638 = arith.mulf %636, %637 : vector<16x32xf32>
    %639 = vector.broadcast %601 : vector<1x32xf32> to vector<16x32xf32>
    %640 = arith.addf %638, %639 : vector<16x32xf32>
    %cst_279 = arith.constant dense<0.000000e+00> : vector<16x96xf32>
    %641 = tpu.matmul %640, %602, %cst_279 {dimension_numbers = #tpu.dot_dimension_numbers<[1], [0], [0], [1], [0, 0, 1, 1], [], []>} : vector<16x32xf32>, vector<32x96xf32>, vector<16x96xf32> -> vector<16x96xf32>
    %642 = vector.broadcast %603 : vector<1x96xf32> to vector<16x96xf32>
    %643 = arith.addf %641, %642 : vector<16x96xf32>
    %644 = vector.extract_strided_slice %643 {offsets = [0, 0], sizes = [16, 32], strides = [1, 1]} : vector<16x96xf32> to vector<16x32xf32>
    %645 = vector.extract_strided_slice %643 {offsets = [0, 32], sizes = [16, 32], strides = [1, 1]} : vector<16x96xf32> to vector<16x32xf32>
    %646 = vector.extract_strided_slice %643 {offsets = [0, 64], sizes = [16, 32], strides = [1, 1]} : vector<16x96xf32> to vector<16x32xf32>
    %647 = vector.extract_strided_slice %644 {offsets = [0, 0], sizes = [16, 8], strides = [1, 1]} : vector<16x32xf32> to vector<16x8xf32>
    %648 = vector.extract_strided_slice %645 {offsets = [0, 0], sizes = [16, 8], strides = [1, 1]} : vector<16x32xf32> to vector<16x8xf32>
    %649 = tpu.transpose %648, [1, 0] : vector<16x8xf32> -> vector<8x16xf32>
    %cst_280 = arith.constant dense<0.000000e+00> : vector<16x16xf32>
    %650 = tpu.matmul %647, %649, %cst_280 {dimension_numbers = #tpu.dot_dimension_numbers<[1], [0], [0], [1], [0, 0, 1, 1], [], []>} : vector<16x8xf32>, vector<8x16xf32>, vector<16x16xf32> -> vector<16x16xf32>
    %651 = arith.addf %650, %1 : vector<16x16xf32>
    %cst_281 = arith.constant dense<0xFF800000> : vector<16xf32>
    %652 = vector.multi_reduction <maximumf>, %651, %cst_281 [1] : vector<16x16xf32> to vector<16xf32>
    %653 = vector.shape_cast %652 : vector<16xf32> to vector<16x1xf32>
    %654 = vector.broadcast %653 : vector<16x1xf32> to vector<16x16xf32>
    %655 = arith.subf %651, %654 : vector<16x16xf32>
    %656 = math.exp %655 : vector<16x16xf32>
    %cst_282 = arith.constant dense<0.000000e+00> : vector<16xf32>
    %657 = vector.multi_reduction <add>, %656, %cst_282 [1] : vector<16x16xf32> to vector<16xf32>
    %658 = vector.shape_cast %657 : vector<16xf32> to vector<16x1xf32>
    %659 = tpu.reciprocal %658 {approx = true} : vector<16x1xf32> -> vector<16x1xf32>
    %660 = vector.broadcast %659 : vector<16x1xf32> to vector<16x16xf32>
    %661 = arith.mulf %656, %660 : vector<16x16xf32>
    %662 = vector.extract_strided_slice %646 {offsets = [0, 0], sizes = [16, 8], strides = [1, 1]} : vector<16x32xf32> to vector<16x8xf32>
    %cst_283 = arith.constant dense<0.000000e+00> : vector<16x8xf32>
    %663 = tpu.matmul %661, %662, %cst_283 {dimension_numbers = #tpu.dot_dimension_numbers<[1], [0], [0], [1], [0, 0, 1, 1], [], []>} : vector<16x16xf32>, vector<16x8xf32>, vector<16x8xf32> -> vector<16x8xf32>
    %664 = vector.extract_strided_slice %604 {offsets = [0, 0], sizes = [8, 32], strides = [1, 1]} : vector<32x32xf32> to vector<8x32xf32>
    %cst_284 = arith.constant dense<0.000000e+00> : vector<16x32xf32>
    %665 = tpu.matmul %663, %664, %cst_284 {dimension_numbers = #tpu.dot_dimension_numbers<[1], [0], [0], [1], [0, 0, 1, 1], [], []>} : vector<16x8xf32>, vector<8x32xf32>, vector<16x32xf32> -> vector<16x32xf32>
    %666 = vector.extract_strided_slice %644 {offsets = [0, 8], sizes = [16, 8], strides = [1, 1]} : vector<16x32xf32> to vector<16x8xf32>
    %667 = vector.extract_strided_slice %645 {offsets = [0, 8], sizes = [16, 8], strides = [1, 1]} : vector<16x32xf32> to vector<16x8xf32>
    %668 = tpu.transpose %667, [1, 0] : vector<16x8xf32> -> vector<8x16xf32>
    %cst_285 = arith.constant dense<0.000000e+00> : vector<16x16xf32>
    %669 = tpu.matmul %666, %668, %cst_285 {dimension_numbers = #tpu.dot_dimension_numbers<[1], [0], [0], [1], [0, 0, 1, 1], [], []>} : vector<16x8xf32>, vector<8x16xf32>, vector<16x16xf32> -> vector<16x16xf32>
    %670 = arith.addf %669, %1 : vector<16x16xf32>
    %cst_286 = arith.constant dense<0xFF800000> : vector<16xf32>
    %671 = vector.multi_reduction <maximumf>, %670, %cst_286 [1] : vector<16x16xf32> to vector<16xf32>
    %672 = vector.shape_cast %671 : vector<16xf32> to vector<16x1xf32>
    %673 = vector.broadcast %672 : vector<16x1xf32> to vector<16x16xf32>
    %674 = arith.subf %670, %673 : vector<16x16xf32>
    %675 = math.exp %674 : vector<16x16xf32>
    %cst_287 = arith.constant dense<0.000000e+00> : vector<16xf32>
    %676 = vector.multi_reduction <add>, %675, %cst_287 [1] : vector<16x16xf32> to vector<16xf32>
    %677 = vector.shape_cast %676 : vector<16xf32> to vector<16x1xf32>
    %678 = tpu.reciprocal %677 {approx = true} : vector<16x1xf32> -> vector<16x1xf32>
    %679 = vector.broadcast %678 : vector<16x1xf32> to vector<16x16xf32>
    %680 = arith.mulf %675, %679 : vector<16x16xf32>
    %681 = vector.extract_strided_slice %646 {offsets = [0, 8], sizes = [16, 8], strides = [1, 1]} : vector<16x32xf32> to vector<16x8xf32>
    %cst_288 = arith.constant dense<0.000000e+00> : vector<16x8xf32>
    %682 = tpu.matmul %680, %681, %cst_288 {dimension_numbers = #tpu.dot_dimension_numbers<[1], [0], [0], [1], [0, 0, 1, 1], [], []>} : vector<16x16xf32>, vector<16x8xf32>, vector<16x8xf32> -> vector<16x8xf32>
    %683 = vector.extract_strided_slice %604 {offsets = [8, 0], sizes = [8, 32], strides = [1, 1]} : vector<32x32xf32> to vector<8x32xf32>
    %cst_289 = arith.constant dense<0.000000e+00> : vector<16x32xf32>
    %684 = tpu.matmul %682, %683, %cst_289 {dimension_numbers = #tpu.dot_dimension_numbers<[1], [0], [0], [1], [0, 0, 1, 1], [], []>} : vector<16x8xf32>, vector<8x32xf32>, vector<16x32xf32> -> vector<16x32xf32>
    %685 = arith.addf %665, %684 : vector<16x32xf32>
    %686 = vector.extract_strided_slice %644 {offsets = [0, 16], sizes = [16, 8], strides = [1, 1]} : vector<16x32xf32> to vector<16x8xf32>
    %687 = vector.extract_strided_slice %645 {offsets = [0, 16], sizes = [16, 8], strides = [1, 1]} : vector<16x32xf32> to vector<16x8xf32>
    %688 = tpu.transpose %687, [1, 0] : vector<16x8xf32> -> vector<8x16xf32>
    %cst_290 = arith.constant dense<0.000000e+00> : vector<16x16xf32>
    %689 = tpu.matmul %686, %688, %cst_290 {dimension_numbers = #tpu.dot_dimension_numbers<[1], [0], [0], [1], [0, 0, 1, 1], [], []>} : vector<16x8xf32>, vector<8x16xf32>, vector<16x16xf32> -> vector<16x16xf32>
    %690 = arith.addf %689, %1 : vector<16x16xf32>
    %cst_291 = arith.constant dense<0xFF800000> : vector<16xf32>
    %691 = vector.multi_reduction <maximumf>, %690, %cst_291 [1] : vector<16x16xf32> to vector<16xf32>
    %692 = vector.shape_cast %691 : vector<16xf32> to vector<16x1xf32>
    %693 = vector.broadcast %692 : vector<16x1xf32> to vector<16x16xf32>
    %694 = arith.subf %690, %693 : vector<16x16xf32>
    %695 = math.exp %694 : vector<16x16xf32>
    %cst_292 = arith.constant dense<0.000000e+00> : vector<16xf32>
    %696 = vector.multi_reduction <add>, %695, %cst_292 [1] : vector<16x16xf32> to vector<16xf32>
    %697 = vector.shape_cast %696 : vector<16xf32> to vector<16x1xf32>
    %698 = tpu.reciprocal %697 {approx = true} : vector<16x1xf32> -> vector<16x1xf32>
    %699 = vector.broadcast %698 : vector<16x1xf32> to vector<16x16xf32>
    %700 = arith.mulf %695, %699 : vector<16x16xf32>
    %701 = vector.extract_strided_slice %646 {offsets = [0, 16], sizes = [16, 8], strides = [1, 1]} : vector<16x32xf32> to vector<16x8xf32>
    %cst_293 = arith.constant dense<0.000000e+00> : vector<16x8xf32>
    %702 = tpu.matmul %700, %701, %cst_293 {dimension_numbers = #tpu.dot_dimension_numbers<[1], [0], [0], [1], [0, 0, 1, 1], [], []>} : vector<16x16xf32>, vector<16x8xf32>, vector<16x8xf32> -> vector<16x8xf32>
    %703 = vector.extract_strided_slice %604 {offsets = [16, 0], sizes = [8, 32], strides = [1, 1]} : vector<32x32xf32> to vector<8x32xf32>
    %cst_294 = arith.constant dense<0.000000e+00> : vector<16x32xf32>
    %704 = tpu.matmul %702, %703, %cst_294 {dimension_numbers = #tpu.dot_dimension_numbers<[1], [0], [0], [1], [0, 0, 1, 1], [], []>} : vector<16x8xf32>, vector<8x32xf32>, vector<16x32xf32> -> vector<16x32xf32>
    %705 = arith.addf %685, %704 : vector<16x32xf32>
    %706 = vector.extract_strided_slice %644 {offsets = [0, 24], sizes = [16, 8], strides = [1, 1]} : vector<16x32xf32> to vector<16x8xf32>
    %707 = vector.extract_strided_slice %645 {offsets = [0, 24], sizes = [16, 8], strides = [1, 1]} : vector<16x32xf32> to vector<16x8xf32>
    %708 = tpu.transpose %707, [1, 0] : vector<16x8xf32> -> vector<8x16xf32>
    %cst_295 = arith.constant dense<0.000000e+00> : vector<16x16xf32>
    %709 = tpu.matmul %706, %708, %cst_295 {dimension_numbers = #tpu.dot_dimension_numbers<[1], [0], [0], [1], [0, 0, 1, 1], [], []>} : vector<16x8xf32>, vector<8x16xf32>, vector<16x16xf32> -> vector<16x16xf32>
    %710 = arith.addf %709, %1 : vector<16x16xf32>
    %cst_296 = arith.constant dense<0xFF800000> : vector<16xf32>
    %711 = vector.multi_reduction <maximumf>, %710, %cst_296 [1] : vector<16x16xf32> to vector<16xf32>
    %712 = vector.shape_cast %711 : vector<16xf32> to vector<16x1xf32>
    %713 = vector.broadcast %712 : vector<16x1xf32> to vector<16x16xf32>
    %714 = arith.subf %710, %713 : vector<16x16xf32>
    %715 = math.exp %714 : vector<16x16xf32>
    %cst_297 = arith.constant dense<0.000000e+00> : vector<16xf32>
    %716 = vector.multi_reduction <add>, %715, %cst_297 [1] : vector<16x16xf32> to vector<16xf32>
    %717 = vector.shape_cast %716 : vector<16xf32> to vector<16x1xf32>
    %718 = tpu.reciprocal %717 {approx = true} : vector<16x1xf32> -> vector<16x1xf32>
    %719 = vector.broadcast %718 : vector<16x1xf32> to vector<16x16xf32>
    %720 = arith.mulf %715, %719 : vector<16x16xf32>
    %721 = vector.extract_strided_slice %646 {offsets = [0, 24], sizes = [16, 8], strides = [1, 1]} : vector<16x32xf32> to vector<16x8xf32>
    %cst_298 = arith.constant dense<0.000000e+00> : vector<16x8xf32>
    %722 = tpu.matmul %720, %721, %cst_298 {dimension_numbers = #tpu.dot_dimension_numbers<[1], [0], [0], [1], [0, 0, 1, 1], [], []>} : vector<16x16xf32>, vector<16x8xf32>, vector<16x8xf32> -> vector<16x8xf32>
    %723 = vector.extract_strided_slice %604 {offsets = [24, 0], sizes = [8, 32], strides = [1, 1]} : vector<32x32xf32> to vector<8x32xf32>
    %cst_299 = arith.constant dense<0.000000e+00> : vector<16x32xf32>
    %724 = tpu.matmul %722, %723, %cst_299 {dimension_numbers = #tpu.dot_dimension_numbers<[1], [0], [0], [1], [0, 0, 1, 1], [], []>} : vector<16x8xf32>, vector<8x32xf32>, vector<16x32xf32> -> vector<16x32xf32>
    %725 = arith.addf %705, %724 : vector<16x32xf32>
    %726 = vector.broadcast %605 : vector<1x32xf32> to vector<16x32xf32>
    %727 = arith.addf %725, %726 : vector<16x32xf32>
    %728 = arith.addf %599, %727 : vector<16x32xf32>
    %cst_300 = arith.constant dense<0.000000e+00> : vector<16xf32>
    %729 = vector.multi_reduction <add>, %728, %cst_300 [1] : vector<16x32xf32> to vector<16xf32>
    %730 = vector.shape_cast %729 : vector<16xf32> to vector<16x1xf32>
    %cst_301 = arith.constant 3.200000e+01 : f32
    %731 = vector.broadcast %cst_301 : f32 to vector<16x1xf32>
    %732 = arith.divf %730, %731 : vector<16x1xf32>
    %733 = vector.broadcast %732 : vector<16x1xf32> to vector<16x32xf32>
    %734 = arith.subf %728, %733 : vector<16x32xf32>
    %735 = arith.mulf %734, %734 : vector<16x32xf32>
    %cst_302 = arith.constant dense<0.000000e+00> : vector<16xf32>
    %736 = vector.multi_reduction <add>, %735, %cst_302 [1] : vector<16x32xf32> to vector<16xf32>
    %737 = vector.shape_cast %736 : vector<16xf32> to vector<16x1xf32>
    %cst_303 = arith.constant 0.0322580636 : f32
    %738 = vector.broadcast %cst_303 : f32 to vector<16x1xf32>
    %739 = arith.mulf %737, %738 : vector<16x1xf32>
    %740 = math.sqrt %739 : vector<16x1xf32>
    %cst_304 = arith.constant 9.99999997E-7 : f32
    %741 = vector.broadcast %cst_304 : f32 to vector<16x1xf32>
    %742 = arith.addf %740, %741 : vector<16x1xf32>
    %743 = tpu.reciprocal %742 {approx = true} : vector<16x1xf32> -> vector<16x1xf32>
    %744 = vector.broadcast %606 : vector<1x32xf32> to vector<16x32xf32>
    %745 = arith.mulf %744, %734 : vector<16x32xf32>
    %746 = vector.broadcast %743 : vector<16x1xf32> to vector<16x32xf32>
    %747 = arith.mulf %745, %746 : vector<16x32xf32>
    %748 = vector.broadcast %607 : vector<1x32xf32> to vector<16x32xf32>
    %749 = arith.addf %747, %748 : vector<16x32xf32>
    %cst_305 = arith.constant dense<0.000000e+00> : vector<16x32xf32>
    %750 = tpu.matmul %749, %608, %cst_305 {dimension_numbers = #tpu.dot_dimension_numbers<[1], [0], [0], [1], [0, 0, 1, 1], [], []>} : vector<16x32xf32>, vector<32x32xf32>, vector<16x32xf32> -> vector<16x32xf32>
    %751 = vector.broadcast %609 : vector<1x32xf32> to vector<16x32xf32>
    %752 = arith.addf %750, %751 : vector<16x32xf32>
    %cst_306 = arith.constant dense<0.000000e+00> : vector<16x64xf32>
    %753 = tpu.matmul %328, %610, %cst_306 {dimension_numbers = #tpu.dot_dimension_numbers<[1], [0], [0], [1], [0, 0, 1, 1], [], []>} : vector<16x32xf32>, vector<32x64xf32>, vector<16x64xf32> -> vector<16x64xf32>
    %754 = vector.broadcast %611 : vector<1x64xf32> to vector<16x64xf32>
    %755 = arith.addf %753, %754 : vector<16x64xf32>
    %756 = vector.extract_strided_slice %755 {offsets = [0, 0], sizes = [16, 32], strides = [1, 1]} : vector<16x64xf32> to vector<16x32xf32>
    %757 = vector.extract_strided_slice %755 {offsets = [0, 32], sizes = [16, 32], strides = [1, 1]} : vector<16x64xf32> to vector<16x32xf32>
    %758 = vector.extract_strided_slice %752 {offsets = [0, 0], sizes = [16, 8], strides = [1, 1]} : vector<16x32xf32> to vector<16x8xf32>
    %759 = vector.extract_strided_slice %756 {offsets = [0, 0], sizes = [16, 8], strides = [1, 1]} : vector<16x32xf32> to vector<16x8xf32>
    %760 = tpu.transpose %759, [1, 0] : vector<16x8xf32> -> vector<8x16xf32>
    %cst_307 = arith.constant dense<0.000000e+00> : vector<16x16xf32>
    %761 = tpu.matmul %758, %760, %cst_307 {dimension_numbers = #tpu.dot_dimension_numbers<[1], [0], [0], [1], [0, 0, 1, 1], [], []>} : vector<16x8xf32>, vector<8x16xf32>, vector<16x16xf32> -> vector<16x16xf32>
    %762 = arith.addf %761, %2 : vector<16x16xf32>
    %cst_308 = arith.constant dense<0xFF800000> : vector<16xf32>
    %763 = vector.multi_reduction <maximumf>, %762, %cst_308 [1] : vector<16x16xf32> to vector<16xf32>
    %764 = vector.shape_cast %763 : vector<16xf32> to vector<16x1xf32>
    %765 = vector.broadcast %764 : vector<16x1xf32> to vector<16x16xf32>
    %766 = arith.subf %762, %765 : vector<16x16xf32>
    %767 = math.exp %766 : vector<16x16xf32>
    %cst_309 = arith.constant dense<0.000000e+00> : vector<16xf32>
    %768 = vector.multi_reduction <add>, %767, %cst_309 [1] : vector<16x16xf32> to vector<16xf32>
    %769 = vector.shape_cast %768 : vector<16xf32> to vector<16x1xf32>
    %770 = tpu.reciprocal %769 {approx = true} : vector<16x1xf32> -> vector<16x1xf32>
    %771 = vector.broadcast %770 : vector<16x1xf32> to vector<16x16xf32>
    %772 = arith.mulf %767, %771 : vector<16x16xf32>
    %773 = vector.extract_strided_slice %757 {offsets = [0, 0], sizes = [16, 8], strides = [1, 1]} : vector<16x32xf32> to vector<16x8xf32>
    %cst_310 = arith.constant dense<0.000000e+00> : vector<16x8xf32>
    %774 = tpu.matmul %772, %773, %cst_310 {dimension_numbers = #tpu.dot_dimension_numbers<[1], [0], [0], [1], [0, 0, 1, 1], [], []>} : vector<16x16xf32>, vector<16x8xf32>, vector<16x8xf32> -> vector<16x8xf32>
    %775 = vector.extract_strided_slice %612 {offsets = [0, 0], sizes = [8, 32], strides = [1, 1]} : vector<32x32xf32> to vector<8x32xf32>
    %cst_311 = arith.constant dense<0.000000e+00> : vector<16x32xf32>
    %776 = tpu.matmul %774, %775, %cst_311 {dimension_numbers = #tpu.dot_dimension_numbers<[1], [0], [0], [1], [0, 0, 1, 1], [], []>} : vector<16x8xf32>, vector<8x32xf32>, vector<16x32xf32> -> vector<16x32xf32>
    %777 = vector.extract_strided_slice %752 {offsets = [0, 8], sizes = [16, 8], strides = [1, 1]} : vector<16x32xf32> to vector<16x8xf32>
    %778 = vector.extract_strided_slice %756 {offsets = [0, 8], sizes = [16, 8], strides = [1, 1]} : vector<16x32xf32> to vector<16x8xf32>
    %779 = tpu.transpose %778, [1, 0] : vector<16x8xf32> -> vector<8x16xf32>
    %cst_312 = arith.constant dense<0.000000e+00> : vector<16x16xf32>
    %780 = tpu.matmul %777, %779, %cst_312 {dimension_numbers = #tpu.dot_dimension_numbers<[1], [0], [0], [1], [0, 0, 1, 1], [], []>} : vector<16x8xf32>, vector<8x16xf32>, vector<16x16xf32> -> vector<16x16xf32>
    %781 = arith.addf %780, %2 : vector<16x16xf32>
    %cst_313 = arith.constant dense<0xFF800000> : vector<16xf32>
    %782 = vector.multi_reduction <maximumf>, %781, %cst_313 [1] : vector<16x16xf32> to vector<16xf32>
    %783 = vector.shape_cast %782 : vector<16xf32> to vector<16x1xf32>
    %784 = vector.broadcast %783 : vector<16x1xf32> to vector<16x16xf32>
    %785 = arith.subf %781, %784 : vector<16x16xf32>
    %786 = math.exp %785 : vector<16x16xf32>
    %cst_314 = arith.constant dense<0.000000e+00> : vector<16xf32>
    %787 = vector.multi_reduction <add>, %786, %cst_314 [1] : vector<16x16xf32> to vector<16xf32>
    %788 = vector.shape_cast %787 : vector<16xf32> to vector<16x1xf32>
    %789 = tpu.reciprocal %788 {approx = true} : vector<16x1xf32> -> vector<16x1xf32>
    %790 = vector.broadcast %789 : vector<16x1xf32> to vector<16x16xf32>
    %791 = arith.mulf %786, %790 : vector<16x16xf32>
    %792 = vector.extract_strided_slice %757 {offsets = [0, 8], sizes = [16, 8], strides = [1, 1]} : vector<16x32xf32> to vector<16x8xf32>
    %cst_315 = arith.constant dense<0.000000e+00> : vector<16x8xf32>
    %793 = tpu.matmul %791, %792, %cst_315 {dimension_numbers = #tpu.dot_dimension_numbers<[1], [0], [0], [1], [0, 0, 1, 1], [], []>} : vector<16x16xf32>, vector<16x8xf32>, vector<16x8xf32> -> vector<16x8xf32>
    %794 = vector.extract_strided_slice %612 {offsets = [8, 0], sizes = [8, 32], strides = [1, 1]} : vector<32x32xf32> to vector<8x32xf32>
    %cst_316 = arith.constant dense<0.000000e+00> : vector<16x32xf32>
    %795 = tpu.matmul %793, %794, %cst_316 {dimension_numbers = #tpu.dot_dimension_numbers<[1], [0], [0], [1], [0, 0, 1, 1], [], []>} : vector<16x8xf32>, vector<8x32xf32>, vector<16x32xf32> -> vector<16x32xf32>
    %796 = arith.addf %776, %795 : vector<16x32xf32>
    %797 = vector.extract_strided_slice %752 {offsets = [0, 16], sizes = [16, 8], strides = [1, 1]} : vector<16x32xf32> to vector<16x8xf32>
    %798 = vector.extract_strided_slice %756 {offsets = [0, 16], sizes = [16, 8], strides = [1, 1]} : vector<16x32xf32> to vector<16x8xf32>
    %799 = tpu.transpose %798, [1, 0] : vector<16x8xf32> -> vector<8x16xf32>
    %cst_317 = arith.constant dense<0.000000e+00> : vector<16x16xf32>
    %800 = tpu.matmul %797, %799, %cst_317 {dimension_numbers = #tpu.dot_dimension_numbers<[1], [0], [0], [1], [0, 0, 1, 1], [], []>} : vector<16x8xf32>, vector<8x16xf32>, vector<16x16xf32> -> vector<16x16xf32>
    %801 = arith.addf %800, %2 : vector<16x16xf32>
    %cst_318 = arith.constant dense<0xFF800000> : vector<16xf32>
    %802 = vector.multi_reduction <maximumf>, %801, %cst_318 [1] : vector<16x16xf32> to vector<16xf32>
    %803 = vector.shape_cast %802 : vector<16xf32> to vector<16x1xf32>
    %804 = vector.broadcast %803 : vector<16x1xf32> to vector<16x16xf32>
    %805 = arith.subf %801, %804 : vector<16x16xf32>
    %806 = math.exp %805 : vector<16x16xf32>
    %cst_319 = arith.constant dense<0.000000e+00> : vector<16xf32>
    %807 = vector.multi_reduction <add>, %806, %cst_319 [1] : vector<16x16xf32> to vector<16xf32>
    %808 = vector.shape_cast %807 : vector<16xf32> to vector<16x1xf32>
    %809 = tpu.reciprocal %808 {approx = true} : vector<16x1xf32> -> vector<16x1xf32>
    %810 = vector.broadcast %809 : vector<16x1xf32> to vector<16x16xf32>
    %811 = arith.mulf %806, %810 : vector<16x16xf32>
    %812 = vector.extract_strided_slice %757 {offsets = [0, 16], sizes = [16, 8], strides = [1, 1]} : vector<16x32xf32> to vector<16x8xf32>
    %cst_320 = arith.constant dense<0.000000e+00> : vector<16x8xf32>
    %813 = tpu.matmul %811, %812, %cst_320 {dimension_numbers = #tpu.dot_dimension_numbers<[1], [0], [0], [1], [0, 0, 1, 1], [], []>} : vector<16x16xf32>, vector<16x8xf32>, vector<16x8xf32> -> vector<16x8xf32>
    %814 = vector.extract_strided_slice %612 {offsets = [16, 0], sizes = [8, 32], strides = [1, 1]} : vector<32x32xf32> to vector<8x32xf32>
    %cst_321 = arith.constant dense<0.000000e+00> : vector<16x32xf32>
    %815 = tpu.matmul %813, %814, %cst_321 {dimension_numbers = #tpu.dot_dimension_numbers<[1], [0], [0], [1], [0, 0, 1, 1], [], []>} : vector<16x8xf32>, vector<8x32xf32>, vector<16x32xf32> -> vector<16x32xf32>
    %816 = arith.addf %796, %815 : vector<16x32xf32>
    %817 = vector.extract_strided_slice %752 {offsets = [0, 24], sizes = [16, 8], strides = [1, 1]} : vector<16x32xf32> to vector<16x8xf32>
    %818 = vector.extract_strided_slice %756 {offsets = [0, 24], sizes = [16, 8], strides = [1, 1]} : vector<16x32xf32> to vector<16x8xf32>
    %819 = tpu.transpose %818, [1, 0] : vector<16x8xf32> -> vector<8x16xf32>
    %cst_322 = arith.constant dense<0.000000e+00> : vector<16x16xf32>
    %820 = tpu.matmul %817, %819, %cst_322 {dimension_numbers = #tpu.dot_dimension_numbers<[1], [0], [0], [1], [0, 0, 1, 1], [], []>} : vector<16x8xf32>, vector<8x16xf32>, vector<16x16xf32> -> vector<16x16xf32>
    %821 = arith.addf %820, %2 : vector<16x16xf32>
    %cst_323 = arith.constant dense<0xFF800000> : vector<16xf32>
    %822 = vector.multi_reduction <maximumf>, %821, %cst_323 [1] : vector<16x16xf32> to vector<16xf32>
    %823 = vector.shape_cast %822 : vector<16xf32> to vector<16x1xf32>
    %824 = vector.broadcast %823 : vector<16x1xf32> to vector<16x16xf32>
    %825 = arith.subf %821, %824 : vector<16x16xf32>
    %826 = math.exp %825 : vector<16x16xf32>
    %cst_324 = arith.constant dense<0.000000e+00> : vector<16xf32>
    %827 = vector.multi_reduction <add>, %826, %cst_324 [1] : vector<16x16xf32> to vector<16xf32>
    %828 = vector.shape_cast %827 : vector<16xf32> to vector<16x1xf32>
    %829 = tpu.reciprocal %828 {approx = true} : vector<16x1xf32> -> vector<16x1xf32>
    %830 = vector.broadcast %829 : vector<16x1xf32> to vector<16x16xf32>
    %831 = arith.mulf %826, %830 : vector<16x16xf32>
    %832 = vector.extract_strided_slice %757 {offsets = [0, 24], sizes = [16, 8], strides = [1, 1]} : vector<16x32xf32> to vector<16x8xf32>
    %cst_325 = arith.constant dense<0.000000e+00> : vector<16x8xf32>
    %833 = tpu.matmul %831, %832, %cst_325 {dimension_numbers = #tpu.dot_dimension_numbers<[1], [0], [0], [1], [0, 0, 1, 1], [], []>} : vector<16x16xf32>, vector<16x8xf32>, vector<16x8xf32> -> vector<16x8xf32>
    %834 = vector.extract_strided_slice %612 {offsets = [24, 0], sizes = [8, 32], strides = [1, 1]} : vector<32x32xf32> to vector<8x32xf32>
    %cst_326 = arith.constant dense<0.000000e+00> : vector<16x32xf32>
    %835 = tpu.matmul %833, %834, %cst_326 {dimension_numbers = #tpu.dot_dimension_numbers<[1], [0], [0], [1], [0, 0, 1, 1], [], []>} : vector<16x8xf32>, vector<8x32xf32>, vector<16x32xf32> -> vector<16x32xf32>
    %836 = arith.addf %816, %835 : vector<16x32xf32>
    %837 = vector.broadcast %613 : vector<1x32xf32> to vector<16x32xf32>
    %838 = arith.addf %836, %837 : vector<16x32xf32>
    %839 = arith.addf %728, %838 : vector<16x32xf32>
    %cst_327 = arith.constant dense<0.000000e+00> : vector<16xf32>
    %840 = vector.multi_reduction <add>, %839, %cst_327 [1] : vector<16x32xf32> to vector<16xf32>
    %841 = vector.shape_cast %840 : vector<16xf32> to vector<16x1xf32>
    %cst_328 = arith.constant 3.200000e+01 : f32
    %842 = vector.broadcast %cst_328 : f32 to vector<16x1xf32>
    %843 = arith.divf %841, %842 : vector<16x1xf32>
    %844 = vector.broadcast %843 : vector<16x1xf32> to vector<16x32xf32>
    %845 = arith.subf %839, %844 : vector<16x32xf32>
    %846 = arith.mulf %845, %845 : vector<16x32xf32>
    %cst_329 = arith.constant dense<0.000000e+00> : vector<16xf32>
    %847 = vector.multi_reduction <add>, %846, %cst_329 [1] : vector<16x32xf32> to vector<16xf32>
    %848 = vector.shape_cast %847 : vector<16xf32> to vector<16x1xf32>
    %cst_330 = arith.constant 0.0322580636 : f32
    %849 = vector.broadcast %cst_330 : f32 to vector<16x1xf32>
    %850 = arith.mulf %848, %849 : vector<16x1xf32>
    %851 = math.sqrt %850 : vector<16x1xf32>
    %cst_331 = arith.constant 9.99999997E-7 : f32
    %852 = vector.broadcast %cst_331 : f32 to vector<16x1xf32>
    %853 = arith.addf %851, %852 : vector<16x1xf32>
    %854 = tpu.reciprocal %853 {approx = true} : vector<16x1xf32> -> vector<16x1xf32>
    %855 = vector.broadcast %614 : vector<1x32xf32> to vector<16x32xf32>
    %856 = arith.mulf %855, %845 : vector<16x32xf32>
    %857 = vector.broadcast %854 : vector<16x1xf32> to vector<16x32xf32>
    %858 = arith.mulf %856, %857 : vector<16x32xf32>
    %859 = vector.broadcast %615 : vector<1x32xf32> to vector<16x32xf32>
    %860 = arith.addf %858, %859 : vector<16x32xf32>
    %cst_332 = arith.constant dense<0.000000e+00> : vector<16x64xf32>
    %861 = tpu.matmul %860, %616, %cst_332 {dimension_numbers = #tpu.dot_dimension_numbers<[1], [0], [0], [1], [0, 0, 1, 1], [], []>} : vector<16x32xf32>, vector<32x64xf32>, vector<16x64xf32> -> vector<16x64xf32>
    %862 = vector.broadcast %617 : vector<1x64xf32> to vector<16x64xf32>
    %863 = arith.addf %861, %862 : vector<16x64xf32>
    %cst_333 = arith.constant 0.000000e+00 : f32
    %864 = vector.broadcast %cst_333 : f32 to vector<16x64xf32>
    %865 = arith.maximumf %863, %864 : vector<16x64xf32>
    %cst_334 = arith.constant dense<0.000000e+00> : vector<16x32xf32>
    %866 = tpu.matmul %865, %618, %cst_334 {dimension_numbers = #tpu.dot_dimension_numbers<[1], [0], [0], [1], [0, 0, 1, 1], [], []>} : vector<16x64xf32>, vector<64x32xf32>, vector<16x32xf32> -> vector<16x32xf32>
    %867 = vector.broadcast %619 : vector<1x32xf32> to vector<16x32xf32>
    %868 = arith.addf %866, %867 : vector<16x32xf32>
    %869 = arith.addf %839, %868 : vector<16x32xf32>
    %c0_335 = arith.constant 0 : index
    %c0_336 = arith.constant 0 : index
    %870 = vector.load %arg71[%c0_335, %c0_336] : memref<1x32xf32, #tpu.memory_space<vmem>>, vector<1x32xf32>
    %c0_337 = arith.constant 0 : index
    %c0_338 = arith.constant 0 : index
    %871 = vector.load %arg72[%c0_337, %c0_338] : memref<1x32xf32, #tpu.memory_space<vmem>>, vector<1x32xf32>
    %cst_339 = arith.constant dense<0.000000e+00> : vector<16xf32>
    %872 = vector.multi_reduction <add>, %869, %cst_339 [1] : vector<16x32xf32> to vector<16xf32>
    %873 = vector.shape_cast %872 : vector<16xf32> to vector<16x1xf32>
    %cst_340 = arith.constant 3.200000e+01 : f32
    %874 = vector.broadcast %cst_340 : f32 to vector<16x1xf32>
    %875 = arith.divf %873, %874 : vector<16x1xf32>
    %876 = vector.broadcast %875 : vector<16x1xf32> to vector<16x32xf32>
    %877 = arith.subf %869, %876 : vector<16x32xf32>
    %878 = arith.mulf %877, %877 : vector<16x32xf32>
    %cst_341 = arith.constant dense<0.000000e+00> : vector<16xf32>
    %879 = vector.multi_reduction <add>, %878, %cst_341 [1] : vector<16x32xf32> to vector<16xf32>
    %880 = vector.shape_cast %879 : vector<16xf32> to vector<16x1xf32>
    %cst_342 = arith.constant 0.0322580636 : f32
    %881 = vector.broadcast %cst_342 : f32 to vector<16x1xf32>
    %882 = arith.mulf %880, %881 : vector<16x1xf32>
    %883 = math.sqrt %882 : vector<16x1xf32>
    %cst_343 = arith.constant 9.99999997E-7 : f32
    %884 = vector.broadcast %cst_343 : f32 to vector<16x1xf32>
    %885 = arith.addf %883, %884 : vector<16x1xf32>
    %886 = tpu.reciprocal %885 {approx = true} : vector<16x1xf32> -> vector<16x1xf32>
    %887 = vector.broadcast %870 : vector<1x32xf32> to vector<16x32xf32>
    %888 = arith.mulf %887, %877 : vector<16x32xf32>
    %889 = vector.broadcast %886 : vector<16x1xf32> to vector<16x32xf32>
    %890 = arith.mulf %888, %889 : vector<16x32xf32>
    %891 = vector.broadcast %871 : vector<1x32xf32> to vector<16x32xf32>
    %892 = arith.addf %890, %891 : vector<16x32xf32>
    %c0_344 = arith.constant 0 : index
    %c0_345 = arith.constant 0 : index
    %893 = vector.load %arg73[%c0_344, %c0_345] : memref<32x128xf32, #tpu.memory_space<vmem>>, vector<32x128xf32>
    %c0_346 = arith.constant 0 : index
    %c0_347 = arith.constant 0 : index
    %894 = vector.load %arg74[%c0_346, %c0_347] : memref<1x128xf32, #tpu.memory_space<vmem>>, vector<1x128xf32>
    %cst_348 = arith.constant dense<0.000000e+00> : vector<16x128xf32>
    %895 = tpu.matmul %892, %893, %cst_348 {dimension_numbers = #tpu.dot_dimension_numbers<[1], [0], [0], [1], [0, 0, 1, 1], [], []>} : vector<16x32xf32>, vector<32x128xf32>, vector<16x128xf32> -> vector<16x128xf32>
    %896 = vector.broadcast %894 : vector<1x128xf32> to vector<16x128xf32>
    %897 = arith.addf %895, %896 : vector<16x128xf32>
    %cst_349 = arith.constant dense<0xFF800000> : vector<16xf32>
    %898 = vector.multi_reduction <maximumf>, %897, %cst_349 [1] : vector<16x128xf32> to vector<16xf32>
    %899 = vector.shape_cast %898 : vector<16xf32> to vector<16x1xf32>
    %900 = vector.broadcast %899 : vector<16x1xf32> to vector<16x128xf32>
    %901 = arith.subf %897, %900 : vector<16x128xf32>
    %902 = math.exp %901 : vector<16x128xf32>
    %cst_350 = arith.constant dense<0.000000e+00> : vector<16xf32>
    %903 = vector.multi_reduction <add>, %902, %cst_350 [1] : vector<16x128xf32> to vector<16xf32>
    %904 = vector.shape_cast %903 : vector<16xf32> to vector<16x1xf32>
    %905 = math.log %904 : vector<16x1xf32>
    %906 = vector.broadcast %905 : vector<16x1xf32> to vector<16x128xf32>
    %907 = arith.subf %901, %906 : vector<16x128xf32>
    %c0_351 = arith.constant 0 : index
    %c0_352 = arith.constant 0 : index
    %908 = vector.load %arg75[%c0_351, %c0_352] : memref<16x128xf32, #tpu.memory_space<vmem>>, vector<16x128xf32>
    tpu.vector_store %arg75[%c0_351, %c0_352], %907 {strides = array<i32>} : memref<16x128xf32, #tpu.memory_space<vmem>>, vector<16x128xf32>,
    return
  }
}

</mosaic_0001>

<llo_original>
// kernel: encoder_decoder_forward.1
$region0: #{encoder_decoder_forward.1}
  #allocation0 [shape = 'u32[]', space=smem, size = 0x4, offset = 0x4, fixed_abs, tag = 'smem constant byte address 0x4 - core index']
  #allocation1 [shape = 'u32[144,128]{1,0:T(1,128)}', space=vmem, size = 0x12000, scoped, tag = 'internal scratch']
  %s0 = inlined_call_operand.smem [shape: u32[76], index: -1, kind: input, shape index: {}]
  %s1 = sld [smem:[%s0]]
  %s2 = scalar_lea.smem %s0, 1
  %s3 = sld [smem:[%s2]]
  %s4 = scalar_lea.smem %s0, 2
  %s5 = sld [smem:[%s4]]
  %s6 = scalar_lea.smem %s0, 3
  %s7 = sld [smem:[%s6]]
  %s8 = scalar_lea.smem %s0, 4
  %s9 = sld [smem:[%s8]]
  %s10 = scalar_lea.smem %s0, 5
  %s11 = sld [smem:[%s10]]
  %s12 = scalar_lea.smem %s0, 6
  %s13 = sld [smem:[%s12]]
  %s14 = scalar_lea.smem %s0, 7
  %s15 = sld [smem:[%s14]]
  %s16 = scalar_lea.smem %s0, 8
  %s17 = sld [smem:[%s16]]
  %s18 = scalar_lea.smem %s0, 9
  %s19 = sld [smem:[%s18]]
  %s20 = scalar_lea.smem %s0, 10
  %s21 = sld [smem:[%s20]]
  %s22 = scalar_lea.smem %s0, 11
  %s23 = sld [smem:[%s22]]
  %s24 = scalar_lea.smem %s0, 12
  %s25 = sld [smem:[%s24]]
  %s26 = scalar_lea.smem %s0, 13
  %s27 = sld [smem:[%s26]]
  %s28 = scalar_lea.smem %s0, 14
  %s29 = sld [smem:[%s28]]
  %s30 = scalar_lea.smem %s0, 15
  %s31 = sld [smem:[%s30]]
  %s32 = scalar_lea.smem %s0, 16
  %s33 = sld [smem:[%s32]]
  %s34 = scalar_lea.smem %s0, 17
  %s35 = sld [smem:[%s34]]
  %s36 = scalar_lea.smem %s0, 18
  %s37 = sld [smem:[%s36]]
  %s38 = scalar_lea.smem %s0, 19
  %s39 = sld [smem:[%s38]]
  %s40 = scalar_lea.smem %s0, 20
  %s41 = sld [smem:[%s40]]
  %s42 = scalar_lea.smem %s0, 21
  %s43 = sld [smem:[%s42]]
  %s44 = scalar_lea.smem %s0, 22
  %s45 = sld [smem:[%s44]]
  %s46 = scalar_lea.smem %s0, 23
  %s47 = sld [smem:[%s46]]
  %s48 = scalar_lea.smem %s0, 24
  %s49 = sld [smem:[%s48]]
  %s50 = scalar_lea.smem %s0, 25
  %s51 = sld [smem:[%s50]]
  %s52 = scalar_lea.smem %s0, 26
  %s53 = sld [smem:[%s52]]
  %s54 = scalar_lea.smem %s0, 27
  %s55 = sld [smem:[%s54]]
  %s56 = scalar_lea.smem %s0, 28
  %s57 = sld [smem:[%s56]]
  %s58 = scalar_lea.smem %s0, 29
  %s59 = sld [smem:[%s58]]
  %s60 = scalar_lea.smem %s0, 30
  %s61 = sld [smem:[%s60]]
  %s62 = scalar_lea.smem %s0, 31
  %s63 = sld [smem:[%s62]]
  %s64 = scalar_lea.smem %s0, 32
  %s65 = sld [smem:[%s64]]
  %s66 = scalar_lea.smem %s0, 33
  %s67 = sld [smem:[%s66]]
  %s68 = scalar_lea.smem %s0, 34
  %s69 = sld [smem:[%s68]]
  %s70 = scalar_lea.smem %s0, 35
  %s71 = sld [smem:[%s70]]
  %s72 = scalar_lea.smem %s0, 36
  %s73 = sld [smem:[%s72]]
  %s74 = scalar_lea.smem %s0, 37
  %s75 = sld [smem:[%s74]]
  %s76 = scalar_lea.smem %s0, 38
  %s77 = sld [smem:[%s76]]
  %s78 = scalar_lea.smem %s0, 39
  %s79 = sld [smem:[%s78]]
  %s80 = scalar_lea.smem %s0, 40
  %s81 = sld [smem:[%s80]]
  %s82 = scalar_lea.smem %s0, 41
  %s83 = sld [smem:[%s82]]
  %s84 = scalar_lea.smem %s0, 42
  %s85 = sld [smem:[%s84]]
  %s86 = scalar_lea.smem %s0, 43
  %s87 = sld [smem:[%s86]]
  %s88 = scalar_lea.smem %s0, 44
  %s89 = sld [smem:[%s88]]
  %s90 = scalar_lea.smem %s0, 45
  %s91 = sld [smem:[%s90]]
  %s92 = scalar_lea.smem %s0, 46
  %s93 = sld [smem:[%s92]]
  %s94 = scalar_lea.smem %s0, 47
  %s95 = sld [smem:[%s94]]
  %s96 = scalar_lea.smem %s0, 48
  %s97 = sld [smem:[%s96]]
  %s98 = scalar_lea.smem %s0, 49
  %s99 = sld [smem:[%s98]]
  %s100 = scalar_lea.smem %s0, 50
  %s101 = sld [smem:[%s100]]
  %s102 = scalar_lea.smem %s0, 51
  %s103 = sld [smem:[%s102]]
  %s104 = scalar_lea.smem %s0, 52
  %s105 = sld [smem:[%s104]]
  %s106 = scalar_lea.smem %s0, 53
  %s107 = sld [smem:[%s106]]
  %s108 = scalar_lea.smem %s0, 54
  %s109 = sld [smem:[%s108]]
  %s110 = scalar_lea.smem %s0, 55
  %s111 = sld [smem:[%s110]]
  %s112 = scalar_lea.smem %s0, 56
  %s113 = sld [smem:[%s112]]
  %s114 = scalar_lea.smem %s0, 57
  %s115 = sld [smem:[%s114]]
  %s116 = scalar_lea.smem %s0, 58
  %s117 = sld [smem:[%s116]]
  %s118 = scalar_lea.smem %s0, 59
  %s119 = sld [smem:[%s118]]
  %s120 = scalar_lea.smem %s0, 60
  %s121 = sld [smem:[%s120]]
  %s122 = scalar_lea.smem %s0, 61
  %s123 = sld [smem:[%s122]]
  %s124 = scalar_lea.smem %s0, 62
  %s125 = sld [smem:[%s124]]
  %s126 = scalar_lea.smem %s0, 63
  %s127 = sld [smem:[%s126]]
  %s128 = scalar_lea.smem %s0, 64
  %s129 = sld [smem:[%s128]]
  %s130 = scalar_lea.smem %s0, 65
  %s131 = sld [smem:[%s130]]
  %s132 = scalar_lea.smem %s0, 66
  %s133 = sld [smem:[%s132]]
  %s134 = scalar_lea.smem %s0, 67
  %s135 = sld [smem:[%s134]]
  %s136 = scalar_lea.smem %s0, 68
  %s137 = sld [smem:[%s136]]
  %s138 = scalar_lea.smem %s0, 69
  %s139 = sld [smem:[%s138]]
  %s140 = scalar_lea.smem %s0, 70
  %s141 = sld [smem:[%s140]]
  %s142 = scalar_lea.smem %s0, 71
  %s143 = sld [smem:[%s142]]
  %s144 = scalar_lea.smem %s0, 72
  %s145 = sld [smem:[%s144]]
  %s146 = scalar_lea.smem %s0, 73
  %s147 = sld [smem:[%s146]]
  %s148 = scalar_lea.smem %s0, 74
  %s149 = sld [smem:[%s148]]
  %s150 = scalar_lea.smem %s0, 75
  %s151 = sld [smem:[%s150]]
  %s152 = sld [smem:[#allocation0]]
  $region326: #{encoder_decoder_forward.1} parent=0
    _
  %s154 = ssub.s32 1, %s152
  %s155 = scalar_select 0, %s154, %s152
  $region1: #{encoder_decoder_forward.1} parent=0
    #allocation2 [shape = 'u8[512]{0}', space=vmem, size = 0x400, scoped, tag = 'input window, operand 68, single buffered']
    #allocation3 [shape = 's32[1]{0}', space=sflag, size = 0x4, scoped, tag = 'scoped memory for encoder_decoder_forward.1']
    #allocation4 [shape = 's32[1]{0}', space=sflag, size = 0x4, scoped, tag = 'scoped memory for encoder_decoder_forward.1']
    #allocation5 [shape = 'u8[512]{0}', space=vmem, size = 0x400, scoped, tag = 'input window, operand 70, single buffered']
    #allocation6 [shape = 's32[1]{0}', space=sflag, size = 0x4, scoped, tag = 'scoped memory for encoder_decoder_forward.1']
    #allocation7 [shape = 'u8[512]{0}', space=vmem, size = 0x400, scoped, tag = 'input window, operand 71, single buffered']
    #allocation8 [shape = 'u8[512]{0}', space=vmem, size = 0x400, scoped, tag = 'input window, operand 72, single buffered']
    #allocation9 [shape = 's32[1]{0}', space=sflag, size = 0x4, scoped, tag = 'scoped memory for encoder_decoder_forward.1']
    #allocation10 [shape = 'u8[8192]{0}', space=vmem, size = 0x2000, scoped, tag = 'output window, operand 0, single buffered']
    %156 = vsyncpa [#allocation3], 0
    %157 = vsyncpa [#allocation6], 0
    %158 = vsyncpa [#allocation9], 0
    %159 = vsyncpa [#allocation4], 0
    // Predicated region
    $region2: #{encoder_decoder_forward.1} parent=1 // pred_check
      _
    $region3: #{encoder_decoder_forward.1} parent=1 // pred_check_branch
      %161 = sbr.rel (0) target = $region5
    $region4: #{encoder_decoder_forward.1} parent=1 // pred_region
      _
    $region5: #{encoder_decoder_forward.1} parent=1 // pred_fallthru
      _
    // Predicated region
    $region6: #{encoder_decoder_forward.1} parent=1 // pred_check
      _
    $region7: #{encoder_decoder_forward.1} parent=1 // pred_check_branch
      %163 = sbr.rel (0) target = $region9
    $region8: #{encoder_decoder_forward.1} parent=1 // pred_region
      _
    $region9: #{encoder_decoder_forward.1} parent=1 // pred_fallthru
      _
    // Predicated region
    $region10: #{encoder_decoder_forward.1} parent=1 // pred_check
      _
    $region11: #{encoder_decoder_forward.1} parent=1 // pred_check_branch
      %165 = sbr.rel (0) target = $region13
    $region12: #{encoder_decoder_forward.1} parent=1 // pred_region
      _
    $region13: #{encoder_decoder_forward.1} parent=1 // pred_fallthru
      _
    // Predicated region
    $region14: #{encoder_decoder_forward.1} parent=1 // pred_check
      _
    $region15: #{encoder_decoder_forward.1} parent=1 // pred_check_branch
      %167 = sbr.rel (0) target = $region17
    $region16: #{encoder_decoder_forward.1} parent=1 // pred_region
      _
    $region17: #{encoder_decoder_forward.1} parent=1 // pred_fallthru
      _
    // Predicated region
    $region18: #{encoder_decoder_forward.1} parent=1 // pred_check
      _
    $region19: #{encoder_decoder_forward.1} parent=1 // pred_check_branch
      %169 = sbr.rel (0) target = $region21
    $region20: #{encoder_decoder_forward.1} parent=1 // pred_region
      _
    $region21: #{encoder_decoder_forward.1} parent=1 // pred_fallthru
      _
    // Predicated region
    $region22: #{encoder_decoder_forward.1} parent=1 // pred_check
      _
    $region23: #{encoder_decoder_forward.1} parent=1 // pred_check_branch
      %171 = sbr.rel (0) target = $region25
    $region24: #{encoder_decoder_forward.1} parent=1 // pred_region
      _
    $region25: #{encoder_decoder_forward.1} parent=1 // pred_fallthru
      _
    // Predicated region
    $region26: #{encoder_decoder_forward.1} parent=1 // pred_check
      _
    $region27: #{encoder_decoder_forward.1} parent=1 // pred_check_branch
      %173 = sbr.rel (0) target = $region29
    $region28: #{encoder_decoder_forward.1} parent=1 // pred_region
      _
    $region29: #{encoder_decoder_forward.1} parent=1 // pred_fallthru
      _
    // Predicated region
    $region30: #{encoder_decoder_forward.1} parent=1 // pred_check
      _
    $region31: #{encoder_decoder_forward.1} parent=1 // pred_check_branch
      %175 = sbr.rel (0) target = $region33
    $region32: #{encoder_decoder_forward.1} parent=1 // pred_region
      _
    $region33: #{encoder_decoder_forward.1} parent=1 // pred_fallthru
      _
    // Predicated region
    $region34: #{encoder_decoder_forward.1} parent=1 // pred_check
      _
    $region35: #{encoder_decoder_forward.1} parent=1 // pred_check_branch
      %177 = sbr.rel (0) target = $region37
    $region36: #{encoder_decoder_forward.1} parent=1 // pred_region
      _
    $region37: #{encoder_decoder_forward.1} parent=1 // pred_fallthru
      _
    // Predicated region
    $region38: #{encoder_decoder_forward.1} parent=1 // pred_check
      _
    $region39: #{encoder_decoder_forward.1} parent=1 // pred_check_branch
      %179 = sbr.rel (0) target = $region41
    $region40: #{encoder_decoder_forward.1} parent=1 // pred_region
      _
    $region41: #{encoder_decoder_forward.1} parent=1 // pred_fallthru
      _
    // Predicated region
    $region42: #{encoder_decoder_forward.1} parent=1 // pred_check
      _
    $region43: #{encoder_decoder_forward.1} parent=1 // pred_check_branch
      %181 = sbr.rel (0) target = $region45
    $region44: #{encoder_decoder_forward.1} parent=1 // pred_region
      _
    $region45: #{encoder_decoder_forward.1} parent=1 // pred_fallthru
      _
    // Predicated region
    $region46: #{encoder_decoder_forward.1} parent=1 // pred_check
      _
    $region47: #{encoder_decoder_forward.1} parent=1 // pred_check_branch
      %183 = sbr.rel (0) target = $region49
    $region48: #{encoder_decoder_forward.1} parent=1 // pred_region
      _
    $region49: #{encoder_decoder_forward.1} parent=1 // pred_fallthru
      _
    // Predicated region
    $region50: #{encoder_decoder_forward.1} parent=1 // pred_check
      _
    $region51: #{encoder_decoder_forward.1} parent=1 // pred_check_branch
      %185 = sbr.rel (0) target = $region53
    $region52: #{encoder_decoder_forward.1} parent=1 // pred_region
      _
    $region53: #{encoder_decoder_forward.1} parent=1 // pred_fallthru
      _
    // Predicated region
    $region54: #{encoder_decoder_forward.1} parent=1 // pred_check
      _
    $region55: #{encoder_decoder_forward.1} parent=1 // pred_check_branch
      %187 = sbr.rel (0) target = $region57
    $region56: #{encoder_decoder_forward.1} parent=1 // pred_region
      _
    $region57: #{encoder_decoder_forward.1} parent=1 // pred_fallthru
      _
    // Predicated region
    $region58: #{encoder_decoder_forward.1} parent=1 // pred_check
      _
    $region59: #{encoder_decoder_forward.1} parent=1 // pred_check_branch
      %189 = sbr.rel (0) target = $region61
    $region60: #{encoder_decoder_forward.1} parent=1 // pred_region
      _
    $region61: #{encoder_decoder_forward.1} parent=1 // pred_fallthru
      _
    // Predicated region
    $region62: #{encoder_decoder_forward.1} parent=1 // pred_check
      _
    $region63: #{encoder_decoder_forward.1} parent=1 // pred_check_branch
      %191 = sbr.rel (0) target = $region65
    $region64: #{encoder_decoder_forward.1} parent=1 // pred_region
      _
    $region65: #{encoder_decoder_forward.1} parent=1 // pred_fallthru
      _
    // Predicated region
    $region66: #{encoder_decoder_forward.1} parent=1 // pred_check
      _
    $region67: #{encoder_decoder_forward.1} parent=1 // pred_check_branch
      %193 = sbr.rel (0) target = $region69
    $region68: #{encoder_decoder_forward.1} parent=1 // pred_region
      _
    $region69: #{encoder_decoder_forward.1} parent=1 // pred_fallthru
      _
    // Predicated region
    $region70: #{encoder_decoder_forward.1} parent=1 // pred_check
      _
    $region71: #{encoder_decoder_forward.1} parent=1 // pred_check_branch
      %195 = sbr.rel (0) target = $region73
    $region72: #{encoder_decoder_forward.1} parent=1 // pred_region
      _
    $region73: #{encoder_decoder_forward.1} parent=1 // pred_fallthru
      _
    // Predicated region
    $region74: #{encoder_decoder_forward.1} parent=1 // pred_check
      _
    $region75: #{encoder_decoder_forward.1} parent=1 // pred_check_branch
      %197 = sbr.rel (0) target = $region77
    $region76: #{encoder_decoder_forward.1} parent=1 // pred_region
      _
    $region77: #{encoder_decoder_forward.1} parent=1 // pred_fallthru
      _
    // Predicated region
    $region78: #{encoder_decoder_forward.1} parent=1 // pred_check
      _
    $region79: #{encoder_decoder_forward.1} parent=1 // pred_check_branch
      %199 = sbr.rel (0) target = $region81
    $region80: #{encoder_decoder_forward.1} parent=1 // pred_region
      _
    $region81: #{encoder_decoder_forward.1} parent=1 // pred_fallthru
      _
    // Predicated region
    $region82: #{encoder_decoder_forward.1} parent=1 // pred_check
      _
    $region83: #{encoder_decoder_forward.1} parent=1 // pred_check_branch
      %201 = sbr.rel (0) target = $region85
    $region84: #{encoder_decoder_forward.1} parent=1 // pred_region
      _
    $region85: #{encoder_decoder_forward.1} parent=1 // pred_fallthru
      _
    // Predicated region
    $region86: #{encoder_decoder_forward.1} parent=1 // pred_check
      _
    $region87: #{encoder_decoder_forward.1} parent=1 // pred_check_branch
      %203 = sbr.rel (0) target = $region89
    $region88: #{encoder_decoder_forward.1} parent=1 // pred_region
      _
    $region89: #{encoder_decoder_forward.1} parent=1 // pred_fallthru
      _
    // Predicated region
    $region90: #{encoder_decoder_forward.1} parent=1 // pred_check
      _
    $region91: #{encoder_decoder_forward.1} parent=1 // pred_check_branch
      %205 = sbr.rel (0) target = $region93
    $region92: #{encoder_decoder_forward.1} parent=1 // pred_region
      _
    $region93: #{encoder_decoder_forward.1} parent=1 // pred_fallthru
      _
    // Predicated region
    $region94: #{encoder_decoder_forward.1} parent=1 // pred_check
      _
    $region95: #{encoder_decoder_forward.1} parent=1 // pred_check_branch
      %207 = sbr.rel (0) target = $region97
    $region96: #{encoder_decoder_forward.1} parent=1 // pred_region
      _
    $region97: #{encoder_decoder_forward.1} parent=1 // pred_fallthru
      _
    // Predicated region
    $region98: #{encoder_decoder_forward.1} parent=1 // pred_check
      _
    $region99: #{encoder_decoder_forward.1} parent=1 // pred_check_branch
      %209 = sbr.rel (0) target = $region101
    $region100: #{encoder_decoder_forward.1} parent=1 // pred_region
      _
    $region101: #{encoder_decoder_forward.1} parent=1 // pred_fallthru
      _
    // Predicated region
    $region102: #{encoder_decoder_forward.1} parent=1 // pred_check
      _
    $region103: #{encoder_decoder_forward.1} parent=1 // pred_check_branch
      %211 = sbr.rel (0) target = $region105
    $region104: #{encoder_decoder_forward.1} parent=1 // pred_region
      _
    $region105: #{encoder_decoder_forward.1} parent=1 // pred_fallthru
      _
    // Predicated region
    $region106: #{encoder_decoder_forward.1} parent=1 // pred_check
      _
    $region107: #{encoder_decoder_forward.1} parent=1 // pred_check_branch
      %213 = sbr.rel (0) target = $region109
    $region108: #{encoder_decoder_forward.1} parent=1 // pred_region
      _
    $region109: #{encoder_decoder_forward.1} parent=1 // pred_fallthru
      _
    // Predicated region
    $region110: #{encoder_decoder_forward.1} parent=1 // pred_check
      _
    $region111: #{encoder_decoder_forward.1} parent=1 // pred_check_branch
      %215 = sbr.rel (0) target = $region113
    $region112: #{encoder_decoder_forward.1} parent=1 // pred_region
      _
    $region113: #{encoder_decoder_forward.1} parent=1 // pred_fallthru
      _
    // Predicated region
    $region114: #{encoder_decoder_forward.1} parent=1 // pred_check
      _
    $region115: #{encoder_decoder_forward.1} parent=1 // pred_check_branch
      %217 = sbr.rel (0) target = $region117
    $region116: #{encoder_decoder_forward.1} parent=1 // pred_region
      _
    $region117: #{encoder_decoder_forward.1} parent=1 // pred_fallthru
      _
    // Predicated region
    $region118: #{encoder_decoder_forward.1} parent=1 // pred_check
      _
    $region119: #{encoder_decoder_forward.1} parent=1 // pred_check_branch
      %219 = sbr.rel (0) target = $region121
    $region120: #{encoder_decoder_forward.1} parent=1 // pred_region
      _
    $region121: #{encoder_decoder_forward.1} parent=1 // pred_fallthru
      _
    // Predicated region
    $region122: #{encoder_decoder_forward.1} parent=1 // pred_check
      _
    $region123: #{encoder_decoder_forward.1} parent=1 // pred_check_branch
      %221 = sbr.rel (0) target = $region125
    $region124: #{encoder_decoder_forward.1} parent=1 // pred_region
      _
    $region125: #{encoder_decoder_forward.1} parent=1 // pred_fallthru
      _
    // Predicated region
    $region126: #{encoder_decoder_forward.1} parent=1 // pred_check
      _
    $region127: #{encoder_decoder_forward.1} parent=1 // pred_check_branch
      %223 = sbr.rel (0) target = $region129
    $region128: #{encoder_decoder_forward.1} parent=1 // pred_region
      _
    $region129: #{encoder_decoder_forward.1} parent=1 // pred_fallthru
      _
    // Predicated region
    $region130: #{encoder_decoder_forward.1} parent=1 // pred_check
      _
    $region131: #{encoder_decoder_forward.1} parent=1 // pred_check_branch
      %225 = sbr.rel (0) target = $region133
    $region132: #{encoder_decoder_forward.1} parent=1 // pred_region
      _
    $region133: #{encoder_decoder_forward.1} parent=1 // pred_fallthru
      _
    // Predicated region
    $region134: #{encoder_decoder_forward.1} parent=1 // pred_check
      _
    $region135: #{encoder_decoder_forward.1} parent=1 // pred_check_branch
      %227 = sbr.rel (0) target = $region137
    $region136: #{encoder_decoder_forward.1} parent=1 // pred_region
      _
    $region137: #{encoder_decoder_forward.1} parent=1 // pred_fallthru
      _
    // Predicated region
    $region138: #{encoder_decoder_forward.1} parent=1 // pred_check
      _
    $region139: #{encoder_decoder_forward.1} parent=1 // pred_check_branch
      %229 = sbr.rel (0) target = $region141
    $region140: #{encoder_decoder_forward.1} parent=1 // pred_region
      _
    $region141: #{encoder_decoder_forward.1} parent=1 // pred_fallthru
      _
    // Predicated region
    $region142: #{encoder_decoder_forward.1} parent=1 // pred_check
      _
    $region143: #{encoder_decoder_forward.1} parent=1 // pred_check_branch
      %231 = sbr.rel (0) target = $region145
    $region144: #{encoder_decoder_forward.1} parent=1 // pred_region
      _
    $region145: #{encoder_decoder_forward.1} parent=1 // pred_fallthru
      _
    // Predicated region
    $region146: #{encoder_decoder_forward.1} parent=1 // pred_check
      _
    $region147: #{encoder_decoder_forward.1} parent=1 // pred_check_branch
      %233 = sbr.rel (0) target = $region149
    $region148: #{encoder_decoder_forward.1} parent=1 // pred_region
      _
    $region149: #{encoder_decoder_forward.1} parent=1 // pred_fallthru
      _
    // Predicated region
    $region150: #{encoder_decoder_forward.1} parent=1 // pred_check
      _
    $region151: #{encoder_decoder_forward.1} parent=1 // pred_check_branch
      %235 = sbr.rel (0) target = $region153
    $region152: #{encoder_decoder_forward.1} parent=1 // pred_region
      _
    $region153: #{encoder_decoder_forward.1} parent=1 // pred_fallthru
      _
    // Predicated region
    $region154: #{encoder_decoder_forward.1} parent=1 // pred_check
      _
    $region155: #{encoder_decoder_forward.1} parent=1 // pred_check_branch
      %237 = sbr.rel (0) target = $region157
    $region156: #{encoder_decoder_forward.1} parent=1 // pred_region
      _
    $region157: #{encoder_decoder_forward.1} parent=1 // pred_fallthru
      _
    // Predicated region
    $region158: #{encoder_decoder_forward.1} parent=1 // pred_check
      _
    $region159: #{encoder_decoder_forward.1} parent=1 // pred_check_branch
      %239 = sbr.rel (0) target = $region161
    $region160: #{encoder_decoder_forward.1} parent=1 // pred_region
      _
    $region161: #{encoder_decoder_forward.1} parent=1 // pred_fallthru
      _
    // Predicated region
    $region162: #{encoder_decoder_forward.1} parent=1 // pred_check
      _
    $region163: #{encoder_decoder_forward.1} parent=1 // pred_check_branch
      %241 = sbr.rel (0) target = $region165
    $region164: #{encoder_decoder_forward.1} parent=1 // pred_region
      _
    $region165: #{encoder_decoder_forward.1} parent=1 // pred_fallthru
      _
    // Predicated region
    $region166: #{encoder_decoder_forward.1} parent=1 // pred_check
      _
    $region167: #{encoder_decoder_forward.1} parent=1 // pred_check_branch
      %243 = sbr.rel (0) target = $region169
    $region168: #{encoder_decoder_forward.1} parent=1 // pred_region
      _
    $region169: #{encoder_decoder_forward.1} parent=1 // pred_fallthru
      _
    // Predicated region
    $region170: #{encoder_decoder_forward.1} parent=1 // pred_check
      _
    $region171: #{encoder_decoder_forward.1} parent=1 // pred_check_branch
      %245 = sbr.rel (0) target = $region173
    $region172: #{encoder_decoder_forward.1} parent=1 // pred_region
      _
    $region173: #{encoder_decoder_forward.1} parent=1 // pred_fallthru
      _
    // Predicated region
    $region174: #{encoder_decoder_forward.1} parent=1 // pred_check
      _
    $region175: #{encoder_decoder_forward.1} parent=1 // pred_check_branch
      %247 = sbr.rel (0) target = $region177
    $region176: #{encoder_decoder_forward.1} parent=1 // pred_region
      _
    $region177: #{encoder_decoder_forward.1} parent=1 // pred_fallthru
      _
    // Predicated region
    $region178: #{encoder_decoder_forward.1} parent=1 // pred_check
      _
    $region179: #{encoder_decoder_forward.1} parent=1 // pred_check_branch
      %249 = sbr.rel (0) target = $region181
    $region180: #{encoder_decoder_forward.1} parent=1 // pred_region
      _
    $region181: #{encoder_decoder_forward.1} parent=1 // pred_fallthru
      _
    // Predicated region
    $region182: #{encoder_decoder_forward.1} parent=1 // pred_check
      _
    $region183: #{encoder_decoder_forward.1} parent=1 // pred_check_branch
      %251 = sbr.rel (0) target = $region185
    $region184: #{encoder_decoder_forward.1} parent=1 // pred_region
      _
    $region185: #{encoder_decoder_forward.1} parent=1 // pred_fallthru
      _
    // Predicated region
    $region186: #{encoder_decoder_forward.1} parent=1 // pred_check
      _
    $region187: #{encoder_decoder_forward.1} parent=1 // pred_check_branch
      %253 = sbr.rel (0) target = $region189
    $region188: #{encoder_decoder_forward.1} parent=1 // pred_region
      _
    $region189: #{encoder_decoder_forward.1} parent=1 // pred_fallthru
      _
    // Predicated region
    $region190: #{encoder_decoder_forward.1} parent=1 // pred_check
      _
    $region191: #{encoder_decoder_forward.1} parent=1 // pred_check_branch
      %255 = sbr.rel (0) target = $region193
    $region192: #{encoder_decoder_forward.1} parent=1 // pred_region
      _
    $region193: #{encoder_decoder_forward.1} parent=1 // pred_fallthru
      _
    // Predicated region
    $region194: #{encoder_decoder_forward.1} parent=1 // pred_check
      _
    $region195: #{encoder_decoder_forward.1} parent=1 // pred_check_branch
      %257 = sbr.rel (0) target = $region197
    $region196: #{encoder_decoder_forward.1} parent=1 // pred_region
      _
    $region197: #{encoder_decoder_forward.1} parent=1 // pred_fallthru
      _
    // Predicated region
    $region198: #{encoder_decoder_forward.1} parent=1 // pred_check
      _
    $region199: #{encoder_decoder_forward.1} parent=1 // pred_check_branch
      %259 = sbr.rel (0) target = $region201
    $region200: #{encoder_decoder_forward.1} parent=1 // pred_region
      _
    $region201: #{encoder_decoder_forward.1} parent=1 // pred_fallthru
      _
    // Predicated region
    $region202: #{encoder_decoder_forward.1} parent=1 // pred_check
      _
    $region203: #{encoder_decoder_forward.1} parent=1 // pred_check_branch
      %261 = sbr.rel (0) target = $region205
    $region204: #{encoder_decoder_forward.1} parent=1 // pred_region
      _
    $region205: #{encoder_decoder_forward.1} parent=1 // pred_fallthru
      _
    // Predicated region
    $region206: #{encoder_decoder_forward.1} parent=1 // pred_check
      _
    $region207: #{encoder_decoder_forward.1} parent=1 // pred_check_branch
      %263 = sbr.rel (0) target = $region209
    $region208: #{encoder_decoder_forward.1} parent=1 // pred_region
      _
    $region209: #{encoder_decoder_forward.1} parent=1 // pred_fallthru
      _
    // Predicated region
    $region210: #{encoder_decoder_forward.1} parent=1 // pred_check
      _
    $region211: #{encoder_decoder_forward.1} parent=1 // pred_check_branch
      %265 = sbr.rel (0) target = $region213
    $region212: #{encoder_decoder_forward.1} parent=1 // pred_region
      _
    $region213: #{encoder_decoder_forward.1} parent=1 // pred_fallthru
      _
    // Predicated region
    $region214: #{encoder_decoder_forward.1} parent=1 // pred_check
      _
    $region215: #{encoder_decoder_forward.1} parent=1 // pred_check_branch
      %267 = sbr.rel (0) target = $region217
    $region216: #{encoder_decoder_forward.1} parent=1 // pred_region
      _
    $region217: #{encoder_decoder_forward.1} parent=1 // pred_fallthru
      _
    // Predicated region
    $region218: #{encoder_decoder_forward.1} parent=1 // pred_check
      _
    $region219: #{encoder_decoder_forward.1} parent=1 // pred_check_branch
      %269 = sbr.rel (0) target = $region221
    $region220: #{encoder_decoder_forward.1} parent=1 // pred_region
      _
    $region221: #{encoder_decoder_forward.1} parent=1 // pred_fallthru
      _
    // Predicated region
    $region222: #{encoder_decoder_forward.1} parent=1 // pred_check
      _
    $region223: #{encoder_decoder_forward.1} parent=1 // pred_check_branch
      %271 = sbr.rel (0) target = $region225
    $region224: #{encoder_decoder_forward.1} parent=1 // pred_region
      _
    $region225: #{encoder_decoder_forward.1} parent=1 // pred_fallthru
      _
    // Predicated region
    $region226: #{encoder_decoder_forward.1} parent=1 // pred_check
      _
    $region227: #{encoder_decoder_forward.1} parent=1 // pred_check_branch
      %273 = sbr.rel (0) target = $region229
    $region228: #{encoder_decoder_forward.1} parent=1 // pred_region
      _
    $region229: #{encoder_decoder_forward.1} parent=1 // pred_fallthru
      _
    // Predicated region
    $region230: #{encoder_decoder_forward.1} parent=1 // pred_check
      _
    $region231: #{encoder_decoder_forward.1} parent=1 // pred_check_branch
      %275 = sbr.rel (0) target = $region233
    $region232: #{encoder_decoder_forward.1} parent=1 // pred_region
      _
    $region233: #{encoder_decoder_forward.1} parent=1 // pred_fallthru
      _
    // Predicated region
    $region234: #{encoder_decoder_forward.1} parent=1 // pred_check
      _
    $region235: #{encoder_decoder_forward.1} parent=1 // pred_check_branch
      %277 = sbr.rel (0) target = $region237
    $region236: #{encoder_decoder_forward.1} parent=1 // pred_region
      _
    $region237: #{encoder_decoder_forward.1} parent=1 // pred_fallthru
      _
    // Predicated region
    $region238: #{encoder_decoder_forward.1} parent=1 // pred_check
      _
    $region239: #{encoder_decoder_forward.1} parent=1 // pred_check_branch
      %279 = sbr.rel (0) target = $region241
    $region240: #{encoder_decoder_forward.1} parent=1 // pred_region
      _
    $region241: #{encoder_decoder_forward.1} parent=1 // pred_fallthru
      _
    // Predicated region
    $region242: #{encoder_decoder_forward.1} parent=1 // pred_check
      _
    $region243: #{encoder_decoder_forward.1} parent=1 // pred_check_branch
      %281 = sbr.rel (0) target = $region245
    $region244: #{encoder_decoder_forward.1} parent=1 // pred_region
      _
    $region245: #{encoder_decoder_forward.1} parent=1 // pred_fallthru
      _
    // Predicated region
    $region246: #{encoder_decoder_forward.1} parent=1 // pred_check
      _
    $region247: #{encoder_decoder_forward.1} parent=1 // pred_check_branch
      %283 = sbr.rel (0) target = $region249
    $region248: #{encoder_decoder_forward.1} parent=1 // pred_region
      _
    $region249: #{encoder_decoder_forward.1} parent=1 // pred_fallthru
      _
    // Predicated region
    $region250: #{encoder_decoder_forward.1} parent=1 // pred_check
      _
    $region251: #{encoder_decoder_forward.1} parent=1 // pred_check_branch
      %285 = sbr.rel (0) target = $region253
    $region252: #{encoder_decoder_forward.1} parent=1 // pred_region
      _
    $region253: #{encoder_decoder_forward.1} parent=1 // pred_fallthru
      _
    // Predicated region
    $region254: #{encoder_decoder_forward.1} parent=1 // pred_check
      _
    $region255: #{encoder_decoder_forward.1} parent=1 // pred_check_branch
      %287 = sbr.rel (0) target = $region257
    $region256: #{encoder_decoder_forward.1} parent=1 // pred_region
      _
    $region257: #{encoder_decoder_forward.1} parent=1 // pred_fallthru
      _
    // Predicated region
    $region258: #{encoder_decoder_forward.1} parent=1 // pred_check
      _
    $region259: #{encoder_decoder_forward.1} parent=1 // pred_check_branch
      %289 = sbr.rel (0) target = $region261
    $region260: #{encoder_decoder_forward.1} parent=1 // pred_region
      _
    $region261: #{encoder_decoder_forward.1} parent=1 // pred_fallthru
      _
    // Predicated region
    $region262: #{encoder_decoder_forward.1} parent=1 // pred_check
      _
    $region263: #{encoder_decoder_forward.1} parent=1 // pred_check_branch
      %291 = sbr.rel (0) target = $region265
    $region264: #{encoder_decoder_forward.1} parent=1 // pred_region
      _
    $region265: #{encoder_decoder_forward.1} parent=1 // pred_fallthru
      _
    // Predicated region
    $region266: #{encoder_decoder_forward.1} parent=1 // pred_check
      _
    $region267: #{encoder_decoder_forward.1} parent=1 // pred_check_branch
      %293 = sbr.rel (0) target = $region269
    $region268: #{encoder_decoder_forward.1} parent=1 // pred_region
      _
    $region269: #{encoder_decoder_forward.1} parent=1 // pred_fallthru
      _
    // Predicated region
    $region270: #{encoder_decoder_forward.1} parent=1 // pred_check
      _
    $region271: #{encoder_decoder_forward.1} parent=1 // pred_check_branch
      %295 = sbr.rel (0) target = $region273
    $region272: #{encoder_decoder_forward.1} parent=1 // pred_region
      _
    $region273: #{encoder_decoder_forward.1} parent=1 // pred_fallthru
      _
    // Predicated region
    $region274: #{encoder_decoder_forward.1} parent=1 // pred_check
      _
    $region275: #{encoder_decoder_forward.1} parent=1 // pred_check_branch
      %297 = sbr.rel (0) target = $region277
    $region276: #{encoder_decoder_forward.1} parent=1 // pred_region
      %s299 = ssub.s32 16, 16
      %300 = vsyncadd [#allocation3], %s299
      %s302 = sshll.u32 [#allocation2], 4
      %s303 = int_to_ptr.vmem [resolvable:$true] %s302
      %305 = dma.hbm_to_vmem [thread:$0]  %s137, 16, %s303, [#allocation3]
    $region277: #{encoder_decoder_forward.1} parent=1 // pred_fallthru
      _
    // Predicated region
    $region278: #{encoder_decoder_forward.1} parent=1 // pred_check
      _
    $region279: #{encoder_decoder_forward.1} parent=1 // pred_check_branch
      %307 = sbr.rel (0) target = $region281
    $region280: #{encoder_decoder_forward.1} parent=1 // pred_region
      _
    $region281: #{encoder_decoder_forward.1} parent=1 // pred_fallthru
      _
    // Predicated region
    $region282: #{encoder_decoder_forward.1} parent=1 // pred_check
      _
    $region283: #{encoder_decoder_forward.1} parent=1 // pred_check_branch
      %309 = sbr.rel (0) target = $region285
    $region284: #{encoder_decoder_forward.1} parent=1 // pred_region
      %s311 = ssub.s32 16, 16
      %312 = vsyncadd [#allocation6], %s311
      %s314 = sshll.u32 [#allocation5], 4
      %s315 = int_to_ptr.vmem [resolvable:$true] %s314
      %317 = dma.hbm_to_vmem [thread:$0]  %s141, 16, %s315, [#allocation6]
    $region285: #{encoder_decoder_forward.1} parent=1 // pred_fallthru
      _
    // Predicated region
    $region286: #{encoder_decoder_forward.1} parent=1 // pred_check
      _
    $region287: #{encoder_decoder_forward.1} parent=1 // pred_check_branch
      %319 = sbr.rel (0) target = $region289
    $region288: #{encoder_decoder_forward.1} parent=1 // pred_region
      %s321 = ssub.s32 16, 16
      %322 = vsyncadd [#allocation6], %s321
      %s324 = sshll.u32 [#allocation7], 4
      %s325 = int_to_ptr.vmem [resolvable:$true] %s324
      %327 = dma.hbm_to_vmem [thread:$0]  %s143, 16, %s325, [#allocation6]
    $region289: #{encoder_decoder_forward.1} parent=1 // pred_fallthru
      _
    // Predicated region
    $region290: #{encoder_decoder_forward.1} parent=1 // pred_check
      _
    $region291: #{encoder_decoder_forward.1} parent=1 // pred_check_branch
      %329 = sbr.rel (0) target = $region293
    $region292: #{encoder_decoder_forward.1} parent=1 // pred_region
      %s331 = ssub.s32 16, 16
      %332 = vsyncadd [#allocation9], %s331
      %s334 = sshll.u32 [#allocation8], 4
      %s335 = int_to_ptr.vmem [resolvable:$true] %s334
      %337 = dma.hbm_to_vmem [thread:$0]  %s145, 16, %s335, [#allocation9]
    $region293: #{encoder_decoder_forward.1} parent=1 // pred_fallthru
      _
    // Predicated region
    $region294: #{encoder_decoder_forward.1} parent=1 // pred_check
      _
    $region295: #{encoder_decoder_forward.1} parent=1 // pred_check_branch
      %339 = sbr.rel (0) target = $region297
    $region296: #{encoder_decoder_forward.1} parent=1 // pred_region
      _
    $region297: #{encoder_decoder_forward.1} parent=1 // pred_fallthru
      _
    // Predicated region
    $region298: #{encoder_decoder_forward.1} parent=1 // pred_check
      _
    $region299: #{encoder_decoder_forward.1} parent=1 // pred_check_branch
      %341 = sbr.rel (0) target = $region301
    $region300: #{encoder_decoder_forward.1} parent=1 // pred_region
      _
    $region301: #{encoder_decoder_forward.1} parent=1 // pred_fallthru
      _
    // Predicated region
    $region302: #{encoder_decoder_forward.1} parent=1 // pred_check
      _
    $region303: #{encoder_decoder_forward.1} parent=1 // pred_check_branch
      %343 = sbr.rel (0) target = $region305
    $region304: #{encoder_decoder_forward.1} parent=1 // pred_region
      %344 = dma.done [#allocation3], 16
    $region305: #{encoder_decoder_forward.1} parent=1 // pred_fallthru
      _
    // Predicated region
    $region306: #{encoder_decoder_forward.1} parent=1 // pred_check
      _
    $region307: #{encoder_decoder_forward.1} parent=1 // pred_check_branch
      %346 = sbr.rel (0) target = $region309
    $region308: #{encoder_decoder_forward.1} parent=1 // pred_region
      %347 = dma.done [#allocation6], 16
    $region309: #{encoder_decoder_forward.1} parent=1 // pred_fallthru
      _
    // Predicated region
    $region310: #{encoder_decoder_forward.1} parent=1 // pred_check
      _
    $region311: #{encoder_decoder_forward.1} parent=1 // pred_check_branch
      %349 = sbr.rel (0) target = $region313
    $region312: #{encoder_decoder_forward.1} parent=1 // pred_region
      %350 = dma.done [#allocation6], 16
    $region313: #{encoder_decoder_forward.1} parent=1 // pred_fallthru
      _
    // Predicated region
    $region314: #{encoder_decoder_forward.1} parent=1 // pred_check
      _
    $region315: #{encoder_decoder_forward.1} parent=1 // pred_check_branch
      %352 = sbr.rel (0) target = $region317
    $region316: #{encoder_decoder_forward.1} parent=1 // pred_region
      %353 = dma.done [#allocation9], 16
    $region317: #{encoder_decoder_forward.1} parent=1 // pred_fallthru
      _
    %v354 = vld [vmem:[%s5] sm:$0xff]
    %v355 = vld [vmem:[%s5 + $0x8] sm:$0xff]
    %v356 = vld [vmem:[%s7] sm:$0xff]
    %v357 = vld [vmem:[%s7 + $0x8] sm:$0xff]
    %v358 = vld [vmem:[%s9] sm:$0xff]
    %v359 = vld [vmem:[%s9 + $0x8] sm:$0xff]
    %v360 = vld [vmem:[%s1] sm:$0xff]
    %v361 = vld [vmem:[%s1 + $0x8] sm:$0xff]
    %v362 = vld [vmem:[%s11] sm:$0x1]
    %v363 = vld [vmem:[%s13] sm:$0x1]
    %v364 = vld [vmem:[%s15] sm:$0xff]
    %v365 = vld [vmem:[%s15 + $0x8] sm:$0xff]
    %v366 = vld [vmem:[%s15 + $0x10] sm:$0xff]
    %v367 = vld [vmem:[%s15 + $0x18] sm:$0xff]
    %v368 = vld [vmem:[%s17] sm:$0x1]
    %v369 = vld [vmem:[%s19] sm:$0xff]
    %v370 = vld [vmem:[%s19 + $0x8] sm:$0xff]
    %v371 = vld [vmem:[%s19 + $0x10] sm:$0xff]
    %v372 = vld [vmem:[%s19 + $0x18] sm:$0xff]
    %v373 = vld [vmem:[%s21] sm:$0x1]
    %v374 = vld [vmem:[%s23] sm:$0x1]
    %v375 = vld [vmem:[%s25] sm:$0x1]
    %v376 = vld [vmem:[%s27] sm:$0xff]
    %v377 = vld [vmem:[%s27 + $0x8] sm:$0xff]
    %v378 = vld [vmem:[%s27 + $0x10] sm:$0xff]
    %v379 = vld [vmem:[%s27 + $0x18] sm:$0xff]
    %v380 = vld [vmem:[%s29] sm:$0x1]
    %v381 = vld [vmem:[%s31] sm:$0xff]
    %v382 = vld [vmem:[%s31 + $0x8] sm:$0xff]
    %v383 = vld [vmem:[%s31 + $0x10] sm:$0xff]
    %v384 = vld [vmem:[%s31 + $0x18] sm:$0xff]
    %v385 = vld [vmem:[%s31 + $0x20] sm:$0xff]
    %v386 = vld [vmem:[%s31 + $0x28] sm:$0xff]
    %v387 = vld [vmem:[%s31 + $0x30] sm:$0xff]
    %v388 = vld [vmem:[%s31 + $0x38] sm:$0xff]
    %v389 = vld [vmem:[%s33] sm:$0x1]
    %vm390 = vcmask 261120
    %v391 = vsel %vm390, %v360, 0.0
    %392 = vadd.xlane.f32.xlu0 %v391
    %v393 = vpop.xlane.xlu0 %392
    %v394 = vsel %vm390, %v361, 0.0
    %395 = vadd.xlane.f32.xlu0 %v394
    %v396 = vpop.xlane.xlu0 %395
    %v397 = vrcp.pop 32.0
    %v398 = vmul.f32 %v393, %v397
    %v399 = vmul.f32 %v396, %v397
    %v400 = vsub.f32 %v360, %v398
    %v401 = vsub.f32 %v361, %v399
    %v402 = vmul.f32 %v400, %v400
    %v403 = vmul.f32 %v401, %v401
    %v404 = vsel %vm390, %v402, 0.0
    %405 = vadd.xlane.f32.xlu0 %v404
    %v406 = vpop.xlane.xlu0 %405
    %v407 = vsel %vm390, %v403, 0.0
    %408 = vadd.xlane.f32.xlu0 %v407
    %v409 = vpop.xlane.xlu0 %408
    %v410 = vmul.f32 %v406, 0.032258064
    %v411 = vmul.f32 %v409, 0.032258064
    %v412 = vrsqrt.pop %v410
    %v413 = vmul.f32 %v410, %v412
    %vm414 = vcmp.eq.f32.partialorder %v410, inf
    %v415 = vsel %vm414, %v410, %v413
    %vm416 = vcmp.eq.f32.partialorder %v410, 0.0
    %v417 = vand.u32 %v410, 2147483648
    %v418 = vsel %vm416, %v417, %v415
    %v419 = vrsqrt.pop %v411
    %v420 = vmul.f32 %v411, %v419
    %vm421 = vcmp.eq.f32.partialorder %v411, inf
    %v422 = vsel %vm421, %v411, %v420
    %vm423 = vcmp.eq.f32.partialorder %v411, 0.0
    %v424 = vand.u32 %v411, 2147483648
    %v425 = vsel %vm423, %v424, %v422
    %v426 = vadd.f32 %v418, 1e-06
    %v427 = vadd.f32 %v425, 1e-06
    %v428 = vrcp.pop %v426
    %v429 = vrcp.pop %v427
    %v431 = vlaneseq
    %v432 = vshrl.u32 %v431, 7
    %v433 = vsub.s32 0, %v432
    %v434 = vrot.slane %v362, %v433
    %v436 = vmul.f32 %v434, %v400
    %v437 = vmul.f32 %v434, %v401
    %v438 = vmul.f32 %v436, %v428
    %v439 = vmul.f32 %v437, %v429
    %v441 = vlaneseq
    %v442 = vshrl.u32 %v441, 7
    %v443 = vsub.s32 0, %v442
    %v444 = vrot.slane %v363, %v443
    %v446 = vadd.f32 %v438, %v444
    %v447 = vadd.f32 %v439, %v444
    %v449 = vlaneseq
    %v450 = vshrl.u32 %v449, 7
    %v451 = vsub.s32 0, %v450
    %v452 = vrot.slane %v368, %v451
    %v455 = vsel %vm390, %v446, 0
    %v458 = vsel %vm390, %v447, 0
    %460 = vmatprep.subr.mxu0 0.0
    %461 = vmatpush1.msra.mxu0 %v364
    %462 = vmatprep.subr.mxu0 0.0
    %463 = vmatpush1.msra.mxu0 %v365
    %464 = vmatprep.subr.mxu0 0.0
    %465 = vmatpush1.msra.mxu0 %v366
    %466 = vmatprep.subr.mxu0 0.0
    %467 = vmatpush1.msra.mxu0 %v367
    %468 = vmatprep.subr.mxu0 0.0
    %469 = vmatpush1.msra.mxu0 0.0
    %470 = vmatprep.subr.mxu0 0.0
    %471 = vmatpush1.msra.mxu0 0.0
    %472 = vmatprep.subr.mxu0 0.0
    %473 = vmatpush1.msra.mxu0 0.0
    %474 = vmatprep.subr.mxu0 0.0
    %475 = vmatpush1.msra.mxu0 0.0
    %476 = vmatprep.subr.mxu0 0.0
    %477 = vmatpush1.msra.mxu0 0.0
    %478 = vmatprep.subr.mxu0 0.0
    %479 = vmatpush1.msra.mxu0 0.0
    %480 = vmatprep.subr.mxu0 0.0
    %481 = vmatpush1.msra.mxu0 0.0
    %482 = vmatprep.subr.mxu0 0.0
    %483 = vmatpush1.msra.mxu0 0.0
    %484 = vmatprep.subr.mxu0 0.0
    %485 = vmatpush1.msra.mxu0 0.0
    %486 = vmatprep.subr.mxu0 0.0
    %487 = vmatpush1.msra.mxu0 0.0
    %488 = vmatprep.subr.mxu0 0.0
    %489 = vmatpush1.msra.mxu0 0.0
    %490 = vmatprep.subr.mxu0 0.0
    %491 = vmatpush1.msra.mxu0 0.0
    %492 = vmatprep.subr.mxu0 0.0
    %493 = vmatpush1.msra.mxu0 0.0
    %494 = vmatprep.subr.mxu0 0.0
    %495 = vmatpush1.msra.mxu0 0.0
    %496 = vmatprep.subr.mxu0 0.0
    %497 = vmatpush1.msra.mxu0 0.0
    %498 = vmatprep.subr.mxu0 0.0
    %499 = vmatpush1.msra.mxu0 0.0
    %500 = vmatprep.subr.mxu0 0.0
    %501 = vmatpush1.msra.mxu0 0.0
    %502 = vmatprep.subr.mxu0 0.0
    %503 = vmatpush1.msra.mxu0 0.0
    %504 = vmatprep.subr.mxu0 0.0
    %505 = vmatpush1.msra.mxu0 0.0
    %506 = vmatprep.subr.mxu0 0.0
    %507 = vmatpush1.msra.mxu0 0.0
    %508 = vmatprep.subr.mxu0 0.0
    %509 = vmatpush1.msra.mxu0 0.0
    %510 = vmatprep.subr.mxu0 0.0
    %511 = vmatpush1.msra.mxu0 0.0
    %512 = vmatprep.subr.mxu0 0.0
    %513 = vmatpush1.msra.mxu0 0.0
    %514 = vmatprep.subr.mxu0 0.0
    %515 = vmatpush1.msra.mxu0 0.0
    %516 = vmatprep.subr.mxu0 0.0
    %517 = vmatpush1.msra.mxu0 0.0
    %518 = vmatprep.subr.mxu0 0.0
    %519 = vmatpush1.msra.mxu0 0.0
    %520 = vmatprep.subr.mxu0 0.0
    %521 = vmatpush1.msra.mxu0 0.0
    %522 = vmatprep.subr.mxu0 0.0
    %523 = vmatpush1.msra.mxu0 0.0
    %524 = vmatprep.mubr.f32.mxu0 0.0
    %525 = vmatmul.mubr.f32.gmra.mrb[0].mxu0 %v455
    %v526 = vpop.f32.mrb[0].mxu0
    %v527 = vadd.f32 %v452, %v526
    %v528 = vpop.f32.mrb[0].mxu0
    %529 = vmatprep.mubr.f32.mxu0 0.0
    %530 = vmatmul.mubr.f32.gmra.mrb[0].mxu0 %v458
    %v531 = vpop.f32.mrb[0].mxu0
    %v532 = vadd.f32 %v452, %v531
    %v533 = vpop.f32.mrb[0].mxu0
    %534 = vdwg.mxu0
    %537 = vrot.lane.b32.xlu0 %v527, 96
    %v538 = vpop.permute.xlu0 %537
    %539 = vrot.lane.b32.xlu0 %v532, 96
    %v540 = vpop.permute.xlu0 %539
    %vm541 = vcmask 64512
    %v542 = vsel %vm541, %v527, 0
    %v544 = vsel %vm541, %v532, 0
    %v546 = vsel %vm541, %v538, 0
    %v548 = vsel %vm541, %v540, 0
    %550 = vmatprep.subr.mxu0 0.0
    %551 = vmatpush1.xpose.msra.mxu0 %v546
    %552 = vmatprep.subr.mxu0 0.0
    %553 = vmatpush1.xpose.msra.mxu0 %v548
    %554 = vmatprep.subr.mxu0 0.0
    %555 = vmatpush1.xpose.msra.mxu0 0.0
    %556 = vmatprep.subr.mxu0 0.0
    %557 = vmatpush1.xpose.msra.mxu0 0.0
    %558 = vmatprep.subr.mxu0 0.0
    %559 = vmatpush1.xpose.msra.mxu0 0.0
    %560 = vmatprep.subr.mxu0 0.0
    %561 = vmatpush1.xpose.msra.mxu0 0.0
    %562 = vmatprep.subr.mxu0 0.0
    %563 = vmatpush1.xpose.msra.mxu0 0.0
    %564 = vmatprep.subr.mxu0 0.0
    %565 = vmatpush1.xpose.msra.mxu0 0.0
    %566 = vmatprep.subr.mxu0 0.0
    %567 = vmatpush1.xpose.msra.mxu0 0.0
    %568 = vmatprep.subr.mxu0 0.0
    %569 = vmatpush1.xpose.msra.mxu0 0.0
    %570 = vmatprep.subr.mxu0 0.0
    %571 = vmatpush1.xpose.msra.mxu0 0.0
    %572 = vmatprep.subr.mxu0 0.0
    %573 = vmatpush1.xpose.msra.mxu0 0.0
    %574 = vmatprep.subr.mxu0 0.0
    %575 = vmatpush1.xpose.msra.mxu0 0.0
    %576 = vmatprep.subr.mxu0 0.0
    %577 = vmatpush1.xpose.msra.mxu0 0.0
    %578 = vmatprep.subr.mxu0 0.0
    %579 = vmatpush1.xpose.msra.mxu0 0.0
    %580 = vmatprep.subr.mxu0 0.0
    %581 = vmatpush1.xpose.msra.mxu0 0.0
    %582 = vmatprep.subr.mxu0 0.0
    %583 = vmatpush1.xpose.msra.mxu0 0.0
    %584 = vmatprep.subr.mxu0 0.0
    %585 = vmatpush1.xpose.msra.mxu0 0.0
    %586 = vmatprep.subr.mxu0 0.0
    %587 = vmatpush1.xpose.msra.mxu0 0.0
    %588 = vmatprep.subr.mxu0 0.0
    %589 = vmatpush1.xpose.msra.mxu0 0.0
    %590 = vmatprep.subr.mxu0 0.0
    %591 = vmatpush1.xpose.msra.mxu0 0.0
    %592 = vmatprep.subr.mxu0 0.0
    %593 = vmatpush1.xpose.msra.mxu0 0.0
    %594 = vmatprep.subr.mxu0 0.0
    %595 = vmatpush1.xpose.msra.mxu0 0.0
    %596 = vmatprep.subr.mxu0 0.0
    %597 = vmatpush1.xpose.msra.mxu0 0.0
    %598 = vmatprep.subr.mxu0 0.0
    %599 = vmatpush1.xpose.msra.mxu0 0.0
    %600 = vmatprep.subr.mxu0 0.0
    %601 = vmatpush1.xpose.msra.mxu0 0.0
    %602 = vmatprep.subr.mxu0 0.0
    %603 = vmatpush1.xpose.msra.mxu0 0.0
    %604 = vmatprep.subr.mxu0 0.0
    %605 = vmatpush1.xpose.msra.mxu0 0.0
    %606 = vmatprep.subr.mxu0 0.0
    %607 = vmatpush1.xpose.msra.mxu0 0.0
    %608 = vmatprep.subr.mxu0 0.0
    %609 = vmatpush1.xpose.msra.mxu0 0.0
    %610 = vmatprep.subr.mxu0 0.0
    %611 = vmatpush1.xpose.msra.mxu0 0.0
    %612 = vmatprep.subr.mxu0 0.0
    %613 = vmatpush1.xpose.msra.mxu0 0.0
    %614 = vmatprep.mubr.f32.mxu0 0.0
    %615 = vmatmul.mubr.f32.gmra.mrb[0].mxu0 %v542
    %v616 = vpop.f32.mrb[0].mxu0
    %v617 = vadd.f32 %v354, %v616
    %v618 = vpop.f32.mrb[0].mxu0
    %619 = vmatprep.mubr.f32.mxu0 0.0
    %620 = vmatmul.mubr.f32.gmra.mrb[0].mxu0 %v544
    %v621 = vpop.f32.mrb[0].mxu0
    %v622 = vadd.f32 %v355, %v621
    %v623 = vpop.f32.mrb[0].mxu0
    %624 = vdwg.mxu0
    %vm625 = vcmask 130048
    %v626 = vsel %vm625, %v617, -inf
    %627 = vmax.xlane.f32.xlu0 %v626
    %v628 = vpop.xlane.xlu0 %627
    %v629 = vsel %vm625, %v622, -inf
    %630 = vmax.xlane.f32.xlu0 %v629
    %v631 = vpop.xlane.xlu0 %630
    %v632 = vsub.f32 %v617, %v628
    %v633 = vsub.f32 %v622, %v631
    %v634 = vmul.f32 %v632, 1.442695
    %v635 = vpow.pop %v634
    %v636 = vmul.f32 %v633, 1.442695
    %v637 = vpow.pop %v636
    %v638 = vsel %vm625, %v635, 0.0
    %639 = vadd.xlane.f32.xlu0 %v638
    %v640 = vpop.xlane.xlu0 %639
    %v641 = vsel %vm625, %v637, 0.0
    %642 = vadd.xlane.f32.xlu0 %v641
    %v643 = vpop.xlane.xlu0 %642
    %v644 = vrcp.pop %v640
    %v645 = vrcp.pop %v643
    %v646 = vmul.f32 %v635, %v644
    %v647 = vmul.f32 %v637, %v645
    %648 = vrot.lane.b32.xlu0 %v527, 64
    %v649 = vpop.permute.xlu0 %648
    %650 = vrot.lane.b32.xlu0 %v532, 64
    %v651 = vpop.permute.xlu0 %650
    %v655 = vsel %vm625, %v646, 0
    %v658 = vsel %vm625, %v647, 0
    %660 = vmatprep.subr.mxu0 0.0
    %661 = vmatpush1.msra.mxu0 %v649
    %662 = vmatprep.subr.mxu0 0.0
    %663 = vmatpush1.msra.mxu0 %v651
    %664 = vmatprep.subr.mxu0 0.0
    %665 = vmatpush1.msra.mxu0 0.0
    %666 = vmatprep.subr.mxu0 0.0
    %667 = vmatpush1.msra.mxu0 0.0
    %668 = vmatprep.subr.mxu0 0.0
    %669 = vmatpush1.msra.mxu0 0.0
    %670 = vmatprep.subr.mxu0 0.0
    %671 = vmatpush1.msra.mxu0 0.0
    %672 = vmatprep.subr.mxu0 0.0
    %673 = vmatpush1.msra.mxu0 0.0
    %674 = vmatprep.subr.mxu0 0.0
    %675 = vmatpush1.msra.mxu0 0.0
    %676 = vmatprep.subr.mxu0 0.0
    %677 = vmatpush1.msra.mxu0 0.0
    %678 = vmatprep.subr.mxu0 0.0
    %679 = vmatpush1.msra.mxu0 0.0
    %680 = vmatprep.subr.mxu0 0.0
    %681 = vmatpush1.msra.mxu0 0.0
    %682 = vmatprep.subr.mxu0 0.0
    %683 = vmatpush1.msra.mxu0 0.0
    %684 = vmatprep.subr.mxu0 0.0
    %685 = vmatpush1.msra.mxu0 0.0
    %686 = vmatprep.subr.mxu0 0.0
    %687 = vmatpush1.msra.mxu0 0.0
    %688 = vmatprep.subr.mxu0 0.0
    %689 = vmatpush1.msra.mxu0 0.0
    %690 = vmatprep.subr.mxu0 0.0
    %691 = vmatpush1.msra.mxu0 0.0
    %692 = vmatprep.subr.mxu0 0.0
    %693 = vmatpush1.msra.mxu0 0.0
    %694 = vmatprep.subr.mxu0 0.0
    %695 = vmatpush1.msra.mxu0 0.0
    %696 = vmatprep.subr.mxu0 0.0
    %697 = vmatpush1.msra.mxu0 0.0
    %698 = vmatprep.subr.mxu0 0.0
    %699 = vmatpush1.msra.mxu0 0.0
    %700 = vmatprep.subr.mxu0 0.0
    %701 = vmatpush1.msra.mxu0 0.0
    %702 = vmatprep.subr.mxu0 0.0
    %703 = vmatpush1.msra.mxu0 0.0
    %704 = vmatprep.subr.mxu0 0.0
    %705 = vmatpush1.msra.mxu0 0.0
    %706 = vmatprep.subr.mxu0 0.0
    %707 = vmatpush1.msra.mxu0 0.0
    %708 = vmatprep.subr.mxu0 0.0
    %709 = vmatpush1.msra.mxu0 0.0
    %710 = vmatprep.subr.mxu0 0.0
    %711 = vmatpush1.msra.mxu0 0.0
    %712 = vmatprep.subr.mxu0 0.0
    %713 = vmatpush1.msra.mxu0 0.0
    %714 = vmatprep.subr.mxu0 0.0
    %715 = vmatpush1.msra.mxu0 0.0
    %716 = vmatprep.subr.mxu0 0.0
    %717 = vmatpush1.msra.mxu0 0.0
    %718 = vmatprep.subr.mxu0 0.0
    %719 = vmatpush1.msra.mxu0 0.0
    %720 = vmatprep.subr.mxu0 0.0
    %721 = vmatpush1.msra.mxu0 0.0
    %722 = vmatprep.subr.mxu0 0.0
    %723 = vmatpush1.msra.mxu0 0.0
    %724 = vmatprep.mubr.f32.mxu0 0.0
    %725 = vmatmul.mubr.f32.gmra.mrb[0].mxu0 %v655
    %v726 = vpop.f32.mrb[0].mxu0
    %v727 = vadd.f32 0.0, %v726
    %v728 = vpop.f32.mrb[0].mxu0
    %729 = vmatprep.mubr.f32.mxu0 0.0
    %730 = vmatmul.mubr.f32.gmra.mrb[0].mxu0 %v658
    %v731 = vpop.f32.mrb[0].mxu0
    %v732 = vadd.f32 0.0, %v731
    %v733 = vpop.f32.mrb[0].mxu0
    %734 = vdwg.mxu0
    %735 = vrot.lane.b32.xlu0 %v527, 120
    %v736 = vpop.permute.xlu0 %735
    %737 = vrot.lane.b32.xlu0 %v532, 120
    %v738 = vpop.permute.xlu0 %737
    %739 = vrot.lane.b32.xlu0 %v527, 88
    %v740 = vpop.permute.xlu0 %739
    %741 = vrot.lane.b32.xlu0 %v532, 88
    %v742 = vpop.permute.xlu0 %741
    %v743 = vsel %vm541, %v736, 0
    %v745 = vsel %vm541, %v738, 0
    %v747 = vsel %vm541, %v740, 0
    %v749 = vsel %vm541, %v742, 0
    %751 = vmatprep.subr.mxu0 0.0
    %752 = vmatpush1.xpose.msra.mxu0 %v747
    %753 = vmatprep.subr.mxu0 0.0
    %754 = vmatpush1.xpose.msra.mxu0 %v749
    %755 = vmatprep.subr.mxu0 0.0
    %756 = vmatpush1.xpose.msra.mxu0 0.0
    %757 = vmatprep.subr.mxu0 0.0
    %758 = vmatpush1.xpose.msra.mxu0 0.0
    %759 = vmatprep.subr.mxu0 0.0
    %760 = vmatpush1.xpose.msra.mxu0 0.0
    %761 = vmatprep.subr.mxu0 0.0
    %762 = vmatpush1.xpose.msra.mxu0 0.0
    %763 = vmatprep.subr.mxu0 0.0
    %764 = vmatpush1.xpose.msra.mxu0 0.0
    %765 = vmatprep.subr.mxu0 0.0
    %766 = vmatpush1.xpose.msra.mxu0 0.0
    %767 = vmatprep.subr.mxu0 0.0
    %768 = vmatpush1.xpose.msra.mxu0 0.0
    %769 = vmatprep.subr.mxu0 0.0
    %770 = vmatpush1.xpose.msra.mxu0 0.0
    %771 = vmatprep.subr.mxu0 0.0
    %772 = vmatpush1.xpose.msra.mxu0 0.0
    %773 = vmatprep.subr.mxu0 0.0
    %774 = vmatpush1.xpose.msra.mxu0 0.0
    %775 = vmatprep.subr.mxu0 0.0
    %776 = vmatpush1.xpose.msra.mxu0 0.0
    %777 = vmatprep.subr.mxu0 0.0
    %778 = vmatpush1.xpose.msra.mxu0 0.0
    %779 = vmatprep.subr.mxu0 0.0
    %780 = vmatpush1.xpose.msra.mxu0 0.0
    %781 = vmatprep.subr.mxu0 0.0
    %782 = vmatpush1.xpose.msra.mxu0 0.0
    %783 = vmatprep.subr.mxu0 0.0
    %784 = vmatpush1.xpose.msra.mxu0 0.0
    %785 = vmatprep.subr.mxu0 0.0
    %786 = vmatpush1.xpose.msra.mxu0 0.0
    %787 = vmatprep.subr.mxu0 0.0
    %788 = vmatpush1.xpose.msra.mxu0 0.0
    %789 = vmatprep.subr.mxu0 0.0
    %790 = vmatpush1.xpose.msra.mxu0 0.0
    %791 = vmatprep.subr.mxu0 0.0
    %792 = vmatpush1.xpose.msra.mxu0 0.0
    %793 = vmatprep.subr.mxu0 0.0
    %794 = vmatpush1.xpose.msra.mxu0 0.0
    %795 = vmatprep.subr.mxu0 0.0
    %796 = vmatpush1.xpose.msra.mxu0 0.0
    %797 = vmatprep.subr.mxu0 0.0
    %798 = vmatpush1.xpose.msra.mxu0 0.0
    %799 = vmatprep.subr.mxu0 0.0
    %800 = vmatpush1.xpose.msra.mxu0 0.0
    %801 = vmatprep.subr.mxu0 0.0
    %802 = vmatpush1.xpose.msra.mxu0 0.0
    %803 = vmatprep.subr.mxu0 0.0
    %804 = vmatpush1.xpose.msra.mxu0 0.0
    %805 = vmatprep.subr.mxu0 0.0
    %806 = vmatpush1.xpose.msra.mxu0 0.0
    %807 = vmatprep.subr.mxu0 0.0
    %808 = vmatpush1.xpose.msra.mxu0 0.0
    %809 = vmatprep.subr.mxu0 0.0
    %810 = vmatpush1.xpose.msra.mxu0 0.0
    %811 = vmatprep.subr.mxu0 0.0
    %812 = vmatpush1.xpose.msra.mxu0 0.0
    %813 = vmatprep.subr.mxu0 0.0
    %814 = vmatpush1.xpose.msra.mxu0 0.0
    %815 = vmatprep.mubr.f32.mxu0 0.0
    %816 = vmatmul.mubr.f32.gmra.mrb[0].mxu0 %v743
    %v817 = vpop.f32.mrb[0].mxu0
    %v818 = vadd.f32 %v354, %v817
    %v819 = vpop.f32.mrb[0].mxu0
    %820 = vmatprep.mubr.f32.mxu0 0.0
    %821 = vmatmul.mubr.f32.gmra.mrb[0].mxu0 %v745
    %v822 = vpop.f32.mrb[0].mxu0
    %v823 = vadd.f32 %v355, %v822
    %v824 = vpop.f32.mrb[0].mxu0
    %825 = vdwg.mxu0
    %v826 = vsel %vm625, %v818, -inf
    %827 = vmax.xlane.f32.xlu0 %v826
    %v828 = vpop.xlane.xlu0 %827
    %v829 = vsel %vm625, %v823, -inf
    %830 = vmax.xlane.f32.xlu0 %v829
    %v831 = vpop.xlane.xlu0 %830
    %v832 = vsub.f32 %v818, %v828
    %v833 = vsub.f32 %v823, %v831
    %v834 = vmul.f32 %v832, 1.442695
    %v835 = vpow.pop %v834
    %v836 = vmul.f32 %v833, 1.442695
    %v837 = vpow.pop %v836
    %v838 = vsel %vm625, %v835, 0.0
    %839 = vadd.xlane.f32.xlu0 %v838
    %v840 = vpop.xlane.xlu0 %839
    %v841 = vsel %vm625, %v837, 0.0
    %842 = vadd.xlane.f32.xlu0 %v841
    %v843 = vpop.xlane.xlu0 %842
    %v844 = vrcp.pop %v840
    %v845 = vrcp.pop %v843
    %v846 = vmul.f32 %v835, %v844
    %v847 = vmul.f32 %v837, %v845
    %848 = vrot.lane.b32.xlu0 %v527, 56
    %v849 = vpop.permute.xlu0 %848
    %850 = vrot.lane.b32.xlu0 %v532, 56
    %v851 = vpop.permute.xlu0 %850
    %v855 = vsel %vm625, %v846, 0
    %v858 = vsel %vm625, %v847, 0
    %860 = vmatprep.subr.mxu0 0.0
    %861 = vmatpush1.msra.mxu0 %v849
    %862 = vmatprep.subr.mxu0 0.0
    %863 = vmatpush1.msra.mxu0 %v851
    %864 = vmatprep.subr.mxu0 0.0
    %865 = vmatpush1.msra.mxu0 0.0
    %866 = vmatprep.subr.mxu0 0.0
    %867 = vmatpush1.msra.mxu0 0.0
    %868 = vmatprep.subr.mxu0 0.0
    %869 = vmatpush1.msra.mxu0 0.0
    %870 = vmatprep.subr.mxu0 0.0
    %871 = vmatpush1.msra.mxu0 0.0
    %872 = vmatprep.subr.mxu0 0.0
    %873 = vmatpush1.msra.mxu0 0.0
    %874 = vmatprep.subr.mxu0 0.0
    %875 = vmatpush1.msra.mxu0 0.0
    %876 = vmatprep.subr.mxu0 0.0
    %877 = vmatpush1.msra.mxu0 0.0
    %878 = vmatprep.subr.mxu0 0.0
    %879 = vmatpush1.msra.mxu0 0.0
    %880 = vmatprep.subr.mxu0 0.0
    %881 = vmatpush1.msra.mxu0 0.0
    %882 = vmatprep.subr.mxu0 0.0
    %883 = vmatpush1.msra.mxu0 0.0
    %884 = vmatprep.subr.mxu0 0.0
    %885 = vmatpush1.msra.mxu0 0.0
    %886 = vmatprep.subr.mxu0 0.0
    %887 = vmatpush1.msra.mxu0 0.0
    %888 = vmatprep.subr.mxu0 0.0
    %889 = vmatpush1.msra.mxu0 0.0
    %890 = vmatprep.subr.mxu0 0.0
    %891 = vmatpush1.msra.mxu0 0.0
    %892 = vmatprep.subr.mxu0 0.0
    %893 = vmatpush1.msra.mxu0 0.0
    %894 = vmatprep.subr.mxu0 0.0
    %895 = vmatpush1.msra.mxu0 0.0
    %896 = vmatprep.subr.mxu0 0.0
    %897 = vmatpush1.msra.mxu0 0.0
    %898 = vmatprep.subr.mxu0 0.0
    %899 = vmatpush1.msra.mxu0 0.0
    %900 = vmatprep.subr.mxu0 0.0
    %901 = vmatpush1.msra.mxu0 0.0
    %902 = vmatprep.subr.mxu0 0.0
    %903 = vmatpush1.msra.mxu0 0.0
    %904 = vmatprep.subr.mxu0 0.0
    %905 = vmatpush1.msra.mxu0 0.0
    %906 = vmatprep.subr.mxu0 0.0
    %907 = vmatpush1.msra.mxu0 0.0
    %908 = vmatprep.subr.mxu0 0.0
    %909 = vmatpush1.msra.mxu0 0.0
    %910 = vmatprep.subr.mxu0 0.0
    %911 = vmatpush1.msra.mxu0 0.0
    %912 = vmatprep.subr.mxu0 0.0
    %913 = vmatpush1.msra.mxu0 0.0
    %914 = vmatprep.subr.mxu0 0.0
    %915 = vmatpush1.msra.mxu0 0.0
    %916 = vmatprep.subr.mxu0 0.0
    %917 = vmatpush1.msra.mxu0 0.0
    %918 = vmatprep.subr.mxu0 0.0
    %919 = vmatpush1.msra.mxu0 0.0
    %920 = vmatprep.subr.mxu0 0.0
    %921 = vmatpush1.msra.mxu0 0.0
    %922 = vmatprep.subr.mxu0 0.0
    %923 = vmatpush1.msra.mxu0 0.0
    %924 = vmatprep.mubr.f32.mxu0 0.0
    %925 = vmatmul.mubr.f32.gmra.mrb[0].mxu0 %v855
    %v926 = vpop.f32.mrb[0].mxu0
    %v927 = vadd.f32 0.0, %v926
    %v928 = vpop.f32.mrb[0].mxu0
    %929 = vmatprep.mubr.f32.mxu0 0.0
    %930 = vmatmul.mubr.f32.gmra.mrb[0].mxu0 %v858
    %v931 = vpop.f32.mrb[0].mxu0
    %v932 = vadd.f32 0.0, %v931
    %v933 = vpop.f32.mrb[0].mxu0
    %934 = vdwg.mxu0
    %v936 = vsel %vm541, %v927, 0
    %v939 = vsel %vm541, %v932, 0
    %941 = vmatprep.subr.mxu0 0.0
    %942 = vmatpush1.msra.mxu0 %v370
    %943 = vmatprep.subr.mxu0 0.0
    %944 = vmatpush1.msra.mxu0 0.0
    %945 = vmatprep.subr.mxu0 0.0
    %946 = vmatpush1.msra.mxu0 0.0
    %947 = vmatprep.subr.mxu0 0.0
    %948 = vmatpush1.msra.mxu0 0.0
    %949 = vmatprep.subr.mxu0 0.0
    %950 = vmatpush1.msra.mxu0 0.0
    %951 = vmatprep.subr.mxu0 0.0
    %952 = vmatpush1.msra.mxu0 0.0
    %953 = vmatprep.subr.mxu0 0.0
    %954 = vmatpush1.msra.mxu0 0.0
    %955 = vmatprep.subr.mxu0 0.0
    %956 = vmatpush1.msra.mxu0 0.0
    %957 = vmatprep.subr.mxu0 0.0
    %958 = vmatpush1.msra.mxu0 0.0
    %959 = vmatprep.subr.mxu0 0.0
    %960 = vmatpush1.msra.mxu0 0.0
    %961 = vmatprep.subr.mxu0 0.0
    %962 = vmatpush1.msra.mxu0 0.0
    %963 = vmatprep.subr.mxu0 0.0
    %964 = vmatpush1.msra.mxu0 0.0
    %965 = vmatprep.subr.mxu0 0.0
    %966 = vmatpush1.msra.mxu0 0.0
    %967 = vmatprep.subr.mxu0 0.0
    %968 = vmatpush1.msra.mxu0 0.0
    %969 = vmatprep.subr.mxu0 0.0
    %970 = vmatpush1.msra.mxu0 0.0
    %971 = vmatprep.subr.mxu0 0.0
    %972 = vmatpush1.msra.mxu0 0.0
    %973 = vmatprep.subr.mxu0 0.0
    %974 = vmatpush1.msra.mxu0 0.0
    %975 = vmatprep.subr.mxu0 0.0
    %976 = vmatpush1.msra.mxu0 0.0
    %977 = vmatprep.subr.mxu0 0.0
    %978 = vmatpush1.msra.mxu0 0.0
    %979 = vmatprep.subr.mxu0 0.0
    %980 = vmatpush1.msra.mxu0 0.0
    %981 = vmatprep.subr.mxu0 0.0
    %982 = vmatpush1.msra.mxu0 0.0
    %983 = vmatprep.subr.mxu0 0.0
    %984 = vmatpush1.msra.mxu0 0.0
    %985 = vmatprep.subr.mxu0 0.0
    %986 = vmatpush1.msra.mxu0 0.0
    %987 = vmatprep.subr.mxu0 0.0
    %988 = vmatpush1.msra.mxu0 0.0
    %989 = vmatprep.subr.mxu0 0.0
    %990 = vmatpush1.msra.mxu0 0.0
    %991 = vmatprep.subr.mxu0 0.0
    %992 = vmatpush1.msra.mxu0 0.0
    %993 = vmatprep.subr.mxu0 0.0
    %994 = vmatpush1.msra.mxu0 0.0
    %995 = vmatprep.subr.mxu0 0.0
    %996 = vmatpush1.msra.mxu0 0.0
    %997 = vmatprep.subr.mxu0 0.0
    %998 = vmatpush1.msra.mxu0 0.0
    %999 = vmatprep.subr.mxu0 0.0
    %1000 = vmatpush1.msra.mxu0 0.0
    %1001 = vmatprep.subr.mxu0 0.0
    %1002 = vmatpush1.msra.mxu0 0.0
    %1003 = vmatprep.subr.mxu0 0.0
    %1004 = vmatpush1.msra.mxu0 0.0
    %1005 = vmatprep.mubr.f32.mxu0 0.0
    %1006 = vmatmul.mubr.f32.gmra.mrb[0].mxu0 %v936
    %v1007 = vpop.f32.mrb[0].mxu0
    %v1008 = vadd.f32 0.0, %v1007
    %v1009 = vpop.f32.mrb[0].mxu0
    %1010 = vmatprep.mubr.f32.mxu0 0.0
    %1011 = vmatmul.mubr.f32.gmra.mrb[0].mxu0 %v939
    %v1012 = vpop.f32.mrb[0].mxu0
    %v1013 = vadd.f32 0.0, %v1012
    %v1014 = vpop.f32.mrb[0].mxu0
    %1015 = vdwg.mxu0
    %v1017 = vsel %vm541, %v727, 0
    %v1020 = vsel %vm541, %v732, 0
    %1022 = vmatprep.subr.mxu0 0.0
    %1023 = vmatpush1.msra.mxu0 %v369
    %1024 = vmatprep.subr.mxu0 0.0
    %1025 = vmatpush1.msra.mxu0 0.0
    %1026 = vmatprep.subr.mxu0 0.0
    %1027 = vmatpush1.msra.mxu0 0.0
    %1028 = vmatprep.subr.mxu0 0.0
    %1029 = vmatpush1.msra.mxu0 0.0
    %1030 = vmatprep.subr.mxu0 0.0
    %1031 = vmatpush1.msra.mxu0 0.0
    %1032 = vmatprep.subr.mxu0 0.0
    %1033 = vmatpush1.msra.mxu0 0.0
    %1034 = vmatprep.subr.mxu0 0.0
    %1035 = vmatpush1.msra.mxu0 0.0
    %1036 = vmatprep.subr.mxu0 0.0
    %1037 = vmatpush1.msra.mxu0 0.0
    %1038 = vmatprep.subr.mxu0 0.0
    %1039 = vmatpush1.msra.mxu0 0.0
    %1040 = vmatprep.subr.mxu0 0.0
    %1041 = vmatpush1.msra.mxu0 0.0
    %1042 = vmatprep.subr.mxu0 0.0
    %1043 = vmatpush1.msra.mxu0 0.0
    %1044 = vmatprep.subr.mxu0 0.0
    %1045 = vmatpush1.msra.mxu0 0.0
    %1046 = vmatprep.subr.mxu0 0.0
    %1047 = vmatpush1.msra.mxu0 0.0
    %1048 = vmatprep.subr.mxu0 0.0
    %1049 = vmatpush1.msra.mxu0 0.0
    %1050 = vmatprep.subr.mxu0 0.0
    %1051 = vmatpush1.msra.mxu0 0.0
    %1052 = vmatprep.subr.mxu0 0.0
    %1053 = vmatpush1.msra.mxu0 0.0
    %1054 = vmatprep.subr.mxu0 0.0
    %1055 = vmatpush1.msra.mxu0 0.0
    %1056 = vmatprep.subr.mxu0 0.0
    %1057 = vmatpush1.msra.mxu0 0.0
    %1058 = vmatprep.subr.mxu0 0.0
    %1059 = vmatpush1.msra.mxu0 0.0
    %1060 = vmatprep.subr.mxu0 0.0
    %1061 = vmatpush1.msra.mxu0 0.0
    %1062 = vmatprep.subr.mxu0 0.0
    %1063 = vmatpush1.msra.mxu0 0.0
    %1064 = vmatprep.subr.mxu0 0.0
    %1065 = vmatpush1.msra.mxu0 0.0
    %1066 = vmatprep.subr.mxu0 0.0
    %1067 = vmatpush1.msra.mxu0 0.0
    %1068 = vmatprep.subr.mxu0 0.0
    %1069 = vmatpush1.msra.mxu0 0.0
    %1070 = vmatprep.subr.mxu0 0.0
    %1071 = vmatpush1.msra.mxu0 0.0
    %1072 = vmatprep.subr.mxu0 0.0
    %1073 = vmatpush1.msra.mxu0 0.0
    %1074 = vmatprep.subr.mxu0 0.0
    %1075 = vmatpush1.msra.mxu0 0.0
    %1076 = vmatprep.subr.mxu0 0.0
    %1077 = vmatpush1.msra.mxu0 0.0
    %1078 = vmatprep.subr.mxu0 0.0
    %1079 = vmatpush1.msra.mxu0 0.0
    %1080 = vmatprep.subr.mxu0 0.0
    %1081 = vmatpush1.msra.mxu0 0.0
    %1082 = vmatprep.subr.mxu0 0.0
    %1083 = vmatpush1.msra.mxu0 0.0
    %1084 = vmatprep.subr.mxu0 0.0
    %1085 = vmatpush1.msra.mxu0 0.0
    %1086 = vmatprep.mubr.f32.mxu0 0.0
    %1087 = vmatmul.mubr.f32.gmra.mrb[0].mxu0 %v1017
    %v1088 = vpop.f32.mrb[0].mxu0
    %v1089 = vadd.f32 %v1008, %v1088
    %v1090 = vpop.f32.mrb[0].mxu0
    %1091 = vmatprep.mubr.f32.mxu0 0.0
    %1092 = vmatmul.mubr.f32.gmra.mrb[0].mxu0 %v1020
    %v1093 = vpop.f32.mrb[0].mxu0
    %v1094 = vadd.f32 %v1013, %v1093
    %v1095 = vpop.f32.mrb[0].mxu0
    %1096 = vdwg.mxu0
    %1097 = vrot.lane.b32.xlu0 %v527, 112
    %v1098 = vpop.permute.xlu0 %1097
    %1099 = vrot.lane.b32.xlu0 %v532, 112
    %v1100 = vpop.permute.xlu0 %1099
    %1101 = vrot.lane.b32.xlu0 %v527, 80
    %v1102 = vpop.permute.xlu0 %1101
    %1103 = vrot.lane.b32.xlu0 %v532, 80
    %v1104 = vpop.permute.xlu0 %1103
    %v1105 = vsel %vm541, %v1098, 0
    %v1107 = vsel %vm541, %v1100, 0
    %v1109 = vsel %vm541, %v1102, 0
    %v1111 = vsel %vm541, %v1104, 0
    %1113 = vmatprep.subr.mxu0 0.0
    %1114 = vmatpush1.xpose.msra.mxu0 %v1109
    %1115 = vmatprep.subr.mxu0 0.0
    %1116 = vmatpush1.xpose.msra.mxu0 %v1111
    %1117 = vmatprep.subr.mxu0 0.0
    %1118 = vmatpush1.xpose.msra.mxu0 0.0
    %1119 = vmatprep.subr.mxu0 0.0
    %1120 = vmatpush1.xpose.msra.mxu0 0.0
    %1121 = vmatprep.subr.mxu0 0.0
    %1122 = vmatpush1.xpose.msra.mxu0 0.0
    %1123 = vmatprep.subr.mxu0 0.0
    %1124 = vmatpush1.xpose.msra.mxu0 0.0
    %1125 = vmatprep.subr.mxu0 0.0
    %1126 = vmatpush1.xpose.msra.mxu0 0.0
    %1127 = vmatprep.subr.mxu0 0.0
    %1128 = vmatpush1.xpose.msra.mxu0 0.0
    %1129 = vmatprep.subr.mxu0 0.0
    %1130 = vmatpush1.xpose.msra.mxu0 0.0
    %1131 = vmatprep.subr.mxu0 0.0
    %1132 = vmatpush1.xpose.msra.mxu0 0.0
    %1133 = vmatprep.subr.mxu0 0.0
    %1134 = vmatpush1.xpose.msra.mxu0 0.0
    %1135 = vmatprep.subr.mxu0 0.0
    %1136 = vmatpush1.xpose.msra.mxu0 0.0
    %1137 = vmatprep.subr.mxu0 0.0
    %1138 = vmatpush1.xpose.msra.mxu0 0.0
    %1139 = vmatprep.subr.mxu0 0.0
    %1140 = vmatpush1.xpose.msra.mxu0 0.0
    %1141 = vmatprep.subr.mxu0 0.0
    %1142 = vmatpush1.xpose.msra.mxu0 0.0
    %1143 = vmatprep.subr.mxu0 0.0
    %1144 = vmatpush1.xpose.msra.mxu0 0.0
    %1145 = vmatprep.subr.mxu0 0.0
    %1146 = vmatpush1.xpose.msra.mxu0 0.0
    %1147 = vmatprep.subr.mxu0 0.0
    %1148 = vmatpush1.xpose.msra.mxu0 0.0
    %1149 = vmatprep.subr.mxu0 0.0
    %1150 = vmatpush1.xpose.msra.mxu0 0.0
    %1151 = vmatprep.subr.mxu0 0.0
    %1152 = vmatpush1.xpose.msra.mxu0 0.0
    %1153 = vmatprep.subr.mxu0 0.0
    %1154 = vmatpush1.xpose.msra.mxu0 0.0
    %1155 = vmatprep.subr.mxu0 0.0
    %1156 = vmatpush1.xpose.msra.mxu0 0.0
    %1157 = vmatprep.subr.mxu0 0.0
    %1158 = vmatpush1.xpose.msra.mxu0 0.0
    %1159 = vmatprep.subr.mxu0 0.0
    %1160 = vmatpush1.xpose.msra.mxu0 0.0
    %1161 = vmatprep.subr.mxu0 0.0
    %1162 = vmatpush1.xpose.msra.mxu0 0.0
    %1163 = vmatprep.subr.mxu0 0.0
    %1164 = vmatpush1.xpose.msra.mxu0 0.0
    %1165 = vmatprep.subr.mxu0 0.0
    %1166 = vmatpush1.xpose.msra.mxu0 0.0
    %1167 = vmatprep.subr.mxu0 0.0
    %1168 = vmatpush1.xpose.msra.mxu0 0.0
    %1169 = vmatprep.subr.mxu0 0.0
    %1170 = vmatpush1.xpose.msra.mxu0 0.0
    %1171 = vmatprep.subr.mxu0 0.0
    %1172 = vmatpush1.xpose.msra.mxu0 0.0
    %1173 = vmatprep.subr.mxu0 0.0
    %1174 = vmatpush1.xpose.msra.mxu0 0.0
    %1175 = vmatprep.subr.mxu0 0.0
    %1176 = vmatpush1.xpose.msra.mxu0 0.0
    %1177 = vmatprep.mubr.f32.mxu0 0.0
    %1178 = vmatmul.mubr.f32.gmra.mrb[0].mxu0 %v1105
    %v1179 = vpop.f32.mrb[0].mxu0
    %v1180 = vadd.f32 %v354, %v1179
    %v1181 = vpop.f32.mrb[0].mxu0
    %1182 = vmatprep.mubr.f32.mxu0 0.0
    %1183 = vmatmul.mubr.f32.gmra.mrb[0].mxu0 %v1107
    %v1184 = vpop.f32.mrb[0].mxu0
    %v1185 = vadd.f32 %v355, %v1184
    %v1186 = vpop.f32.mrb[0].mxu0
    %1187 = vdwg.mxu0
    %v1188 = vsel %vm625, %v1180, -inf
    %1189 = vmax.xlane.f32.xlu0 %v1188
    %v1190 = vpop.xlane.xlu0 %1189
    %v1191 = vsel %vm625, %v1185, -inf
    %1192 = vmax.xlane.f32.xlu0 %v1191
    %v1193 = vpop.xlane.xlu0 %1192
    %v1194 = vsub.f32 %v1180, %v1190
    %v1195 = vsub.f32 %v1185, %v1193
    %v1196 = vmul.f32 %v1194, 1.442695
    %v1197 = vpow.pop %v1196
    %v1198 = vmul.f32 %v1195, 1.442695
    %v1199 = vpow.pop %v1198
    %v1200 = vsel %vm625, %v1197, 0.0
    %1201 = vadd.xlane.f32.xlu0 %v1200
    %v1202 = vpop.xlane.xlu0 %1201
    %v1203 = vsel %vm625, %v1199, 0.0
    %1204 = vadd.xlane.f32.xlu0 %v1203
    %v1205 = vpop.xlane.xlu0 %1204
    %v1206 = vrcp.pop %v1202
    %v1207 = vrcp.pop %v1205
    %v1208 = vmul.f32 %v1197, %v1206
    %v1209 = vmul.f32 %v1199, %v1207
    %1210 = vrot.lane.b32.xlu0 %v527, 48
    %v1211 = vpop.permute.xlu0 %1210
    %1212 = vrot.lane.b32.xlu0 %v532, 48
    %v1213 = vpop.permute.xlu0 %1212
    %v1217 = vsel %vm625, %v1208, 0
    %v1220 = vsel %vm625, %v1209, 0
    %1222 = vmatprep.subr.mxu0 0.0
    %1223 = vmatpush1.msra.mxu0 %v1211
    %1224 = vmatprep.subr.mxu0 0.0
    %1225 = vmatpush1.msra.mxu0 %v1213
    %1226 = vmatprep.subr.mxu0 0.0
    %1227 = vmatpush1.msra.mxu0 0.0
    %1228 = vmatprep.subr.mxu0 0.0
    %1229 = vmatpush1.msra.mxu0 0.0
    %1230 = vmatprep.subr.mxu0 0.0
    %1231 = vmatpush1.msra.mxu0 0.0
    %1232 = vmatprep.subr.mxu0 0.0
    %1233 = vmatpush1.msra.mxu0 0.0
    %1234 = vmatprep.subr.mxu0 0.0
    %1235 = vmatpush1.msra.mxu0 0.0
    %1236 = vmatprep.subr.mxu0 0.0
    %1237 = vmatpush1.msra.mxu0 0.0
    %1238 = vmatprep.subr.mxu0 0.0
    %1239 = vmatpush1.msra.mxu0 0.0
    %1240 = vmatprep.subr.mxu0 0.0
    %1241 = vmatpush1.msra.mxu0 0.0
    %1242 = vmatprep.subr.mxu0 0.0
    %1243 = vmatpush1.msra.mxu0 0.0
    %1244 = vmatprep.subr.mxu0 0.0
    %1245 = vmatpush1.msra.mxu0 0.0
    %1246 = vmatprep.subr.mxu0 0.0
    %1247 = vmatpush1.msra.mxu0 0.0
    %1248 = vmatprep.subr.mxu0 0.0
    %1249 = vmatpush1.msra.mxu0 0.0
    %1250 = vmatprep.subr.mxu0 0.0
    %1251 = vmatpush1.msra.mxu0 0.0
    %1252 = vmatprep.subr.mxu0 0.0
    %1253 = vmatpush1.msra.mxu0 0.0
    %1254 = vmatprep.subr.mxu0 0.0
    %1255 = vmatpush1.msra.mxu0 0.0
    %1256 = vmatprep.subr.mxu0 0.0
    %1257 = vmatpush1.msra.mxu0 0.0
    %1258 = vmatprep.subr.mxu0 0.0
    %1259 = vmatpush1.msra.mxu0 0.0
    %1260 = vmatprep.subr.mxu0 0.0
    %1261 = vmatpush1.msra.mxu0 0.0
    %1262 = vmatprep.subr.mxu0 0.0
    %1263 = vmatpush1.msra.mxu0 0.0
    %1264 = vmatprep.subr.mxu0 0.0
    %1265 = vmatpush1.msra.mxu0 0.0
    %1266 = vmatprep.subr.mxu0 0.0
    %1267 = vmatpush1.msra.mxu0 0.0
    %1268 = vmatprep.subr.mxu0 0.0
    %1269 = vmatpush1.msra.mxu0 0.0
    %1270 = vmatprep.subr.mxu0 0.0
    %1271 = vmatpush1.msra.mxu0 0.0
    %1272 = vmatprep.subr.mxu0 0.0
    %1273 = vmatpush1.msra.mxu0 0.0
    %1274 = vmatprep.subr.mxu0 0.0
    %1275 = vmatpush1.msra.mxu0 0.0
    %1276 = vmatprep.subr.mxu0 0.0
    %1277 = vmatpush1.msra.mxu0 0.0
    %1278 = vmatprep.subr.mxu0 0.0
    %1279 = vmatpush1.msra.mxu0 0.0
    %1280 = vmatprep.subr.mxu0 0.0
    %1281 = vmatpush1.msra.mxu0 0.0
    %1282 = vmatprep.subr.mxu0 0.0
    %1283 = vmatpush1.msra.mxu0 0.0
    %1284 = vmatprep.subr.mxu0 0.0
    %1285 = vmatpush1.msra.mxu0 0.0
    %1286 = vmatprep.mubr.f32.mxu0 0.0
    %1287 = vmatmul.mubr.f32.gmra.mrb[0].mxu0 %v1217
    %v1288 = vpop.f32.mrb[0].mxu0
    %v1289 = vadd.f32 0.0, %v1288
    %v1290 = vpop.f32.mrb[0].mxu0
    %1291 = vmatprep.mubr.f32.mxu0 0.0
    %1292 = vmatmul.mubr.f32.gmra.mrb[0].mxu0 %v1220
    %v1293 = vpop.f32.mrb[0].mxu0
    %v1294 = vadd.f32 0.0, %v1293
    %v1295 = vpop.f32.mrb[0].mxu0
    %1296 = vdwg.mxu0
    %v1298 = vsel %vm541, %v1289, 0
    %v1301 = vsel %vm541, %v1294, 0
    %1303 = vmatprep.subr.mxu0 0.0
    %1304 = vmatpush1.msra.mxu0 %v371
    %1305 = vmatprep.subr.mxu0 0.0
    %1306 = vmatpush1.msra.mxu0 0.0
    %1307 = vmatprep.subr.mxu0 0.0
    %1308 = vmatpush1.msra.mxu0 0.0
    %1309 = vmatprep.subr.mxu0 0.0
    %1310 = vmatpush1.msra.mxu0 0.0
    %1311 = vmatprep.subr.mxu0 0.0
    %1312 = vmatpush1.msra.mxu0 0.0
    %1313 = vmatprep.subr.mxu0 0.0
    %1314 = vmatpush1.msra.mxu0 0.0
    %1315 = vmatprep.subr.mxu0 0.0
    %1316 = vmatpush1.msra.mxu0 0.0
    %1317 = vmatprep.subr.mxu0 0.0
    %1318 = vmatpush1.msra.mxu0 0.0
    %1319 = vmatprep.subr.mxu0 0.0
    %1320 = vmatpush1.msra.mxu0 0.0
    %1321 = vmatprep.subr.mxu0 0.0
    %1322 = vmatpush1.msra.mxu0 0.0
    %1323 = vmatprep.subr.mxu0 0.0
    %1324 = vmatpush1.msra.mxu0 0.0
    %1325 = vmatprep.subr.mxu0 0.0
    %1326 = vmatpush1.msra.mxu0 0.0
    %1327 = vmatprep.subr.mxu0 0.0
    %1328 = vmatpush1.msra.mxu0 0.0
    %1329 = vmatprep.subr.mxu0 0.0
    %1330 = vmatpush1.msra.mxu0 0.0
    %1331 = vmatprep.subr.mxu0 0.0
    %1332 = vmatpush1.msra.mxu0 0.0
    %1333 = vmatprep.subr.mxu0 0.0
    %1334 = vmatpush1.msra.mxu0 0.0
    %1335 = vmatprep.subr.mxu0 0.0
    %1336 = vmatpush1.msra.mxu0 0.0
    %1337 = vmatprep.subr.mxu0 0.0
    %1338 = vmatpush1.msra.mxu0 0.0
    %1339 = vmatprep.subr.mxu0 0.0
    %1340 = vmatpush1.msra.mxu0 0.0
    %1341 = vmatprep.subr.mxu0 0.0
    %1342 = vmatpush1.msra.mxu0 0.0
    %1343 = vmatprep.subr.mxu0 0.0
    %1344 = vmatpush1.msra.mxu0 0.0
    %1345 = vmatprep.subr.mxu0 0.0
    %1346 = vmatpush1.msra.mxu0 0.0
    %1347 = vmatprep.subr.mxu0 0.0
    %1348 = vmatpush1.msra.mxu0 0.0
    %1349 = vmatprep.subr.mxu0 0.0
    %1350 = vmatpush1.msra.mxu0 0.0
    %1351 = vmatprep.subr.mxu0 0.0
    %1352 = vmatpush1.msra.mxu0 0.0
    %1353 = vmatprep.subr.mxu0 0.0
    %1354 = vmatpush1.msra.mxu0 0.0
    %1355 = vmatprep.subr.mxu0 0.0
    %1356 = vmatpush1.msra.mxu0 0.0
    %1357 = vmatprep.subr.mxu0 0.0
    %1358 = vmatpush1.msra.mxu0 0.0
    %1359 = vmatprep.subr.mxu0 0.0
    %1360 = vmatpush1.msra.mxu0 0.0
    %1361 = vmatprep.subr.mxu0 0.0
    %1362 = vmatpush1.msra.mxu0 0.0
    %1363 = vmatprep.subr.mxu0 0.0
    %1364 = vmatpush1.msra.mxu0 0.0
    %1365 = vmatprep.subr.mxu0 0.0
    %1366 = vmatpush1.msra.mxu0 0.0
    %1367 = vmatprep.mubr.f32.mxu0 0.0
    %1368 = vmatmul.mubr.f32.gmra.mrb[0].mxu0 %v1298
    %v1369 = vpop.f32.mrb[0].mxu0
    %v1370 = vadd.f32 0.0, %v1369
    %v1371 = vpop.f32.mrb[0].mxu0
    %1372 = vmatprep.mubr.f32.mxu0 0.0
    %1373 = vmatmul.mubr.f32.gmra.mrb[0].mxu0 %v1301
    %v1374 = vpop.f32.mrb[0].mxu0
    %v1375 = vadd.f32 0.0, %v1374
    %v1376 = vpop.f32.mrb[0].mxu0
    %1377 = vdwg.mxu0
    %v1378 = vadd.f32 %v1089, %v1370
    %v1379 = vadd.f32 %v1094, %v1375
    %1380 = vrot.lane.b32.xlu0 %v527, 104
    %v1381 = vpop.permute.xlu0 %1380
    %1382 = vrot.lane.b32.xlu0 %v532, 104
    %v1383 = vpop.permute.xlu0 %1382
    %1384 = vrot.lane.b32.xlu0 %v527, 72
    %v1385 = vpop.permute.xlu0 %1384
    %1386 = vrot.lane.b32.xlu0 %v532, 72
    %v1387 = vpop.permute.xlu0 %1386
    %v1388 = vsel %vm541, %v1381, 0
    %v1390 = vsel %vm541, %v1383, 0
    %v1392 = vsel %vm541, %v1385, 0
    %v1394 = vsel %vm541, %v1387, 0
    %1396 = vmatprep.subr.mxu0 0.0
    %1397 = vmatpush1.xpose.msra.mxu0 %v1392
    %1398 = vmatprep.subr.mxu0 0.0
    %1399 = vmatpush1.xpose.msra.mxu0 %v1394
    %1400 = vmatprep.subr.mxu0 0.0
    %1401 = vmatpush1.xpose.msra.mxu0 0.0
    %1402 = vmatprep.subr.mxu0 0.0
    %1403 = vmatpush1.xpose.msra.mxu0 0.0
    %1404 = vmatprep.subr.mxu0 0.0
    %1405 = vmatpush1.xpose.msra.mxu0 0.0
    %1406 = vmatprep.subr.mxu0 0.0
    %1407 = vmatpush1.xpose.msra.mxu0 0.0
    %1408 = vmatprep.subr.mxu0 0.0
    %1409 = vmatpush1.xpose.msra.mxu0 0.0
    %1410 = vmatprep.subr.mxu0 0.0
    %1411 = vmatpush1.xpose.msra.mxu0 0.0
    %1412 = vmatprep.subr.mxu0 0.0
    %1413 = vmatpush1.xpose.msra.mxu0 0.0
    %1414 = vmatprep.subr.mxu0 0.0
    %1415 = vmatpush1.xpose.msra.mxu0 0.0
    %1416 = vmatprep.subr.mxu0 0.0
    %1417 = vmatpush1.xpose.msra.mxu0 0.0
    %1418 = vmatprep.subr.mxu0 0.0
    %1419 = vmatpush1.xpose.msra.mxu0 0.0
    %1420 = vmatprep.subr.mxu0 0.0
    %1421 = vmatpush1.xpose.msra.mxu0 0.0
    %1422 = vmatprep.subr.mxu0 0.0
    %1423 = vmatpush1.xpose.msra.mxu0 0.0
    %1424 = vmatprep.subr.mxu0 0.0
    %1425 = vmatpush1.xpose.msra.mxu0 0.0
    %1426 = vmatprep.subr.mxu0 0.0
    %1427 = vmatpush1.xpose.msra.mxu0 0.0
    %1428 = vmatprep.subr.mxu0 0.0
    %1429 = vmatpush1.xpose.msra.mxu0 0.0
    %1430 = vmatprep.subr.mxu0 0.0
    %1431 = vmatpush1.xpose.msra.mxu0 0.0
    %1432 = vmatprep.subr.mxu0 0.0
    %1433 = vmatpush1.xpose.msra.mxu0 0.0
    %1434 = vmatprep.subr.mxu0 0.0
    %1435 = vmatpush1.xpose.msra.mxu0 0.0
    %1436 = vmatprep.subr.mxu0 0.0
    %1437 = vmatpush1.xpose.msra.mxu0 0.0
    %1438 = vmatprep.subr.mxu0 0.0
    %1439 = vmatpush1.xpose.msra.mxu0 0.0
    %1440 = vmatprep.subr.mxu0 0.0
    %1441 = vmatpush1.xpose.msra.mxu0 0.0
    %1442 = vmatprep.subr.mxu0 0.0
    %1443 = vmatpush1.xpose.msra.mxu0 0.0
    %1444 = vmatprep.subr.mxu0 0.0
    %1445 = vmatpush1.xpose.msra.mxu0 0.0
    %1446 = vmatprep.subr.mxu0 0.0
    %1447 = vmatpush1.xpose.msra.mxu0 0.0
    %1448 = vmatprep.subr.mxu0 0.0
    %1449 = vmatpush1.xpose.msra.mxu0 0.0
    %1450 = vmatprep.subr.mxu0 0.0
    %1451 = vmatpush1.xpose.msra.mxu0 0.0
    %1452 = vmatprep.subr.mxu0 0.0
    %1453 = vmatpush1.xpose.msra.mxu0 0.0
    %1454 = vmatprep.subr.mxu0 0.0
    %1455 = vmatpush1.xpose.msra.mxu0 0.0
    %1456 = vmatprep.subr.mxu0 0.0
    %1457 = vmatpush1.xpose.msra.mxu0 0.0
    %1458 = vmatprep.subr.mxu0 0.0
    %1459 = vmatpush1.xpose.msra.mxu0 0.0
    %1460 = vmatprep.mubr.f32.mxu0 0.0
    %1461 = vmatmul.mubr.f32.gmra.mrb[0].mxu0 %v1388
    %v1462 = vpop.f32.mrb[0].mxu0
    %v1463 = vadd.f32 %v354, %v1462
    %v1464 = vpop.f32.mrb[0].mxu0
    %1465 = vmatprep.mubr.f32.mxu0 0.0
    %1466 = vmatmul.mubr.f32.gmra.mrb[0].mxu0 %v1390
    %v1467 = vpop.f32.mrb[0].mxu0
    %v1468 = vadd.f32 %v355, %v1467
    %v1469 = vpop.f32.mrb[0].mxu0
    %1470 = vdwg.mxu0
    %v1471 = vsel %vm625, %v1463, -inf
    %1472 = vmax.xlane.f32.xlu0 %v1471
    %v1473 = vpop.xlane.xlu0 %1472
    %v1474 = vsel %vm625, %v1468, -inf
    %1475 = vmax.xlane.f32.xlu0 %v1474
    %v1476 = vpop.xlane.xlu0 %1475
    %v1477 = vsub.f32 %v1463, %v1473
    %v1478 = vsub.f32 %v1468, %v1476
    %v1479 = vmul.f32 %v1477, 1.442695
    %v1480 = vpow.pop %v1479
    %v1481 = vmul.f32 %v1478, 1.442695
    %v1482 = vpow.pop %v1481
    %v1483 = vsel %vm625, %v1480, 0.0
    %1484 = vadd.xlane.f32.xlu0 %v1483
    %v1485 = vpop.xlane.xlu0 %1484
    %v1486 = vsel %vm625, %v1482, 0.0
    %1487 = vadd.xlane.f32.xlu0 %v1486
    %v1488 = vpop.xlane.xlu0 %1487
    %v1489 = vrcp.pop %v1485
    %v1490 = vrcp.pop %v1488
    %v1491 = vmul.f32 %v1480, %v1489
    %v1492 = vmul.f32 %v1482, %v1490
    %1493 = vrot.lane.b32.xlu0 %v527, 40
    %v1494 = vpop.permute.xlu0 %1493
    %1495 = vrot.lane.b32.xlu0 %v532, 40
    %v1496 = vpop.permute.xlu0 %1495
    %v1500 = vsel %vm625, %v1491, 0
    %v1503 = vsel %vm625, %v1492, 0
    %1505 = vmatprep.subr.mxu0 0.0
    %1506 = vmatpush1.msra.mxu0 %v1494
    %1507 = vmatprep.subr.mxu0 0.0
    %1508 = vmatpush1.msra.mxu0 %v1496
    %1509 = vmatprep.subr.mxu0 0.0
    %1510 = vmatpush1.msra.mxu0 0.0
    %1511 = vmatprep.subr.mxu0 0.0
    %1512 = vmatpush1.msra.mxu0 0.0
    %1513 = vmatprep.subr.mxu0 0.0
    %1514 = vmatpush1.msra.mxu0 0.0
    %1515 = vmatprep.subr.mxu0 0.0
    %1516 = vmatpush1.msra.mxu0 0.0
    %1517 = vmatprep.subr.mxu0 0.0
    %1518 = vmatpush1.msra.mxu0 0.0
    %1519 = vmatprep.subr.mxu0 0.0
    %1520 = vmatpush1.msra.mxu0 0.0
    %1521 = vmatprep.subr.mxu0 0.0
    %1522 = vmatpush1.msra.mxu0 0.0
    %1523 = vmatprep.subr.mxu0 0.0
    %1524 = vmatpush1.msra.mxu0 0.0
    %1525 = vmatprep.subr.mxu0 0.0
    %1526 = vmatpush1.msra.mxu0 0.0
    %1527 = vmatprep.subr.mxu0 0.0
    %1528 = vmatpush1.msra.mxu0 0.0
    %1529 = vmatprep.subr.mxu0 0.0
    %1530 = vmatpush1.msra.mxu0 0.0
    %1531 = vmatprep.subr.mxu0 0.0
    %1532 = vmatpush1.msra.mxu0 0.0
    %1533 = vmatprep.subr.mxu0 0.0
    %1534 = vmatpush1.msra.mxu0 0.0
    %1535 = vmatprep.subr.mxu0 0.0
    %1536 = vmatpush1.msra.mxu0 0.0
    %1537 = vmatprep.subr.mxu0 0.0
    %1538 = vmatpush1.msra.mxu0 0.0
    %1539 = vmatprep.subr.mxu0 0.0
    %1540 = vmatpush1.msra.mxu0 0.0
    %1541 = vmatprep.subr.mxu0 0.0
    %1542 = vmatpush1.msra.mxu0 0.0
    %1543 = vmatprep.subr.mxu0 0.0
    %1544 = vmatpush1.msra.mxu0 0.0
    %1545 = vmatprep.subr.mxu0 0.0
    %1546 = vmatpush1.msra.mxu0 0.0
    %1547 = vmatprep.subr.mxu0 0.0
    %1548 = vmatpush1.msra.mxu0 0.0
    %1549 = vmatprep.subr.mxu0 0.0
    %1550 = vmatpush1.msra.mxu0 0.0
    %1551 = vmatprep.subr.mxu0 0.0
    %1552 = vmatpush1.msra.mxu0 0.0
    %1553 = vmatprep.subr.mxu0 0.0
    %1554 = vmatpush1.msra.mxu0 0.0
    %1555 = vmatprep.subr.mxu0 0.0
    %1556 = vmatpush1.msra.mxu0 0.0
    %1557 = vmatprep.subr.mxu0 0.0
    %1558 = vmatpush1.msra.mxu0 0.0
    %1559 = vmatprep.subr.mxu0 0.0
    %1560 = vmatpush1.msra.mxu0 0.0
    %1561 = vmatprep.subr.mxu0 0.0
    %1562 = vmatpush1.msra.mxu0 0.0
    %1563 = vmatprep.subr.mxu0 0.0
    %1564 = vmatpush1.msra.mxu0 0.0
    %1565 = vmatprep.subr.mxu0 0.0
    %1566 = vmatpush1.msra.mxu0 0.0
    %1567 = vmatprep.subr.mxu0 0.0
    %1568 = vmatpush1.msra.mxu0 0.0
    %1569 = vmatprep.mubr.f32.mxu0 0.0
    %1570 = vmatmul.mubr.f32.gmra.mrb[0].mxu0 %v1500
    %v1571 = vpop.f32.mrb[0].mxu0
    %v1572 = vadd.f32 0.0, %v1571
    %v1573 = vpop.f32.mrb[0].mxu0
    %1574 = vmatprep.mubr.f32.mxu0 0.0
    %1575 = vmatmul.mubr.f32.gmra.mrb[0].mxu0 %v1503
    %v1576 = vpop.f32.mrb[0].mxu0
    %v1577 = vadd.f32 0.0, %v1576
    %v1578 = vpop.f32.mrb[0].mxu0
    %1579 = vdwg.mxu0
    %v1581 = vsel %vm541, %v1572, 0
    %v1584 = vsel %vm541, %v1577, 0
    %1586 = vmatprep.subr.mxu0 0.0
    %1587 = vmatpush1.msra.mxu0 %v372
    %1588 = vmatprep.subr.mxu0 0.0
    %1589 = vmatpush1.msra.mxu0 0.0
    %1590 = vmatprep.subr.mxu0 0.0
    %1591 = vmatpush1.msra.mxu0 0.0
    %1592 = vmatprep.subr.mxu0 0.0
    %1593 = vmatpush1.msra.mxu0 0.0
    %1594 = vmatprep.subr.mxu0 0.0
    %1595 = vmatpush1.msra.mxu0 0.0
    %1596 = vmatprep.subr.mxu0 0.0
    %1597 = vmatpush1.msra.mxu0 0.0
    %1598 = vmatprep.subr.mxu0 0.0
    %1599 = vmatpush1.msra.mxu0 0.0
    %1600 = vmatprep.subr.mxu0 0.0
    %1601 = vmatpush1.msra.mxu0 0.0
    %1602 = vmatprep.subr.mxu0 0.0
    %1603 = vmatpush1.msra.mxu0 0.0
    %1604 = vmatprep.subr.mxu0 0.0
    %1605 = vmatpush1.msra.mxu0 0.0
    %1606 = vmatprep.subr.mxu0 0.0
    %1607 = vmatpush1.msra.mxu0 0.0
    %1608 = vmatprep.subr.mxu0 0.0
    %1609 = vmatpush1.msra.mxu0 0.0
    %1610 = vmatprep.subr.mxu0 0.0
    %1611 = vmatpush1.msra.mxu0 0.0
    %1612 = vmatprep.subr.mxu0 0.0
    %1613 = vmatpush1.msra.mxu0 0.0
    %1614 = vmatprep.subr.mxu0 0.0
    %1615 = vmatpush1.msra.mxu0 0.0
    %1616 = vmatprep.subr.mxu0 0.0
    %1617 = vmatpush1.msra.mxu0 0.0
    %1618 = vmatprep.subr.mxu0 0.0
    %1619 = vmatpush1.msra.mxu0 0.0
    %1620 = vmatprep.subr.mxu0 0.0
    %1621 = vmatpush1.msra.mxu0 0.0
    %1622 = vmatprep.subr.mxu0 0.0
    %1623 = vmatpush1.msra.mxu0 0.0
    %1624 = vmatprep.subr.mxu0 0.0
    %1625 = vmatpush1.msra.mxu0 0.0
    %1626 = vmatprep.subr.mxu0 0.0
    %1627 = vmatpush1.msra.mxu0 0.0
    %1628 = vmatprep.subr.mxu0 0.0
    %1629 = vmatpush1.msra.mxu0 0.0
    %1630 = vmatprep.subr.mxu0 0.0
    %1631 = vmatpush1.msra.mxu0 0.0
    %1632 = vmatprep.subr.mxu0 0.0
    %1633 = vmatpush1.msra.mxu0 0.0
    %1634 = vmatprep.subr.mxu0 0.0
    %1635 = vmatpush1.msra.mxu0 0.0
    %1636 = vmatprep.subr.mxu0 0.0
    %1637 = vmatpush1.msra.mxu0 0.0
    %1638 = vmatprep.subr.mxu0 0.0
    %1639 = vmatpush1.msra.mxu0 0.0
    %1640 = vmatprep.subr.mxu0 0.0
    %1641 = vmatpush1.msra.mxu0 0.0
    %1642 = vmatprep.subr.mxu0 0.0
    %1643 = vmatpush1.msra.mxu0 0.0
    %1644 = vmatprep.subr.mxu0 0.0
    %1645 = vmatpush1.msra.mxu0 0.0
    %1646 = vmatprep.subr.mxu0 0.0
    %1647 = vmatpush1.msra.mxu0 0.0
    %1648 = vmatprep.subr.mxu0 0.0
    %1649 = vmatpush1.msra.mxu0 0.0
    %1650 = vmatprep.mubr.f32.mxu0 0.0
    %1651 = vmatmul.mubr.f32.gmra.mrb[0].mxu0 %v1581
    %v1652 = vpop.f32.mrb[0].mxu0
    %v1653 = vadd.f32 0.0, %v1652
    %v1654 = vpop.f32.mrb[0].mxu0
    %1655 = vmatprep.mubr.f32.mxu0 0.0
    %1656 = vmatmul.mubr.f32.gmra.mrb[0].mxu0 %v1584
    %v1657 = vpop.f32.mrb[0].mxu0
    %v1658 = vadd.f32 0.0, %v1657
    %v1659 = vpop.f32.mrb[0].mxu0
    %1660 = vdwg.mxu0
    %v1661 = vadd.f32 %v1378, %v1653
    %v1662 = vadd.f32 %v1379, %v1658
    %v1664 = vlaneseq
    %v1665 = vshrl.u32 %v1664, 7
    %v1666 = vsub.s32 0, %v1665
    %v1667 = vrot.slane %v373, %v1666
    %v1669 = vadd.f32 %v1661, %v1667
    %v1670 = vadd.f32 %v1662, %v1667
    %v1671 = vadd.f32 %v360, %v1669
    %v1672 = vadd.f32 %v361, %v1670
    %v1673 = vsel %vm390, %v1671, 0.0
    %1674 = vadd.xlane.f32.xlu0 %v1673
    %v1675 = vpop.xlane.xlu0 %1674
    %v1676 = vsel %vm390, %v1672, 0.0
    %1677 = vadd.xlane.f32.xlu0 %v1676
    %v1678 = vpop.xlane.xlu0 %1677
    %v1679 = vmul.f32 %v1675, %v397
    %v1680 = vmul.f32 %v1678, %v397
    %v1681 = vsub.f32 %v1671, %v1679
    %v1682 = vsub.f32 %v1672, %v1680
    %v1683 = vmul.f32 %v1681, %v1681
    %v1684 = vmul.f32 %v1682, %v1682
    %v1685 = vsel %vm390, %v1683, 0.0
    %1686 = vadd.xlane.f32.xlu0 %v1685
    %v1687 = vpop.xlane.xlu0 %1686
    %v1688 = vsel %vm390, %v1684, 0.0
    %1689 = vadd.xlane.f32.xlu0 %v1688
    %v1690 = vpop.xlane.xlu0 %1689
    %v1691 = vmul.f32 %v1687, 0.032258064
    %v1692 = vmul.f32 %v1690, 0.032258064
    %v1693 = vrsqrt.pop %v1691
    %v1694 = vmul.f32 %v1691, %v1693
    %vm1695 = vcmp.eq.f32.partialorder %v1691, inf
    %v1696 = vsel %vm1695, %v1691, %v1694
    %vm1697 = vcmp.eq.f32.partialorder %v1691, 0.0
    %v1698 = vand.u32 %v1691, 2147483648
    %v1699 = vsel %vm1697, %v1698, %v1696
    %v1700 = vrsqrt.pop %v1692
    %v1701 = vmul.f32 %v1692, %v1700
    %vm1702 = vcmp.eq.f32.partialorder %v1692, inf
    %v1703 = vsel %vm1702, %v1692, %v1701
    %vm1704 = vcmp.eq.f32.partialorder %v1692, 0.0
    %v1705 = vand.u32 %v1692, 2147483648
    %v1706 = vsel %vm1704, %v1705, %v1703
    %v1707 = vadd.f32 %v1699, 1e-06
    %v1708 = vadd.f32 %v1706, 1e-06
    %v1709 = vrcp.pop %v1707
    %v1710 = vrcp.pop %v1708
    %v1712 = vlaneseq
    %v1713 = vshrl.u32 %v1712, 7
    %v1714 = vsub.s32 0, %v1713
    %v1715 = vrot.slane %v374, %v1714
    %v1717 = vmul.f32 %v1715, %v1681
    %v1718 = vmul.f32 %v1715, %v1682
    %v1719 = vmul.f32 %v1717, %v1709
    %v1720 = vmul.f32 %v1718, %v1710
    %v1722 = vlaneseq
    %v1723 = vshrl.u32 %v1722, 7
    %v1724 = vsub.s32 0, %v1723
    %v1725 = vrot.slane %v375, %v1724
    %v1727 = vadd.f32 %v1719, %v1725
    %v1728 = vadd.f32 %v1720, %v1725
    %v1730 = vlaneseq
    %v1731 = vshrl.u32 %v1730, 7
    %v1732 = vsub.s32 0, %v1731
    %v1733 = vrot.slane %v380, %v1732
    %v1736 = vsel %vm390, %v1727, 0
    %v1739 = vsel %vm390, %v1728, 0
    %1741 = vmatprep.subr.mxu0 0.0
    %1742 = vmatpush1.msra.mxu0 %v376
    %1743 = vmatprep.subr.mxu0 0.0
    %1744 = vmatpush1.msra.mxu0 %v377
    %1745 = vmatprep.subr.mxu0 0.0
    %1746 = vmatpush1.msra.mxu0 %v378
    %1747 = vmatprep.subr.mxu0 0.0
    %1748 = vmatpush1.msra.mxu0 %v379
    %1749 = vmatprep.subr.mxu0 0.0
    %1750 = vmatpush1.msra.mxu0 0.0
    %1751 = vmatprep.subr.mxu0 0.0
    %1752 = vmatpush1.msra.mxu0 0.0
    %1753 = vmatprep.subr.mxu0 0.0
    %1754 = vmatpush1.msra.mxu0 0.0
    %1755 = vmatprep.subr.mxu0 0.0
    %1756 = vmatpush1.msra.mxu0 0.0
    %1757 = vmatprep.subr.mxu0 0.0
    %1758 = vmatpush1.msra.mxu0 0.0
    %1759 = vmatprep.subr.mxu0 0.0
    %1760 = vmatpush1.msra.mxu0 0.0
    %1761 = vmatprep.subr.mxu0 0.0
    %1762 = vmatpush1.msra.mxu0 0.0
    %1763 = vmatprep.subr.mxu0 0.0
    %1764 = vmatpush1.msra.mxu0 0.0
    %1765 = vmatprep.subr.mxu0 0.0
    %1766 = vmatpush1.msra.mxu0 0.0
    %1767 = vmatprep.subr.mxu0 0.0
    %1768 = vmatpush1.msra.mxu0 0.0
    %1769 = vmatprep.subr.mxu0 0.0
    %1770 = vmatpush1.msra.mxu0 0.0
    %1771 = vmatprep.subr.mxu0 0.0
    %1772 = vmatpush1.msra.mxu0 0.0
    %1773 = vmatprep.subr.mxu0 0.0
    %1774 = vmatpush1.msra.mxu0 0.0
    %1775 = vmatprep.subr.mxu0 0.0
    %1776 = vmatpush1.msra.mxu0 0.0
    %1777 = vmatprep.subr.mxu0 0.0
    %1778 = vmatpush1.msra.mxu0 0.0
    %1779 = vmatprep.subr.mxu0 0.0
    %1780 = vmatpush1.msra.mxu0 0.0
    %1781 = vmatprep.subr.mxu0 0.0
    %1782 = vmatpush1.msra.mxu0 0.0
    %1783 = vmatprep.subr.mxu0 0.0
    %1784 = vmatpush1.msra.mxu0 0.0
    %1785 = vmatprep.subr.mxu0 0.0
    %1786 = vmatpush1.msra.mxu0 0.0
    %1787 = vmatprep.subr.mxu0 0.0
    %1788 = vmatpush1.msra.mxu0 0.0
    %1789 = vmatprep.subr.mxu0 0.0
    %1790 = vmatpush1.msra.mxu0 0.0
    %1791 = vmatprep.subr.mxu0 0.0
    %1792 = vmatpush1.msra.mxu0 0.0
    %1793 = vmatprep.subr.mxu0 0.0
    %1794 = vmatpush1.msra.mxu0 0.0
    %1795 = vmatprep.subr.mxu0 0.0
    %1796 = vmatpush1.msra.mxu0 0.0
    %1797 = vmatprep.subr.mxu0 0.0
    %1798 = vmatpush1.msra.mxu0 0.0
    %1799 = vmatprep.subr.mxu0 0.0
    %1800 = vmatpush1.msra.mxu0 0.0
    %1801 = vmatprep.subr.mxu0 0.0
    %1802 = vmatpush1.msra.mxu0 0.0
    %1803 = vmatprep.subr.mxu0 0.0
    %1804 = vmatpush1.msra.mxu0 0.0
    %1805 = vmatprep.mubr.f32.mxu0 0.0
    %1806 = vmatmul.mubr.f32.gmra.mrb[0].mxu0 %v1736
    %v1807 = vpop.f32.mrb[0].mxu0
    %v1808 = vadd.f32 %v1733, %v1807
    %v1809 = vpop.f32.mrb[0].mxu0
    %1810 = vmatprep.mubr.f32.mxu0 0.0
    %1811 = vmatmul.mubr.f32.gmra.mrb[0].mxu0 %v1739
    %v1812 = vpop.f32.mrb[0].mxu0
    %v1813 = vadd.f32 %v1733, %v1812
    %v1814 = vpop.f32.mrb[0].mxu0
    %1815 = vdwg.mxu0
    %v1816 = vmax.f32 %v1808, 0.0
    %v1817 = vmax.f32 %v1813, 0.0
    %v1819 = vlaneseq
    %v1820 = vshrl.u32 %v1819, 7
    %v1821 = vsub.s32 0, %v1820
    %v1822 = vrot.slane %v389, %v1821
    %vm1824 = vcmask 523264
    %v1826 = vsel %vm1824, %v1816, 0
    %v1829 = vsel %vm1824, %v1817, 0
    %1831 = vmatprep.subr.mxu0 0.0
    %1832 = vmatpush1.msra.mxu0 %v381
    %1833 = vmatprep.subr.mxu0 0.0
    %1834 = vmatpush1.msra.mxu0 %v382
    %1835 = vmatprep.subr.mxu0 0.0
    %1836 = vmatpush1.msra.mxu0 %v383
    %1837 = vmatprep.subr.mxu0 0.0
    %1838 = vmatpush1.msra.mxu0 %v384
    %1839 = vmatprep.subr.mxu0 0.0
    %1840 = vmatpush1.msra.mxu0 %v385
    %1841 = vmatprep.subr.mxu0 0.0
    %1842 = vmatpush1.msra.mxu0 %v386
    %1843 = vmatprep.subr.mxu0 0.0
    %1844 = vmatpush1.msra.mxu0 %v387
    %1845 = vmatprep.subr.mxu0 0.0
    %1846 = vmatpush1.msra.mxu0 %v388
    %1847 = vmatprep.subr.mxu0 0.0
    %1848 = vmatpush1.msra.mxu0 0.0
    %1849 = vmatprep.subr.mxu0 0.0
    %1850 = vmatpush1.msra.mxu0 0.0
    %1851 = vmatprep.subr.mxu0 0.0
    %1852 = vmatpush1.msra.mxu0 0.0
    %1853 = vmatprep.subr.mxu0 0.0
    %1854 = vmatpush1.msra.mxu0 0.0
    %1855 = vmatprep.subr.mxu0 0.0
    %1856 = vmatpush1.msra.mxu0 0.0
    %1857 = vmatprep.subr.mxu0 0.0
    %1858 = vmatpush1.msra.mxu0 0.0
    %1859 = vmatprep.subr.mxu0 0.0
    %1860 = vmatpush1.msra.mxu0 0.0
    %1861 = vmatprep.subr.mxu0 0.0
    %1862 = vmatpush1.msra.mxu0 0.0
    %1863 = vmatprep.subr.mxu0 0.0
    %1864 = vmatpush1.msra.mxu0 0.0
    %1865 = vmatprep.subr.mxu0 0.0
    %1866 = vmatpush1.msra.mxu0 0.0
    %1867 = vmatprep.subr.mxu0 0.0
    %1868 = vmatpush1.msra.mxu0 0.0
    %1869 = vmatprep.subr.mxu0 0.0
    %1870 = vmatpush1.msra.mxu0 0.0
    %1871 = vmatprep.subr.mxu0 0.0
    %1872 = vmatpush1.msra.mxu0 0.0
    %1873 = vmatprep.subr.mxu0 0.0
    %1874 = vmatpush1.msra.mxu0 0.0
    %1875 = vmatprep.subr.mxu0 0.0
    %1876 = vmatpush1.msra.mxu0 0.0
    %1877 = vmatprep.subr.mxu0 0.0
    %1878 = vmatpush1.msra.mxu0 0.0
    %1879 = vmatprep.subr.mxu0 0.0
    %1880 = vmatpush1.msra.mxu0 0.0
    %1881 = vmatprep.subr.mxu0 0.0
    %1882 = vmatpush1.msra.mxu0 0.0
    %1883 = vmatprep.subr.mxu0 0.0
    %1884 = vmatpush1.msra.mxu0 0.0
    %1885 = vmatprep.subr.mxu0 0.0
    %1886 = vmatpush1.msra.mxu0 0.0
    %1887 = vmatprep.subr.mxu0 0.0
    %1888 = vmatpush1.msra.mxu0 0.0
    %1889 = vmatprep.subr.mxu0 0.0
    %1890 = vmatpush1.msra.mxu0 0.0
    %1891 = vmatprep.subr.mxu0 0.0
    %1892 = vmatpush1.msra.mxu0 0.0
    %1893 = vmatprep.subr.mxu0 0.0
    %1894 = vmatpush1.msra.mxu0 0.0
    %1895 = vmatprep.mubr.f32.mxu0 0.0
    %1896 = vmatmul.mubr.f32.gmra.mrb[0].mxu0 %v1826
    %v1897 = vpop.f32.mrb[0].mxu0
    %v1898 = vadd.f32 %v1822, %v1897
    %v1899 = vpop.f32.mrb[0].mxu0
    %1900 = vmatprep.mubr.f32.mxu0 0.0
    %1901 = vmatmul.mubr.f32.gmra.mrb[0].mxu0 %v1829
    %v1902 = vpop.f32.mrb[0].mxu0
    %v1903 = vadd.f32 %v1822, %v1902
    %v1904 = vpop.f32.mrb[0].mxu0
    %1905 = vdwg.mxu0
    %v1906 = vadd.f32 %v1671, %v1898
    %v1907 = vadd.f32 %v1672, %v1903
    %v1908 = vld [vmem:[%s35] sm:$0x1]
    %v1909 = vld [vmem:[%s37] sm:$0x1]
    %v1910 = vld [vmem:[%s39] sm:$0xff]
    %v1911 = vld [vmem:[%s39 + $0x8] sm:$0xff]
    %v1912 = vld [vmem:[%s39 + $0x10] sm:$0xff]
    %v1913 = vld [vmem:[%s39 + $0x18] sm:$0xff]
    %v1914 = vld [vmem:[%s41] sm:$0x1]
    %v1915 = vld [vmem:[%s43] sm:$0xff]
    %v1916 = vld [vmem:[%s43 + $0x8] sm:$0xff]
    %v1917 = vld [vmem:[%s43 + $0x10] sm:$0xff]
    %v1918 = vld [vmem:[%s43 + $0x18] sm:$0xff]
    %v1919 = vld [vmem:[%s45] sm:$0x1]
    %v1920 = vld [vmem:[%s47] sm:$0x1]
    %v1921 = vld [vmem:[%s49] sm:$0x1]
    %v1922 = vld [vmem:[%s51] sm:$0xff]
    %v1923 = vld [vmem:[%s51 + $0x8] sm:$0xff]
    %v1924 = vld [vmem:[%s51 + $0x10] sm:$0xff]
    %v1925 = vld [vmem:[%s51 + $0x18] sm:$0xff]
    %v1926 = vld [vmem:[%s53] sm:$0x1]
    %v1927 = vld [vmem:[%s55] sm:$0xff]
    %v1928 = vld [vmem:[%s55 + $0x8] sm:$0xff]
    %v1929 = vld [vmem:[%s55 + $0x10] sm:$0xff]
    %v1930 = vld [vmem:[%s55 + $0x18] sm:$0xff]
    %v1931 = vld [vmem:[%s55 + $0x20] sm:$0xff]
    %v1932 = vld [vmem:[%s55 + $0x28] sm:$0xff]
    %v1933 = vld [vmem:[%s55 + $0x30] sm:$0xff]
    %v1934 = vld [vmem:[%s55 + $0x38] sm:$0xff]
    %v1935 = vld [vmem:[%s57] sm:$0x1]
    %v1936 = vsel %vm390, %v1906, 0.0
    %1937 = vadd.xlane.f32.xlu0 %v1936
    %v1938 = vpop.xlane.xlu0 %1937
    %v1939 = vsel %vm390, %v1907, 0.0
    %1940 = vadd.xlane.f32.xlu0 %v1939
    %v1941 = vpop.xlane.xlu0 %1940
    %v1942 = vmul.f32 %v1938, %v397
    %v1943 = vmul.f32 %v1941, %v397
    %v1944 = vsub.f32 %v1906, %v1942
    %v1945 = vsub.f32 %v1907, %v1943
    %v1946 = vmul.f32 %v1944, %v1944
    %v1947 = vmul.f32 %v1945, %v1945
    %v1948 = vsel %vm390, %v1946, 0.0
    %1949 = vadd.xlane.f32.xlu0 %v1948
    %v1950 = vpop.xlane.xlu0 %1949
    %v1951 = vsel %vm390, %v1947, 0.0
    %1952 = vadd.xlane.f32.xlu0 %v1951
    %v1953 = vpop.xlane.xlu0 %1952
    %v1954 = vmul.f32 %v1950, 0.032258064
    %v1955 = vmul.f32 %v1953, 0.032258064
    %v1956 = vrsqrt.pop %v1954
    %v1957 = vmul.f32 %v1954, %v1956
    %vm1958 = vcmp.eq.f32.partialorder %v1954, inf
    %v1959 = vsel %vm1958, %v1954, %v1957
    %vm1960 = vcmp.eq.f32.partialorder %v1954, 0.0
    %v1961 = vand.u32 %v1954, 2147483648
    %v1962 = vsel %vm1960, %v1961, %v1959
    %v1963 = vrsqrt.pop %v1955
    %v1964 = vmul.f32 %v1955, %v1963
    %vm1965 = vcmp.eq.f32.partialorder %v1955, inf
    %v1966 = vsel %vm1965, %v1955, %v1964
    %vm1967 = vcmp.eq.f32.partialorder %v1955, 0.0
    %v1968 = vand.u32 %v1955, 2147483648
    %v1969 = vsel %vm1967, %v1968, %v1966
    %v1970 = vadd.f32 %v1962, 1e-06
    %v1971 = vadd.f32 %v1969, 1e-06
    %v1972 = vrcp.pop %v1970
    %v1973 = vrcp.pop %v1971
    %v1975 = vlaneseq
    %v1976 = vshrl.u32 %v1975, 7
    %v1977 = vsub.s32 0, %v1976
    %v1978 = vrot.slane %v1908, %v1977
    %v1980 = vmul.f32 %v1978, %v1944
    %v1981 = vmul.f32 %v1978, %v1945
    %v1982 = vmul.f32 %v1980, %v1972
    %v1983 = vmul.f32 %v1981, %v1973
    %v1985 = vlaneseq
    %v1986 = vshrl.u32 %v1985, 7
    %v1987 = vsub.s32 0, %v1986
    %v1988 = vrot.slane %v1909, %v1987
    %v1990 = vadd.f32 %v1982, %v1988
    %v1991 = vadd.f32 %v1983, %v1988
    %v1993 = vlaneseq
    %v1994 = vshrl.u32 %v1993, 7
    %v1995 = vsub.s32 0, %v1994
    %v1996 = vrot.slane %v1914, %v1995
    %v1999 = vsel %vm390, %v1990, 0
    %v2002 = vsel %vm390, %v1991, 0
    %2004 = vmatprep.subr.mxu0 0.0
    %2005 = vmatpush1.msra.mxu0 %v1910
    %2006 = vmatprep.subr.mxu0 0.0
    %2007 = vmatpush1.msra.mxu0 %v1911
    %2008 = vmatprep.subr.mxu0 0.0
    %2009 = vmatpush1.msra.mxu0 %v1912
    %2010 = vmatprep.subr.mxu0 0.0
    %2011 = vmatpush1.msra.mxu0 %v1913
    %2012 = vmatprep.subr.mxu0 0.0
    %2013 = vmatpush1.msra.mxu0 0.0
    %2014 = vmatprep.subr.mxu0 0.0
    %2015 = vmatpush1.msra.mxu0 0.0
    %2016 = vmatprep.subr.mxu0 0.0
    %2017 = vmatpush1.msra.mxu0 0.0
    %2018 = vmatprep.subr.mxu0 0.0
    %2019 = vmatpush1.msra.mxu0 0.0
    %2020 = vmatprep.subr.mxu0 0.0
    %2021 = vmatpush1.msra.mxu0 0.0
    %2022 = vmatprep.subr.mxu0 0.0
    %2023 = vmatpush1.msra.mxu0 0.0
    %2024 = vmatprep.subr.mxu0 0.0
    %2025 = vmatpush1.msra.mxu0 0.0
    %2026 = vmatprep.subr.mxu0 0.0
    %2027 = vmatpush1.msra.mxu0 0.0
    %2028 = vmatprep.subr.mxu0 0.0
    %2029 = vmatpush1.msra.mxu0 0.0
    %2030 = vmatprep.subr.mxu0 0.0
    %2031 = vmatpush1.msra.mxu0 0.0
    %2032 = vmatprep.subr.mxu0 0.0
    %2033 = vmatpush1.msra.mxu0 0.0
    %2034 = vmatprep.subr.mxu0 0.0
    %2035 = vmatpush1.msra.mxu0 0.0
    %2036 = vmatprep.subr.mxu0 0.0
    %2037 = vmatpush1.msra.mxu0 0.0
    %2038 = vmatprep.subr.mxu0 0.0
    %2039 = vmatpush1.msra.mxu0 0.0
    %2040 = vmatprep.subr.mxu0 0.0
    %2041 = vmatpush1.msra.mxu0 0.0
    %2042 = vmatprep.subr.mxu0 0.0
    %2043 = vmatpush1.msra.mxu0 0.0
    %2044 = vmatprep.subr.mxu0 0.0
    %2045 = vmatpush1.msra.mxu0 0.0
    %2046 = vmatprep.subr.mxu0 0.0
    %2047 = vmatpush1.msra.mxu0 0.0
    %2048 = vmatprep.subr.mxu0 0.0
    %2049 = vmatpush1.msra.mxu0 0.0
    %2050 = vmatprep.subr.mxu0 0.0
    %2051 = vmatpush1.msra.mxu0 0.0
    %2052 = vmatprep.subr.mxu0 0.0
    %2053 = vmatpush1.msra.mxu0 0.0
    %2054 = vmatprep.subr.mxu0 0.0
    %2055 = vmatpush1.msra.mxu0 0.0
    %2056 = vmatprep.subr.mxu0 0.0
    %2057 = vmatpush1.msra.mxu0 0.0
    %2058 = vmatprep.subr.mxu0 0.0
    %2059 = vmatpush1.msra.mxu0 0.0
    %2060 = vmatprep.subr.mxu0 0.0
    %2061 = vmatpush1.msra.mxu0 0.0
    %2062 = vmatprep.subr.mxu0 0.0
    %2063 = vmatpush1.msra.mxu0 0.0
    %2064 = vmatprep.subr.mxu0 0.0
    %2065 = vmatpush1.msra.mxu0 0.0
    %2066 = vmatprep.subr.mxu0 0.0
    %2067 = vmatpush1.msra.mxu0 0.0
    %2068 = vmatprep.mubr.f32.mxu0 0.0
    %2069 = vmatmul.mubr.f32.gmra.mrb[0].mxu0 %v1999
    %v2070 = vpop.f32.mrb[0].mxu0
    %v2071 = vadd.f32 %v1996, %v2070
    %v2072 = vpop.f32.mrb[0].mxu0
    %2073 = vmatprep.mubr.f32.mxu0 0.0
    %2074 = vmatmul.mubr.f32.gmra.mrb[0].mxu0 %v2002
    %v2075 = vpop.f32.mrb[0].mxu0
    %v2076 = vadd.f32 %v1996, %v2075
    %v2077 = vpop.f32.mrb[0].mxu0
    %2078 = vdwg.mxu0
    %2081 = vrot.lane.b32.xlu0 %v2071, 96
    %v2082 = vpop.permute.xlu0 %2081
    %2083 = vrot.lane.b32.xlu0 %v2076, 96
    %v2084 = vpop.permute.xlu0 %2083
    %v2085 = vsel %vm541, %v2071, 0
    %v2087 = vsel %vm541, %v2076, 0
    %v2089 = vsel %vm541, %v2082, 0
    %v2091 = vsel %vm541, %v2084, 0
    %2093 = vmatprep.subr.mxu0 0.0
    %2094 = vmatpush1.xpose.msra.mxu0 %v2089
    %2095 = vmatprep.subr.mxu0 0.0
    %2096 = vmatpush1.xpose.msra.mxu0 %v2091
    %2097 = vmatprep.subr.mxu0 0.0
    %2098 = vmatpush1.xpose.msra.mxu0 0.0
    %2099 = vmatprep.subr.mxu0 0.0
    %2100 = vmatpush1.xpose.msra.mxu0 0.0
    %2101 = vmatprep.subr.mxu0 0.0
    %2102 = vmatpush1.xpose.msra.mxu0 0.0
    %2103 = vmatprep.subr.mxu0 0.0
    %2104 = vmatpush1.xpose.msra.mxu0 0.0
    %2105 = vmatprep.subr.mxu0 0.0
    %2106 = vmatpush1.xpose.msra.mxu0 0.0
    %2107 = vmatprep.subr.mxu0 0.0
    %2108 = vmatpush1.xpose.msra.mxu0 0.0
    %2109 = vmatprep.subr.mxu0 0.0
    %2110 = vmatpush1.xpose.msra.mxu0 0.0
    %2111 = vmatprep.subr.mxu0 0.0
    %2112 = vmatpush1.xpose.msra.mxu0 0.0
    %2113 = vmatprep.subr.mxu0 0.0
    %2114 = vmatpush1.xpose.msra.mxu0 0.0
    %2115 = vmatprep.subr.mxu0 0.0
    %2116 = vmatpush1.xpose.msra.mxu0 0.0
    %2117 = vmatprep.subr.mxu0 0.0
    %2118 = vmatpush1.xpose.msra.mxu0 0.0
    %2119 = vmatprep.subr.mxu0 0.0
    %2120 = vmatpush1.xpose.msra.mxu0 0.0
    %2121 = vmatprep.subr.mxu0 0.0
    %2122 = vmatpush1.xpose.msra.mxu0 0.0
    %2123 = vmatprep.subr.mxu0 0.0
    %2124 = vmatpush1.xpose.msra.mxu0 0.0
    %2125 = vmatprep.subr.mxu0 0.0
    %2126 = vmatpush1.xpose.msra.mxu0 0.0
    %2127 = vmatprep.subr.mxu0 0.0
    %2128 = vmatpush1.xpose.msra.mxu0 0.0
    %2129 = vmatprep.subr.mxu0 0.0
    %2130 = vmatpush1.xpose.msra.mxu0 0.0
    %2131 = vmatprep.subr.mxu0 0.0
    %2132 = vmatpush1.xpose.msra.mxu0 0.0
    %2133 = vmatprep.subr.mxu0 0.0
    %2134 = vmatpush1.xpose.msra.mxu0 0.0
    %2135 = vmatprep.subr.mxu0 0.0
    %2136 = vmatpush1.xpose.msra.mxu0 0.0
    %2137 = vmatprep.subr.mxu0 0.0
    %2138 = vmatpush1.xpose.msra.mxu0 0.0
    %2139 = vmatprep.subr.mxu0 0.0
    %2140 = vmatpush1.xpose.msra.mxu0 0.0
    %2141 = vmatprep.subr.mxu0 0.0
    %2142 = vmatpush1.xpose.msra.mxu0 0.0
    %2143 = vmatprep.subr.mxu0 0.0
    %2144 = vmatpush1.xpose.msra.mxu0 0.0
    %2145 = vmatprep.subr.mxu0 0.0
    %2146 = vmatpush1.xpose.msra.mxu0 0.0
    %2147 = vmatprep.subr.mxu0 0.0
    %2148 = vmatpush1.xpose.msra.mxu0 0.0
    %2149 = vmatprep.subr.mxu0 0.0
    %2150 = vmatpush1.xpose.msra.mxu0 0.0
    %2151 = vmatprep.subr.mxu0 0.0
    %2152 = vmatpush1.xpose.msra.mxu0 0.0
    %2153 = vmatprep.subr.mxu0 0.0
    %2154 = vmatpush1.xpose.msra.mxu0 0.0
    %2155 = vmatprep.subr.mxu0 0.0
    %2156 = vmatpush1.xpose.msra.mxu0 0.0
    %2157 = vmatprep.mubr.f32.mxu0 0.0
    %2158 = vmatmul.mubr.f32.gmra.mrb[0].mxu0 %v2085
    %v2159 = vpop.f32.mrb[0].mxu0
    %v2160 = vadd.f32 %v354, %v2159
    %v2161 = vpop.f32.mrb[0].mxu0
    %2162 = vmatprep.mubr.f32.mxu0 0.0
    %2163 = vmatmul.mubr.f32.gmra.mrb[0].mxu0 %v2087
    %v2164 = vpop.f32.mrb[0].mxu0
    %v2165 = vadd.f32 %v355, %v2164
    %v2166 = vpop.f32.mrb[0].mxu0
    %2167 = vdwg.mxu0
    %v2168 = vsel %vm625, %v2160, -inf
    %2169 = vmax.xlane.f32.xlu0 %v2168
    %v2170 = vpop.xlane.xlu0 %2169
    %v2171 = vsel %vm625, %v2165, -inf
    %2172 = vmax.xlane.f32.xlu0 %v2171
    %v2173 = vpop.xlane.xlu0 %2172
    %v2174 = vsub.f32 %v2160, %v2170
    %v2175 = vsub.f32 %v2165, %v2173
    %v2176 = vmul.f32 %v2174, 1.442695
    %v2177 = vpow.pop %v2176
    %v2178 = vmul.f32 %v2175, 1.442695
    %v2179 = vpow.pop %v2178
    %v2180 = vsel %vm625, %v2177, 0.0
    %2181 = vadd.xlane.f32.xlu0 %v2180
    %v2182 = vpop.xlane.xlu0 %2181
    %v2183 = vsel %vm625, %v2179, 0.0
    %2184 = vadd.xlane.f32.xlu0 %v2183
    %v2185 = vpop.xlane.xlu0 %2184
    %v2186 = vrcp.pop %v2182
    %v2187 = vrcp.pop %v2185
    %v2188 = vmul.f32 %v2177, %v2186
    %v2189 = vmul.f32 %v2179, %v2187
    %2190 = vrot.lane.b32.xlu0 %v2071, 64
    %v2191 = vpop.permute.xlu0 %2190
    %2192 = vrot.lane.b32.xlu0 %v2076, 64
    %v2193 = vpop.permute.xlu0 %2192
    %v2197 = vsel %vm625, %v2188, 0
    %v2200 = vsel %vm625, %v2189, 0
    %2202 = vmatprep.subr.mxu0 0.0
    %2203 = vmatpush1.msra.mxu0 %v2191
    %2204 = vmatprep.subr.mxu0 0.0
    %2205 = vmatpush1.msra.mxu0 %v2193
    %2206 = vmatprep.subr.mxu0 0.0
    %2207 = vmatpush1.msra.mxu0 0.0
    %2208 = vmatprep.subr.mxu0 0.0
    %2209 = vmatpush1.msra.mxu0 0.0
    %2210 = vmatprep.subr.mxu0 0.0
    %2211 = vmatpush1.msra.mxu0 0.0
    %2212 = vmatprep.subr.mxu0 0.0
    %2213 = vmatpush1.msra.mxu0 0.0
    %2214 = vmatprep.subr.mxu0 0.0
    %2215 = vmatpush1.msra.mxu0 0.0
    %2216 = vmatprep.subr.mxu0 0.0
    %2217 = vmatpush1.msra.mxu0 0.0
    %2218 = vmatprep.subr.mxu0 0.0
    %2219 = vmatpush1.msra.mxu0 0.0
    %2220 = vmatprep.subr.mxu0 0.0
    %2221 = vmatpush1.msra.mxu0 0.0
    %2222 = vmatprep.subr.mxu0 0.0
    %2223 = vmatpush1.msra.mxu0 0.0
    %2224 = vmatprep.subr.mxu0 0.0
    %2225 = vmatpush1.msra.mxu0 0.0
    %2226 = vmatprep.subr.mxu0 0.0
    %2227 = vmatpush1.msra.mxu0 0.0
    %2228 = vmatprep.subr.mxu0 0.0
    %2229 = vmatpush1.msra.mxu0 0.0
    %2230 = vmatprep.subr.mxu0 0.0
    %2231 = vmatpush1.msra.mxu0 0.0
    %2232 = vmatprep.subr.mxu0 0.0
    %2233 = vmatpush1.msra.mxu0 0.0
    %2234 = vmatprep.subr.mxu0 0.0
    %2235 = vmatpush1.msra.mxu0 0.0
    %2236 = vmatprep.subr.mxu0 0.0
    %2237 = vmatpush1.msra.mxu0 0.0
    %2238 = vmatprep.subr.mxu0 0.0
    %2239 = vmatpush1.msra.mxu0 0.0
    %2240 = vmatprep.subr.mxu0 0.0
    %2241 = vmatpush1.msra.mxu0 0.0
    %2242 = vmatprep.subr.mxu0 0.0
    %2243 = vmatpush1.msra.mxu0 0.0
    %2244 = vmatprep.subr.mxu0 0.0
    %2245 = vmatpush1.msra.mxu0 0.0
    %2246 = vmatprep.subr.mxu0 0.0
    %2247 = vmatpush1.msra.mxu0 0.0
    %2248 = vmatprep.subr.mxu0 0.0
    %2249 = vmatpush1.msra.mxu0 0.0
    %2250 = vmatprep.subr.mxu0 0.0
    %2251 = vmatpush1.msra.mxu0 0.0
    %2252 = vmatprep.subr.mxu0 0.0
    %2253 = vmatpush1.msra.mxu0 0.0
    %2254 = vmatprep.subr.mxu0 0.0
    %2255 = vmatpush1.msra.mxu0 0.0
    %2256 = vmatprep.subr.mxu0 0.0
    %2257 = vmatpush1.msra.mxu0 0.0
    %2258 = vmatprep.subr.mxu0 0.0
    %2259 = vmatpush1.msra.mxu0 0.0
    %2260 = vmatprep.subr.mxu0 0.0
    %2261 = vmatpush1.msra.mxu0 0.0
    %2262 = vmatprep.subr.mxu0 0.0
    %2263 = vmatpush1.msra.mxu0 0.0
    %2264 = vmatprep.subr.mxu0 0.0
    %2265 = vmatpush1.msra.mxu0 0.0
    %2266 = vmatprep.mubr.f32.mxu0 0.0
    %2267 = vmatmul.mubr.f32.gmra.mrb[0].mxu0 %v2197
    %v2268 = vpop.f32.mrb[0].mxu0
    %v2269 = vadd.f32 0.0, %v2268
    %v2270 = vpop.f32.mrb[0].mxu0
    %2271 = vmatprep.mubr.f32.mxu0 0.0
    %2272 = vmatmul.mubr.f32.gmra.mrb[0].mxu0 %v2200
    %v2273 = vpop.f32.mrb[0].mxu0
    %v2274 = vadd.f32 0.0, %v2273
    %v2275 = vpop.f32.mrb[0].mxu0
    %2276 = vdwg.mxu0
    %2277 = vrot.lane.b32.xlu0 %v2071, 120
    %v2278 = vpop.permute.xlu0 %2277
    %2279 = vrot.lane.b32.xlu0 %v2076, 120
    %v2280 = vpop.permute.xlu0 %2279
    %2281 = vrot.lane.b32.xlu0 %v2071, 88
    %v2282 = vpop.permute.xlu0 %2281
    %2283 = vrot.lane.b32.xlu0 %v2076, 88
    %v2284 = vpop.permute.xlu0 %2283
    %v2285 = vsel %vm541, %v2278, 0
    %v2287 = vsel %vm541, %v2280, 0
    %v2289 = vsel %vm541, %v2282, 0
    %v2291 = vsel %vm541, %v2284, 0
    %2293 = vmatprep.subr.mxu0 0.0
    %2294 = vmatpush1.xpose.msra.mxu0 %v2289
    %2295 = vmatprep.subr.mxu0 0.0
    %2296 = vmatpush1.xpose.msra.mxu0 %v2291
    %2297 = vmatprep.subr.mxu0 0.0
    %2298 = vmatpush1.xpose.msra.mxu0 0.0
    %2299 = vmatprep.subr.mxu0 0.0
    %2300 = vmatpush1.xpose.msra.mxu0 0.0
    %2301 = vmatprep.subr.mxu0 0.0
    %2302 = vmatpush1.xpose.msra.mxu0 0.0
    %2303 = vmatprep.subr.mxu0 0.0
    %2304 = vmatpush1.xpose.msra.mxu0 0.0
    %2305 = vmatprep.subr.mxu0 0.0
    %2306 = vmatpush1.xpose.msra.mxu0 0.0
    %2307 = vmatprep.subr.mxu0 0.0
    %2308 = vmatpush1.xpose.msra.mxu0 0.0
    %2309 = vmatprep.subr.mxu0 0.0
    %2310 = vmatpush1.xpose.msra.mxu0 0.0
    %2311 = vmatprep.subr.mxu0 0.0
    %2312 = vmatpush1.xpose.msra.mxu0 0.0
    %2313 = vmatprep.subr.mxu0 0.0
    %2314 = vmatpush1.xpose.msra.mxu0 0.0
    %2315 = vmatprep.subr.mxu0 0.0
    %2316 = vmatpush1.xpose.msra.mxu0 0.0
    %2317 = vmatprep.subr.mxu0 0.0
    %2318 = vmatpush1.xpose.msra.mxu0 0.0
    %2319 = vmatprep.subr.mxu0 0.0
    %2320 = vmatpush1.xpose.msra.mxu0 0.0
    %2321 = vmatprep.subr.mxu0 0.0
    %2322 = vmatpush1.xpose.msra.mxu0 0.0
    %2323 = vmatprep.subr.mxu0 0.0
    %2324 = vmatpush1.xpose.msra.mxu0 0.0
    %2325 = vmatprep.subr.mxu0 0.0
    %2326 = vmatpush1.xpose.msra.mxu0 0.0
    %2327 = vmatprep.subr.mxu0 0.0
    %2328 = vmatpush1.xpose.msra.mxu0 0.0
    %2329 = vmatprep.subr.mxu0 0.0
    %2330 = vmatpush1.xpose.msra.mxu0 0.0
    %2331 = vmatprep.subr.mxu0 0.0
    %2332 = vmatpush1.xpose.msra.mxu0 0.0
    %2333 = vmatprep.subr.mxu0 0.0
    %2334 = vmatpush1.xpose.msra.mxu0 0.0
    %2335 = vmatprep.subr.mxu0 0.0
    %2336 = vmatpush1.xpose.msra.mxu0 0.0
    %2337 = vmatprep.subr.mxu0 0.0
    %2338 = vmatpush1.xpose.msra.mxu0 0.0
    %2339 = vmatprep.subr.mxu0 0.0
    %2340 = vmatpush1.xpose.msra.mxu0 0.0
    %2341 = vmatprep.subr.mxu0 0.0
    %2342 = vmatpush1.xpose.msra.mxu0 0.0
    %2343 = vmatprep.subr.mxu0 0.0
    %2344 = vmatpush1.xpose.msra.mxu0 0.0
    %2345 = vmatprep.subr.mxu0 0.0
    %2346 = vmatpush1.xpose.msra.mxu0 0.0
    %2347 = vmatprep.subr.mxu0 0.0
    %2348 = vmatpush1.xpose.msra.mxu0 0.0
    %2349 = vmatprep.subr.mxu0 0.0
    %2350 = vmatpush1.xpose.msra.mxu0 0.0
    %2351 = vmatprep.subr.mxu0 0.0
    %2352 = vmatpush1.xpose.msra.mxu0 0.0
    %2353 = vmatprep.subr.mxu0 0.0
    %2354 = vmatpush1.xpose.msra.mxu0 0.0
    %2355 = vmatprep.subr.mxu0 0.0
    %2356 = vmatpush1.xpose.msra.mxu0 0.0
    %2357 = vmatprep.mubr.f32.mxu0 0.0
    %2358 = vmatmul.mubr.f32.gmra.mrb[0].mxu0 %v2285
    %v2359 = vpop.f32.mrb[0].mxu0
    %v2360 = vadd.f32 %v354, %v2359
    %v2361 = vpop.f32.mrb[0].mxu0
    %2362 = vmatprep.mubr.f32.mxu0 0.0
    %2363 = vmatmul.mubr.f32.gmra.mrb[0].mxu0 %v2287
    %v2364 = vpop.f32.mrb[0].mxu0
    %v2365 = vadd.f32 %v355, %v2364
    %v2366 = vpop.f32.mrb[0].mxu0
    %2367 = vdwg.mxu0
    %v2368 = vsel %vm625, %v2360, -inf
    %2369 = vmax.xlane.f32.xlu0 %v2368
    %v2370 = vpop.xlane.xlu0 %2369
    %v2371 = vsel %vm625, %v2365, -inf
    %2372 = vmax.xlane.f32.xlu0 %v2371
    %v2373 = vpop.xlane.xlu0 %2372
    %v2374 = vsub.f32 %v2360, %v2370
    %v2375 = vsub.f32 %v2365, %v2373
    %v2376 = vmul.f32 %v2374, 1.442695
    %v2377 = vpow.pop %v2376
    %v2378 = vmul.f32 %v2375, 1.442695
    %v2379 = vpow.pop %v2378
    %v2380 = vsel %vm625, %v2377, 0.0
    %2381 = vadd.xlane.f32.xlu0 %v2380
    %v2382 = vpop.xlane.xlu0 %2381
    %v2383 = vsel %vm625, %v2379, 0.0
    %2384 = vadd.xlane.f32.xlu0 %v2383
    %v2385 = vpop.xlane.xlu0 %2384
    %v2386 = vrcp.pop %v2382
    %v2387 = vrcp.pop %v2385
    %v2388 = vmul.f32 %v2377, %v2386
    %v2389 = vmul.f32 %v2379, %v2387
    %2390 = vrot.lane.b32.xlu0 %v2071, 56
    %v2391 = vpop.permute.xlu0 %2390
    %2392 = vrot.lane.b32.xlu0 %v2076, 56
    %v2393 = vpop.permute.xlu0 %2392
    %v2397 = vsel %vm625, %v2388, 0
    %v2400 = vsel %vm625, %v2389, 0
    %2402 = vmatprep.subr.mxu0 0.0
    %2403 = vmatpush1.msra.mxu0 %v2391
    %2404 = vmatprep.subr.mxu0 0.0
    %2405 = vmatpush1.msra.mxu0 %v2393
    %2406 = vmatprep.subr.mxu0 0.0
    %2407 = vmatpush1.msra.mxu0 0.0
    %2408 = vmatprep.subr.mxu0 0.0
    %2409 = vmatpush1.msra.mxu0 0.0
    %2410 = vmatprep.subr.mxu0 0.0
    %2411 = vmatpush1.msra.mxu0 0.0
    %2412 = vmatprep.subr.mxu0 0.0
    %2413 = vmatpush1.msra.mxu0 0.0
    %2414 = vmatprep.subr.mxu0 0.0
    %2415 = vmatpush1.msra.mxu0 0.0
    %2416 = vmatprep.subr.mxu0 0.0
    %2417 = vmatpush1.msra.mxu0 0.0
    %2418 = vmatprep.subr.mxu0 0.0
    %2419 = vmatpush1.msra.mxu0 0.0
    %2420 = vmatprep.subr.mxu0 0.0
    %2421 = vmatpush1.msra.mxu0 0.0
    %2422 = vmatprep.subr.mxu0 0.0
    %2423 = vmatpush1.msra.mxu0 0.0
    %2424 = vmatprep.subr.mxu0 0.0
    %2425 = vmatpush1.msra.mxu0 0.0
    %2426 = vmatprep.subr.mxu0 0.0
    %2427 = vmatpush1.msra.mxu0 0.0
    %2428 = vmatprep.subr.mxu0 0.0
    %2429 = vmatpush1.msra.mxu0 0.0
    %2430 = vmatprep.subr.mxu0 0.0
    %2431 = vmatpush1.msra.mxu0 0.0
    %2432 = vmatprep.subr.mxu0 0.0
    %2433 = vmatpush1.msra.mxu0 0.0
    %2434 = vmatprep.subr.mxu0 0.0
    %2435 = vmatpush1.msra.mxu0 0.0
    %2436 = vmatprep.subr.mxu0 0.0
    %2437 = vmatpush1.msra.mxu0 0.0
    %2438 = vmatprep.subr.mxu0 0.0
    %2439 = vmatpush1.msra.mxu0 0.0
    %2440 = vmatprep.subr.mxu0 0.0
    %2441 = vmatpush1.msra.mxu0 0.0
    %2442 = vmatprep.subr.mxu0 0.0
    %2443 = vmatpush1.msra.mxu0 0.0
    %2444 = vmatprep.subr.mxu0 0.0
    %2445 = vmatpush1.msra.mxu0 0.0
    %2446 = vmatprep.subr.mxu0 0.0
    %2447 = vmatpush1.msra.mxu0 0.0
    %2448 = vmatprep.subr.mxu0 0.0
    %2449 = vmatpush1.msra.mxu0 0.0
    %2450 = vmatprep.subr.mxu0 0.0
    %2451 = vmatpush1.msra.mxu0 0.0
    %2452 = vmatprep.subr.mxu0 0.0
    %2453 = vmatpush1.msra.mxu0 0.0
    %2454 = vmatprep.subr.mxu0 0.0
    %2455 = vmatpush1.msra.mxu0 0.0
    %2456 = vmatprep.subr.mxu0 0.0
    %2457 = vmatpush1.msra.mxu0 0.0
    %2458 = vmatprep.subr.mxu0 0.0
    %2459 = vmatpush1.msra.mxu0 0.0
    %2460 = vmatprep.subr.mxu0 0.0
    %2461 = vmatpush1.msra.mxu0 0.0
    %2462 = vmatprep.subr.mxu0 0.0
    %2463 = vmatpush1.msra.mxu0 0.0
    %2464 = vmatprep.subr.mxu0 0.0
    %2465 = vmatpush1.msra.mxu0 0.0
    %2466 = vmatprep.mubr.f32.mxu0 0.0
    %2467 = vmatmul.mubr.f32.gmra.mrb[0].mxu0 %v2397
    %v2468 = vpop.f32.mrb[0].mxu0
    %v2469 = vadd.f32 0.0, %v2468
    %v2470 = vpop.f32.mrb[0].mxu0
    %2471 = vmatprep.mubr.f32.mxu0 0.0
    %2472 = vmatmul.mubr.f32.gmra.mrb[0].mxu0 %v2400
    %v2473 = vpop.f32.mrb[0].mxu0
    %v2474 = vadd.f32 0.0, %v2473
    %v2475 = vpop.f32.mrb[0].mxu0
    %2476 = vdwg.mxu0
    %v2478 = vsel %vm541, %v2469, 0
    %v2481 = vsel %vm541, %v2474, 0
    %2483 = vmatprep.subr.mxu0 0.0
    %2484 = vmatpush1.msra.mxu0 %v1916
    %2485 = vmatprep.subr.mxu0 0.0
    %2486 = vmatpush1.msra.mxu0 0.0
    %2487 = vmatprep.subr.mxu0 0.0
    %2488 = vmatpush1.msra.mxu0 0.0
    %2489 = vmatprep.subr.mxu0 0.0
    %2490 = vmatpush1.msra.mxu0 0.0
    %2491 = vmatprep.subr.mxu0 0.0
    %2492 = vmatpush1.msra.mxu0 0.0
    %2493 = vmatprep.subr.mxu0 0.0
    %2494 = vmatpush1.msra.mxu0 0.0
    %2495 = vmatprep.subr.mxu0 0.0
    %2496 = vmatpush1.msra.mxu0 0.0
    %2497 = vmatprep.subr.mxu0 0.0
    %2498 = vmatpush1.msra.mxu0 0.0
    %2499 = vmatprep.subr.mxu0 0.0
    %2500 = vmatpush1.msra.mxu0 0.0
    %2501 = vmatprep.subr.mxu0 0.0
    %2502 = vmatpush1.msra.mxu0 0.0
    %2503 = vmatprep.subr.mxu0 0.0
    %2504 = vmatpush1.msra.mxu0 0.0
    %2505 = vmatprep.subr.mxu0 0.0
    %2506 = vmatpush1.msra.mxu0 0.0
    %2507 = vmatprep.subr.mxu0 0.0
    %2508 = vmatpush1.msra.mxu0 0.0
    %2509 = vmatprep.subr.mxu0 0.0
    %2510 = vmatpush1.msra.mxu0 0.0
    %2511 = vmatprep.subr.mxu0 0.0
    %2512 = vmatpush1.msra.mxu0 0.0
    %2513 = vmatprep.subr.mxu0 0.0
    %2514 = vmatpush1.msra.mxu0 0.0
    %2515 = vmatprep.subr.mxu0 0.0
    %2516 = vmatpush1.msra.mxu0 0.0
    %2517 = vmatprep.subr.mxu0 0.0
    %2518 = vmatpush1.msra.mxu0 0.0
    %2519 = vmatprep.subr.mxu0 0.0
    %2520 = vmatpush1.msra.mxu0 0.0
    %2521 = vmatprep.subr.mxu0 0.0
    %2522 = vmatpush1.msra.mxu0 0.0
    %2523 = vmatprep.subr.mxu0 0.0
    %2524 = vmatpush1.msra.mxu0 0.0
    %2525 = vmatprep.subr.mxu0 0.0
    %2526 = vmatpush1.msra.mxu0 0.0
    %2527 = vmatprep.subr.mxu0 0.0
    %2528 = vmatpush1.msra.mxu0 0.0
    %2529 = vmatprep.subr.mxu0 0.0
    %2530 = vmatpush1.msra.mxu0 0.0
    %2531 = vmatprep.subr.mxu0 0.0
    %2532 = vmatpush1.msra.mxu0 0.0
    %2533 = vmatprep.subr.mxu0 0.0
    %2534 = vmatpush1.msra.mxu0 0.0
    %2535 = vmatprep.subr.mxu0 0.0
    %2536 = vmatpush1.msra.mxu0 0.0
    %2537 = vmatprep.subr.mxu0 0.0
    %2538 = vmatpush1.msra.mxu0 0.0
    %2539 = vmatprep.subr.mxu0 0.0
    %2540 = vmatpush1.msra.mxu0 0.0
    %2541 = vmatprep.subr.mxu0 0.0
    %2542 = vmatpush1.msra.mxu0 0.0
    %2543 = vmatprep.subr.mxu0 0.0
    %2544 = vmatpush1.msra.mxu0 0.0
    %2545 = vmatprep.subr.mxu0 0.0
    %2546 = vmatpush1.msra.mxu0 0.0
    %2547 = vmatprep.mubr.f32.mxu0 0.0
    %2548 = vmatmul.mubr.f32.gmra.mrb[0].mxu0 %v2478
    %v2549 = vpop.f32.mrb[0].mxu0
    %v2550 = vadd.f32 0.0, %v2549
    %v2551 = vpop.f32.mrb[0].mxu0
    %2552 = vmatprep.mubr.f32.mxu0 0.0
    %2553 = vmatmul.mubr.f32.gmra.mrb[0].mxu0 %v2481
    %v2554 = vpop.f32.mrb[0].mxu0
    %v2555 = vadd.f32 0.0, %v2554
    %v2556 = vpop.f32.mrb[0].mxu0
    %2557 = vdwg.mxu0
    %v2559 = vsel %vm541, %v2269, 0
    %v2562 = vsel %vm541, %v2274, 0
    %2564 = vmatprep.subr.mxu0 0.0
    %2565 = vmatpush1.msra.mxu0 %v1915
    %2566 = vmatprep.subr.mxu0 0.0
    %2567 = vmatpush1.msra.mxu0 0.0
    %2568 = vmatprep.subr.mxu0 0.0
    %2569 = vmatpush1.msra.mxu0 0.0
    %2570 = vmatprep.subr.mxu0 0.0
    %2571 = vmatpush1.msra.mxu0 0.0
    %2572 = vmatprep.subr.mxu0 0.0
    %2573 = vmatpush1.msra.mxu0 0.0
    %2574 = vmatprep.subr.mxu0 0.0
    %2575 = vmatpush1.msra.mxu0 0.0
    %2576 = vmatprep.subr.mxu0 0.0
    %2577 = vmatpush1.msra.mxu0 0.0
    %2578 = vmatprep.subr.mxu0 0.0
    %2579 = vmatpush1.msra.mxu0 0.0
    %2580 = vmatprep.subr.mxu0 0.0
    %2581 = vmatpush1.msra.mxu0 0.0
    %2582 = vmatprep.subr.mxu0 0.0
    %2583 = vmatpush1.msra.mxu0 0.0
    %2584 = vmatprep.subr.mxu0 0.0
    %2585 = vmatpush1.msra.mxu0 0.0
    %2586 = vmatprep.subr.mxu0 0.0
    %2587 = vmatpush1.msra.mxu0 0.0
    %2588 = vmatprep.subr.mxu0 0.0
    %2589 = vmatpush1.msra.mxu0 0.0
    %2590 = vmatprep.subr.mxu0 0.0
    %2591 = vmatpush1.msra.mxu0 0.0
    %2592 = vmatprep.subr.mxu0 0.0
    %2593 = vmatpush1.msra.mxu0 0.0
    %2594 = vmatprep.subr.mxu0 0.0
    %2595 = vmatpush1.msra.mxu0 0.0
    %2596 = vmatprep.subr.mxu0 0.0
    %2597 = vmatpush1.msra.mxu0 0.0
    %2598 = vmatprep.subr.mxu0 0.0
    %2599 = vmatpush1.msra.mxu0 0.0
    %2600 = vmatprep.subr.mxu0 0.0
    %2601 = vmatpush1.msra.mxu0 0.0
    %2602 = vmatprep.subr.mxu0 0.0
    %2603 = vmatpush1.msra.mxu0 0.0
    %2604 = vmatprep.subr.mxu0 0.0
    %2605 = vmatpush1.msra.mxu0 0.0
    %2606 = vmatprep.subr.mxu0 0.0
    %2607 = vmatpush1.msra.mxu0 0.0
    %2608 = vmatprep.subr.mxu0 0.0
    %2609 = vmatpush1.msra.mxu0 0.0
    %2610 = vmatprep.subr.mxu0 0.0
    %2611 = vmatpush1.msra.mxu0 0.0
    %2612 = vmatprep.subr.mxu0 0.0
    %2613 = vmatpush1.msra.mxu0 0.0
    %2614 = vmatprep.subr.mxu0 0.0
    %2615 = vmatpush1.msra.mxu0 0.0
    %2616 = vmatprep.subr.mxu0 0.0
    %2617 = vmatpush1.msra.mxu0 0.0
    %2618 = vmatprep.subr.mxu0 0.0
    %2619 = vmatpush1.msra.mxu0 0.0
    %2620 = vmatprep.subr.mxu0 0.0
    %2621 = vmatpush1.msra.mxu0 0.0
    %2622 = vmatprep.subr.mxu0 0.0
    %2623 = vmatpush1.msra.mxu0 0.0
    %2624 = vmatprep.subr.mxu0 0.0
    %2625 = vmatpush1.msra.mxu0 0.0
    %2626 = vmatprep.subr.mxu0 0.0
    %2627 = vmatpush1.msra.mxu0 0.0
    %2628 = vmatprep.mubr.f32.mxu0 0.0
    %2629 = vmatmul.mubr.f32.gmra.mrb[0].mxu0 %v2559
    %v2630 = vpop.f32.mrb[0].mxu0
    %v2631 = vadd.f32 %v2550, %v2630
    %v2632 = vpop.f32.mrb[0].mxu0
    %2633 = vmatprep.mubr.f32.mxu0 0.0
    %2634 = vmatmul.mubr.f32.gmra.mrb[0].mxu0 %v2562
    %v2635 = vpop.f32.mrb[0].mxu0
    %v2636 = vadd.f32 %v2555, %v2635
    %v2637 = vpop.f32.mrb[0].mxu0
    %2638 = vdwg.mxu0
    %2639 = vrot.lane.b32.xlu0 %v2071, 112
    %v2640 = vpop.permute.xlu0 %2639
    %2641 = vrot.lane.b32.xlu0 %v2076, 112
    %v2642 = vpop.permute.xlu0 %2641
    %2643 = vrot.lane.b32.xlu0 %v2071, 80
    %v2644 = vpop.permute.xlu0 %2643
    %2645 = vrot.lane.b32.xlu0 %v2076, 80
    %v2646 = vpop.permute.xlu0 %2645
    %v2647 = vsel %vm541, %v2640, 0
    %v2649 = vsel %vm541, %v2642, 0
    %v2651 = vsel %vm541, %v2644, 0
    %v2653 = vsel %vm541, %v2646, 0
    %2655 = vmatprep.subr.mxu0 0.0
    %2656 = vmatpush1.xpose.msra.mxu0 %v2651
    %2657 = vmatprep.subr.mxu0 0.0
    %2658 = vmatpush1.xpose.msra.mxu0 %v2653
    %2659 = vmatprep.subr.mxu0 0.0
    %2660 = vmatpush1.xpose.msra.mxu0 0.0
    %2661 = vmatprep.subr.mxu0 0.0
    %2662 = vmatpush1.xpose.msra.mxu0 0.0
    %2663 = vmatprep.subr.mxu0 0.0
    %2664 = vmatpush1.xpose.msra.mxu0 0.0
    %2665 = vmatprep.subr.mxu0 0.0
    %2666 = vmatpush1.xpose.msra.mxu0 0.0
    %2667 = vmatprep.subr.mxu0 0.0
    %2668 = vmatpush1.xpose.msra.mxu0 0.0
    %2669 = vmatprep.subr.mxu0 0.0
    %2670 = vmatpush1.xpose.msra.mxu0 0.0
    %2671 = vmatprep.subr.mxu0 0.0
    %2672 = vmatpush1.xpose.msra.mxu0 0.0
    %2673 = vmatprep.subr.mxu0 0.0
    %2674 = vmatpush1.xpose.msra.mxu0 0.0
    %2675 = vmatprep.subr.mxu0 0.0
    %2676 = vmatpush1.xpose.msra.mxu0 0.0
    %2677 = vmatprep.subr.mxu0 0.0
    %2678 = vmatpush1.xpose.msra.mxu0 0.0
    %2679 = vmatprep.subr.mxu0 0.0
    %2680 = vmatpush1.xpose.msra.mxu0 0.0
    %2681 = vmatprep.subr.mxu0 0.0
    %2682 = vmatpush1.xpose.msra.mxu0 0.0
    %2683 = vmatprep.subr.mxu0 0.0
    %2684 = vmatpush1.xpose.msra.mxu0 0.0
    %2685 = vmatprep.subr.mxu0 0.0
    %2686 = vmatpush1.xpose.msra.mxu0 0.0
    %2687 = vmatprep.subr.mxu0 0.0
    %2688 = vmatpush1.xpose.msra.mxu0 0.0
    %2689 = vmatprep.subr.mxu0 0.0
    %2690 = vmatpush1.xpose.msra.mxu0 0.0
    %2691 = vmatprep.subr.mxu0 0.0
    %2692 = vmatpush1.xpose.msra.mxu0 0.0
    %2693 = vmatprep.subr.mxu0 0.0
    %2694 = vmatpush1.xpose.msra.mxu0 0.0
    %2695 = vmatprep.subr.mxu0 0.0
    %2696 = vmatpush1.xpose.msra.mxu0 0.0
    %2697 = vmatprep.subr.mxu0 0.0
    %2698 = vmatpush1.xpose.msra.mxu0 0.0
    %2699 = vmatprep.subr.mxu0 0.0
    %2700 = vmatpush1.xpose.msra.mxu0 0.0
    %2701 = vmatprep.subr.mxu0 0.0
    %2702 = vmatpush1.xpose.msra.mxu0 0.0
    %2703 = vmatprep.subr.mxu0 0.0
    %2704 = vmatpush1.xpose.msra.mxu0 0.0
    %2705 = vmatprep.subr.mxu0 0.0
    %2706 = vmatpush1.xpose.msra.mxu0 0.0
    %2707 = vmatprep.subr.mxu0 0.0
    %2708 = vmatpush1.xpose.msra.mxu0 0.0
    %2709 = vmatprep.subr.mxu0 0.0
    %2710 = vmatpush1.xpose.msra.mxu0 0.0
    %2711 = vmatprep.subr.mxu0 0.0
    %2712 = vmatpush1.xpose.msra.mxu0 0.0
    %2713 = vmatprep.subr.mxu0 0.0
    %2714 = vmatpush1.xpose.msra.mxu0 0.0
    %2715 = vmatprep.subr.mxu0 0.0
    %2716 = vmatpush1.xpose.msra.mxu0 0.0
    %2717 = vmatprep.subr.mxu0 0.0
    %2718 = vmatpush1.xpose.msra.mxu0 0.0
    %2719 = vmatprep.mubr.f32.mxu0 0.0
    %2720 = vmatmul.mubr.f32.gmra.mrb[0].mxu0 %v2647
    %v2721 = vpop.f32.mrb[0].mxu0
    %v2722 = vadd.f32 %v354, %v2721
    %v2723 = vpop.f32.mrb[0].mxu0
    %2724 = vmatprep.mubr.f32.mxu0 0.0
    %2725 = vmatmul.mubr.f32.gmra.mrb[0].mxu0 %v2649
    %v2726 = vpop.f32.mrb[0].mxu0
    %v2727 = vadd.f32 %v355, %v2726
    %v2728 = vpop.f32.mrb[0].mxu0
    %2729 = vdwg.mxu0
    %v2730 = vsel %vm625, %v2722, -inf
    %2731 = vmax.xlane.f32.xlu0 %v2730
    %v2732 = vpop.xlane.xlu0 %2731
    %v2733 = vsel %vm625, %v2727, -inf
    %2734 = vmax.xlane.f32.xlu0 %v2733
    %v2735 = vpop.xlane.xlu0 %2734
    %v2736 = vsub.f32 %v2722, %v2732
    %v2737 = vsub.f32 %v2727, %v2735
    %v2738 = vmul.f32 %v2736, 1.442695
    %v2739 = vpow.pop %v2738
    %v2740 = vmul.f32 %v2737, 1.442695
    %v2741 = vpow.pop %v2740
    %v2742 = vsel %vm625, %v2739, 0.0
    %2743 = vadd.xlane.f32.xlu0 %v2742
    %v2744 = vpop.xlane.xlu0 %2743
    %v2745 = vsel %vm625, %v2741, 0.0
    %2746 = vadd.xlane.f32.xlu0 %v2745
    %v2747 = vpop.xlane.xlu0 %2746
    %v2748 = vrcp.pop %v2744
    %v2749 = vrcp.pop %v2747
    %v2750 = vmul.f32 %v2739, %v2748
    %v2751 = vmul.f32 %v2741, %v2749
    %2752 = vrot.lane.b32.xlu0 %v2071, 48
    %v2753 = vpop.permute.xlu0 %2752
    %2754 = vrot.lane.b32.xlu0 %v2076, 48
    %v2755 = vpop.permute.xlu0 %2754
    %v2759 = vsel %vm625, %v2750, 0
    %v2762 = vsel %vm625, %v2751, 0
    %2764 = vmatprep.subr.mxu0 0.0
    %2765 = vmatpush1.msra.mxu0 %v2753
    %2766 = vmatprep.subr.mxu0 0.0
    %2767 = vmatpush1.msra.mxu0 %v2755
    %2768 = vmatprep.subr.mxu0 0.0
    %2769 = vmatpush1.msra.mxu0 0.0
    %2770 = vmatprep.subr.mxu0 0.0
    %2771 = vmatpush1.msra.mxu0 0.0
    %2772 = vmatprep.subr.mxu0 0.0
    %2773 = vmatpush1.msra.mxu0 0.0
    %2774 = vmatprep.subr.mxu0 0.0
    %2775 = vmatpush1.msra.mxu0 0.0
    %2776 = vmatprep.subr.mxu0 0.0
    %2777 = vmatpush1.msra.mxu0 0.0
    %2778 = vmatprep.subr.mxu0 0.0
    %2779 = vmatpush1.msra.mxu0 0.0
    %2780 = vmatprep.subr.mxu0 0.0
    %2781 = vmatpush1.msra.mxu0 0.0
    %2782 = vmatprep.subr.mxu0 0.0
    %2783 = vmatpush1.msra.mxu0 0.0
    %2784 = vmatprep.subr.mxu0 0.0
    %2785 = vmatpush1.msra.mxu0 0.0
    %2786 = vmatprep.subr.mxu0 0.0
    %2787 = vmatpush1.msra.mxu0 0.0
    %2788 = vmatprep.subr.mxu0 0.0
    %2789 = vmatpush1.msra.mxu0 0.0
    %2790 = vmatprep.subr.mxu0 0.0
    %2791 = vmatpush1.msra.mxu0 0.0
    %2792 = vmatprep.subr.mxu0 0.0
    %2793 = vmatpush1.msra.mxu0 0.0
    %2794 = vmatprep.subr.mxu0 0.0
    %2795 = vmatpush1.msra.mxu0 0.0
    %2796 = vmatprep.subr.mxu0 0.0
    %2797 = vmatpush1.msra.mxu0 0.0
    %2798 = vmatprep.subr.mxu0 0.0
    %2799 = vmatpush1.msra.mxu0 0.0
    %2800 = vmatprep.subr.mxu0 0.0
    %2801 = vmatpush1.msra.mxu0 0.0
    %2802 = vmatprep.subr.mxu0 0.0
    %2803 = vmatpush1.msra.mxu0 0.0
    %2804 = vmatprep.subr.mxu0 0.0
    %2805 = vmatpush1.msra.mxu0 0.0
    %2806 = vmatprep.subr.mxu0 0.0
    %2807 = vmatpush1.msra.mxu0 0.0
    %2808 = vmatprep.subr.mxu0 0.0
    %2809 = vmatpush1.msra.mxu0 0.0
    %2810 = vmatprep.subr.mxu0 0.0
    %2811 = vmatpush1.msra.mxu0 0.0
    %2812 = vmatprep.subr.mxu0 0.0
    %2813 = vmatpush1.msra.mxu0 0.0
    %2814 = vmatprep.subr.mxu0 0.0
    %2815 = vmatpush1.msra.mxu0 0.0
    %2816 = vmatprep.subr.mxu0 0.0
    %2817 = vmatpush1.msra.mxu0 0.0
    %2818 = vmatprep.subr.mxu0 0.0
    %2819 = vmatpush1.msra.mxu0 0.0
    %2820 = vmatprep.subr.mxu0 0.0
    %2821 = vmatpush1.msra.mxu0 0.0
    %2822 = vmatprep.subr.mxu0 0.0
    %2823 = vmatpush1.msra.mxu0 0.0
    %2824 = vmatprep.subr.mxu0 0.0
    %2825 = vmatpush1.msra.mxu0 0.0
    %2826 = vmatprep.subr.mxu0 0.0
    %2827 = vmatpush1.msra.mxu0 0.0
    %2828 = vmatprep.mubr.f32.mxu0 0.0
    %2829 = vmatmul.mubr.f32.gmra.mrb[0].mxu0 %v2759
    %v2830 = vpop.f32.mrb[0].mxu0
    %v2831 = vadd.f32 0.0, %v2830
    %v2832 = vpop.f32.mrb[0].mxu0
    %2833 = vmatprep.mubr.f32.mxu0 0.0
    %2834 = vmatmul.mubr.f32.gmra.mrb[0].mxu0 %v2762
    %v2835 = vpop.f32.mrb[0].mxu0
    %v2836 = vadd.f32 0.0, %v2835
    %v2837 = vpop.f32.mrb[0].mxu0
    %2838 = vdwg.mxu0
    %v2840 = vsel %vm541, %v2831, 0
    %v2843 = vsel %vm541, %v2836, 0
    %2845 = vmatprep.subr.mxu0 0.0
    %2846 = vmatpush1.msra.mxu0 %v1917
    %2847 = vmatprep.subr.mxu0 0.0
    %2848 = vmatpush1.msra.mxu0 0.0
    %2849 = vmatprep.subr.mxu0 0.0
    %2850 = vmatpush1.msra.mxu0 0.0
    %2851 = vmatprep.subr.mxu0 0.0
    %2852 = vmatpush1.msra.mxu0 0.0
    %2853 = vmatprep.subr.mxu0 0.0
    %2854 = vmatpush1.msra.mxu0 0.0
    %2855 = vmatprep.subr.mxu0 0.0
    %2856 = vmatpush1.msra.mxu0 0.0
    %2857 = vmatprep.subr.mxu0 0.0
    %2858 = vmatpush1.msra.mxu0 0.0
    %2859 = vmatprep.subr.mxu0 0.0
    %2860 = vmatpush1.msra.mxu0 0.0
    %2861 = vmatprep.subr.mxu0 0.0
    %2862 = vmatpush1.msra.mxu0 0.0
    %2863 = vmatprep.subr.mxu0 0.0
    %2864 = vmatpush1.msra.mxu0 0.0
    %2865 = vmatprep.subr.mxu0 0.0
    %2866 = vmatpush1.msra.mxu0 0.0
    %2867 = vmatprep.subr.mxu0 0.0
    %2868 = vmatpush1.msra.mxu0 0.0
    %2869 = vmatprep.subr.mxu0 0.0
    %2870 = vmatpush1.msra.mxu0 0.0
    %2871 = vmatprep.subr.mxu0 0.0
    %2872 = vmatpush1.msra.mxu0 0.0
    %2873 = vmatprep.subr.mxu0 0.0
    %2874 = vmatpush1.msra.mxu0 0.0
    %2875 = vmatprep.subr.mxu0 0.0
    %2876 = vmatpush1.msra.mxu0 0.0
    %2877 = vmatprep.subr.mxu0 0.0
    %2878 = vmatpush1.msra.mxu0 0.0
    %2879 = vmatprep.subr.mxu0 0.0
    %2880 = vmatpush1.msra.mxu0 0.0
    %2881 = vmatprep.subr.mxu0 0.0
    %2882 = vmatpush1.msra.mxu0 0.0
    %2883 = vmatprep.subr.mxu0 0.0
    %2884 = vmatpush1.msra.mxu0 0.0
    %2885 = vmatprep.subr.mxu0 0.0
    %2886 = vmatpush1.msra.mxu0 0.0
    %2887 = vmatprep.subr.mxu0 0.0
    %2888 = vmatpush1.msra.mxu0 0.0
    %2889 = vmatprep.subr.mxu0 0.0
    %2890 = vmatpush1.msra.mxu0 0.0
    %2891 = vmatprep.subr.mxu0 0.0
    %2892 = vmatpush1.msra.mxu0 0.0
    %2893 = vmatprep.subr.mxu0 0.0
    %2894 = vmatpush1.msra.mxu0 0.0
    %2895 = vmatprep.subr.mxu0 0.0
    %2896 = vmatpush1.msra.mxu0 0.0
    %2897 = vmatprep.subr.mxu0 0.0
    %2898 = vmatpush1.msra.mxu0 0.0
    %2899 = vmatprep.subr.mxu0 0.0
    %2900 = vmatpush1.msra.mxu0 0.0
    %2901 = vmatprep.subr.mxu0 0.0
    %2902 = vmatpush1.msra.mxu0 0.0
    %2903 = vmatprep.subr.mxu0 0.0
    %2904 = vmatpush1.msra.mxu0 0.0
    %2905 = vmatprep.subr.mxu0 0.0
    %2906 = vmatpush1.msra.mxu0 0.0
    %2907 = vmatprep.subr.mxu0 0.0
    %2908 = vmatpush1.msra.mxu0 0.0
    %2909 = vmatprep.mubr.f32.mxu0 0.0
    %2910 = vmatmul.mubr.f32.gmra.mrb[0].mxu0 %v2840
    %v2911 = vpop.f32.mrb[0].mxu0
    %v2912 = vadd.f32 0.0, %v2911
    %v2913 = vpop.f32.mrb[0].mxu0
    %2914 = vmatprep.mubr.f32.mxu0 0.0
    %2915 = vmatmul.mubr.f32.gmra.mrb[0].mxu0 %v2843
    %v2916 = vpop.f32.mrb[0].mxu0
    %v2917 = vadd.f32 0.0, %v2916
    %v2918 = vpop.f32.mrb[0].mxu0
    %2919 = vdwg.mxu0
    %v2920 = vadd.f32 %v2631, %v2912
    %v2921 = vadd.f32 %v2636, %v2917
    %2922 = vrot.lane.b32.xlu0 %v2071, 104
    %v2923 = vpop.permute.xlu0 %2922
    %2924 = vrot.lane.b32.xlu0 %v2076, 104
    %v2925 = vpop.permute.xlu0 %2924
    %2926 = vrot.lane.b32.xlu0 %v2071, 72
    %v2927 = vpop.permute.xlu0 %2926
    %2928 = vrot.lane.b32.xlu0 %v2076, 72
    %v2929 = vpop.permute.xlu0 %2928
    %v2930 = vsel %vm541, %v2923, 0
    %v2932 = vsel %vm541, %v2925, 0
    %v2934 = vsel %vm541, %v2927, 0
    %v2936 = vsel %vm541, %v2929, 0
    %2938 = vmatprep.subr.mxu0 0.0
    %2939 = vmatpush1.xpose.msra.mxu0 %v2934
    %2940 = vmatprep.subr.mxu0 0.0
    %2941 = vmatpush1.xpose.msra.mxu0 %v2936
    %2942 = vmatprep.subr.mxu0 0.0
    %2943 = vmatpush1.xpose.msra.mxu0 0.0
    %2944 = vmatprep.subr.mxu0 0.0
    %2945 = vmatpush1.xpose.msra.mxu0 0.0
    %2946 = vmatprep.subr.mxu0 0.0
    %2947 = vmatpush1.xpose.msra.mxu0 0.0
    %2948 = vmatprep.subr.mxu0 0.0
    %2949 = vmatpush1.xpose.msra.mxu0 0.0
    %2950 = vmatprep.subr.mxu0 0.0
    %2951 = vmatpush1.xpose.msra.mxu0 0.0
    %2952 = vmatprep.subr.mxu0 0.0
    %2953 = vmatpush1.xpose.msra.mxu0 0.0
    %2954 = vmatprep.subr.mxu0 0.0
    %2955 = vmatpush1.xpose.msra.mxu0 0.0
    %2956 = vmatprep.subr.mxu0 0.0
    %2957 = vmatpush1.xpose.msra.mxu0 0.0
    %2958 = vmatprep.subr.mxu0 0.0
    %2959 = vmatpush1.xpose.msra.mxu0 0.0
    %2960 = vmatprep.subr.mxu0 0.0
    %2961 = vmatpush1.xpose.msra.mxu0 0.0
    %2962 = vmatprep.subr.mxu0 0.0
    %2963 = vmatpush1.xpose.msra.mxu0 0.0
    %2964 = vmatprep.subr.mxu0 0.0
    %2965 = vmatpush1.xpose.msra.mxu0 0.0
    %2966 = vmatprep.subr.mxu0 0.0
    %2967 = vmatpush1.xpose.msra.mxu0 0.0
    %2968 = vmatprep.subr.mxu0 0.0
    %2969 = vmatpush1.xpose.msra.mxu0 0.0
    %2970 = vmatprep.subr.mxu0 0.0
    %2971 = vmatpush1.xpose.msra.mxu0 0.0
    %2972 = vmatprep.subr.mxu0 0.0
    %2973 = vmatpush1.xpose.msra.mxu0 0.0
    %2974 = vmatprep.subr.mxu0 0.0
    %2975 = vmatpush1.xpose.msra.mxu0 0.0
    %2976 = vmatprep.subr.mxu0 0.0
    %2977 = vmatpush1.xpose.msra.mxu0 0.0
    %2978 = vmatprep.subr.mxu0 0.0
    %2979 = vmatpush1.xpose.msra.mxu0 0.0
    %2980 = vmatprep.subr.mxu0 0.0
    %2981 = vmatpush1.xpose.msra.mxu0 0.0
    %2982 = vmatprep.subr.mxu0 0.0
    %2983 = vmatpush1.xpose.msra.mxu0 0.0
    %2984 = vmatprep.subr.mxu0 0.0
    %2985 = vmatpush1.xpose.msra.mxu0 0.0
    %2986 = vmatprep.subr.mxu0 0.0
    %2987 = vmatpush1.xpose.msra.mxu0 0.0
    %2988 = vmatprep.subr.mxu0 0.0
    %2989 = vmatpush1.xpose.msra.mxu0 0.0
    %2990 = vmatprep.subr.mxu0 0.0
    %2991 = vmatpush1.xpose.msra.mxu0 0.0
    %2992 = vmatprep.subr.mxu0 0.0
    %2993 = vmatpush1.xpose.msra.mxu0 0.0
    %2994 = vmatprep.subr.mxu0 0.0
    %2995 = vmatpush1.xpose.msra.mxu0 0.0
    %2996 = vmatprep.subr.mxu0 0.0
    %2997 = vmatpush1.xpose.msra.mxu0 0.0
    %2998 = vmatprep.subr.mxu0 0.0
    %2999 = vmatpush1.xpose.msra.mxu0 0.0
    %3000 = vmatprep.subr.mxu0 0.0
    %3001 = vmatpush1.xpose.msra.mxu0 0.0
    %3002 = vmatprep.mubr.f32.mxu0 0.0
    %3003 = vmatmul.mubr.f32.gmra.mrb[0].mxu0 %v2930
    %v3004 = vpop.f32.mrb[0].mxu0
    %v3005 = vadd.f32 %v354, %v3004
    %v3006 = vpop.f32.mrb[0].mxu0
    %3007 = vmatprep.mubr.f32.mxu0 0.0
    %3008 = vmatmul.mubr.f32.gmra.mrb[0].mxu0 %v2932
    %v3009 = vpop.f32.mrb[0].mxu0
    %v3010 = vadd.f32 %v355, %v3009
    %v3011 = vpop.f32.mrb[0].mxu0
    %3012 = vdwg.mxu0
    %v3013 = vsel %vm625, %v3005, -inf
    %3014 = vmax.xlane.f32.xlu0 %v3013
    %v3015 = vpop.xlane.xlu0 %3014
    %v3016 = vsel %vm625, %v3010, -inf
    %3017 = vmax.xlane.f32.xlu0 %v3016
    %v3018 = vpop.xlane.xlu0 %3017
    %v3019 = vsub.f32 %v3005, %v3015
    %v3020 = vsub.f32 %v3010, %v3018
    %v3021 = vmul.f32 %v3019, 1.442695
    %v3022 = vpow.pop %v3021
    %v3023 = vmul.f32 %v3020, 1.442695
    %v3024 = vpow.pop %v3023
    %v3025 = vsel %vm625, %v3022, 0.0
    %3026 = vadd.xlane.f32.xlu0 %v3025
    %v3027 = vpop.xlane.xlu0 %3026
    %v3028 = vsel %vm625, %v3024, 0.0
    %3029 = vadd.xlane.f32.xlu0 %v3028
    %v3030 = vpop.xlane.xlu0 %3029
    %v3031 = vrcp.pop %v3027
    %v3032 = vrcp.pop %v3030
    %v3033 = vmul.f32 %v3022, %v3031
    %v3034 = vmul.f32 %v3024, %v3032
    %3035 = vrot.lane.b32.xlu0 %v2071, 40
    %v3036 = vpop.permute.xlu0 %3035
    %3037 = vrot.lane.b32.xlu0 %v2076, 40
    %v3038 = vpop.permute.xlu0 %3037
    %v3042 = vsel %vm625, %v3033, 0
    %v3045 = vsel %vm625, %v3034, 0
    %3047 = vmatprep.subr.mxu0 0.0
    %3048 = vmatpush1.msra.mxu0 %v3036
    %3049 = vmatprep.subr.mxu0 0.0
    %3050 = vmatpush1.msra.mxu0 %v3038
    %3051 = vmatprep.subr.mxu0 0.0
    %3052 = vmatpush1.msra.mxu0 0.0
    %3053 = vmatprep.subr.mxu0 0.0
    %3054 = vmatpush1.msra.mxu0 0.0
    %3055 = vmatprep.subr.mxu0 0.0
    %3056 = vmatpush1.msra.mxu0 0.0
    %3057 = vmatprep.subr.mxu0 0.0
    %3058 = vmatpush1.msra.mxu0 0.0
    %3059 = vmatprep.subr.mxu0 0.0
    %3060 = vmatpush1.msra.mxu0 0.0
    %3061 = vmatprep.subr.mxu0 0.0
    %3062 = vmatpush1.msra.mxu0 0.0
    %3063 = vmatprep.subr.mxu0 0.0
    %3064 = vmatpush1.msra.mxu0 0.0
    %3065 = vmatprep.subr.mxu0 0.0
    %3066 = vmatpush1.msra.mxu0 0.0
    %3067 = vmatprep.subr.mxu0 0.0
    %3068 = vmatpush1.msra.mxu0 0.0
    %3069 = vmatprep.subr.mxu0 0.0
    %3070 = vmatpush1.msra.mxu0 0.0
    %3071 = vmatprep.subr.mxu0 0.0
    %3072 = vmatpush1.msra.mxu0 0.0
    %3073 = vmatprep.subr.mxu0 0.0
    %3074 = vmatpush1.msra.mxu0 0.0
    %3075 = vmatprep.subr.mxu0 0.0
    %3076 = vmatpush1.msra.mxu0 0.0
    %3077 = vmatprep.subr.mxu0 0.0
    %3078 = vmatpush1.msra.mxu0 0.0
    %3079 = vmatprep.subr.mxu0 0.0
    %3080 = vmatpush1.msra.mxu0 0.0
    %3081 = vmatprep.subr.mxu0 0.0
    %3082 = vmatpush1.msra.mxu0 0.0
    %3083 = vmatprep.subr.mxu0 0.0
    %3084 = vmatpush1.msra.mxu0 0.0
    %3085 = vmatprep.subr.mxu0 0.0
    %3086 = vmatpush1.msra.mxu0 0.0
    %3087 = vmatprep.subr.mxu0 0.0
    %3088 = vmatpush1.msra.mxu0 0.0
    %3089 = vmatprep.subr.mxu0 0.0
    %3090 = vmatpush1.msra.mxu0 0.0
    %3091 = vmatprep.subr.mxu0 0.0
    %3092 = vmatpush1.msra.mxu0 0.0
    %3093 = vmatprep.subr.mxu0 0.0
    %3094 = vmatpush1.msra.mxu0 0.0
    %3095 = vmatprep.subr.mxu0 0.0
    %3096 = vmatpush1.msra.mxu0 0.0
    %3097 = vmatprep.subr.mxu0 0.0
    %3098 = vmatpush1.msra.mxu0 0.0
    %3099 = vmatprep.subr.mxu0 0.0
    %3100 = vmatpush1.msra.mxu0 0.0
    %3101 = vmatprep.subr.mxu0 0.0
    %3102 = vmatpush1.msra.mxu0 0.0
    %3103 = vmatprep.subr.mxu0 0.0
    %3104 = vmatpush1.msra.mxu0 0.0
    %3105 = vmatprep.subr.mxu0 0.0
    %3106 = vmatpush1.msra.mxu0 0.0
    %3107 = vmatprep.subr.mxu0 0.0
    %3108 = vmatpush1.msra.mxu0 0.0
    %3109 = vmatprep.subr.mxu0 0.0
    %3110 = vmatpush1.msra.mxu0 0.0
    %3111 = vmatprep.mubr.f32.mxu0 0.0
    %3112 = vmatmul.mubr.f32.gmra.mrb[0].mxu0 %v3042
    %v3113 = vpop.f32.mrb[0].mxu0
    %v3114 = vadd.f32 0.0, %v3113
    %v3115 = vpop.f32.mrb[0].mxu0
    %3116 = vmatprep.mubr.f32.mxu0 0.0
    %3117 = vmatmul.mubr.f32.gmra.mrb[0].mxu0 %v3045
    %v3118 = vpop.f32.mrb[0].mxu0
    %v3119 = vadd.f32 0.0, %v3118
    %v3120 = vpop.f32.mrb[0].mxu0
    %3121 = vdwg.mxu0
    %v3123 = vsel %vm541, %v3114, 0
    %v3126 = vsel %vm541, %v3119, 0
    %3128 = vmatprep.subr.mxu0 0.0
    %3129 = vmatpush1.msra.mxu0 %v1918
    %3130 = vmatprep.subr.mxu0 0.0
    %3131 = vmatpush1.msra.mxu0 0.0
    %3132 = vmatprep.subr.mxu0 0.0
    %3133 = vmatpush1.msra.mxu0 0.0
    %3134 = vmatprep.subr.mxu0 0.0
    %3135 = vmatpush1.msra.mxu0 0.0
    %3136 = vmatprep.subr.mxu0 0.0
    %3137 = vmatpush1.msra.mxu0 0.0
    %3138 = vmatprep.subr.mxu0 0.0
    %3139 = vmatpush1.msra.mxu0 0.0
    %3140 = vmatprep.subr.mxu0 0.0
    %3141 = vmatpush1.msra.mxu0 0.0
    %3142 = vmatprep.subr.mxu0 0.0
    %3143 = vmatpush1.msra.mxu0 0.0
    %3144 = vmatprep.subr.mxu0 0.0
    %3145 = vmatpush1.msra.mxu0 0.0
    %3146 = vmatprep.subr.mxu0 0.0
    %3147 = vmatpush1.msra.mxu0 0.0
    %3148 = vmatprep.subr.mxu0 0.0
    %3149 = vmatpush1.msra.mxu0 0.0
    %3150 = vmatprep.subr.mxu0 0.0
    %3151 = vmatpush1.msra.mxu0 0.0
    %3152 = vmatprep.subr.mxu0 0.0
    %3153 = vmatpush1.msra.mxu0 0.0
    %3154 = vmatprep.subr.mxu0 0.0
    %3155 = vmatpush1.msra.mxu0 0.0
    %3156 = vmatprep.subr.mxu0 0.0
    %3157 = vmatpush1.msra.mxu0 0.0
    %3158 = vmatprep.subr.mxu0 0.0
    %3159 = vmatpush1.msra.mxu0 0.0
    %3160 = vmatprep.subr.mxu0 0.0
    %3161 = vmatpush1.msra.mxu0 0.0
    %3162 = vmatprep.subr.mxu0 0.0
    %3163 = vmatpush1.msra.mxu0 0.0
    %3164 = vmatprep.subr.mxu0 0.0
    %3165 = vmatpush1.msra.mxu0 0.0
    %3166 = vmatprep.subr.mxu0 0.0
    %3167 = vmatpush1.msra.mxu0 0.0
    %3168 = vmatprep.subr.mxu0 0.0
    %3169 = vmatpush1.msra.mxu0 0.0
    %3170 = vmatprep.subr.mxu0 0.0
    %3171 = vmatpush1.msra.mxu0 0.0
    %3172 = vmatprep.subr.mxu0 0.0
    %3173 = vmatpush1.msra.mxu0 0.0
    %3174 = vmatprep.subr.mxu0 0.0
    %3175 = vmatpush1.msra.mxu0 0.0
    %3176 = vmatprep.subr.mxu0 0.0
    %3177 = vmatpush1.msra.mxu0 0.0
    %3178 = vmatprep.subr.mxu0 0.0
    %3179 = vmatpush1.msra.mxu0 0.0
    %3180 = vmatprep.subr.mxu0 0.0
    %3181 = vmatpush1.msra.mxu0 0.0
    %3182 = vmatprep.subr.mxu0 0.0
    %3183 = vmatpush1.msra.mxu0 0.0
    %3184 = vmatprep.subr.mxu0 0.0
    %3185 = vmatpush1.msra.mxu0 0.0
    %3186 = vmatprep.subr.mxu0 0.0
    %3187 = vmatpush1.msra.mxu0 0.0
    %3188 = vmatprep.subr.mxu0 0.0
    %3189 = vmatpush1.msra.mxu0 0.0
    %3190 = vmatprep.subr.mxu0 0.0
    %3191 = vmatpush1.msra.mxu0 0.0
    %3192 = vmatprep.mubr.f32.mxu0 0.0
    %3193 = vmatmul.mubr.f32.gmra.mrb[0].mxu0 %v3123
    %v3194 = vpop.f32.mrb[0].mxu0
    %v3195 = vadd.f32 0.0, %v3194
    %v3196 = vpop.f32.mrb[0].mxu0
    %3197 = vmatprep.mubr.f32.mxu0 0.0
    %3198 = vmatmul.mubr.f32.gmra.mrb[0].mxu0 %v3126
    %v3199 = vpop.f32.mrb[0].mxu0
    %v3200 = vadd.f32 0.0, %v3199
    %v3201 = vpop.f32.mrb[0].mxu0
    %3202 = vdwg.mxu0
    %v3203 = vadd.f32 %v2920, %v3195
    %v3204 = vadd.f32 %v2921, %v3200
    %v3206 = vlaneseq
    %v3207 = vshrl.u32 %v3206, 7
    %v3208 = vsub.s32 0, %v3207
    %v3209 = vrot.slane %v1919, %v3208
    %v3211 = vadd.f32 %v3203, %v3209
    %v3212 = vadd.f32 %v3204, %v3209
    %v3213 = vadd.f32 %v1906, %v3211
    %v3214 = vadd.f32 %v1907, %v3212
    %v3215 = vsel %vm390, %v3213, 0.0
    %3216 = vadd.xlane.f32.xlu0 %v3215
    %v3217 = vpop.xlane.xlu0 %3216
    %v3218 = vsel %vm390, %v3214, 0.0
    %3219 = vadd.xlane.f32.xlu0 %v3218
    %v3220 = vpop.xlane.xlu0 %3219
    %v3221 = vmul.f32 %v3217, %v397
    %v3222 = vmul.f32 %v3220, %v397
    %v3223 = vsub.f32 %v3213, %v3221
    %v3224 = vsub.f32 %v3214, %v3222
    %v3225 = vmul.f32 %v3223, %v3223
    %v3226 = vmul.f32 %v3224, %v3224
    %v3227 = vsel %vm390, %v3225, 0.0
    %3228 = vadd.xlane.f32.xlu0 %v3227
    %v3229 = vpop.xlane.xlu0 %3228
    %v3230 = vsel %vm390, %v3226, 0.0
    %3231 = vadd.xlane.f32.xlu0 %v3230
    %v3232 = vpop.xlane.xlu0 %3231
    %v3233 = vmul.f32 %v3229, 0.032258064
    %v3234 = vmul.f32 %v3232, 0.032258064
    %v3235 = vrsqrt.pop %v3233
    %v3236 = vmul.f32 %v3233, %v3235
    %vm3237 = vcmp.eq.f32.partialorder %v3233, inf
    %v3238 = vsel %vm3237, %v3233, %v3236
    %vm3239 = vcmp.eq.f32.partialorder %v3233, 0.0
    %v3240 = vand.u32 %v3233, 2147483648
    %v3241 = vsel %vm3239, %v3240, %v3238
    %v3242 = vrsqrt.pop %v3234
    %v3243 = vmul.f32 %v3234, %v3242
    %vm3244 = vcmp.eq.f32.partialorder %v3234, inf
    %v3245 = vsel %vm3244, %v3234, %v3243
    %vm3246 = vcmp.eq.f32.partialorder %v3234, 0.0
    %v3247 = vand.u32 %v3234, 2147483648
    %v3248 = vsel %vm3246, %v3247, %v3245
    %v3249 = vadd.f32 %v3241, 1e-06
    %v3250 = vadd.f32 %v3248, 1e-06
    %v3251 = vrcp.pop %v3249
    %v3252 = vrcp.pop %v3250
    %v3254 = vlaneseq
    %v3255 = vshrl.u32 %v3254, 7
    %v3256 = vsub.s32 0, %v3255
    %v3257 = vrot.slane %v1920, %v3256
    %v3259 = vmul.f32 %v3257, %v3223
    %v3260 = vmul.f32 %v3257, %v3224
    %v3261 = vmul.f32 %v3259, %v3251
    %v3262 = vmul.f32 %v3260, %v3252
    %v3264 = vlaneseq
    %v3265 = vshrl.u32 %v3264, 7
    %v3266 = vsub.s32 0, %v3265
    %v3267 = vrot.slane %v1921, %v3266
    %v3269 = vadd.f32 %v3261, %v3267
    %v3270 = vadd.f32 %v3262, %v3267
    %v3272 = vlaneseq
    %v3273 = vshrl.u32 %v3272, 7
    %v3274 = vsub.s32 0, %v3273
    %v3275 = vrot.slane %v1926, %v3274
    %v3278 = vsel %vm390, %v3269, 0
    %v3281 = vsel %vm390, %v3270, 0
    %3283 = vmatprep.subr.mxu0 0.0
    %3284 = vmatpush1.msra.mxu0 %v1922
    %3285 = vmatprep.subr.mxu0 0.0
    %3286 = vmatpush1.msra.mxu0 %v1923
    %3287 = vmatprep.subr.mxu0 0.0
    %3288 = vmatpush1.msra.mxu0 %v1924
    %3289 = vmatprep.subr.mxu0 0.0
    %3290 = vmatpush1.msra.mxu0 %v1925
    %3291 = vmatprep.subr.mxu0 0.0
    %3292 = vmatpush1.msra.mxu0 0.0
    %3293 = vmatprep.subr.mxu0 0.0
    %3294 = vmatpush1.msra.mxu0 0.0
    %3295 = vmatprep.subr.mxu0 0.0
    %3296 = vmatpush1.msra.mxu0 0.0
    %3297 = vmatprep.subr.mxu0 0.0
    %3298 = vmatpush1.msra.mxu0 0.0
    %3299 = vmatprep.subr.mxu0 0.0
    %3300 = vmatpush1.msra.mxu0 0.0
    %3301 = vmatprep.subr.mxu0 0.0
    %3302 = vmatpush1.msra.mxu0 0.0
    %3303 = vmatprep.subr.mxu0 0.0
    %3304 = vmatpush1.msra.mxu0 0.0
    %3305 = vmatprep.subr.mxu0 0.0
    %3306 = vmatpush1.msra.mxu0 0.0
    %3307 = vmatprep.subr.mxu0 0.0
    %3308 = vmatpush1.msra.mxu0 0.0
    %3309 = vmatprep.subr.mxu0 0.0
    %3310 = vmatpush1.msra.mxu0 0.0
    %3311 = vmatprep.subr.mxu0 0.0
    %3312 = vmatpush1.msra.mxu0 0.0
    %3313 = vmatprep.subr.mxu0 0.0
    %3314 = vmatpush1.msra.mxu0 0.0
    %3315 = vmatprep.subr.mxu0 0.0
    %3316 = vmatpush1.msra.mxu0 0.0
    %3317 = vmatprep.subr.mxu0 0.0
    %3318 = vmatpush1.msra.mxu0 0.0
    %3319 = vmatprep.subr.mxu0 0.0
    %3320 = vmatpush1.msra.mxu0 0.0
    %3321 = vmatprep.subr.mxu0 0.0
    %3322 = vmatpush1.msra.mxu0 0.0
    %3323 = vmatprep.subr.mxu0 0.0
    %3324 = vmatpush1.msra.mxu0 0.0
    %3325 = vmatprep.subr.mxu0 0.0
    %3326 = vmatpush1.msra.mxu0 0.0
    %3327 = vmatprep.subr.mxu0 0.0
    %3328 = vmatpush1.msra.mxu0 0.0
    %3329 = vmatprep.subr.mxu0 0.0
    %3330 = vmatpush1.msra.mxu0 0.0
    %3331 = vmatprep.subr.mxu0 0.0
    %3332 = vmatpush1.msra.mxu0 0.0
    %3333 = vmatprep.subr.mxu0 0.0
    %3334 = vmatpush1.msra.mxu0 0.0
    %3335 = vmatprep.subr.mxu0 0.0
    %3336 = vmatpush1.msra.mxu0 0.0
    %3337 = vmatprep.subr.mxu0 0.0
    %3338 = vmatpush1.msra.mxu0 0.0
    %3339 = vmatprep.subr.mxu0 0.0
    %3340 = vmatpush1.msra.mxu0 0.0
    %3341 = vmatprep.subr.mxu0 0.0
    %3342 = vmatpush1.msra.mxu0 0.0
    %3343 = vmatprep.subr.mxu0 0.0
    %3344 = vmatpush1.msra.mxu0 0.0
    %3345 = vmatprep.subr.mxu0 0.0
    %3346 = vmatpush1.msra.mxu0 0.0
    %3347 = vmatprep.mubr.f32.mxu0 0.0
    %3348 = vmatmul.mubr.f32.gmra.mrb[0].mxu0 %v3278
    %v3349 = vpop.f32.mrb[0].mxu0
    %v3350 = vadd.f32 %v3275, %v3349
    %v3351 = vpop.f32.mrb[0].mxu0
    %3352 = vmatprep.mubr.f32.mxu0 0.0
    %3353 = vmatmul.mubr.f32.gmra.mrb[0].mxu0 %v3281
    %v3354 = vpop.f32.mrb[0].mxu0
    %v3355 = vadd.f32 %v3275, %v3354
    %v3356 = vpop.f32.mrb[0].mxu0
    %3357 = vdwg.mxu0
    %v3358 = vmax.f32 %v3350, 0.0
    %v3359 = vmax.f32 %v3355, 0.0
    %v3361 = vlaneseq
    %v3362 = vshrl.u32 %v3361, 7
    %v3363 = vsub.s32 0, %v3362
    %v3364 = vrot.slane %v1935, %v3363
    %v3367 = vsel %vm1824, %v3358, 0
    %v3370 = vsel %vm1824, %v3359, 0
    %3372 = vmatprep.subr.mxu0 0.0
    %3373 = vmatpush1.msra.mxu0 %v1927
    %3374 = vmatprep.subr.mxu0 0.0
    %3375 = vmatpush1.msra.mxu0 %v1928
    %3376 = vmatprep.subr.mxu0 0.0
    %3377 = vmatpush1.msra.mxu0 %v1929
    %3378 = vmatprep.subr.mxu0 0.0
    %3379 = vmatpush1.msra.mxu0 %v1930
    %3380 = vmatprep.subr.mxu0 0.0
    %3381 = vmatpush1.msra.mxu0 %v1931
    %3382 = vmatprep.subr.mxu0 0.0
    %3383 = vmatpush1.msra.mxu0 %v1932
    %3384 = vmatprep.subr.mxu0 0.0
    %3385 = vmatpush1.msra.mxu0 %v1933
    %3386 = vmatprep.subr.mxu0 0.0
    %3387 = vmatpush1.msra.mxu0 %v1934
    %3388 = vmatprep.subr.mxu0 0.0
    %3389 = vmatpush1.msra.mxu0 0.0
    %3390 = vmatprep.subr.mxu0 0.0
    %3391 = vmatpush1.msra.mxu0 0.0
    %3392 = vmatprep.subr.mxu0 0.0
    %3393 = vmatpush1.msra.mxu0 0.0
    %3394 = vmatprep.subr.mxu0 0.0
    %3395 = vmatpush1.msra.mxu0 0.0
    %3396 = vmatprep.subr.mxu0 0.0
    %3397 = vmatpush1.msra.mxu0 0.0
    %3398 = vmatprep.subr.mxu0 0.0
    %3399 = vmatpush1.msra.mxu0 0.0
    %3400 = vmatprep.subr.mxu0 0.0
    %3401 = vmatpush1.msra.mxu0 0.0
    %3402 = vmatprep.subr.mxu0 0.0
    %3403 = vmatpush1.msra.mxu0 0.0
    %3404 = vmatprep.subr.mxu0 0.0
    %3405 = vmatpush1.msra.mxu0 0.0
    %3406 = vmatprep.subr.mxu0 0.0
    %3407 = vmatpush1.msra.mxu0 0.0
    %3408 = vmatprep.subr.mxu0 0.0
    %3409 = vmatpush1.msra.mxu0 0.0
    %3410 = vmatprep.subr.mxu0 0.0
    %3411 = vmatpush1.msra.mxu0 0.0
    %3412 = vmatprep.subr.mxu0 0.0
    %3413 = vmatpush1.msra.mxu0 0.0
    %3414 = vmatprep.subr.mxu0 0.0
    %3415 = vmatpush1.msra.mxu0 0.0
    %3416 = vmatprep.subr.mxu0 0.0
    %3417 = vmatpush1.msra.mxu0 0.0
    %3418 = vmatprep.subr.mxu0 0.0
    %3419 = vmatpush1.msra.mxu0 0.0
    %3420 = vmatprep.subr.mxu0 0.0
    %3421 = vmatpush1.msra.mxu0 0.0
    %3422 = vmatprep.subr.mxu0 0.0
    %3423 = vmatpush1.msra.mxu0 0.0
    %3424 = vmatprep.subr.mxu0 0.0
    %3425 = vmatpush1.msra.mxu0 0.0
    %3426 = vmatprep.subr.mxu0 0.0
    %3427 = vmatpush1.msra.mxu0 0.0
    %3428 = vmatprep.subr.mxu0 0.0
    %3429 = vmatpush1.msra.mxu0 0.0
    %3430 = vmatprep.subr.mxu0 0.0
    %3431 = vmatpush1.msra.mxu0 0.0
    %3432 = vmatprep.subr.mxu0 0.0
    %3433 = vmatpush1.msra.mxu0 0.0
    %3434 = vmatprep.subr.mxu0 0.0
    %3435 = vmatpush1.msra.mxu0 0.0
    %3436 = vmatprep.mubr.f32.mxu0 0.0
    %3437 = vmatmul.mubr.f32.gmra.mrb[0].mxu0 %v3367
    %v3438 = vpop.f32.mrb[0].mxu0
    %v3439 = vadd.f32 %v3364, %v3438
    %v3440 = vpop.f32.mrb[0].mxu0
    %3441 = vmatprep.mubr.f32.mxu0 0.0
    %3442 = vmatmul.mubr.f32.gmra.mrb[0].mxu0 %v3370
    %v3443 = vpop.f32.mrb[0].mxu0
    %v3444 = vadd.f32 %v3364, %v3443
    %v3445 = vpop.f32.mrb[0].mxu0
    %3446 = vdwg.mxu0
    %v3447 = vadd.f32 %v3213, %v3439
    %v3448 = vadd.f32 %v3214, %v3444
    %v3449 = vld [vmem:[%s59] sm:$0x1]
    %v3450 = vld [vmem:[%s61] sm:$0x1]
    %v3451 = vsel %vm390, %v3447, 0.0
    %3452 = vadd.xlane.f32.xlu0 %v3451
    %v3453 = vpop.xlane.xlu0 %3452
    %v3454 = vsel %vm390, %v3448, 0.0
    %3455 = vadd.xlane.f32.xlu0 %v3454
    %v3456 = vpop.xlane.xlu0 %3455
    %v3457 = vmul.f32 %v3453, %v397
    %v3458 = vmul.f32 %v3456, %v397
    %v3459 = vsub.f32 %v3447, %v3457
    %v3460 = vsub.f32 %v3448, %v3458
    %v3461 = vmul.f32 %v3459, %v3459
    %v3462 = vmul.f32 %v3460, %v3460
    %v3463 = vsel %vm390, %v3461, 0.0
    %3464 = vadd.xlane.f32.xlu0 %v3463
    %v3465 = vpop.xlane.xlu0 %3464
    %v3466 = vsel %vm390, %v3462, 0.0
    %3467 = vadd.xlane.f32.xlu0 %v3466
    %v3468 = vpop.xlane.xlu0 %3467
    %v3469 = vmul.f32 %v3465, 0.032258064
    %v3470 = vmul.f32 %v3468, 0.032258064
    %v3471 = vrsqrt.pop %v3469
    %v3472 = vmul.f32 %v3469, %v3471
    %vm3473 = vcmp.eq.f32.partialorder %v3469, inf
    %v3474 = vsel %vm3473, %v3469, %v3472
    %vm3475 = vcmp.eq.f32.partialorder %v3469, 0.0
    %v3476 = vand.u32 %v3469, 2147483648
    %v3477 = vsel %vm3475, %v3476, %v3474
    %v3478 = vrsqrt.pop %v3470
    %v3479 = vmul.f32 %v3470, %v3478
    %vm3480 = vcmp.eq.f32.partialorder %v3470, inf
    %v3481 = vsel %vm3480, %v3470, %v3479
    %vm3482 = vcmp.eq.f32.partialorder %v3470, 0.0
    %v3483 = vand.u32 %v3470, 2147483648
    %v3484 = vsel %vm3482, %v3483, %v3481
    %v3485 = vadd.f32 %v3477, 1e-06
    %v3486 = vadd.f32 %v3484, 1e-06
    %v3487 = vrcp.pop %v3485
    %v3488 = vrcp.pop %v3486
    %v3490 = vlaneseq
    %v3491 = vshrl.u32 %v3490, 7
    %v3492 = vsub.s32 0, %v3491
    %v3493 = vrot.slane %v3449, %v3492
    %v3495 = vmul.f32 %v3493, %v3459
    %v3496 = vmul.f32 %v3493, %v3460
    %v3497 = vmul.f32 %v3495, %v3487
    %v3498 = vmul.f32 %v3496, %v3488
    %v3500 = vlaneseq
    %v3501 = vshrl.u32 %v3500, 7
    %v3502 = vsub.s32 0, %v3501
    %v3503 = vrot.slane %v3450, %v3502
    %v3505 = vadd.f32 %v3497, %v3503
    %v3506 = vadd.f32 %v3498, %v3503
    %v3507 = vld [vmem:[%s3] sm:$0xff]
    %v3508 = vld [vmem:[%s3 + $0x8] sm:$0xff]
    %v3509 = vld [vmem:[%s63] sm:$0x1]
    %v3510 = vld [vmem:[%s65] sm:$0x1]
    %v3511 = vld [vmem:[%s67] sm:$0xff]
    %v3512 = vld [vmem:[%s67 + $0x8] sm:$0xff]
    %v3513 = vld [vmem:[%s67 + $0x10] sm:$0xff]
    %v3514 = vld [vmem:[%s67 + $0x18] sm:$0xff]
    %v3515 = vld [vmem:[%s69] sm:$0x1]
    %v3516 = vld [vmem:[%s71] sm:$0xff]
    %v3517 = vld [vmem:[%s71 + $0x8] sm:$0xff]
    %v3518 = vld [vmem:[%s71 + $0x10] sm:$0xff]
    %v3519 = vld [vmem:[%s71 + $0x18] sm:$0xff]
    %v3520 = vld [vmem:[%s73] sm:$0x1]
    %v3521 = vld [vmem:[%s75] sm:$0x1]
    %v3522 = vld [vmem:[%s77] sm:$0x1]
    %v3523 = vld [vmem:[%s79] sm:$0xff]
    %v3524 = vld [vmem:[%s79 + $0x8] sm:$0xff]
    %v3525 = vld [vmem:[%s79 + $0x10] sm:$0xff]
    %v3526 = vld [vmem:[%s79 + $0x18] sm:$0xff]
    %v3527 = vld [vmem:[%s81] sm:$0x1]
    %v3528 = vld [vmem:[%s83] sm:$0xff]
    %v3529 = vld [vmem:[%s83 + $0x8] sm:$0xff]
    %v3530 = vld [vmem:[%s83 + $0x10] sm:$0xff]
    %v3531 = vld [vmem:[%s83 + $0x18] sm:$0xff]
    %v3532 = vld [vmem:[%s85] sm:$0x1]
    %v3533 = vld [vmem:[%s87] sm:$0xff]
    %v3534 = vld [vmem:[%s87 + $0x8] sm:$0xff]
    %v3535 = vld [vmem:[%s87 + $0x10] sm:$0xff]
    %v3536 = vld [vmem:[%s87 + $0x18] sm:$0xff]
    %v3537 = vld [vmem:[%s89] sm:$0x1]
    %v3538 = vld [vmem:[%s91] sm:$0x1]
    %v3539 = vld [vmem:[%s93] sm:$0x1]
    %v3540 = vld [vmem:[%s95] sm:$0xff]
    %v3541 = vld [vmem:[%s95 + $0x8] sm:$0xff]
    %v3542 = vld [vmem:[%s95 + $0x10] sm:$0xff]
    %v3543 = vld [vmem:[%s95 + $0x18] sm:$0xff]
    %v3544 = vld [vmem:[%s97] sm:$0x1]
    %v3545 = vld [vmem:[%s99] sm:$0xff]
    %v3546 = vld [vmem:[%s99 + $0x8] sm:$0xff]
    %v3547 = vld [vmem:[%s99 + $0x10] sm:$0xff]
    %v3548 = vld [vmem:[%s99 + $0x18] sm:$0xff]
    %v3549 = vld [vmem:[%s99 + $0x20] sm:$0xff]
    %v3550 = vld [vmem:[%s99 + $0x28] sm:$0xff]
    %v3551 = vld [vmem:[%s99 + $0x30] sm:$0xff]
    %v3552 = vld [vmem:[%s99 + $0x38] sm:$0xff]
    %v3553 = vld [vmem:[%s101] sm:$0x1]
    %v3554 = vsel %vm390, %v3507, 0.0
    %3555 = vadd.xlane.f32.xlu0 %v3554
    %v3556 = vpop.xlane.xlu0 %3555
    %v3557 = vsel %vm390, %v3508, 0.0
    %3558 = vadd.xlane.f32.xlu0 %v3557
    %v3559 = vpop.xlane.xlu0 %3558
    %v3560 = vmul.f32 %v3556, %v397
    %v3561 = vmul.f32 %v3559, %v397
    %v3562 = vsub.f32 %v3507, %v3560
    %v3563 = vsub.f32 %v3508, %v3561
    %v3564 = vmul.f32 %v3562, %v3562
    %v3565 = vmul.f32 %v3563, %v3563
    %v3566 = vsel %vm390, %v3564, 0.0
    %3567 = vadd.xlane.f32.xlu0 %v3566
    %v3568 = vpop.xlane.xlu0 %3567
    %v3569 = vsel %vm390, %v3565, 0.0
    %3570 = vadd.xlane.f32.xlu0 %v3569
    %v3571 = vpop.xlane.xlu0 %3570
    %v3572 = vmul.f32 %v3568, 0.032258064
    %v3573 = vmul.f32 %v3571, 0.032258064
    %v3574 = vrsqrt.pop %v3572
    %v3575 = vmul.f32 %v3572, %v3574
    %vm3576 = vcmp.eq.f32.partialorder %v3572, inf
    %v3577 = vsel %vm3576, %v3572, %v3575
    %vm3578 = vcmp.eq.f32.partialorder %v3572, 0.0
    %v3579 = vand.u32 %v3572, 2147483648
    %v3580 = vsel %vm3578, %v3579, %v3577
    %v3581 = vrsqrt.pop %v3573
    %v3582 = vmul.f32 %v3573, %v3581
    %vm3583 = vcmp.eq.f32.partialorder %v3573, inf
    %v3584 = vsel %vm3583, %v3573, %v3582
    %vm3585 = vcmp.eq.f32.partialorder %v3573, 0.0
    %v3586 = vand.u32 %v3573, 2147483648
    %v3587 = vsel %vm3585, %v3586, %v3584
    %v3588 = vadd.f32 %v3580, 1e-06
    %v3589 = vadd.f32 %v3587, 1e-06
    %v3590 = vrcp.pop %v3588
    %v3591 = vrcp.pop %v3589
    %v3593 = vlaneseq
    %v3594 = vshrl.u32 %v3593, 7
    %v3595 = vsub.s32 0, %v3594
    %v3596 = vrot.slane %v3509, %v3595
    %v3598 = vmul.f32 %v3596, %v3562
    %v3599 = vmul.f32 %v3596, %v3563
    %v3600 = vmul.f32 %v3598, %v3590
    %v3601 = vmul.f32 %v3599, %v3591
    %v3603 = vlaneseq
    %v3604 = vshrl.u32 %v3603, 7
    %v3605 = vsub.s32 0, %v3604
    %v3606 = vrot.slane %v3510, %v3605
    %v3608 = vadd.f32 %v3600, %v3606
    %v3609 = vadd.f32 %v3601, %v3606
    %v3611 = vlaneseq
    %v3612 = vshrl.u32 %v3611, 7
    %v3613 = vsub.s32 0, %v3612
    %v3614 = vrot.slane %v3515, %v3613
    %v3617 = vsel %vm390, %v3608, 0
    %v3620 = vsel %vm390, %v3609, 0
    %3622 = vmatprep.subr.mxu0 0.0
    %3623 = vmatpush1.msra.mxu0 %v3511
    %3624 = vmatprep.subr.mxu0 0.0
    %3625 = vmatpush1.msra.mxu0 %v3512
    %3626 = vmatprep.subr.mxu0 0.0
    %3627 = vmatpush1.msra.mxu0 %v3513
    %3628 = vmatprep.subr.mxu0 0.0
    %3629 = vmatpush1.msra.mxu0 %v3514
    %3630 = vmatprep.subr.mxu0 0.0
    %3631 = vmatpush1.msra.mxu0 0.0
    %3632 = vmatprep.subr.mxu0 0.0
    %3633 = vmatpush1.msra.mxu0 0.0
    %3634 = vmatprep.subr.mxu0 0.0
    %3635 = vmatpush1.msra.mxu0 0.0
    %3636 = vmatprep.subr.mxu0 0.0
    %3637 = vmatpush1.msra.mxu0 0.0
    %3638 = vmatprep.subr.mxu0 0.0
    %3639 = vmatpush1.msra.mxu0 0.0
    %3640 = vmatprep.subr.mxu0 0.0
    %3641 = vmatpush1.msra.mxu0 0.0
    %3642 = vmatprep.subr.mxu0 0.0
    %3643 = vmatpush1.msra.mxu0 0.0
    %3644 = vmatprep.subr.mxu0 0.0
    %3645 = vmatpush1.msra.mxu0 0.0
    %3646 = vmatprep.subr.mxu0 0.0
    %3647 = vmatpush1.msra.mxu0 0.0
    %3648 = vmatprep.subr.mxu0 0.0
    %3649 = vmatpush1.msra.mxu0 0.0
    %3650 = vmatprep.subr.mxu0 0.0
    %3651 = vmatpush1.msra.mxu0 0.0
    %3652 = vmatprep.subr.mxu0 0.0
    %3653 = vmatpush1.msra.mxu0 0.0
    %3654 = vmatprep.subr.mxu0 0.0
    %3655 = vmatpush1.msra.mxu0 0.0
    %3656 = vmatprep.subr.mxu0 0.0
    %3657 = vmatpush1.msra.mxu0 0.0
    %3658 = vmatprep.subr.mxu0 0.0
    %3659 = vmatpush1.msra.mxu0 0.0
    %3660 = vmatprep.subr.mxu0 0.0
    %3661 = vmatpush1.msra.mxu0 0.0
    %3662 = vmatprep.subr.mxu0 0.0
    %3663 = vmatpush1.msra.mxu0 0.0
    %3664 = vmatprep.subr.mxu0 0.0
    %3665 = vmatpush1.msra.mxu0 0.0
    %3666 = vmatprep.subr.mxu0 0.0
    %3667 = vmatpush1.msra.mxu0 0.0
    %3668 = vmatprep.subr.mxu0 0.0
    %3669 = vmatpush1.msra.mxu0 0.0
    %3670 = vmatprep.subr.mxu0 0.0
    %3671 = vmatpush1.msra.mxu0 0.0
    %3672 = vmatprep.subr.mxu0 0.0
    %3673 = vmatpush1.msra.mxu0 0.0
    %3674 = vmatprep.subr.mxu0 0.0
    %3675 = vmatpush1.msra.mxu0 0.0
    %3676 = vmatprep.subr.mxu0 0.0
    %3677 = vmatpush1.msra.mxu0 0.0
    %3678 = vmatprep.subr.mxu0 0.0
    %3679 = vmatpush1.msra.mxu0 0.0
    %3680 = vmatprep.subr.mxu0 0.0
    %3681 = vmatpush1.msra.mxu0 0.0
    %3682 = vmatprep.subr.mxu0 0.0
    %3683 = vmatpush1.msra.mxu0 0.0
    %3684 = vmatprep.subr.mxu0 0.0
    %3685 = vmatpush1.msra.mxu0 0.0
    %3686 = vmatprep.mubr.f32.mxu0 0.0
    %3687 = vmatmul.mubr.f32.gmra.mrb[0].mxu0 %v3617
    %v3688 = vpop.f32.mrb[0].mxu0
    %v3689 = vadd.f32 %v3614, %v3688
    %v3690 = vpop.f32.mrb[0].mxu0
    %3691 = vmatprep.mubr.f32.mxu0 0.0
    %3692 = vmatmul.mubr.f32.gmra.mrb[0].mxu0 %v3620
    %v3693 = vpop.f32.mrb[0].mxu0
    %v3694 = vadd.f32 %v3614, %v3693
    %v3695 = vpop.f32.mrb[0].mxu0
    %3696 = vdwg.mxu0
    %3699 = vrot.lane.b32.xlu0 %v3689, 96
    %v3700 = vpop.permute.xlu0 %3699
    %3701 = vrot.lane.b32.xlu0 %v3694, 96
    %v3702 = vpop.permute.xlu0 %3701
    %v3703 = vsel %vm541, %v3689, 0
    %v3705 = vsel %vm541, %v3694, 0
    %v3707 = vsel %vm541, %v3700, 0
    %v3709 = vsel %vm541, %v3702, 0
    %3711 = vmatprep.subr.mxu0 0.0
    %3712 = vmatpush1.xpose.msra.mxu0 %v3707
    %3713 = vmatprep.subr.mxu0 0.0
    %3714 = vmatpush1.xpose.msra.mxu0 %v3709
    %3715 = vmatprep.subr.mxu0 0.0
    %3716 = vmatpush1.xpose.msra.mxu0 0.0
    %3717 = vmatprep.subr.mxu0 0.0
    %3718 = vmatpush1.xpose.msra.mxu0 0.0
    %3719 = vmatprep.subr.mxu0 0.0
    %3720 = vmatpush1.xpose.msra.mxu0 0.0
    %3721 = vmatprep.subr.mxu0 0.0
    %3722 = vmatpush1.xpose.msra.mxu0 0.0
    %3723 = vmatprep.subr.mxu0 0.0
    %3724 = vmatpush1.xpose.msra.mxu0 0.0
    %3725 = vmatprep.subr.mxu0 0.0
    %3726 = vmatpush1.xpose.msra.mxu0 0.0
    %3727 = vmatprep.subr.mxu0 0.0
    %3728 = vmatpush1.xpose.msra.mxu0 0.0
    %3729 = vmatprep.subr.mxu0 0.0
    %3730 = vmatpush1.xpose.msra.mxu0 0.0
    %3731 = vmatprep.subr.mxu0 0.0
    %3732 = vmatpush1.xpose.msra.mxu0 0.0
    %3733 = vmatprep.subr.mxu0 0.0
    %3734 = vmatpush1.xpose.msra.mxu0 0.0
    %3735 = vmatprep.subr.mxu0 0.0
    %3736 = vmatpush1.xpose.msra.mxu0 0.0
    %3737 = vmatprep.subr.mxu0 0.0
    %3738 = vmatpush1.xpose.msra.mxu0 0.0
    %3739 = vmatprep.subr.mxu0 0.0
    %3740 = vmatpush1.xpose.msra.mxu0 0.0
    %3741 = vmatprep.subr.mxu0 0.0
    %3742 = vmatpush1.xpose.msra.mxu0 0.0
    %3743 = vmatprep.subr.mxu0 0.0
    %3744 = vmatpush1.xpose.msra.mxu0 0.0
    %3745 = vmatprep.subr.mxu0 0.0
    %3746 = vmatpush1.xpose.msra.mxu0 0.0
    %3747 = vmatprep.subr.mxu0 0.0
    %3748 = vmatpush1.xpose.msra.mxu0 0.0
    %3749 = vmatprep.subr.mxu0 0.0
    %3750 = vmatpush1.xpose.msra.mxu0 0.0
    %3751 = vmatprep.subr.mxu0 0.0
    %3752 = vmatpush1.xpose.msra.mxu0 0.0
    %3753 = vmatprep.subr.mxu0 0.0
    %3754 = vmatpush1.xpose.msra.mxu0 0.0
    %3755 = vmatprep.subr.mxu0 0.0
    %3756 = vmatpush1.xpose.msra.mxu0 0.0
    %3757 = vmatprep.subr.mxu0 0.0
    %3758 = vmatpush1.xpose.msra.mxu0 0.0
    %3759 = vmatprep.subr.mxu0 0.0
    %3760 = vmatpush1.xpose.msra.mxu0 0.0
    %3761 = vmatprep.subr.mxu0 0.0
    %3762 = vmatpush1.xpose.msra.mxu0 0.0
    %3763 = vmatprep.subr.mxu0 0.0
    %3764 = vmatpush1.xpose.msra.mxu0 0.0
    %3765 = vmatprep.subr.mxu0 0.0
    %3766 = vmatpush1.xpose.msra.mxu0 0.0
    %3767 = vmatprep.subr.mxu0 0.0
    %3768 = vmatpush1.xpose.msra.mxu0 0.0
    %3769 = vmatprep.subr.mxu0 0.0
    %3770 = vmatpush1.xpose.msra.mxu0 0.0
    %3771 = vmatprep.subr.mxu0 0.0
    %3772 = vmatpush1.xpose.msra.mxu0 0.0
    %3773 = vmatprep.subr.mxu0 0.0
    %3774 = vmatpush1.xpose.msra.mxu0 0.0
    %3775 = vmatprep.mubr.f32.mxu0 0.0
    %3776 = vmatmul.mubr.f32.gmra.mrb[0].mxu0 %v3703
    %v3777 = vpop.f32.mrb[0].mxu0
    %v3778 = vadd.f32 %v356, %v3777
    %v3779 = vpop.f32.mrb[0].mxu0
    %3780 = vmatprep.mubr.f32.mxu0 0.0
    %3781 = vmatmul.mubr.f32.gmra.mrb[0].mxu0 %v3705
    %v3782 = vpop.f32.mrb[0].mxu0
    %v3783 = vadd.f32 %v357, %v3782
    %v3784 = vpop.f32.mrb[0].mxu0
    %3785 = vdwg.mxu0
    %v3786 = vsel %vm625, %v3778, -inf
    %3787 = vmax.xlane.f32.xlu0 %v3786
    %v3788 = vpop.xlane.xlu0 %3787
    %v3789 = vsel %vm625, %v3783, -inf
    %3790 = vmax.xlane.f32.xlu0 %v3789
    %v3791 = vpop.xlane.xlu0 %3790
    %v3792 = vsub.f32 %v3778, %v3788
    %v3793 = vsub.f32 %v3783, %v3791
    %v3794 = vmul.f32 %v3792, 1.442695
    %v3795 = vpow.pop %v3794
    %v3796 = vmul.f32 %v3793, 1.442695
    %v3797 = vpow.pop %v3796
    %v3798 = vsel %vm625, %v3795, 0.0
    %3799 = vadd.xlane.f32.xlu0 %v3798
    %v3800 = vpop.xlane.xlu0 %3799
    %v3801 = vsel %vm625, %v3797, 0.0
    %3802 = vadd.xlane.f32.xlu0 %v3801
    %v3803 = vpop.xlane.xlu0 %3802
    %v3804 = vrcp.pop %v3800
    %v3805 = vrcp.pop %v3803
    %v3806 = vmul.f32 %v3795, %v3804
    %v3807 = vmul.f32 %v3797, %v3805
    %3808 = vrot.lane.b32.xlu0 %v3689, 64
    %v3809 = vpop.permute.xlu0 %3808
    %3810 = vrot.lane.b32.xlu0 %v3694, 64
    %v3811 = vpop.permute.xlu0 %3810
    %v3815 = vsel %vm625, %v3806, 0
    %v3818 = vsel %vm625, %v3807, 0
    %3820 = vmatprep.subr.mxu0 0.0
    %3821 = vmatpush1.msra.mxu0 %v3809
    %3822 = vmatprep.subr.mxu0 0.0
    %3823 = vmatpush1.msra.mxu0 %v3811
    %3824 = vmatprep.subr.mxu0 0.0
    %3825 = vmatpush1.msra.mxu0 0.0
    %3826 = vmatprep.subr.mxu0 0.0
    %3827 = vmatpush1.msra.mxu0 0.0
    %3828 = vmatprep.subr.mxu0 0.0
    %3829 = vmatpush1.msra.mxu0 0.0
    %3830 = vmatprep.subr.mxu0 0.0
    %3831 = vmatpush1.msra.mxu0 0.0
    %3832 = vmatprep.subr.mxu0 0.0
    %3833 = vmatpush1.msra.mxu0 0.0
    %3834 = vmatprep.subr.mxu0 0.0
    %3835 = vmatpush1.msra.mxu0 0.0
    %3836 = vmatprep.subr.mxu0 0.0
    %3837 = vmatpush1.msra.mxu0 0.0
    %3838 = vmatprep.subr.mxu0 0.0
    %3839 = vmatpush1.msra.mxu0 0.0
    %3840 = vmatprep.subr.mxu0 0.0
    %3841 = vmatpush1.msra.mxu0 0.0
    %3842 = vmatprep.subr.mxu0 0.0
    %3843 = vmatpush1.msra.mxu0 0.0
    %3844 = vmatprep.subr.mxu0 0.0
    %3845 = vmatpush1.msra.mxu0 0.0
    %3846 = vmatprep.subr.mxu0 0.0
    %3847 = vmatpush1.msra.mxu0 0.0
    %3848 = vmatprep.subr.mxu0 0.0
    %3849 = vmatpush1.msra.mxu0 0.0
    %3850 = vmatprep.subr.mxu0 0.0
    %3851 = vmatpush1.msra.mxu0 0.0
    %3852 = vmatprep.subr.mxu0 0.0
    %3853 = vmatpush1.msra.mxu0 0.0
    %3854 = vmatprep.subr.mxu0 0.0
    %3855 = vmatpush1.msra.mxu0 0.0
    %3856 = vmatprep.subr.mxu0 0.0
    %3857 = vmatpush1.msra.mxu0 0.0
    %3858 = vmatprep.subr.mxu0 0.0
    %3859 = vmatpush1.msra.mxu0 0.0
    %3860 = vmatprep.subr.mxu0 0.0
    %3861 = vmatpush1.msra.mxu0 0.0
    %3862 = vmatprep.subr.mxu0 0.0
    %3863 = vmatpush1.msra.mxu0 0.0
    %3864 = vmatprep.subr.mxu0 0.0
    %3865 = vmatpush1.msra.mxu0 0.0
    %3866 = vmatprep.subr.mxu0 0.0
    %3867 = vmatpush1.msra.mxu0 0.0
    %3868 = vmatprep.subr.mxu0 0.0
    %3869 = vmatpush1.msra.mxu0 0.0
    %3870 = vmatprep.subr.mxu0 0.0
    %3871 = vmatpush1.msra.mxu0 0.0
    %3872 = vmatprep.subr.mxu0 0.0
    %3873 = vmatpush1.msra.mxu0 0.0
    %3874 = vmatprep.subr.mxu0 0.0
    %3875 = vmatpush1.msra.mxu0 0.0
    %3876 = vmatprep.subr.mxu0 0.0
    %3877 = vmatpush1.msra.mxu0 0.0
    %3878 = vmatprep.subr.mxu0 0.0
    %3879 = vmatpush1.msra.mxu0 0.0
    %3880 = vmatprep.subr.mxu0 0.0
    %3881 = vmatpush1.msra.mxu0 0.0
    %3882 = vmatprep.subr.mxu0 0.0
    %3883 = vmatpush1.msra.mxu0 0.0
    %3884 = vmatprep.mubr.f32.mxu0 0.0
    %3885 = vmatmul.mubr.f32.gmra.mrb[0].mxu0 %v3815
    %v3886 = vpop.f32.mrb[0].mxu0
    %v3887 = vadd.f32 0.0, %v3886
    %v3888 = vpop.f32.mrb[0].mxu0
    %3889 = vmatprep.mubr.f32.mxu0 0.0
    %3890 = vmatmul.mubr.f32.gmra.mrb[0].mxu0 %v3818
    %v3891 = vpop.f32.mrb[0].mxu0
    %v3892 = vadd.f32 0.0, %v3891
    %v3893 = vpop.f32.mrb[0].mxu0
    %3894 = vdwg.mxu0
    %3895 = vrot.lane.b32.xlu0 %v3689, 120
    %v3896 = vpop.permute.xlu0 %3895
    %3897 = vrot.lane.b32.xlu0 %v3694, 120
    %v3898 = vpop.permute.xlu0 %3897
    %3899 = vrot.lane.b32.xlu0 %v3689, 88
    %v3900 = vpop.permute.xlu0 %3899
    %3901 = vrot.lane.b32.xlu0 %v3694, 88
    %v3902 = vpop.permute.xlu0 %3901
    %v3903 = vsel %vm541, %v3896, 0
    %v3905 = vsel %vm541, %v3898, 0
    %v3907 = vsel %vm541, %v3900, 0
    %v3909 = vsel %vm541, %v3902, 0
    %3911 = vmatprep.subr.mxu0 0.0
    %3912 = vmatpush1.xpose.msra.mxu0 %v3907
    %3913 = vmatprep.subr.mxu0 0.0
    %3914 = vmatpush1.xpose.msra.mxu0 %v3909
    %3915 = vmatprep.subr.mxu0 0.0
    %3916 = vmatpush1.xpose.msra.mxu0 0.0
    %3917 = vmatprep.subr.mxu0 0.0
    %3918 = vmatpush1.xpose.msra.mxu0 0.0
    %3919 = vmatprep.subr.mxu0 0.0
    %3920 = vmatpush1.xpose.msra.mxu0 0.0
    %3921 = vmatprep.subr.mxu0 0.0
    %3922 = vmatpush1.xpose.msra.mxu0 0.0
    %3923 = vmatprep.subr.mxu0 0.0
    %3924 = vmatpush1.xpose.msra.mxu0 0.0
    %3925 = vmatprep.subr.mxu0 0.0
    %3926 = vmatpush1.xpose.msra.mxu0 0.0
    %3927 = vmatprep.subr.mxu0 0.0
    %3928 = vmatpush1.xpose.msra.mxu0 0.0
    %3929 = vmatprep.subr.mxu0 0.0
    %3930 = vmatpush1.xpose.msra.mxu0 0.0
    %3931 = vmatprep.subr.mxu0 0.0
    %3932 = vmatpush1.xpose.msra.mxu0 0.0
    %3933 = vmatprep.subr.mxu0 0.0
    %3934 = vmatpush1.xpose.msra.mxu0 0.0
    %3935 = vmatprep.subr.mxu0 0.0
    %3936 = vmatpush1.xpose.msra.mxu0 0.0
    %3937 = vmatprep.subr.mxu0 0.0
    %3938 = vmatpush1.xpose.msra.mxu0 0.0
    %3939 = vmatprep.subr.mxu0 0.0
    %3940 = vmatpush1.xpose.msra.mxu0 0.0
    %3941 = vmatprep.subr.mxu0 0.0
    %3942 = vmatpush1.xpose.msra.mxu0 0.0
    %3943 = vmatprep.subr.mxu0 0.0
    %3944 = vmatpush1.xpose.msra.mxu0 0.0
    %3945 = vmatprep.subr.mxu0 0.0
    %3946 = vmatpush1.xpose.msra.mxu0 0.0
    %3947 = vmatprep.subr.mxu0 0.0
    %3948 = vmatpush1.xpose.msra.mxu0 0.0
    %3949 = vmatprep.subr.mxu0 0.0
    %3950 = vmatpush1.xpose.msra.mxu0 0.0
    %3951 = vmatprep.subr.mxu0 0.0
    %3952 = vmatpush1.xpose.msra.mxu0 0.0
    %3953 = vmatprep.subr.mxu0 0.0
    %3954 = vmatpush1.xpose.msra.mxu0 0.0
    %3955 = vmatprep.subr.mxu0 0.0
    %3956 = vmatpush1.xpose.msra.mxu0 0.0
    %3957 = vmatprep.subr.mxu0 0.0
    %3958 = vmatpush1.xpose.msra.mxu0 0.0
    %3959 = vmatprep.subr.mxu0 0.0
    %3960 = vmatpush1.xpose.msra.mxu0 0.0
    %3961 = vmatprep.subr.mxu0 0.0
    %3962 = vmatpush1.xpose.msra.mxu0 0.0
    %3963 = vmatprep.subr.mxu0 0.0
    %3964 = vmatpush1.xpose.msra.mxu0 0.0
    %3965 = vmatprep.subr.mxu0 0.0
    %3966 = vmatpush1.xpose.msra.mxu0 0.0
    %3967 = vmatprep.subr.mxu0 0.0
    %3968 = vmatpush1.xpose.msra.mxu0 0.0
    %3969 = vmatprep.subr.mxu0 0.0
    %3970 = vmatpush1.xpose.msra.mxu0 0.0
    %3971 = vmatprep.subr.mxu0 0.0
    %3972 = vmatpush1.xpose.msra.mxu0 0.0
    %3973 = vmatprep.subr.mxu0 0.0
    %3974 = vmatpush1.xpose.msra.mxu0 0.0
    %3975 = vmatprep.mubr.f32.mxu0 0.0
    %3976 = vmatmul.mubr.f32.gmra.mrb[0].mxu0 %v3903
    %v3977 = vpop.f32.mrb[0].mxu0
    %v3978 = vadd.f32 %v356, %v3977
    %v3979 = vpop.f32.mrb[0].mxu0
    %3980 = vmatprep.mubr.f32.mxu0 0.0
    %3981 = vmatmul.mubr.f32.gmra.mrb[0].mxu0 %v3905
    %v3982 = vpop.f32.mrb[0].mxu0
    %v3983 = vadd.f32 %v357, %v3982
    %v3984 = vpop.f32.mrb[0].mxu0
    %3985 = vdwg.mxu0
    %v3986 = vsel %vm625, %v3978, -inf
    %3987 = vmax.xlane.f32.xlu0 %v3986
    %v3988 = vpop.xlane.xlu0 %3987
    %v3989 = vsel %vm625, %v3983, -inf
    %3990 = vmax.xlane.f32.xlu0 %v3989
    %v3991 = vpop.xlane.xlu0 %3990
    %v3992 = vsub.f32 %v3978, %v3988
    %v3993 = vsub.f32 %v3983, %v3991
    %v3994 = vmul.f32 %v3992, 1.442695
    %v3995 = vpow.pop %v3994
    %v3996 = vmul.f32 %v3993, 1.442695
    %v3997 = vpow.pop %v3996
    %v3998 = vsel %vm625, %v3995, 0.0
    %3999 = vadd.xlane.f32.xlu0 %v3998
    %v4000 = vpop.xlane.xlu0 %3999
    %v4001 = vsel %vm625, %v3997, 0.0
    %4002 = vadd.xlane.f32.xlu0 %v4001
    %v4003 = vpop.xlane.xlu0 %4002
    %v4004 = vrcp.pop %v4000
    %v4005 = vrcp.pop %v4003
    %v4006 = vmul.f32 %v3995, %v4004
    %v4007 = vmul.f32 %v3997, %v4005
    %4008 = vrot.lane.b32.xlu0 %v3689, 56
    %v4009 = vpop.permute.xlu0 %4008
    %4010 = vrot.lane.b32.xlu0 %v3694, 56
    %v4011 = vpop.permute.xlu0 %4010
    %v4015 = vsel %vm625, %v4006, 0
    %v4018 = vsel %vm625, %v4007, 0
    %4020 = vmatprep.subr.mxu0 0.0
    %4021 = vmatpush1.msra.mxu0 %v4009
    %4022 = vmatprep.subr.mxu0 0.0
    %4023 = vmatpush1.msra.mxu0 %v4011
    %4024 = vmatprep.subr.mxu0 0.0
    %4025 = vmatpush1.msra.mxu0 0.0
    %4026 = vmatprep.subr.mxu0 0.0
    %4027 = vmatpush1.msra.mxu0 0.0
    %4028 = vmatprep.subr.mxu0 0.0
    %4029 = vmatpush1.msra.mxu0 0.0
    %4030 = vmatprep.subr.mxu0 0.0
    %4031 = vmatpush1.msra.mxu0 0.0
    %4032 = vmatprep.subr.mxu0 0.0
    %4033 = vmatpush1.msra.mxu0 0.0
    %4034 = vmatprep.subr.mxu0 0.0
    %4035 = vmatpush1.msra.mxu0 0.0
    %4036 = vmatprep.subr.mxu0 0.0
    %4037 = vmatpush1.msra.mxu0 0.0
    %4038 = vmatprep.subr.mxu0 0.0
    %4039 = vmatpush1.msra.mxu0 0.0
    %4040 = vmatprep.subr.mxu0 0.0
    %4041 = vmatpush1.msra.mxu0 0.0
    %4042 = vmatprep.subr.mxu0 0.0
    %4043 = vmatpush1.msra.mxu0 0.0
    %4044 = vmatprep.subr.mxu0 0.0
    %4045 = vmatpush1.msra.mxu0 0.0
    %4046 = vmatprep.subr.mxu0 0.0
    %4047 = vmatpush1.msra.mxu0 0.0
    %4048 = vmatprep.subr.mxu0 0.0
    %4049 = vmatpush1.msra.mxu0 0.0
    %4050 = vmatprep.subr.mxu0 0.0
    %4051 = vmatpush1.msra.mxu0 0.0
    %4052 = vmatprep.subr.mxu0 0.0
    %4053 = vmatpush1.msra.mxu0 0.0
    %4054 = vmatprep.subr.mxu0 0.0
    %4055 = vmatpush1.msra.mxu0 0.0
    %4056 = vmatprep.subr.mxu0 0.0
    %4057 = vmatpush1.msra.mxu0 0.0
    %4058 = vmatprep.subr.mxu0 0.0
    %4059 = vmatpush1.msra.mxu0 0.0
    %4060 = vmatprep.subr.mxu0 0.0
    %4061 = vmatpush1.msra.mxu0 0.0
    %4062 = vmatprep.subr.mxu0 0.0
    %4063 = vmatpush1.msra.mxu0 0.0
    %4064 = vmatprep.subr.mxu0 0.0
    %4065 = vmatpush1.msra.mxu0 0.0
    %4066 = vmatprep.subr.mxu0 0.0
    %4067 = vmatpush1.msra.mxu0 0.0
    %4068 = vmatprep.subr.mxu0 0.0
    %4069 = vmatpush1.msra.mxu0 0.0
    %4070 = vmatprep.subr.mxu0 0.0
    %4071 = vmatpush1.msra.mxu0 0.0
    %4072 = vmatprep.subr.mxu0 0.0
    %4073 = vmatpush1.msra.mxu0 0.0
    %4074 = vmatprep.subr.mxu0 0.0
    %4075 = vmatpush1.msra.mxu0 0.0
    %4076 = vmatprep.subr.mxu0 0.0
    %4077 = vmatpush1.msra.mxu0 0.0
    %4078 = vmatprep.subr.mxu0 0.0
    %4079 = vmatpush1.msra.mxu0 0.0
    %4080 = vmatprep.subr.mxu0 0.0
    %4081 = vmatpush1.msra.mxu0 0.0
    %4082 = vmatprep.subr.mxu0 0.0
    %4083 = vmatpush1.msra.mxu0 0.0
    %4084 = vmatprep.mubr.f32.mxu0 0.0
    %4085 = vmatmul.mubr.f32.gmra.mrb[0].mxu0 %v4015
    %v4086 = vpop.f32.mrb[0].mxu0
    %v4087 = vadd.f32 0.0, %v4086
    %v4088 = vpop.f32.mrb[0].mxu0
    %4089 = vmatprep.mubr.f32.mxu0 0.0
    %4090 = vmatmul.mubr.f32.gmra.mrb[0].mxu0 %v4018
    %v4091 = vpop.f32.mrb[0].mxu0
    %v4092 = vadd.f32 0.0, %v4091
    %v4093 = vpop.f32.mrb[0].mxu0
    %4094 = vdwg.mxu0
    %v4096 = vsel %vm541, %v4087, 0
    %v4099 = vsel %vm541, %v4092, 0
    %4101 = vmatprep.subr.mxu0 0.0
    %4102 = vmatpush1.msra.mxu0 %v3517
    %4103 = vmatprep.subr.mxu0 0.0
    %4104 = vmatpush1.msra.mxu0 0.0
    %4105 = vmatprep.subr.mxu0 0.0
    %4106 = vmatpush1.msra.mxu0 0.0
    %4107 = vmatprep.subr.mxu0 0.0
    %4108 = vmatpush1.msra.mxu0 0.0
    %4109 = vmatprep.subr.mxu0 0.0
    %4110 = vmatpush1.msra.mxu0 0.0
    %4111 = vmatprep.subr.mxu0 0.0
    %4112 = vmatpush1.msra.mxu0 0.0
    %4113 = vmatprep.subr.mxu0 0.0
    %4114 = vmatpush1.msra.mxu0 0.0
    %4115 = vmatprep.subr.mxu0 0.0
    %4116 = vmatpush1.msra.mxu0 0.0
    %4117 = vmatprep.subr.mxu0 0.0
    %4118 = vmatpush1.msra.mxu0 0.0
    %4119 = vmatprep.subr.mxu0 0.0
    %4120 = vmatpush1.msra.mxu0 0.0
    %4121 = vmatprep.subr.mxu0 0.0
    %4122 = vmatpush1.msra.mxu0 0.0
    %4123 = vmatprep.subr.mxu0 0.0
    %4124 = vmatpush1.msra.mxu0 0.0
    %4125 = vmatprep.subr.mxu0 0.0
    %4126 = vmatpush1.msra.mxu0 0.0
    %4127 = vmatprep.subr.mxu0 0.0
    %4128 = vmatpush1.msra.mxu0 0.0
    %4129 = vmatprep.subr.mxu0 0.0
    %4130 = vmatpush1.msra.mxu0 0.0
    %4131 = vmatprep.subr.mxu0 0.0
    %4132 = vmatpush1.msra.mxu0 0.0
    %4133 = vmatprep.subr.mxu0 0.0
    %4134 = vmatpush1.msra.mxu0 0.0
    %4135 = vmatprep.subr.mxu0 0.0
    %4136 = vmatpush1.msra.mxu0 0.0
    %4137 = vmatprep.subr.mxu0 0.0
    %4138 = vmatpush1.msra.mxu0 0.0
    %4139 = vmatprep.subr.mxu0 0.0
    %4140 = vmatpush1.msra.mxu0 0.0
    %4141 = vmatprep.subr.mxu0 0.0
    %4142 = vmatpush1.msra.mxu0 0.0
    %4143 = vmatprep.subr.mxu0 0.0
    %4144 = vmatpush1.msra.mxu0 0.0
    %4145 = vmatprep.subr.mxu0 0.0
    %4146 = vmatpush1.msra.mxu0 0.0
    %4147 = vmatprep.subr.mxu0 0.0
    %4148 = vmatpush1.msra.mxu0 0.0
    %4149 = vmatprep.subr.mxu0 0.0
    %4150 = vmatpush1.msra.mxu0 0.0
    %4151 = vmatprep.subr.mxu0 0.0
    %4152 = vmatpush1.msra.mxu0 0.0
    %4153 = vmatprep.subr.mxu0 0.0
    %4154 = vmatpush1.msra.mxu0 0.0
    %4155 = vmatprep.subr.mxu0 0.0
    %4156 = vmatpush1.msra.mxu0 0.0
    %4157 = vmatprep.subr.mxu0 0.0
    %4158 = vmatpush1.msra.mxu0 0.0
    %4159 = vmatprep.subr.mxu0 0.0
    %4160 = vmatpush1.msra.mxu0 0.0
    %4161 = vmatprep.subr.mxu0 0.0
    %4162 = vmatpush1.msra.mxu0 0.0
    %4163 = vmatprep.subr.mxu0 0.0
    %4164 = vmatpush1.msra.mxu0 0.0
    %4165 = vmatprep.mubr.f32.mxu0 0.0
    %4166 = vmatmul.mubr.f32.gmra.mrb[0].mxu0 %v4096
    %v4167 = vpop.f32.mrb[0].mxu0
    %v4168 = vadd.f32 0.0, %v4167
    %v4169 = vpop.f32.mrb[0].mxu0
    %4170 = vmatprep.mubr.f32.mxu0 0.0
    %4171 = vmatmul.mubr.f32.gmra.mrb[0].mxu0 %v4099
    %v4172 = vpop.f32.mrb[0].mxu0
    %v4173 = vadd.f32 0.0, %v4172
    %v4174 = vpop.f32.mrb[0].mxu0
    %4175 = vdwg.mxu0
    %v4177 = vsel %vm541, %v3887, 0
    %v4180 = vsel %vm541, %v3892, 0
    %4182 = vmatprep.subr.mxu0 0.0
    %4183 = vmatpush1.msra.mxu0 %v3516
    %4184 = vmatprep.subr.mxu0 0.0
    %4185 = vmatpush1.msra.mxu0 0.0
    %4186 = vmatprep.subr.mxu0 0.0
    %4187 = vmatpush1.msra.mxu0 0.0
    %4188 = vmatprep.subr.mxu0 0.0
    %4189 = vmatpush1.msra.mxu0 0.0
    %4190 = vmatprep.subr.mxu0 0.0
    %4191 = vmatpush1.msra.mxu0 0.0
    %4192 = vmatprep.subr.mxu0 0.0
    %4193 = vmatpush1.msra.mxu0 0.0
    %4194 = vmatprep.subr.mxu0 0.0
    %4195 = vmatpush1.msra.mxu0 0.0
    %4196 = vmatprep.subr.mxu0 0.0
    %4197 = vmatpush1.msra.mxu0 0.0
    %4198 = vmatprep.subr.mxu0 0.0
    %4199 = vmatpush1.msra.mxu0 0.0
    %4200 = vmatprep.subr.mxu0 0.0
    %4201 = vmatpush1.msra.mxu0 0.0
    %4202 = vmatprep.subr.mxu0 0.0
    %4203 = vmatpush1.msra.mxu0 0.0
    %4204 = vmatprep.subr.mxu0 0.0
    %4205 = vmatpush1.msra.mxu0 0.0
    %4206 = vmatprep.subr.mxu0 0.0
    %4207 = vmatpush1.msra.mxu0 0.0
    %4208 = vmatprep.subr.mxu0 0.0
    %4209 = vmatpush1.msra.mxu0 0.0
    %4210 = vmatprep.subr.mxu0 0.0
    %4211 = vmatpush1.msra.mxu0 0.0
    %4212 = vmatprep.subr.mxu0 0.0
    %4213 = vmatpush1.msra.mxu0 0.0
    %4214 = vmatprep.subr.mxu0 0.0
    %4215 = vmatpush1.msra.mxu0 0.0
    %4216 = vmatprep.subr.mxu0 0.0
    %4217 = vmatpush1.msra.mxu0 0.0
    %4218 = vmatprep.subr.mxu0 0.0
    %4219 = vmatpush1.msra.mxu0 0.0
    %4220 = vmatprep.subr.mxu0 0.0
    %4221 = vmatpush1.msra.mxu0 0.0
    %4222 = vmatprep.subr.mxu0 0.0
    %4223 = vmatpush1.msra.mxu0 0.0
    %4224 = vmatprep.subr.mxu0 0.0
    %4225 = vmatpush1.msra.mxu0 0.0
    %4226 = vmatprep.subr.mxu0 0.0
    %4227 = vmatpush1.msra.mxu0 0.0
    %4228 = vmatprep.subr.mxu0 0.0
    %4229 = vmatpush1.msra.mxu0 0.0
    %4230 = vmatprep.subr.mxu0 0.0
    %4231 = vmatpush1.msra.mxu0 0.0
    %4232 = vmatprep.subr.mxu0 0.0
    %4233 = vmatpush1.msra.mxu0 0.0
    %4234 = vmatprep.subr.mxu0 0.0
    %4235 = vmatpush1.msra.mxu0 0.0
    %4236 = vmatprep.subr.mxu0 0.0
    %4237 = vmatpush1.msra.mxu0 0.0
    %4238 = vmatprep.subr.mxu0 0.0
    %4239 = vmatpush1.msra.mxu0 0.0
    %4240 = vmatprep.subr.mxu0 0.0
    %4241 = vmatpush1.msra.mxu0 0.0
    %4242 = vmatprep.subr.mxu0 0.0
    %4243 = vmatpush1.msra.mxu0 0.0
    %4244 = vmatprep.subr.mxu0 0.0
    %4245 = vmatpush1.msra.mxu0 0.0
    %4246 = vmatprep.mubr.f32.mxu0 0.0
    %4247 = vmatmul.mubr.f32.gmra.mrb[0].mxu0 %v4177
    %v4248 = vpop.f32.mrb[0].mxu0
    %v4249 = vadd.f32 %v4168, %v4248
    %v4250 = vpop.f32.mrb[0].mxu0
    %4251 = vmatprep.mubr.f32.mxu0 0.0
    %4252 = vmatmul.mubr.f32.gmra.mrb[0].mxu0 %v4180
    %v4253 = vpop.f32.mrb[0].mxu0
    %v4254 = vadd.f32 %v4173, %v4253
    %v4255 = vpop.f32.mrb[0].mxu0
    %4256 = vdwg.mxu0
    %4257 = vrot.lane.b32.xlu0 %v3689, 112
    %v4258 = vpop.permute.xlu0 %4257
    %4259 = vrot.lane.b32.xlu0 %v3694, 112
    %v4260 = vpop.permute.xlu0 %4259
    %4261 = vrot.lane.b32.xlu0 %v3689, 80
    %v4262 = vpop.permute.xlu0 %4261
    %4263 = vrot.lane.b32.xlu0 %v3694, 80
    %v4264 = vpop.permute.xlu0 %4263
    %v4265 = vsel %vm541, %v4258, 0
    %v4267 = vsel %vm541, %v4260, 0
    %v4269 = vsel %vm541, %v4262, 0
    %v4271 = vsel %vm541, %v4264, 0
    %4273 = vmatprep.subr.mxu0 0.0
    %4274 = vmatpush1.xpose.msra.mxu0 %v4269
    %4275 = vmatprep.subr.mxu0 0.0
    %4276 = vmatpush1.xpose.msra.mxu0 %v4271
    %4277 = vmatprep.subr.mxu0 0.0
    %4278 = vmatpush1.xpose.msra.mxu0 0.0
    %4279 = vmatprep.subr.mxu0 0.0
    %4280 = vmatpush1.xpose.msra.mxu0 0.0
    %4281 = vmatprep.subr.mxu0 0.0
    %4282 = vmatpush1.xpose.msra.mxu0 0.0
    %4283 = vmatprep.subr.mxu0 0.0
    %4284 = vmatpush1.xpose.msra.mxu0 0.0
    %4285 = vmatprep.subr.mxu0 0.0
    %4286 = vmatpush1.xpose.msra.mxu0 0.0
    %4287 = vmatprep.subr.mxu0 0.0
    %4288 = vmatpush1.xpose.msra.mxu0 0.0
    %4289 = vmatprep.subr.mxu0 0.0
    %4290 = vmatpush1.xpose.msra.mxu0 0.0
    %4291 = vmatprep.subr.mxu0 0.0
    %4292 = vmatpush1.xpose.msra.mxu0 0.0
    %4293 = vmatprep.subr.mxu0 0.0
    %4294 = vmatpush1.xpose.msra.mxu0 0.0
    %4295 = vmatprep.subr.mxu0 0.0
    %4296 = vmatpush1.xpose.msra.mxu0 0.0
    %4297 = vmatprep.subr.mxu0 0.0
    %4298 = vmatpush1.xpose.msra.mxu0 0.0
    %4299 = vmatprep.subr.mxu0 0.0
    %4300 = vmatpush1.xpose.msra.mxu0 0.0
    %4301 = vmatprep.subr.mxu0 0.0
    %4302 = vmatpush1.xpose.msra.mxu0 0.0
    %4303 = vmatprep.subr.mxu0 0.0
    %4304 = vmatpush1.xpose.msra.mxu0 0.0
    %4305 = vmatprep.subr.mxu0 0.0
    %4306 = vmatpush1.xpose.msra.mxu0 0.0
    %4307 = vmatprep.subr.mxu0 0.0
    %4308 = vmatpush1.xpose.msra.mxu0 0.0
    %4309 = vmatprep.subr.mxu0 0.0
    %4310 = vmatpush1.xpose.msra.mxu0 0.0
    %4311 = vmatprep.subr.mxu0 0.0
    %4312 = vmatpush1.xpose.msra.mxu0 0.0
    %4313 = vmatprep.subr.mxu0 0.0
    %4314 = vmatpush1.xpose.msra.mxu0 0.0
    %4315 = vmatprep.subr.mxu0 0.0
    %4316 = vmatpush1.xpose.msra.mxu0 0.0
    %4317 = vmatprep.subr.mxu0 0.0
    %4318 = vmatpush1.xpose.msra.mxu0 0.0
    %4319 = vmatprep.subr.mxu0 0.0
    %4320 = vmatpush1.xpose.msra.mxu0 0.0
    %4321 = vmatprep.subr.mxu0 0.0
    %4322 = vmatpush1.xpose.msra.mxu0 0.0
    %4323 = vmatprep.subr.mxu0 0.0
    %4324 = vmatpush1.xpose.msra.mxu0 0.0
    %4325 = vmatprep.subr.mxu0 0.0
    %4326 = vmatpush1.xpose.msra.mxu0 0.0
    %4327 = vmatprep.subr.mxu0 0.0
    %4328 = vmatpush1.xpose.msra.mxu0 0.0
    %4329 = vmatprep.subr.mxu0 0.0
    %4330 = vmatpush1.xpose.msra.mxu0 0.0
    %4331 = vmatprep.subr.mxu0 0.0
    %4332 = vmatpush1.xpose.msra.mxu0 0.0
    %4333 = vmatprep.subr.mxu0 0.0
    %4334 = vmatpush1.xpose.msra.mxu0 0.0
    %4335 = vmatprep.subr.mxu0 0.0
    %4336 = vmatpush1.xpose.msra.mxu0 0.0
    %4337 = vmatprep.mubr.f32.mxu0 0.0
    %4338 = vmatmul.mubr.f32.gmra.mrb[0].mxu0 %v4265
    %v4339 = vpop.f32.mrb[0].mxu0
    %v4340 = vadd.f32 %v356, %v4339
    %v4341 = vpop.f32.mrb[0].mxu0
    %4342 = vmatprep.mubr.f32.mxu0 0.0
    %4343 = vmatmul.mubr.f32.gmra.mrb[0].mxu0 %v4267
    %v4344 = vpop.f32.mrb[0].mxu0
    %v4345 = vadd.f32 %v357, %v4344
    %v4346 = vpop.f32.mrb[0].mxu0
    %4347 = vdwg.mxu0
    %v4348 = vsel %vm625, %v4340, -inf
    %4349 = vmax.xlane.f32.xlu0 %v4348
    %v4350 = vpop.xlane.xlu0 %4349
    %v4351 = vsel %vm625, %v4345, -inf
    %4352 = vmax.xlane.f32.xlu0 %v4351
    %v4353 = vpop.xlane.xlu0 %4352
    %v4354 = vsub.f32 %v4340, %v4350
    %v4355 = vsub.f32 %v4345, %v4353
    %v4356 = vmul.f32 %v4354, 1.442695
    %v4357 = vpow.pop %v4356
    %v4358 = vmul.f32 %v4355, 1.442695
    %v4359 = vpow.pop %v4358
    %v4360 = vsel %vm625, %v4357, 0.0
    %4361 = vadd.xlane.f32.xlu0 %v4360
    %v4362 = vpop.xlane.xlu0 %4361
    %v4363 = vsel %vm625, %v4359, 0.0
    %4364 = vadd.xlane.f32.xlu0 %v4363
    %v4365 = vpop.xlane.xlu0 %4364
    %v4366 = vrcp.pop %v4362
    %v4367 = vrcp.pop %v4365
    %v4368 = vmul.f32 %v4357, %v4366
    %v4369 = vmul.f32 %v4359, %v4367
    %4370 = vrot.lane.b32.xlu0 %v3689, 48
    %v4371 = vpop.permute.xlu0 %4370
    %4372 = vrot.lane.b32.xlu0 %v3694, 48
    %v4373 = vpop.permute.xlu0 %4372
    %v4377 = vsel %vm625, %v4368, 0
    %v4380 = vsel %vm625, %v4369, 0
    %4382 = vmatprep.subr.mxu0 0.0
    %4383 = vmatpush1.msra.mxu0 %v4371
    %4384 = vmatprep.subr.mxu0 0.0
    %4385 = vmatpush1.msra.mxu0 %v4373
    %4386 = vmatprep.subr.mxu0 0.0
    %4387 = vmatpush1.msra.mxu0 0.0
    %4388 = vmatprep.subr.mxu0 0.0
    %4389 = vmatpush1.msra.mxu0 0.0
    %4390 = vmatprep.subr.mxu0 0.0
    %4391 = vmatpush1.msra.mxu0 0.0
    %4392 = vmatprep.subr.mxu0 0.0
    %4393 = vmatpush1.msra.mxu0 0.0
    %4394 = vmatprep.subr.mxu0 0.0
    %4395 = vmatpush1.msra.mxu0 0.0
    %4396 = vmatprep.subr.mxu0 0.0
    %4397 = vmatpush1.msra.mxu0 0.0
    %4398 = vmatprep.subr.mxu0 0.0
    %4399 = vmatpush1.msra.mxu0 0.0
    %4400 = vmatprep.subr.mxu0 0.0
    %4401 = vmatpush1.msra.mxu0 0.0
    %4402 = vmatprep.subr.mxu0 0.0
    %4403 = vmatpush1.msra.mxu0 0.0
    %4404 = vmatprep.subr.mxu0 0.0
    %4405 = vmatpush1.msra.mxu0 0.0
    %4406 = vmatprep.subr.mxu0 0.0
    %4407 = vmatpush1.msra.mxu0 0.0
    %4408 = vmatprep.subr.mxu0 0.0
    %4409 = vmatpush1.msra.mxu0 0.0
    %4410 = vmatprep.subr.mxu0 0.0
    %4411 = vmatpush1.msra.mxu0 0.0
    %4412 = vmatprep.subr.mxu0 0.0
    %4413 = vmatpush1.msra.mxu0 0.0
    %4414 = vmatprep.subr.mxu0 0.0
    %4415 = vmatpush1.msra.mxu0 0.0
    %4416 = vmatprep.subr.mxu0 0.0
    %4417 = vmatpush1.msra.mxu0 0.0
    %4418 = vmatprep.subr.mxu0 0.0
    %4419 = vmatpush1.msra.mxu0 0.0
    %4420 = vmatprep.subr.mxu0 0.0
    %4421 = vmatpush1.msra.mxu0 0.0
    %4422 = vmatprep.subr.mxu0 0.0
    %4423 = vmatpush1.msra.mxu0 0.0
    %4424 = vmatprep.subr.mxu0 0.0
    %4425 = vmatpush1.msra.mxu0 0.0
    %4426 = vmatprep.subr.mxu0 0.0
    %4427 = vmatpush1.msra.mxu0 0.0
    %4428 = vmatprep.subr.mxu0 0.0
    %4429 = vmatpush1.msra.mxu0 0.0
    %4430 = vmatprep.subr.mxu0 0.0
    %4431 = vmatpush1.msra.mxu0 0.0
    %4432 = vmatprep.subr.mxu0 0.0
    %4433 = vmatpush1.msra.mxu0 0.0
    %4434 = vmatprep.subr.mxu0 0.0
    %4435 = vmatpush1.msra.mxu0 0.0
    %4436 = vmatprep.subr.mxu0 0.0
    %4437 = vmatpush1.msra.mxu0 0.0
    %4438 = vmatprep.subr.mxu0 0.0
    %4439 = vmatpush1.msra.mxu0 0.0
    %4440 = vmatprep.subr.mxu0 0.0
    %4441 = vmatpush1.msra.mxu0 0.0
    %4442 = vmatprep.subr.mxu0 0.0
    %4443 = vmatpush1.msra.mxu0 0.0
    %4444 = vmatprep.subr.mxu0 0.0
    %4445 = vmatpush1.msra.mxu0 0.0
    %4446 = vmatprep.mubr.f32.mxu0 0.0
    %4447 = vmatmul.mubr.f32.gmra.mrb[0].mxu0 %v4377
    %v4448 = vpop.f32.mrb[0].mxu0
    %v4449 = vadd.f32 0.0, %v4448
    %v4450 = vpop.f32.mrb[0].mxu0
    %4451 = vmatprep.mubr.f32.mxu0 0.0
    %4452 = vmatmul.mubr.f32.gmra.mrb[0].mxu0 %v4380
    %v4453 = vpop.f32.mrb[0].mxu0
    %v4454 = vadd.f32 0.0, %v4453
    %v4455 = vpop.f32.mrb[0].mxu0
    %4456 = vdwg.mxu0
    %v4458 = vsel %vm541, %v4449, 0
    %v4461 = vsel %vm541, %v4454, 0
    %4463 = vmatprep.subr.mxu0 0.0
    %4464 = vmatpush1.msra.mxu0 %v3518
    %4465 = vmatprep.subr.mxu0 0.0
    %4466 = vmatpush1.msra.mxu0 0.0
    %4467 = vmatprep.subr.mxu0 0.0
    %4468 = vmatpush1.msra.mxu0 0.0
    %4469 = vmatprep.subr.mxu0 0.0
    %4470 = vmatpush1.msra.mxu0 0.0
    %4471 = vmatprep.subr.mxu0 0.0
    %4472 = vmatpush1.msra.mxu0 0.0
    %4473 = vmatprep.subr.mxu0 0.0
    %4474 = vmatpush1.msra.mxu0 0.0
    %4475 = vmatprep.subr.mxu0 0.0
    %4476 = vmatpush1.msra.mxu0 0.0
    %4477 = vmatprep.subr.mxu0 0.0
    %4478 = vmatpush1.msra.mxu0 0.0
    %4479 = vmatprep.subr.mxu0 0.0
    %4480 = vmatpush1.msra.mxu0 0.0
    %4481 = vmatprep.subr.mxu0 0.0
    %4482 = vmatpush1.msra.mxu0 0.0
    %4483 = vmatprep.subr.mxu0 0.0
    %4484 = vmatpush1.msra.mxu0 0.0
    %4485 = vmatprep.subr.mxu0 0.0
    %4486 = vmatpush1.msra.mxu0 0.0
    %4487 = vmatprep.subr.mxu0 0.0
    %4488 = vmatpush1.msra.mxu0 0.0
    %4489 = vmatprep.subr.mxu0 0.0
    %4490 = vmatpush1.msra.mxu0 0.0
    %4491 = vmatprep.subr.mxu0 0.0
    %4492 = vmatpush1.msra.mxu0 0.0
    %4493 = vmatprep.subr.mxu0 0.0
    %4494 = vmatpush1.msra.mxu0 0.0
    %4495 = vmatprep.subr.mxu0 0.0
    %4496 = vmatpush1.msra.mxu0 0.0
    %4497 = vmatprep.subr.mxu0 0.0
    %4498 = vmatpush1.msra.mxu0 0.0
    %4499 = vmatprep.subr.mxu0 0.0
    %4500 = vmatpush1.msra.mxu0 0.0
    %4501 = vmatprep.subr.mxu0 0.0
    %4502 = vmatpush1.msra.mxu0 0.0
    %4503 = vmatprep.subr.mxu0 0.0
    %4504 = vmatpush1.msra.mxu0 0.0
    %4505 = vmatprep.subr.mxu0 0.0
    %4506 = vmatpush1.msra.mxu0 0.0
    %4507 = vmatprep.subr.mxu0 0.0
    %4508 = vmatpush1.msra.mxu0 0.0
    %4509 = vmatprep.subr.mxu0 0.0
    %4510 = vmatpush1.msra.mxu0 0.0
    %4511 = vmatprep.subr.mxu0 0.0
    %4512 = vmatpush1.msra.mxu0 0.0
    %4513 = vmatprep.subr.mxu0 0.0
    %4514 = vmatpush1.msra.mxu0 0.0
    %4515 = vmatprep.subr.mxu0 0.0
    %4516 = vmatpush1.msra.mxu0 0.0
    %4517 = vmatprep.subr.mxu0 0.0
    %4518 = vmatpush1.msra.mxu0 0.0
    %4519 = vmatprep.subr.mxu0 0.0
    %4520 = vmatpush1.msra.mxu0 0.0
    %4521 = vmatprep.subr.mxu0 0.0
    %4522 = vmatpush1.msra.mxu0 0.0
    %4523 = vmatprep.subr.mxu0 0.0
    %4524 = vmatpush1.msra.mxu0 0.0
    %4525 = vmatprep.subr.mxu0 0.0
    %4526 = vmatpush1.msra.mxu0 0.0
    %4527 = vmatprep.mubr.f32.mxu0 0.0
    %4528 = vmatmul.mubr.f32.gmra.mrb[0].mxu0 %v4458
    %v4529 = vpop.f32.mrb[0].mxu0
    %v4530 = vadd.f32 0.0, %v4529
    %v4531 = vpop.f32.mrb[0].mxu0
    %4532 = vmatprep.mubr.f32.mxu0 0.0
    %4533 = vmatmul.mubr.f32.gmra.mrb[0].mxu0 %v4461
    %v4534 = vpop.f32.mrb[0].mxu0
    %v4535 = vadd.f32 0.0, %v4534
    %v4536 = vpop.f32.mrb[0].mxu0
    %4537 = vdwg.mxu0
    %v4538 = vadd.f32 %v4249, %v4530
    %v4539 = vadd.f32 %v4254, %v4535
    %4540 = vrot.lane.b32.xlu0 %v3689, 104
    %v4541 = vpop.permute.xlu0 %4540
    %4542 = vrot.lane.b32.xlu0 %v3694, 104
    %v4543 = vpop.permute.xlu0 %4542
    %4544 = vrot.lane.b32.xlu0 %v3689, 72
    %v4545 = vpop.permute.xlu0 %4544
    %4546 = vrot.lane.b32.xlu0 %v3694, 72
    %v4547 = vpop.permute.xlu0 %4546
    %v4548 = vsel %vm541, %v4541, 0
    %v4550 = vsel %vm541, %v4543, 0
    %v4552 = vsel %vm541, %v4545, 0
    %v4554 = vsel %vm541, %v4547, 0
    %4556 = vmatprep.subr.mxu0 0.0
    %4557 = vmatpush1.xpose.msra.mxu0 %v4552
    %4558 = vmatprep.subr.mxu0 0.0
    %4559 = vmatpush1.xpose.msra.mxu0 %v4554
    %4560 = vmatprep.subr.mxu0 0.0
    %4561 = vmatpush1.xpose.msra.mxu0 0.0
    %4562 = vmatprep.subr.mxu0 0.0
    %4563 = vmatpush1.xpose.msra.mxu0 0.0
    %4564 = vmatprep.subr.mxu0 0.0
    %4565 = vmatpush1.xpose.msra.mxu0 0.0
    %4566 = vmatprep.subr.mxu0 0.0
    %4567 = vmatpush1.xpose.msra.mxu0 0.0
    %4568 = vmatprep.subr.mxu0 0.0
    %4569 = vmatpush1.xpose.msra.mxu0 0.0
    %4570 = vmatprep.subr.mxu0 0.0
    %4571 = vmatpush1.xpose.msra.mxu0 0.0
    %4572 = vmatprep.subr.mxu0 0.0
    %4573 = vmatpush1.xpose.msra.mxu0 0.0
    %4574 = vmatprep.subr.mxu0 0.0
    %4575 = vmatpush1.xpose.msra.mxu0 0.0
    %4576 = vmatprep.subr.mxu0 0.0
    %4577 = vmatpush1.xpose.msra.mxu0 0.0
    %4578 = vmatprep.subr.mxu0 0.0
    %4579 = vmatpush1.xpose.msra.mxu0 0.0
    %4580 = vmatprep.subr.mxu0 0.0
    %4581 = vmatpush1.xpose.msra.mxu0 0.0
    %4582 = vmatprep.subr.mxu0 0.0
    %4583 = vmatpush1.xpose.msra.mxu0 0.0
    %4584 = vmatprep.subr.mxu0 0.0
    %4585 = vmatpush1.xpose.msra.mxu0 0.0
    %4586 = vmatprep.subr.mxu0 0.0
    %4587 = vmatpush1.xpose.msra.mxu0 0.0
    %4588 = vmatprep.subr.mxu0 0.0
    %4589 = vmatpush1.xpose.msra.mxu0 0.0
    %4590 = vmatprep.subr.mxu0 0.0
    %4591 = vmatpush1.xpose.msra.mxu0 0.0
    %4592 = vmatprep.subr.mxu0 0.0
    %4593 = vmatpush1.xpose.msra.mxu0 0.0
    %4594 = vmatprep.subr.mxu0 0.0
    %4595 = vmatpush1.xpose.msra.mxu0 0.0
    %4596 = vmatprep.subr.mxu0 0.0
    %4597 = vmatpush1.xpose.msra.mxu0 0.0
    %4598 = vmatprep.subr.mxu0 0.0
    %4599 = vmatpush1.xpose.msra.mxu0 0.0
    %4600 = vmatprep.subr.mxu0 0.0
    %4601 = vmatpush1.xpose.msra.mxu0 0.0
    %4602 = vmatprep.subr.mxu0 0.0
    %4603 = vmatpush1.xpose.msra.mxu0 0.0
    %4604 = vmatprep.subr.mxu0 0.0
    %4605 = vmatpush1.xpose.msra.mxu0 0.0
    %4606 = vmatprep.subr.mxu0 0.0
    %4607 = vmatpush1.xpose.msra.mxu0 0.0
    %4608 = vmatprep.subr.mxu0 0.0
    %4609 = vmatpush1.xpose.msra.mxu0 0.0
    %4610 = vmatprep.subr.mxu0 0.0
    %4611 = vmatpush1.xpose.msra.mxu0 0.0
    %4612 = vmatprep.subr.mxu0 0.0
    %4613 = vmatpush1.xpose.msra.mxu0 0.0
    %4614 = vmatprep.subr.mxu0 0.0
    %4615 = vmatpush1.xpose.msra.mxu0 0.0
    %4616 = vmatprep.subr.mxu0 0.0
    %4617 = vmatpush1.xpose.msra.mxu0 0.0
    %4618 = vmatprep.subr.mxu0 0.0
    %4619 = vmatpush1.xpose.msra.mxu0 0.0
    %4620 = vmatprep.mubr.f32.mxu0 0.0
    %4621 = vmatmul.mubr.f32.gmra.mrb[0].mxu0 %v4548
    %v4622 = vpop.f32.mrb[0].mxu0
    %v4623 = vadd.f32 %v356, %v4622
    %v4624 = vpop.f32.mrb[0].mxu0
    %4625 = vmatprep.mubr.f32.mxu0 0.0
    %4626 = vmatmul.mubr.f32.gmra.mrb[0].mxu0 %v4550
    %v4627 = vpop.f32.mrb[0].mxu0
    %v4628 = vadd.f32 %v357, %v4627
    %v4629 = vpop.f32.mrb[0].mxu0
    %4630 = vdwg.mxu0
    %v4631 = vsel %vm625, %v4623, -inf
    %4632 = vmax.xlane.f32.xlu0 %v4631
    %v4633 = vpop.xlane.xlu0 %4632
    %v4634 = vsel %vm625, %v4628, -inf
    %4635 = vmax.xlane.f32.xlu0 %v4634
    %v4636 = vpop.xlane.xlu0 %4635
    %v4637 = vsub.f32 %v4623, %v4633
    %v4638 = vsub.f32 %v4628, %v4636
    %v4639 = vmul.f32 %v4637, 1.442695
    %v4640 = vpow.pop %v4639
    %v4641 = vmul.f32 %v4638, 1.442695
    %v4642 = vpow.pop %v4641
    %v4643 = vsel %vm625, %v4640, 0.0
    %4644 = vadd.xlane.f32.xlu0 %v4643
    %v4645 = vpop.xlane.xlu0 %4644
    %v4646 = vsel %vm625, %v4642, 0.0
    %4647 = vadd.xlane.f32.xlu0 %v4646
    %v4648 = vpop.xlane.xlu0 %4647
    %v4649 = vrcp.pop %v4645
    %v4650 = vrcp.pop %v4648
    %v4651 = vmul.f32 %v4640, %v4649
    %v4652 = vmul.f32 %v4642, %v4650
    %4653 = vrot.lane.b32.xlu0 %v3689, 40
    %v4654 = vpop.permute.xlu0 %4653
    %4655 = vrot.lane.b32.xlu0 %v3694, 40
    %v4656 = vpop.permute.xlu0 %4655
    %v4660 = vsel %vm625, %v4651, 0
    %v4663 = vsel %vm625, %v4652, 0
    %4665 = vmatprep.subr.mxu0 0.0
    %4666 = vmatpush1.msra.mxu0 %v4654
    %4667 = vmatprep.subr.mxu0 0.0
    %4668 = vmatpush1.msra.mxu0 %v4656
    %4669 = vmatprep.subr.mxu0 0.0
    %4670 = vmatpush1.msra.mxu0 0.0
    %4671 = vmatprep.subr.mxu0 0.0
    %4672 = vmatpush1.msra.mxu0 0.0
    %4673 = vmatprep.subr.mxu0 0.0
    %4674 = vmatpush1.msra.mxu0 0.0
    %4675 = vmatprep.subr.mxu0 0.0
    %4676 = vmatpush1.msra.mxu0 0.0
    %4677 = vmatprep.subr.mxu0 0.0
    %4678 = vmatpush1.msra.mxu0 0.0
    %4679 = vmatprep.subr.mxu0 0.0
    %4680 = vmatpush1.msra.mxu0 0.0
    %4681 = vmatprep.subr.mxu0 0.0
    %4682 = vmatpush1.msra.mxu0 0.0
    %4683 = vmatprep.subr.mxu0 0.0
    %4684 = vmatpush1.msra.mxu0 0.0
    %4685 = vmatprep.subr.mxu0 0.0
    %4686 = vmatpush1.msra.mxu0 0.0
    %4687 = vmatprep.subr.mxu0 0.0
    %4688 = vmatpush1.msra.mxu0 0.0
    %4689 = vmatprep.subr.mxu0 0.0
    %4690 = vmatpush1.msra.mxu0 0.0
    %4691 = vmatprep.subr.mxu0 0.0
    %4692 = vmatpush1.msra.mxu0 0.0
    %4693 = vmatprep.subr.mxu0 0.0
    %4694 = vmatpush1.msra.mxu0 0.0
    %4695 = vmatprep.subr.mxu0 0.0
    %4696 = vmatpush1.msra.mxu0 0.0
    %4697 = vmatprep.subr.mxu0 0.0
    %4698 = vmatpush1.msra.mxu0 0.0
    %4699 = vmatprep.subr.mxu0 0.0
    %4700 = vmatpush1.msra.mxu0 0.0
    %4701 = vmatprep.subr.mxu0 0.0
    %4702 = vmatpush1.msra.mxu0 0.0
    %4703 = vmatprep.subr.mxu0 0.0
    %4704 = vmatpush1.msra.mxu0 0.0
    %4705 = vmatprep.subr.mxu0 0.0
    %4706 = vmatpush1.msra.mxu0 0.0
    %4707 = vmatprep.subr.mxu0 0.0
    %4708 = vmatpush1.msra.mxu0 0.0
    %4709 = vmatprep.subr.mxu0 0.0
    %4710 = vmatpush1.msra.mxu0 0.0
    %4711 = vmatprep.subr.mxu0 0.0
    %4712 = vmatpush1.msra.mxu0 0.0
    %4713 = vmatprep.subr.mxu0 0.0
    %4714 = vmatpush1.msra.mxu0 0.0
    %4715 = vmatprep.subr.mxu0 0.0
    %4716 = vmatpush1.msra.mxu0 0.0
    %4717 = vmatprep.subr.mxu0 0.0
    %4718 = vmatpush1.msra.mxu0 0.0
    %4719 = vmatprep.subr.mxu0 0.0
    %4720 = vmatpush1.msra.mxu0 0.0
    %4721 = vmatprep.subr.mxu0 0.0
    %4722 = vmatpush1.msra.mxu0 0.0
    %4723 = vmatprep.subr.mxu0 0.0
    %4724 = vmatpush1.msra.mxu0 0.0
    %4725 = vmatprep.subr.mxu0 0.0
    %4726 = vmatpush1.msra.mxu0 0.0
    %4727 = vmatprep.subr.mxu0 0.0
    %4728 = vmatpush1.msra.mxu0 0.0
    %4729 = vmatprep.mubr.f32.mxu0 0.0
    %4730 = vmatmul.mubr.f32.gmra.mrb[0].mxu0 %v4660
    %v4731 = vpop.f32.mrb[0].mxu0
    %v4732 = vadd.f32 0.0, %v4731
    %v4733 = vpop.f32.mrb[0].mxu0
    %4734 = vmatprep.mubr.f32.mxu0 0.0
    %4735 = vmatmul.mubr.f32.gmra.mrb[0].mxu0 %v4663
    %v4736 = vpop.f32.mrb[0].mxu0
    %v4737 = vadd.f32 0.0, %v4736
    %v4738 = vpop.f32.mrb[0].mxu0
    %4739 = vdwg.mxu0
    %v4741 = vsel %vm541, %v4732, 0
    %v4744 = vsel %vm541, %v4737, 0
    %4746 = vmatprep.subr.mxu0 0.0
    %4747 = vmatpush1.msra.mxu0 %v3519
    %4748 = vmatprep.subr.mxu0 0.0
    %4749 = vmatpush1.msra.mxu0 0.0
    %4750 = vmatprep.subr.mxu0 0.0
    %4751 = vmatpush1.msra.mxu0 0.0
    %4752 = vmatprep.subr.mxu0 0.0
    %4753 = vmatpush1.msra.mxu0 0.0
    %4754 = vmatprep.subr.mxu0 0.0
    %4755 = vmatpush1.msra.mxu0 0.0
    %4756 = vmatprep.subr.mxu0 0.0
    %4757 = vmatpush1.msra.mxu0 0.0
    %4758 = vmatprep.subr.mxu0 0.0
    %4759 = vmatpush1.msra.mxu0 0.0
    %4760 = vmatprep.subr.mxu0 0.0
    %4761 = vmatpush1.msra.mxu0 0.0
    %4762 = vmatprep.subr.mxu0 0.0
    %4763 = vmatpush1.msra.mxu0 0.0
    %4764 = vmatprep.subr.mxu0 0.0
    %4765 = vmatpush1.msra.mxu0 0.0
    %4766 = vmatprep.subr.mxu0 0.0
    %4767 = vmatpush1.msra.mxu0 0.0
    %4768 = vmatprep.subr.mxu0 0.0
    %4769 = vmatpush1.msra.mxu0 0.0
    %4770 = vmatprep.subr.mxu0 0.0
    %4771 = vmatpush1.msra.mxu0 0.0
    %4772 = vmatprep.subr.mxu0 0.0
    %4773 = vmatpush1.msra.mxu0 0.0
    %4774 = vmatprep.subr.mxu0 0.0
    %4775 = vmatpush1.msra.mxu0 0.0
    %4776 = vmatprep.subr.mxu0 0.0
    %4777 = vmatpush1.msra.mxu0 0.0
    %4778 = vmatprep.subr.mxu0 0.0
    %4779 = vmatpush1.msra.mxu0 0.0
    %4780 = vmatprep.subr.mxu0 0.0
    %4781 = vmatpush1.msra.mxu0 0.0
    %4782 = vmatprep.subr.mxu0 0.0
    %4783 = vmatpush1.msra.mxu0 0.0
    %4784 = vmatprep.subr.mxu0 0.0
    %4785 = vmatpush1.msra.mxu0 0.0
    %4786 = vmatprep.subr.mxu0 0.0
    %4787 = vmatpush1.msra.mxu0 0.0
    %4788 = vmatprep.subr.mxu0 0.0
    %4789 = vmatpush1.msra.mxu0 0.0
    %4790 = vmatprep.subr.mxu0 0.0
    %4791 = vmatpush1.msra.mxu0 0.0
    %4792 = vmatprep.subr.mxu0 0.0
    %4793 = vmatpush1.msra.mxu0 0.0
    %4794 = vmatprep.subr.mxu0 0.0
    %4795 = vmatpush1.msra.mxu0 0.0
    %4796 = vmatprep.subr.mxu0 0.0
    %4797 = vmatpush1.msra.mxu0 0.0
    %4798 = vmatprep.subr.mxu0 0.0
    %4799 = vmatpush1.msra.mxu0 0.0
    %4800 = vmatprep.subr.mxu0 0.0
    %4801 = vmatpush1.msra.mxu0 0.0
    %4802 = vmatprep.subr.mxu0 0.0
    %4803 = vmatpush1.msra.mxu0 0.0
    %4804 = vmatprep.subr.mxu0 0.0
    %4805 = vmatpush1.msra.mxu0 0.0
    %4806 = vmatprep.subr.mxu0 0.0
    %4807 = vmatpush1.msra.mxu0 0.0
    %4808 = vmatprep.subr.mxu0 0.0
    %4809 = vmatpush1.msra.mxu0 0.0
    %4810 = vmatprep.mubr.f32.mxu0 0.0
    %4811 = vmatmul.mubr.f32.gmra.mrb[0].mxu0 %v4741
    %v4812 = vpop.f32.mrb[0].mxu0
    %v4813 = vadd.f32 0.0, %v4812
    %v4814 = vpop.f32.mrb[0].mxu0
    %4815 = vmatprep.mubr.f32.mxu0 0.0
    %4816 = vmatmul.mubr.f32.gmra.mrb[0].mxu0 %v4744
    %v4817 = vpop.f32.mrb[0].mxu0
    %v4818 = vadd.f32 0.0, %v4817
    %v4819 = vpop.f32.mrb[0].mxu0
    %4820 = vdwg.mxu0
    %v4821 = vadd.f32 %v4538, %v4813
    %v4822 = vadd.f32 %v4539, %v4818
    %v4824 = vlaneseq
    %v4825 = vshrl.u32 %v4824, 7
    %v4826 = vsub.s32 0, %v4825
    %v4827 = vrot.slane %v3520, %v4826
    %v4829 = vadd.f32 %v4821, %v4827
    %v4830 = vadd.f32 %v4822, %v4827
    %v4831 = vadd.f32 %v3507, %v4829
    %v4832 = vadd.f32 %v3508, %v4830
    %v4833 = vsel %vm390, %v4831, 0.0
    %4834 = vadd.xlane.f32.xlu0 %v4833
    %v4835 = vpop.xlane.xlu0 %4834
    %v4836 = vsel %vm390, %v4832, 0.0
    %4837 = vadd.xlane.f32.xlu0 %v4836
    %v4838 = vpop.xlane.xlu0 %4837
    %v4839 = vmul.f32 %v4835, %v397
    %v4840 = vmul.f32 %v4838, %v397
    %v4841 = vsub.f32 %v4831, %v4839
    %v4842 = vsub.f32 %v4832, %v4840
    %v4843 = vmul.f32 %v4841, %v4841
    %v4844 = vmul.f32 %v4842, %v4842
    %v4845 = vsel %vm390, %v4843, 0.0
    %4846 = vadd.xlane.f32.xlu0 %v4845
    %v4847 = vpop.xlane.xlu0 %4846
    %v4848 = vsel %vm390, %v4844, 0.0
    %4849 = vadd.xlane.f32.xlu0 %v4848
    %v4850 = vpop.xlane.xlu0 %4849
    %v4851 = vmul.f32 %v4847, 0.032258064
    %v4852 = vmul.f32 %v4850, 0.032258064
    %v4853 = vrsqrt.pop %v4851
    %v4854 = vmul.f32 %v4851, %v4853
    %vm4855 = vcmp.eq.f32.partialorder %v4851, inf
    %v4856 = vsel %vm4855, %v4851, %v4854
    %vm4857 = vcmp.eq.f32.partialorder %v4851, 0.0
    %v4858 = vand.u32 %v4851, 2147483648
    %v4859 = vsel %vm4857, %v4858, %v4856
    %v4860 = vrsqrt.pop %v4852
    %v4861 = vmul.f32 %v4852, %v4860
    %vm4862 = vcmp.eq.f32.partialorder %v4852, inf
    %v4863 = vsel %vm4862, %v4852, %v4861
    %vm4864 = vcmp.eq.f32.partialorder %v4852, 0.0
    %v4865 = vand.u32 %v4852, 2147483648
    %v4866 = vsel %vm4864, %v4865, %v4863
    %v4867 = vadd.f32 %v4859, 1e-06
    %v4868 = vadd.f32 %v4866, 1e-06
    %v4869 = vrcp.pop %v4867
    %v4870 = vrcp.pop %v4868
    %v4872 = vlaneseq
    %v4873 = vshrl.u32 %v4872, 7
    %v4874 = vsub.s32 0, %v4873
    %v4875 = vrot.slane %v3521, %v4874
    %v4877 = vmul.f32 %v4875, %v4841
    %v4878 = vmul.f32 %v4875, %v4842
    %v4879 = vmul.f32 %v4877, %v4869
    %v4880 = vmul.f32 %v4878, %v4870
    %v4882 = vlaneseq
    %v4883 = vshrl.u32 %v4882, 7
    %v4884 = vsub.s32 0, %v4883
    %v4885 = vrot.slane %v3522, %v4884
    %v4887 = vadd.f32 %v4879, %v4885
    %v4888 = vadd.f32 %v4880, %v4885
    %v4890 = vlaneseq
    %v4891 = vshrl.u32 %v4890, 7
    %v4892 = vsub.s32 0, %v4891
    %v4893 = vrot.slane %v3527, %v4892
    %v4896 = vsel %vm390, %v4887, 0
    %v4899 = vsel %vm390, %v4888, 0
    %4901 = vmatprep.subr.mxu0 0.0
    %4902 = vmatpush1.msra.mxu0 %v3523
    %4903 = vmatprep.subr.mxu0 0.0
    %4904 = vmatpush1.msra.mxu0 %v3524
    %4905 = vmatprep.subr.mxu0 0.0
    %4906 = vmatpush1.msra.mxu0 %v3525
    %4907 = vmatprep.subr.mxu0 0.0
    %4908 = vmatpush1.msra.mxu0 %v3526
    %4909 = vmatprep.subr.mxu0 0.0
    %4910 = vmatpush1.msra.mxu0 0.0
    %4911 = vmatprep.subr.mxu0 0.0
    %4912 = vmatpush1.msra.mxu0 0.0
    %4913 = vmatprep.subr.mxu0 0.0
    %4914 = vmatpush1.msra.mxu0 0.0
    %4915 = vmatprep.subr.mxu0 0.0
    %4916 = vmatpush1.msra.mxu0 0.0
    %4917 = vmatprep.subr.mxu0 0.0
    %4918 = vmatpush1.msra.mxu0 0.0
    %4919 = vmatprep.subr.mxu0 0.0
    %4920 = vmatpush1.msra.mxu0 0.0
    %4921 = vmatprep.subr.mxu0 0.0
    %4922 = vmatpush1.msra.mxu0 0.0
    %4923 = vmatprep.subr.mxu0 0.0
    %4924 = vmatpush1.msra.mxu0 0.0
    %4925 = vmatprep.subr.mxu0 0.0
    %4926 = vmatpush1.msra.mxu0 0.0
    %4927 = vmatprep.subr.mxu0 0.0
    %4928 = vmatpush1.msra.mxu0 0.0
    %4929 = vmatprep.subr.mxu0 0.0
    %4930 = vmatpush1.msra.mxu0 0.0
    %4931 = vmatprep.subr.mxu0 0.0
    %4932 = vmatpush1.msra.mxu0 0.0
    %4933 = vmatprep.subr.mxu0 0.0
    %4934 = vmatpush1.msra.mxu0 0.0
    %4935 = vmatprep.subr.mxu0 0.0
    %4936 = vmatpush1.msra.mxu0 0.0
    %4937 = vmatprep.subr.mxu0 0.0
    %4938 = vmatpush1.msra.mxu0 0.0
    %4939 = vmatprep.subr.mxu0 0.0
    %4940 = vmatpush1.msra.mxu0 0.0
    %4941 = vmatprep.subr.mxu0 0.0
    %4942 = vmatpush1.msra.mxu0 0.0
    %4943 = vmatprep.subr.mxu0 0.0
    %4944 = vmatpush1.msra.mxu0 0.0
    %4945 = vmatprep.subr.mxu0 0.0
    %4946 = vmatpush1.msra.mxu0 0.0
    %4947 = vmatprep.subr.mxu0 0.0
    %4948 = vmatpush1.msra.mxu0 0.0
    %4949 = vmatprep.subr.mxu0 0.0
    %4950 = vmatpush1.msra.mxu0 0.0
    %4951 = vmatprep.subr.mxu0 0.0
    %4952 = vmatpush1.msra.mxu0 0.0
    %4953 = vmatprep.subr.mxu0 0.0
    %4954 = vmatpush1.msra.mxu0 0.0
    %4955 = vmatprep.subr.mxu0 0.0
    %4956 = vmatpush1.msra.mxu0 0.0
    %4957 = vmatprep.subr.mxu0 0.0
    %4958 = vmatpush1.msra.mxu0 0.0
    %4959 = vmatprep.subr.mxu0 0.0
    %4960 = vmatpush1.msra.mxu0 0.0
    %4961 = vmatprep.subr.mxu0 0.0
    %4962 = vmatpush1.msra.mxu0 0.0
    %4963 = vmatprep.subr.mxu0 0.0
    %4964 = vmatpush1.msra.mxu0 0.0
    %4965 = vmatprep.mubr.f32.mxu0 0.0
    %4966 = vmatmul.mubr.f32.gmra.mrb[0].mxu0 %v4896
    %v4967 = vpop.f32.mrb[0].mxu0
    %v4968 = vadd.f32 %v4893, %v4967
    %v4969 = vpop.f32.mrb[0].mxu0
    %4970 = vmatprep.mubr.f32.mxu0 0.0
    %4971 = vmatmul.mubr.f32.gmra.mrb[0].mxu0 %v4899
    %v4972 = vpop.f32.mrb[0].mxu0
    %v4973 = vadd.f32 %v4893, %v4972
    %v4974 = vpop.f32.mrb[0].mxu0
    %4975 = vdwg.mxu0
    %v4977 = vlaneseq
    %v4978 = vshrl.u32 %v4977, 7
    %v4979 = vsub.s32 0, %v4978
    %v4980 = vrot.slane %v3532, %v4979
    %v4983 = vsel %vm390, %v3505, 0
    %v4986 = vsel %vm390, %v3506, 0
    %4988 = vmatprep.subr.mxu0 0.0
    %4989 = vmatpush1.msra.mxu0 %v3528
    %4990 = vmatprep.subr.mxu0 0.0
    %4991 = vmatpush1.msra.mxu0 %v3529
    %4992 = vmatprep.subr.mxu0 0.0
    %4993 = vmatpush1.msra.mxu0 %v3530
    %4994 = vmatprep.subr.mxu0 0.0
    %4995 = vmatpush1.msra.mxu0 %v3531
    %4996 = vmatprep.subr.mxu0 0.0
    %4997 = vmatpush1.msra.mxu0 0.0
    %4998 = vmatprep.subr.mxu0 0.0
    %4999 = vmatpush1.msra.mxu0 0.0
    %5000 = vmatprep.subr.mxu0 0.0
    %5001 = vmatpush1.msra.mxu0 0.0
    %5002 = vmatprep.subr.mxu0 0.0
    %5003 = vmatpush1.msra.mxu0 0.0
    %5004 = vmatprep.subr.mxu0 0.0
    %5005 = vmatpush1.msra.mxu0 0.0
    %5006 = vmatprep.subr.mxu0 0.0
    %5007 = vmatpush1.msra.mxu0 0.0
    %5008 = vmatprep.subr.mxu0 0.0
    %5009 = vmatpush1.msra.mxu0 0.0
    %5010 = vmatprep.subr.mxu0 0.0
    %5011 = vmatpush1.msra.mxu0 0.0
    %5012 = vmatprep.subr.mxu0 0.0
    %5013 = vmatpush1.msra.mxu0 0.0
    %5014 = vmatprep.subr.mxu0 0.0
    %5015 = vmatpush1.msra.mxu0 0.0
    %5016 = vmatprep.subr.mxu0 0.0
    %5017 = vmatpush1.msra.mxu0 0.0
    %5018 = vmatprep.subr.mxu0 0.0
    %5019 = vmatpush1.msra.mxu0 0.0
    %5020 = vmatprep.subr.mxu0 0.0
    %5021 = vmatpush1.msra.mxu0 0.0
    %5022 = vmatprep.subr.mxu0 0.0
    %5023 = vmatpush1.msra.mxu0 0.0
    %5024 = vmatprep.subr.mxu0 0.0
    %5025 = vmatpush1.msra.mxu0 0.0
    %5026 = vmatprep.subr.mxu0 0.0
    %5027 = vmatpush1.msra.mxu0 0.0
    %5028 = vmatprep.subr.mxu0 0.0
    %5029 = vmatpush1.msra.mxu0 0.0
    %5030 = vmatprep.subr.mxu0 0.0
    %5031 = vmatpush1.msra.mxu0 0.0
    %5032 = vmatprep.subr.mxu0 0.0
    %5033 = vmatpush1.msra.mxu0 0.0
    %5034 = vmatprep.subr.mxu0 0.0
    %5035 = vmatpush1.msra.mxu0 0.0
    %5036 = vmatprep.subr.mxu0 0.0
    %5037 = vmatpush1.msra.mxu0 0.0
    %5038 = vmatprep.subr.mxu0 0.0
    %5039 = vmatpush1.msra.mxu0 0.0
    %5040 = vmatprep.subr.mxu0 0.0
    %5041 = vmatpush1.msra.mxu0 0.0
    %5042 = vmatprep.subr.mxu0 0.0
    %5043 = vmatpush1.msra.mxu0 0.0
    %5044 = vmatprep.subr.mxu0 0.0
    %5045 = vmatpush1.msra.mxu0 0.0
    %5046 = vmatprep.subr.mxu0 0.0
    %5047 = vmatpush1.msra.mxu0 0.0
    %5048 = vmatprep.subr.mxu0 0.0
    %5049 = vmatpush1.msra.mxu0 0.0
    %5050 = vmatprep.subr.mxu0 0.0
    %5051 = vmatpush1.msra.mxu0 0.0
    %5052 = vmatprep.mubr.f32.mxu0 0.0
    %5053 = vmatmul.mubr.f32.gmra.mrb[0].mxu0 %v4983
    %v5054 = vpop.f32.mrb[0].mxu0
    %v5055 = vadd.f32 %v4980, %v5054
    %v5056 = vpop.f32.mrb[0].mxu0
    %5057 = vmatprep.mubr.f32.mxu0 0.0
    %5058 = vmatmul.mubr.f32.gmra.mrb[0].mxu0 %v4986
    %v5059 = vpop.f32.mrb[0].mxu0
    %v5060 = vadd.f32 %v4980, %v5059
    %v5061 = vpop.f32.mrb[0].mxu0
    %5062 = vdwg.mxu0
    %v5064 = vsel %vm541, %v4968, 0
    %v5067 = vsel %vm541, %v4973, 0
    %v5070 = vsel %vm541, %v5055, 0
    %v5073 = vsel %vm541, %v5060, 0
    %5075 = vmatprep.subr.mxu0 0.0
    %5076 = vmatpush1.xpose.msra.mxu0 %v5070
    %5077 = vmatprep.subr.mxu0 0.0
    %5078 = vmatpush1.xpose.msra.mxu0 %v5073
    %5079 = vmatprep.subr.mxu0 0.0
    %5080 = vmatpush1.xpose.msra.mxu0 0.0
    %5081 = vmatprep.subr.mxu0 0.0
    %5082 = vmatpush1.xpose.msra.mxu0 0.0
    %5083 = vmatprep.subr.mxu0 0.0
    %5084 = vmatpush1.xpose.msra.mxu0 0.0
    %5085 = vmatprep.subr.mxu0 0.0
    %5086 = vmatpush1.xpose.msra.mxu0 0.0
    %5087 = vmatprep.subr.mxu0 0.0
    %5088 = vmatpush1.xpose.msra.mxu0 0.0
    %5089 = vmatprep.subr.mxu0 0.0
    %5090 = vmatpush1.xpose.msra.mxu0 0.0
    %5091 = vmatprep.subr.mxu0 0.0
    %5092 = vmatpush1.xpose.msra.mxu0 0.0
    %5093 = vmatprep.subr.mxu0 0.0
    %5094 = vmatpush1.xpose.msra.mxu0 0.0
    %5095 = vmatprep.subr.mxu0 0.0
    %5096 = vmatpush1.xpose.msra.mxu0 0.0
    %5097 = vmatprep.subr.mxu0 0.0
    %5098 = vmatpush1.xpose.msra.mxu0 0.0
    %5099 = vmatprep.subr.mxu0 0.0
    %5100 = vmatpush1.xpose.msra.mxu0 0.0
    %5101 = vmatprep.subr.mxu0 0.0
    %5102 = vmatpush1.xpose.msra.mxu0 0.0
    %5103 = vmatprep.subr.mxu0 0.0
    %5104 = vmatpush1.xpose.msra.mxu0 0.0
    %5105 = vmatprep.subr.mxu0 0.0
    %5106 = vmatpush1.xpose.msra.mxu0 0.0
    %5107 = vmatprep.subr.mxu0 0.0
    %5108 = vmatpush1.xpose.msra.mxu0 0.0
    %5109 = vmatprep.subr.mxu0 0.0
    %5110 = vmatpush1.xpose.msra.mxu0 0.0
    %5111 = vmatprep.subr.mxu0 0.0
    %5112 = vmatpush1.xpose.msra.mxu0 0.0
    %5113 = vmatprep.subr.mxu0 0.0
    %5114 = vmatpush1.xpose.msra.mxu0 0.0
    %5115 = vmatprep.subr.mxu0 0.0
    %5116 = vmatpush1.xpose.msra.mxu0 0.0
    %5117 = vmatprep.subr.mxu0 0.0
    %5118 = vmatpush1.xpose.msra.mxu0 0.0
    %5119 = vmatprep.subr.mxu0 0.0
    %5120 = vmatpush1.xpose.msra.mxu0 0.0
    %5121 = vmatprep.subr.mxu0 0.0
    %5122 = vmatpush1.xpose.msra.mxu0 0.0
    %5123 = vmatprep.subr.mxu0 0.0
    %5124 = vmatpush1.xpose.msra.mxu0 0.0
    %5125 = vmatprep.subr.mxu0 0.0
    %5126 = vmatpush1.xpose.msra.mxu0 0.0
    %5127 = vmatprep.subr.mxu0 0.0
    %5128 = vmatpush1.xpose.msra.mxu0 0.0
    %5129 = vmatprep.subr.mxu0 0.0
    %5130 = vmatpush1.xpose.msra.mxu0 0.0
    %5131 = vmatprep.subr.mxu0 0.0
    %5132 = vmatpush1.xpose.msra.mxu0 0.0
    %5133 = vmatprep.subr.mxu0 0.0
    %5134 = vmatpush1.xpose.msra.mxu0 0.0
    %5135 = vmatprep.subr.mxu0 0.0
    %5136 = vmatpush1.xpose.msra.mxu0 0.0
    %5137 = vmatprep.subr.mxu0 0.0
    %5138 = vmatpush1.xpose.msra.mxu0 0.0
    %5139 = vmatprep.mubr.f32.mxu0 0.0
    %5140 = vmatmul.mubr.f32.gmra.mrb[0].mxu0 %v5064
    %v5141 = vpop.f32.mrb[0].mxu0
    %v5142 = vadd.f32 %v358, %v5141
    %v5143 = vpop.f32.mrb[0].mxu0
    %5144 = vmatprep.mubr.f32.mxu0 0.0
    %5145 = vmatmul.mubr.f32.gmra.mrb[0].mxu0 %v5067
    %v5146 = vpop.f32.mrb[0].mxu0
    %v5147 = vadd.f32 %v359, %v5146
    %v5148 = vpop.f32.mrb[0].mxu0
    %5149 = vdwg.mxu0
    %v5150 = vsel %vm625, %v5142, -inf
    %5151 = vmax.xlane.f32.xlu0 %v5150
    %v5152 = vpop.xlane.xlu0 %5151
    %v5153 = vsel %vm625, %v5147, -inf
    %5154 = vmax.xlane.f32.xlu0 %v5153
    %v5155 = vpop.xlane.xlu0 %5154
    %v5156 = vsub.f32 %v5142, %v5152
    %v5157 = vsub.f32 %v5147, %v5155
    %v5158 = vmul.f32 %v5156, 1.442695
    %v5159 = vpow.pop %v5158
    %v5160 = vmul.f32 %v5157, 1.442695
    %v5161 = vpow.pop %v5160
    %v5162 = vsel %vm625, %v5159, 0.0
    %5163 = vadd.xlane.f32.xlu0 %v5162
    %v5164 = vpop.xlane.xlu0 %5163
    %v5165 = vsel %vm625, %v5161, 0.0
    %5166 = vadd.xlane.f32.xlu0 %v5165
    %v5167 = vpop.xlane.xlu0 %5166
    %v5168 = vrcp.pop %v5164
    %v5169 = vrcp.pop %v5167
    %v5170 = vmul.f32 %v5159, %v5168
    %v5171 = vmul.f32 %v5161, %v5169
    %5172 = vrot.lane.b32.xlu0 %v5055, 96
    %v5173 = vpop.permute.xlu0 %5172
    %5174 = vrot.lane.b32.xlu0 %v5060, 96
    %v5175 = vpop.permute.xlu0 %5174
    %v5179 = vsel %vm625, %v5170, 0
    %v5182 = vsel %vm625, %v5171, 0
    %5184 = vmatprep.subr.mxu0 0.0
    %5185 = vmatpush1.msra.mxu0 %v5173
    %5186 = vmatprep.subr.mxu0 0.0
    %5187 = vmatpush1.msra.mxu0 %v5175
    %5188 = vmatprep.subr.mxu0 0.0
    %5189 = vmatpush1.msra.mxu0 0.0
    %5190 = vmatprep.subr.mxu0 0.0
    %5191 = vmatpush1.msra.mxu0 0.0
    %5192 = vmatprep.subr.mxu0 0.0
    %5193 = vmatpush1.msra.mxu0 0.0
    %5194 = vmatprep.subr.mxu0 0.0
    %5195 = vmatpush1.msra.mxu0 0.0
    %5196 = vmatprep.subr.mxu0 0.0
    %5197 = vmatpush1.msra.mxu0 0.0
    %5198 = vmatprep.subr.mxu0 0.0
    %5199 = vmatpush1.msra.mxu0 0.0
    %5200 = vmatprep.subr.mxu0 0.0
    %5201 = vmatpush1.msra.mxu0 0.0
    %5202 = vmatprep.subr.mxu0 0.0
    %5203 = vmatpush1.msra.mxu0 0.0
    %5204 = vmatprep.subr.mxu0 0.0
    %5205 = vmatpush1.msra.mxu0 0.0
    %5206 = vmatprep.subr.mxu0 0.0
    %5207 = vmatpush1.msra.mxu0 0.0
    %5208 = vmatprep.subr.mxu0 0.0
    %5209 = vmatpush1.msra.mxu0 0.0
    %5210 = vmatprep.subr.mxu0 0.0
    %5211 = vmatpush1.msra.mxu0 0.0
    %5212 = vmatprep.subr.mxu0 0.0
    %5213 = vmatpush1.msra.mxu0 0.0
    %5214 = vmatprep.subr.mxu0 0.0
    %5215 = vmatpush1.msra.mxu0 0.0
    %5216 = vmatprep.subr.mxu0 0.0
    %5217 = vmatpush1.msra.mxu0 0.0
    %5218 = vmatprep.subr.mxu0 0.0
    %5219 = vmatpush1.msra.mxu0 0.0
    %5220 = vmatprep.subr.mxu0 0.0
    %5221 = vmatpush1.msra.mxu0 0.0
    %5222 = vmatprep.subr.mxu0 0.0
    %5223 = vmatpush1.msra.mxu0 0.0
    %5224 = vmatprep.subr.mxu0 0.0
    %5225 = vmatpush1.msra.mxu0 0.0
    %5226 = vmatprep.subr.mxu0 0.0
    %5227 = vmatpush1.msra.mxu0 0.0
    %5228 = vmatprep.subr.mxu0 0.0
    %5229 = vmatpush1.msra.mxu0 0.0
    %5230 = vmatprep.subr.mxu0 0.0
    %5231 = vmatpush1.msra.mxu0 0.0
    %5232 = vmatprep.subr.mxu0 0.0
    %5233 = vmatpush1.msra.mxu0 0.0
    %5234 = vmatprep.subr.mxu0 0.0
    %5235 = vmatpush1.msra.mxu0 0.0
    %5236 = vmatprep.subr.mxu0 0.0
    %5237 = vmatpush1.msra.mxu0 0.0
    %5238 = vmatprep.subr.mxu0 0.0
    %5239 = vmatpush1.msra.mxu0 0.0
    %5240 = vmatprep.subr.mxu0 0.0
    %5241 = vmatpush1.msra.mxu0 0.0
    %5242 = vmatprep.subr.mxu0 0.0
    %5243 = vmatpush1.msra.mxu0 0.0
    %5244 = vmatprep.subr.mxu0 0.0
    %5245 = vmatpush1.msra.mxu0 0.0
    %5246 = vmatprep.subr.mxu0 0.0
    %5247 = vmatpush1.msra.mxu0 0.0
    %5248 = vmatprep.mubr.f32.mxu0 0.0
    %5249 = vmatmul.mubr.f32.gmra.mrb[0].mxu0 %v5179
    %v5250 = vpop.f32.mrb[0].mxu0
    %v5251 = vadd.f32 0.0, %v5250
    %v5252 = vpop.f32.mrb[0].mxu0
    %5253 = vmatprep.mubr.f32.mxu0 0.0
    %5254 = vmatmul.mubr.f32.gmra.mrb[0].mxu0 %v5182
    %v5255 = vpop.f32.mrb[0].mxu0
    %v5256 = vadd.f32 0.0, %v5255
    %v5257 = vpop.f32.mrb[0].mxu0
    %5258 = vdwg.mxu0
    %5259 = vrot.lane.b32.xlu0 %v4968, 120
    %v5260 = vpop.permute.xlu0 %5259
    %5261 = vrot.lane.b32.xlu0 %v4973, 120
    %v5262 = vpop.permute.xlu0 %5261
    %5263 = vrot.lane.b32.xlu0 %v5055, 120
    %v5264 = vpop.permute.xlu0 %5263
    %5265 = vrot.lane.b32.xlu0 %v5060, 120
    %v5266 = vpop.permute.xlu0 %5265
    %v5267 = vsel %vm541, %v5260, 0
    %v5269 = vsel %vm541, %v5262, 0
    %v5271 = vsel %vm541, %v5264, 0
    %v5273 = vsel %vm541, %v5266, 0
    %5275 = vmatprep.subr.mxu0 0.0
    %5276 = vmatpush1.xpose.msra.mxu0 %v5271
    %5277 = vmatprep.subr.mxu0 0.0
    %5278 = vmatpush1.xpose.msra.mxu0 %v5273
    %5279 = vmatprep.subr.mxu0 0.0
    %5280 = vmatpush1.xpose.msra.mxu0 0.0
    %5281 = vmatprep.subr.mxu0 0.0
    %5282 = vmatpush1.xpose.msra.mxu0 0.0
    %5283 = vmatprep.subr.mxu0 0.0
    %5284 = vmatpush1.xpose.msra.mxu0 0.0
    %5285 = vmatprep.subr.mxu0 0.0
    %5286 = vmatpush1.xpose.msra.mxu0 0.0
    %5287 = vmatprep.subr.mxu0 0.0
    %5288 = vmatpush1.xpose.msra.mxu0 0.0
    %5289 = vmatprep.subr.mxu0 0.0
    %5290 = vmatpush1.xpose.msra.mxu0 0.0
    %5291 = vmatprep.subr.mxu0 0.0
    %5292 = vmatpush1.xpose.msra.mxu0 0.0
    %5293 = vmatprep.subr.mxu0 0.0
    %5294 = vmatpush1.xpose.msra.mxu0 0.0
    %5295 = vmatprep.subr.mxu0 0.0
    %5296 = vmatpush1.xpose.msra.mxu0 0.0
    %5297 = vmatprep.subr.mxu0 0.0
    %5298 = vmatpush1.xpose.msra.mxu0 0.0
    %5299 = vmatprep.subr.mxu0 0.0
    %5300 = vmatpush1.xpose.msra.mxu0 0.0
    %5301 = vmatprep.subr.mxu0 0.0
    %5302 = vmatpush1.xpose.msra.mxu0 0.0
    %5303 = vmatprep.subr.mxu0 0.0
    %5304 = vmatpush1.xpose.msra.mxu0 0.0
    %5305 = vmatprep.subr.mxu0 0.0
    %5306 = vmatpush1.xpose.msra.mxu0 0.0
    %5307 = vmatprep.subr.mxu0 0.0
    %5308 = vmatpush1.xpose.msra.mxu0 0.0
    %5309 = vmatprep.subr.mxu0 0.0
    %5310 = vmatpush1.xpose.msra.mxu0 0.0
    %5311 = vmatprep.subr.mxu0 0.0
    %5312 = vmatpush1.xpose.msra.mxu0 0.0
    %5313 = vmatprep.subr.mxu0 0.0
    %5314 = vmatpush1.xpose.msra.mxu0 0.0
    %5315 = vmatprep.subr.mxu0 0.0
    %5316 = vmatpush1.xpose.msra.mxu0 0.0
    %5317 = vmatprep.subr.mxu0 0.0
    %5318 = vmatpush1.xpose.msra.mxu0 0.0
    %5319 = vmatprep.subr.mxu0 0.0
    %5320 = vmatpush1.xpose.msra.mxu0 0.0
    %5321 = vmatprep.subr.mxu0 0.0
    %5322 = vmatpush1.xpose.msra.mxu0 0.0
    %5323 = vmatprep.subr.mxu0 0.0
    %5324 = vmatpush1.xpose.msra.mxu0 0.0
    %5325 = vmatprep.subr.mxu0 0.0
    %5326 = vmatpush1.xpose.msra.mxu0 0.0
    %5327 = vmatprep.subr.mxu0 0.0
    %5328 = vmatpush1.xpose.msra.mxu0 0.0
    %5329 = vmatprep.subr.mxu0 0.0
    %5330 = vmatpush1.xpose.msra.mxu0 0.0
    %5331 = vmatprep.subr.mxu0 0.0
    %5332 = vmatpush1.xpose.msra.mxu0 0.0
    %5333 = vmatprep.subr.mxu0 0.0
    %5334 = vmatpush1.xpose.msra.mxu0 0.0
    %5335 = vmatprep.subr.mxu0 0.0
    %5336 = vmatpush1.xpose.msra.mxu0 0.0
    %5337 = vmatprep.subr.mxu0 0.0
    %5338 = vmatpush1.xpose.msra.mxu0 0.0
    %5339 = vmatprep.mubr.f32.mxu0 0.0
    %5340 = vmatmul.mubr.f32.gmra.mrb[0].mxu0 %v5267
    %v5341 = vpop.f32.mrb[0].mxu0
    %v5342 = vadd.f32 %v358, %v5341
    %v5343 = vpop.f32.mrb[0].mxu0
    %5344 = vmatprep.mubr.f32.mxu0 0.0
    %5345 = vmatmul.mubr.f32.gmra.mrb[0].mxu0 %v5269
    %v5346 = vpop.f32.mrb[0].mxu0
    %v5347 = vadd.f32 %v359, %v5346
    %v5348 = vpop.f32.mrb[0].mxu0
    %5349 = vdwg.mxu0
    %v5350 = vsel %vm625, %v5342, -inf
    %5351 = vmax.xlane.f32.xlu0 %v5350
    %v5352 = vpop.xlane.xlu0 %5351
    %v5353 = vsel %vm625, %v5347, -inf
    %5354 = vmax.xlane.f32.xlu0 %v5353
    %v5355 = vpop.xlane.xlu0 %5354
    %v5356 = vsub.f32 %v5342, %v5352
    %v5357 = vsub.f32 %v5347, %v5355
    %v5358 = vmul.f32 %v5356, 1.442695
    %v5359 = vpow.pop %v5358
    %v5360 = vmul.f32 %v5357, 1.442695
    %v5361 = vpow.pop %v5360
    %v5362 = vsel %vm625, %v5359, 0.0
    %5363 = vadd.xlane.f32.xlu0 %v5362
    %v5364 = vpop.xlane.xlu0 %5363
    %v5365 = vsel %vm625, %v5361, 0.0
    %5366 = vadd.xlane.f32.xlu0 %v5365
    %v5367 = vpop.xlane.xlu0 %5366
    %v5368 = vrcp.pop %v5364
    %v5369 = vrcp.pop %v5367
    %v5370 = vmul.f32 %v5359, %v5368
    %v5371 = vmul.f32 %v5361, %v5369
    %5372 = vrot.lane.b32.xlu0 %v5055, 88
    %v5373 = vpop.permute.xlu0 %5372
    %5374 = vrot.lane.b32.xlu0 %v5060, 88
    %v5375 = vpop.permute.xlu0 %5374
    %v5379 = vsel %vm625, %v5370, 0
    %v5382 = vsel %vm625, %v5371, 0
    %5384 = vmatprep.subr.mxu0 0.0
    %5385 = vmatpush1.msra.mxu0 %v5373
    %5386 = vmatprep.subr.mxu0 0.0
    %5387 = vmatpush1.msra.mxu0 %v5375
    %5388 = vmatprep.subr.mxu0 0.0
    %5389 = vmatpush1.msra.mxu0 0.0
    %5390 = vmatprep.subr.mxu0 0.0
    %5391 = vmatpush1.msra.mxu0 0.0
    %5392 = vmatprep.subr.mxu0 0.0
    %5393 = vmatpush1.msra.mxu0 0.0
    %5394 = vmatprep.subr.mxu0 0.0
    %5395 = vmatpush1.msra.mxu0 0.0
    %5396 = vmatprep.subr.mxu0 0.0
    %5397 = vmatpush1.msra.mxu0 0.0
    %5398 = vmatprep.subr.mxu0 0.0
    %5399 = vmatpush1.msra.mxu0 0.0
    %5400 = vmatprep.subr.mxu0 0.0
    %5401 = vmatpush1.msra.mxu0 0.0
    %5402 = vmatprep.subr.mxu0 0.0
    %5403 = vmatpush1.msra.mxu0 0.0
    %5404 = vmatprep.subr.mxu0 0.0
    %5405 = vmatpush1.msra.mxu0 0.0
    %5406 = vmatprep.subr.mxu0 0.0
    %5407 = vmatpush1.msra.mxu0 0.0
    %5408 = vmatprep.subr.mxu0 0.0
    %5409 = vmatpush1.msra.mxu0 0.0
    %5410 = vmatprep.subr.mxu0 0.0
    %5411 = vmatpush1.msra.mxu0 0.0
    %5412 = vmatprep.subr.mxu0 0.0
    %5413 = vmatpush1.msra.mxu0 0.0
    %5414 = vmatprep.subr.mxu0 0.0
    %5415 = vmatpush1.msra.mxu0 0.0
    %5416 = vmatprep.subr.mxu0 0.0
    %5417 = vmatpush1.msra.mxu0 0.0
    %5418 = vmatprep.subr.mxu0 0.0
    %5419 = vmatpush1.msra.mxu0 0.0
    %5420 = vmatprep.subr.mxu0 0.0
    %5421 = vmatpush1.msra.mxu0 0.0
    %5422 = vmatprep.subr.mxu0 0.0
    %5423 = vmatpush1.msra.mxu0 0.0
    %5424 = vmatprep.subr.mxu0 0.0
    %5425 = vmatpush1.msra.mxu0 0.0
    %5426 = vmatprep.subr.mxu0 0.0
    %5427 = vmatpush1.msra.mxu0 0.0
    %5428 = vmatprep.subr.mxu0 0.0
    %5429 = vmatpush1.msra.mxu0 0.0
    %5430 = vmatprep.subr.mxu0 0.0
    %5431 = vmatpush1.msra.mxu0 0.0
    %5432 = vmatprep.subr.mxu0 0.0
    %5433 = vmatpush1.msra.mxu0 0.0
    %5434 = vmatprep.subr.mxu0 0.0
    %5435 = vmatpush1.msra.mxu0 0.0
    %5436 = vmatprep.subr.mxu0 0.0
    %5437 = vmatpush1.msra.mxu0 0.0
    %5438 = vmatprep.subr.mxu0 0.0
    %5439 = vmatpush1.msra.mxu0 0.0
    %5440 = vmatprep.subr.mxu0 0.0
    %5441 = vmatpush1.msra.mxu0 0.0
    %5442 = vmatprep.subr.mxu0 0.0
    %5443 = vmatpush1.msra.mxu0 0.0
    %5444 = vmatprep.subr.mxu0 0.0
    %5445 = vmatpush1.msra.mxu0 0.0
    %5446 = vmatprep.subr.mxu0 0.0
    %5447 = vmatpush1.msra.mxu0 0.0
    %5448 = vmatprep.mubr.f32.mxu0 0.0
    %5449 = vmatmul.mubr.f32.gmra.mrb[0].mxu0 %v5379
    %v5450 = vpop.f32.mrb[0].mxu0
    %v5451 = vadd.f32 0.0, %v5450
    %v5452 = vpop.f32.mrb[0].mxu0
    %5453 = vmatprep.mubr.f32.mxu0 0.0
    %5454 = vmatmul.mubr.f32.gmra.mrb[0].mxu0 %v5382
    %v5455 = vpop.f32.mrb[0].mxu0
    %v5456 = vadd.f32 0.0, %v5455
    %v5457 = vpop.f32.mrb[0].mxu0
    %5458 = vdwg.mxu0
    %v5460 = vsel %vm541, %v5451, 0
    %v5463 = vsel %vm541, %v5456, 0
    %5465 = vmatprep.subr.mxu0 0.0
    %5466 = vmatpush1.msra.mxu0 %v3534
    %5467 = vmatprep.subr.mxu0 0.0
    %5468 = vmatpush1.msra.mxu0 0.0
    %5469 = vmatprep.subr.mxu0 0.0
    %5470 = vmatpush1.msra.mxu0 0.0
    %5471 = vmatprep.subr.mxu0 0.0
    %5472 = vmatpush1.msra.mxu0 0.0
    %5473 = vmatprep.subr.mxu0 0.0
    %5474 = vmatpush1.msra.mxu0 0.0
    %5475 = vmatprep.subr.mxu0 0.0
    %5476 = vmatpush1.msra.mxu0 0.0
    %5477 = vmatprep.subr.mxu0 0.0
    %5478 = vmatpush1.msra.mxu0 0.0
    %5479 = vmatprep.subr.mxu0 0.0
    %5480 = vmatpush1.msra.mxu0 0.0
    %5481 = vmatprep.subr.mxu0 0.0
    %5482 = vmatpush1.msra.mxu0 0.0
    %5483 = vmatprep.subr.mxu0 0.0
    %5484 = vmatpush1.msra.mxu0 0.0
    %5485 = vmatprep.subr.mxu0 0.0
    %5486 = vmatpush1.msra.mxu0 0.0
    %5487 = vmatprep.subr.mxu0 0.0
    %5488 = vmatpush1.msra.mxu0 0.0
    %5489 = vmatprep.subr.mxu0 0.0
    %5490 = vmatpush1.msra.mxu0 0.0
    %5491 = vmatprep.subr.mxu0 0.0
    %5492 = vmatpush1.msra.mxu0 0.0
    %5493 = vmatprep.subr.mxu0 0.0
    %5494 = vmatpush1.msra.mxu0 0.0
    %5495 = vmatprep.subr.mxu0 0.0
    %5496 = vmatpush1.msra.mxu0 0.0
    %5497 = vmatprep.subr.mxu0 0.0
    %5498 = vmatpush1.msra.mxu0 0.0
    %5499 = vmatprep.subr.mxu0 0.0
    %5500 = vmatpush1.msra.mxu0 0.0
    %5501 = vmatprep.subr.mxu0 0.0
    %5502 = vmatpush1.msra.mxu0 0.0
    %5503 = vmatprep.subr.mxu0 0.0
    %5504 = vmatpush1.msra.mxu0 0.0
    %5505 = vmatprep.subr.mxu0 0.0
    %5506 = vmatpush1.msra.mxu0 0.0
    %5507 = vmatprep.subr.mxu0 0.0
    %5508 = vmatpush1.msra.mxu0 0.0
    %5509 = vmatprep.subr.mxu0 0.0
    %5510 = vmatpush1.msra.mxu0 0.0
    %5511 = vmatprep.subr.mxu0 0.0
    %5512 = vmatpush1.msra.mxu0 0.0
    %5513 = vmatprep.subr.mxu0 0.0
    %5514 = vmatpush1.msra.mxu0 0.0
    %5515 = vmatprep.subr.mxu0 0.0
    %5516 = vmatpush1.msra.mxu0 0.0
    %5517 = vmatprep.subr.mxu0 0.0
    %5518 = vmatpush1.msra.mxu0 0.0
    %5519 = vmatprep.subr.mxu0 0.0
    %5520 = vmatpush1.msra.mxu0 0.0
    %5521 = vmatprep.subr.mxu0 0.0
    %5522 = vmatpush1.msra.mxu0 0.0
    %5523 = vmatprep.subr.mxu0 0.0
    %5524 = vmatpush1.msra.mxu0 0.0
    %5525 = vmatprep.subr.mxu0 0.0
    %5526 = vmatpush1.msra.mxu0 0.0
    %5527 = vmatprep.subr.mxu0 0.0
    %5528 = vmatpush1.msra.mxu0 0.0
    %5529 = vmatprep.mubr.f32.mxu0 0.0
    %5530 = vmatmul.mubr.f32.gmra.mrb[0].mxu0 %v5460
    %v5531 = vpop.f32.mrb[0].mxu0
    %v5532 = vadd.f32 0.0, %v5531
    %v5533 = vpop.f32.mrb[0].mxu0
    %5534 = vmatprep.mubr.f32.mxu0 0.0
    %5535 = vmatmul.mubr.f32.gmra.mrb[0].mxu0 %v5463
    %v5536 = vpop.f32.mrb[0].mxu0
    %v5537 = vadd.f32 0.0, %v5536
    %v5538 = vpop.f32.mrb[0].mxu0
    %5539 = vdwg.mxu0
    %v5541 = vsel %vm541, %v5251, 0
    %v5544 = vsel %vm541, %v5256, 0
    %5546 = vmatprep.subr.mxu0 0.0
    %5547 = vmatpush1.msra.mxu0 %v3533
    %5548 = vmatprep.subr.mxu0 0.0
    %5549 = vmatpush1.msra.mxu0 0.0
    %5550 = vmatprep.subr.mxu0 0.0
    %5551 = vmatpush1.msra.mxu0 0.0
    %5552 = vmatprep.subr.mxu0 0.0
    %5553 = vmatpush1.msra.mxu0 0.0
    %5554 = vmatprep.subr.mxu0 0.0
    %5555 = vmatpush1.msra.mxu0 0.0
    %5556 = vmatprep.subr.mxu0 0.0
    %5557 = vmatpush1.msra.mxu0 0.0
    %5558 = vmatprep.subr.mxu0 0.0
    %5559 = vmatpush1.msra.mxu0 0.0
    %5560 = vmatprep.subr.mxu0 0.0
    %5561 = vmatpush1.msra.mxu0 0.0
    %5562 = vmatprep.subr.mxu0 0.0
    %5563 = vmatpush1.msra.mxu0 0.0
    %5564 = vmatprep.subr.mxu0 0.0
    %5565 = vmatpush1.msra.mxu0 0.0
    %5566 = vmatprep.subr.mxu0 0.0
    %5567 = vmatpush1.msra.mxu0 0.0
    %5568 = vmatprep.subr.mxu0 0.0
    %5569 = vmatpush1.msra.mxu0 0.0
    %5570 = vmatprep.subr.mxu0 0.0
    %5571 = vmatpush1.msra.mxu0 0.0
    %5572 = vmatprep.subr.mxu0 0.0
    %5573 = vmatpush1.msra.mxu0 0.0
    %5574 = vmatprep.subr.mxu0 0.0
    %5575 = vmatpush1.msra.mxu0 0.0
    %5576 = vmatprep.subr.mxu0 0.0
    %5577 = vmatpush1.msra.mxu0 0.0
    %5578 = vmatprep.subr.mxu0 0.0
    %5579 = vmatpush1.msra.mxu0 0.0
    %5580 = vmatprep.subr.mxu0 0.0
    %5581 = vmatpush1.msra.mxu0 0.0
    %5582 = vmatprep.subr.mxu0 0.0
    %5583 = vmatpush1.msra.mxu0 0.0
    %5584 = vmatprep.subr.mxu0 0.0
    %5585 = vmatpush1.msra.mxu0 0.0
    %5586 = vmatprep.subr.mxu0 0.0
    %5587 = vmatpush1.msra.mxu0 0.0
    %5588 = vmatprep.subr.mxu0 0.0
    %5589 = vmatpush1.msra.mxu0 0.0
    %5590 = vmatprep.subr.mxu0 0.0
    %5591 = vmatpush1.msra.mxu0 0.0
    %5592 = vmatprep.subr.mxu0 0.0
    %5593 = vmatpush1.msra.mxu0 0.0
    %5594 = vmatprep.subr.mxu0 0.0
    %5595 = vmatpush1.msra.mxu0 0.0
    %5596 = vmatprep.subr.mxu0 0.0
    %5597 = vmatpush1.msra.mxu0 0.0
    %5598 = vmatprep.subr.mxu0 0.0
    %5599 = vmatpush1.msra.mxu0 0.0
    %5600 = vmatprep.subr.mxu0 0.0
    %5601 = vmatpush1.msra.mxu0 0.0
    %5602 = vmatprep.subr.mxu0 0.0
    %5603 = vmatpush1.msra.mxu0 0.0
    %5604 = vmatprep.subr.mxu0 0.0
    %5605 = vmatpush1.msra.mxu0 0.0
    %5606 = vmatprep.subr.mxu0 0.0
    %5607 = vmatpush1.msra.mxu0 0.0
    %5608 = vmatprep.subr.mxu0 0.0
    %5609 = vmatpush1.msra.mxu0 0.0
    %5610 = vmatprep.mubr.f32.mxu0 0.0
    %5611 = vmatmul.mubr.f32.gmra.mrb[0].mxu0 %v5541
    %v5612 = vpop.f32.mrb[0].mxu0
    %v5613 = vadd.f32 %v5532, %v5612
    %v5614 = vpop.f32.mrb[0].mxu0
    %5615 = vmatprep.mubr.f32.mxu0 0.0
    %5616 = vmatmul.mubr.f32.gmra.mrb[0].mxu0 %v5544
    %v5617 = vpop.f32.mrb[0].mxu0
    %v5618 = vadd.f32 %v5537, %v5617
    %v5619 = vpop.f32.mrb[0].mxu0
    %5620 = vdwg.mxu0
    %5621 = vrot.lane.b32.xlu0 %v4968, 112
    %v5622 = vpop.permute.xlu0 %5621
    %5623 = vrot.lane.b32.xlu0 %v4973, 112
    %v5624 = vpop.permute.xlu0 %5623
    %5625 = vrot.lane.b32.xlu0 %v5055, 112
    %v5626 = vpop.permute.xlu0 %5625
    %5627 = vrot.lane.b32.xlu0 %v5060, 112
    %v5628 = vpop.permute.xlu0 %5627
    %v5629 = vsel %vm541, %v5622, 0
    %v5631 = vsel %vm541, %v5624, 0
    %v5633 = vsel %vm541, %v5626, 0
    %v5635 = vsel %vm541, %v5628, 0
    %5637 = vmatprep.subr.mxu0 0.0
    %5638 = vmatpush1.xpose.msra.mxu0 %v5633
    %5639 = vmatprep.subr.mxu0 0.0
    %5640 = vmatpush1.xpose.msra.mxu0 %v5635
    %5641 = vmatprep.subr.mxu0 0.0
    %5642 = vmatpush1.xpose.msra.mxu0 0.0
    %5643 = vmatprep.subr.mxu0 0.0
    %5644 = vmatpush1.xpose.msra.mxu0 0.0
    %5645 = vmatprep.subr.mxu0 0.0
    %5646 = vmatpush1.xpose.msra.mxu0 0.0
    %5647 = vmatprep.subr.mxu0 0.0
    %5648 = vmatpush1.xpose.msra.mxu0 0.0
    %5649 = vmatprep.subr.mxu0 0.0
    %5650 = vmatpush1.xpose.msra.mxu0 0.0
    %5651 = vmatprep.subr.mxu0 0.0
    %5652 = vmatpush1.xpose.msra.mxu0 0.0
    %5653 = vmatprep.subr.mxu0 0.0
    %5654 = vmatpush1.xpose.msra.mxu0 0.0
    %5655 = vmatprep.subr.mxu0 0.0
    %5656 = vmatpush1.xpose.msra.mxu0 0.0
    %5657 = vmatprep.subr.mxu0 0.0
    %5658 = vmatpush1.xpose.msra.mxu0 0.0
    %5659 = vmatprep.subr.mxu0 0.0
    %5660 = vmatpush1.xpose.msra.mxu0 0.0
    %5661 = vmatprep.subr.mxu0 0.0
    %5662 = vmatpush1.xpose.msra.mxu0 0.0
    %5663 = vmatprep.subr.mxu0 0.0
    %5664 = vmatpush1.xpose.msra.mxu0 0.0
    %5665 = vmatprep.subr.mxu0 0.0
    %5666 = vmatpush1.xpose.msra.mxu0 0.0
    %5667 = vmatprep.subr.mxu0 0.0
    %5668 = vmatpush1.xpose.msra.mxu0 0.0
    %5669 = vmatprep.subr.mxu0 0.0
    %5670 = vmatpush1.xpose.msra.mxu0 0.0
    %5671 = vmatprep.subr.mxu0 0.0
    %5672 = vmatpush1.xpose.msra.mxu0 0.0
    %5673 = vmatprep.subr.mxu0 0.0
    %5674 = vmatpush1.xpose.msra.mxu0 0.0
    %5675 = vmatprep.subr.mxu0 0.0
    %5676 = vmatpush1.xpose.msra.mxu0 0.0
    %5677 = vmatprep.subr.mxu0 0.0
    %5678 = vmatpush1.xpose.msra.mxu0 0.0
    %5679 = vmatprep.subr.mxu0 0.0
    %5680 = vmatpush1.xpose.msra.mxu0 0.0
    %5681 = vmatprep.subr.mxu0 0.0
    %5682 = vmatpush1.xpose.msra.mxu0 0.0
    %5683 = vmatprep.subr.mxu0 0.0
    %5684 = vmatpush1.xpose.msra.mxu0 0.0
    %5685 = vmatprep.subr.mxu0 0.0
    %5686 = vmatpush1.xpose.msra.mxu0 0.0
    %5687 = vmatprep.subr.mxu0 0.0
    %5688 = vmatpush1.xpose.msra.mxu0 0.0
    %5689 = vmatprep.subr.mxu0 0.0
    %5690 = vmatpush1.xpose.msra.mxu0 0.0
    %5691 = vmatprep.subr.mxu0 0.0
    %5692 = vmatpush1.xpose.msra.mxu0 0.0
    %5693 = vmatprep.subr.mxu0 0.0
    %5694 = vmatpush1.xpose.msra.mxu0 0.0
    %5695 = vmatprep.subr.mxu0 0.0
    %5696 = vmatpush1.xpose.msra.mxu0 0.0
    %5697 = vmatprep.subr.mxu0 0.0
    %5698 = vmatpush1.xpose.msra.mxu0 0.0
    %5699 = vmatprep.subr.mxu0 0.0
    %5700 = vmatpush1.xpose.msra.mxu0 0.0
    %5701 = vmatprep.mubr.f32.mxu0 0.0
    %5702 = vmatmul.mubr.f32.gmra.mrb[0].mxu0 %v5629
    %v5703 = vpop.f32.mrb[0].mxu0
    %v5704 = vadd.f32 %v358, %v5703
    %v5705 = vpop.f32.mrb[0].mxu0
    %5706 = vmatprep.mubr.f32.mxu0 0.0
    %5707 = vmatmul.mubr.f32.gmra.mrb[0].mxu0 %v5631
    %v5708 = vpop.f32.mrb[0].mxu0
    %v5709 = vadd.f32 %v359, %v5708
    %v5710 = vpop.f32.mrb[0].mxu0
    %5711 = vdwg.mxu0
    %v5712 = vsel %vm625, %v5704, -inf
    %5713 = vmax.xlane.f32.xlu0 %v5712
    %v5714 = vpop.xlane.xlu0 %5713
    %v5715 = vsel %vm625, %v5709, -inf
    %5716 = vmax.xlane.f32.xlu0 %v5715
    %v5717 = vpop.xlane.xlu0 %5716
    %v5718 = vsub.f32 %v5704, %v5714
    %v5719 = vsub.f32 %v5709, %v5717
    %v5720 = vmul.f32 %v5718, 1.442695
    %v5721 = vpow.pop %v5720
    %v5722 = vmul.f32 %v5719, 1.442695
    %v5723 = vpow.pop %v5722
    %v5724 = vsel %vm625, %v5721, 0.0
    %5725 = vadd.xlane.f32.xlu0 %v5724
    %v5726 = vpop.xlane.xlu0 %5725
    %v5727 = vsel %vm625, %v5723, 0.0
    %5728 = vadd.xlane.f32.xlu0 %v5727
    %v5729 = vpop.xlane.xlu0 %5728
    %v5730 = vrcp.pop %v5726
    %v5731 = vrcp.pop %v5729
    %v5732 = vmul.f32 %v5721, %v5730
    %v5733 = vmul.f32 %v5723, %v5731
    %5734 = vrot.lane.b32.xlu0 %v5055, 80
    %v5735 = vpop.permute.xlu0 %5734
    %5736 = vrot.lane.b32.xlu0 %v5060, 80
    %v5737 = vpop.permute.xlu0 %5736
    %v5741 = vsel %vm625, %v5732, 0
    %v5744 = vsel %vm625, %v5733, 0
    %5746 = vmatprep.subr.mxu0 0.0
    %5747 = vmatpush1.msra.mxu0 %v5735
    %5748 = vmatprep.subr.mxu0 0.0
    %5749 = vmatpush1.msra.mxu0 %v5737
    %5750 = vmatprep.subr.mxu0 0.0
    %5751 = vmatpush1.msra.mxu0 0.0
    %5752 = vmatprep.subr.mxu0 0.0
    %5753 = vmatpush1.msra.mxu0 0.0
    %5754 = vmatprep.subr.mxu0 0.0
    %5755 = vmatpush1.msra.mxu0 0.0
    %5756 = vmatprep.subr.mxu0 0.0
    %5757 = vmatpush1.msra.mxu0 0.0
    %5758 = vmatprep.subr.mxu0 0.0
    %5759 = vmatpush1.msra.mxu0 0.0
    %5760 = vmatprep.subr.mxu0 0.0
    %5761 = vmatpush1.msra.mxu0 0.0
    %5762 = vmatprep.subr.mxu0 0.0
    %5763 = vmatpush1.msra.mxu0 0.0
    %5764 = vmatprep.subr.mxu0 0.0
    %5765 = vmatpush1.msra.mxu0 0.0
    %5766 = vmatprep.subr.mxu0 0.0
    %5767 = vmatpush1.msra.mxu0 0.0
    %5768 = vmatprep.subr.mxu0 0.0
    %5769 = vmatpush1.msra.mxu0 0.0
    %5770 = vmatprep.subr.mxu0 0.0
    %5771 = vmatpush1.msra.mxu0 0.0
    %5772 = vmatprep.subr.mxu0 0.0
    %5773 = vmatpush1.msra.mxu0 0.0
    %5774 = vmatprep.subr.mxu0 0.0
    %5775 = vmatpush1.msra.mxu0 0.0
    %5776 = vmatprep.subr.mxu0 0.0
    %5777 = vmatpush1.msra.mxu0 0.0
    %5778 = vmatprep.subr.mxu0 0.0
    %5779 = vmatpush1.msra.mxu0 0.0
    %5780 = vmatprep.subr.mxu0 0.0
    %5781 = vmatpush1.msra.mxu0 0.0
    %5782 = vmatprep.subr.mxu0 0.0
    %5783 = vmatpush1.msra.mxu0 0.0
    %5784 = vmatprep.subr.mxu0 0.0
    %5785 = vmatpush1.msra.mxu0 0.0
    %5786 = vmatprep.subr.mxu0 0.0
    %5787 = vmatpush1.msra.mxu0 0.0
    %5788 = vmatprep.subr.mxu0 0.0
    %5789 = vmatpush1.msra.mxu0 0.0
    %5790 = vmatprep.subr.mxu0 0.0
    %5791 = vmatpush1.msra.mxu0 0.0
    %5792 = vmatprep.subr.mxu0 0.0
    %5793 = vmatpush1.msra.mxu0 0.0
    %5794 = vmatprep.subr.mxu0 0.0
    %5795 = vmatpush1.msra.mxu0 0.0
    %5796 = vmatprep.subr.mxu0 0.0
    %5797 = vmatpush1.msra.mxu0 0.0
    %5798 = vmatprep.subr.mxu0 0.0
    %5799 = vmatpush1.msra.mxu0 0.0
    %5800 = vmatprep.subr.mxu0 0.0
    %5801 = vmatpush1.msra.mxu0 0.0
    %5802 = vmatprep.subr.mxu0 0.0
    %5803 = vmatpush1.msra.mxu0 0.0
    %5804 = vmatprep.subr.mxu0 0.0
    %5805 = vmatpush1.msra.mxu0 0.0
    %5806 = vmatprep.subr.mxu0 0.0
    %5807 = vmatpush1.msra.mxu0 0.0
    %5808 = vmatprep.subr.mxu0 0.0
    %5809 = vmatpush1.msra.mxu0 0.0
    %5810 = vmatprep.mubr.f32.mxu0 0.0
    %5811 = vmatmul.mubr.f32.gmra.mrb[0].mxu0 %v5741
    %v5812 = vpop.f32.mrb[0].mxu0
    %v5813 = vadd.f32 0.0, %v5812
    %v5814 = vpop.f32.mrb[0].mxu0
    %5815 = vmatprep.mubr.f32.mxu0 0.0
    %5816 = vmatmul.mubr.f32.gmra.mrb[0].mxu0 %v5744
    %v5817 = vpop.f32.mrb[0].mxu0
    %v5818 = vadd.f32 0.0, %v5817
    %v5819 = vpop.f32.mrb[0].mxu0
    %5820 = vdwg.mxu0
    %v5822 = vsel %vm541, %v5813, 0
    %v5825 = vsel %vm541, %v5818, 0
    %5827 = vmatprep.subr.mxu0 0.0
    %5828 = vmatpush1.msra.mxu0 %v3535
    %5829 = vmatprep.subr.mxu0 0.0
    %5830 = vmatpush1.msra.mxu0 0.0
    %5831 = vmatprep.subr.mxu0 0.0
    %5832 = vmatpush1.msra.mxu0 0.0
    %5833 = vmatprep.subr.mxu0 0.0
    %5834 = vmatpush1.msra.mxu0 0.0
    %5835 = vmatprep.subr.mxu0 0.0
    %5836 = vmatpush1.msra.mxu0 0.0
    %5837 = vmatprep.subr.mxu0 0.0
    %5838 = vmatpush1.msra.mxu0 0.0
    %5839 = vmatprep.subr.mxu0 0.0
    %5840 = vmatpush1.msra.mxu0 0.0
    %5841 = vmatprep.subr.mxu0 0.0
    %5842 = vmatpush1.msra.mxu0 0.0
    %5843 = vmatprep.subr.mxu0 0.0
    %5844 = vmatpush1.msra.mxu0 0.0
    %5845 = vmatprep.subr.mxu0 0.0
    %5846 = vmatpush1.msra.mxu0 0.0
    %5847 = vmatprep.subr.mxu0 0.0
    %5848 = vmatpush1.msra.mxu0 0.0
    %5849 = vmatprep.subr.mxu0 0.0
    %5850 = vmatpush1.msra.mxu0 0.0
    %5851 = vmatprep.subr.mxu0 0.0
    %5852 = vmatpush1.msra.mxu0 0.0
    %5853 = vmatprep.subr.mxu0 0.0
    %5854 = vmatpush1.msra.mxu0 0.0
    %5855 = vmatprep.subr.mxu0 0.0
    %5856 = vmatpush1.msra.mxu0 0.0
    %5857 = vmatprep.subr.mxu0 0.0
    %5858 = vmatpush1.msra.mxu0 0.0
    %5859 = vmatprep.subr.mxu0 0.0
    %5860 = vmatpush1.msra.mxu0 0.0
    %5861 = vmatprep.subr.mxu0 0.0
    %5862 = vmatpush1.msra.mxu0 0.0
    %5863 = vmatprep.subr.mxu0 0.0
    %5864 = vmatpush1.msra.mxu0 0.0
    %5865 = vmatprep.subr.mxu0 0.0
    %5866 = vmatpush1.msra.mxu0 0.0
    %5867 = vmatprep.subr.mxu0 0.0
    %5868 = vmatpush1.msra.mxu0 0.0
    %5869 = vmatprep.subr.mxu0 0.0
    %5870 = vmatpush1.msra.mxu0 0.0
    %5871 = vmatprep.subr.mxu0 0.0
    %5872 = vmatpush1.msra.mxu0 0.0
    %5873 = vmatprep.subr.mxu0 0.0
    %5874 = vmatpush1.msra.mxu0 0.0
    %5875 = vmatprep.subr.mxu0 0.0
    %5876 = vmatpush1.msra.mxu0 0.0
    %5877 = vmatprep.subr.mxu0 0.0
    %5878 = vmatpush1.msra.mxu0 0.0
    %5879 = vmatprep.subr.mxu0 0.0
    %5880 = vmatpush1.msra.mxu0 0.0
    %5881 = vmatprep.subr.mxu0 0.0
    %5882 = vmatpush1.msra.mxu0 0.0
    %5883 = vmatprep.subr.mxu0 0.0
    %5884 = vmatpush1.msra.mxu0 0.0
    %5885 = vmatprep.subr.mxu0 0.0
    %5886 = vmatpush1.msra.mxu0 0.0
    %5887 = vmatprep.subr.mxu0 0.0
    %5888 = vmatpush1.msra.mxu0 0.0
    %5889 = vmatprep.subr.mxu0 0.0
    %5890 = vmatpush1.msra.mxu0 0.0
    %5891 = vmatprep.mubr.f32.mxu0 0.0
    %5892 = vmatmul.mubr.f32.gmra.mrb[0].mxu0 %v5822
    %v5893 = vpop.f32.mrb[0].mxu0
    %v5894 = vadd.f32 0.0, %v5893
    %v5895 = vpop.f32.mrb[0].mxu0
    %5896 = vmatprep.mubr.f32.mxu0 0.0
    %5897 = vmatmul.mubr.f32.gmra.mrb[0].mxu0 %v5825
    %v5898 = vpop.f32.mrb[0].mxu0
    %v5899 = vadd.f32 0.0, %v5898
    %v5900 = vpop.f32.mrb[0].mxu0
    %5901 = vdwg.mxu0
    %v5902 = vadd.f32 %v5613, %v5894
    %v5903 = vadd.f32 %v5618, %v5899
    %5904 = vrot.lane.b32.xlu0 %v4968, 104
    %v5905 = vpop.permute.xlu0 %5904
    %5906 = vrot.lane.b32.xlu0 %v4973, 104
    %v5907 = vpop.permute.xlu0 %5906
    %5908 = vrot.lane.b32.xlu0 %v5055, 104
    %v5909 = vpop.permute.xlu0 %5908
    %5910 = vrot.lane.b32.xlu0 %v5060, 104
    %v5911 = vpop.permute.xlu0 %5910
    %v5912 = vsel %vm541, %v5905, 0
    %v5914 = vsel %vm541, %v5907, 0
    %v5916 = vsel %vm541, %v5909, 0
    %v5918 = vsel %vm541, %v5911, 0
    %5920 = vmatprep.subr.mxu0 0.0
    %5921 = vmatpush1.xpose.msra.mxu0 %v5916
    %5922 = vmatprep.subr.mxu0 0.0
    %5923 = vmatpush1.xpose.msra.mxu0 %v5918
    %5924 = vmatprep.subr.mxu0 0.0
    %5925 = vmatpush1.xpose.msra.mxu0 0.0
    %5926 = vmatprep.subr.mxu0 0.0
    %5927 = vmatpush1.xpose.msra.mxu0 0.0
    %5928 = vmatprep.subr.mxu0 0.0
    %5929 = vmatpush1.xpose.msra.mxu0 0.0
    %5930 = vmatprep.subr.mxu0 0.0
    %5931 = vmatpush1.xpose.msra.mxu0 0.0
    %5932 = vmatprep.subr.mxu0 0.0
    %5933 = vmatpush1.xpose.msra.mxu0 0.0
    %5934 = vmatprep.subr.mxu0 0.0
    %5935 = vmatpush1.xpose.msra.mxu0 0.0
    %5936 = vmatprep.subr.mxu0 0.0
    %5937 = vmatpush1.xpose.msra.mxu0 0.0
    %5938 = vmatprep.subr.mxu0 0.0
    %5939 = vmatpush1.xpose.msra.mxu0 0.0
    %5940 = vmatprep.subr.mxu0 0.0
    %5941 = vmatpush1.xpose.msra.mxu0 0.0
    %5942 = vmatprep.subr.mxu0 0.0
    %5943 = vmatpush1.xpose.msra.mxu0 0.0
    %5944 = vmatprep.subr.mxu0 0.0
    %5945 = vmatpush1.xpose.msra.mxu0 0.0
    %5946 = vmatprep.subr.mxu0 0.0
    %5947 = vmatpush1.xpose.msra.mxu0 0.0
    %5948 = vmatprep.subr.mxu0 0.0
    %5949 = vmatpush1.xpose.msra.mxu0 0.0
    %5950 = vmatprep.subr.mxu0 0.0
    %5951 = vmatpush1.xpose.msra.mxu0 0.0
    %5952 = vmatprep.subr.mxu0 0.0
    %5953 = vmatpush1.xpose.msra.mxu0 0.0
    %5954 = vmatprep.subr.mxu0 0.0
    %5955 = vmatpush1.xpose.msra.mxu0 0.0
    %5956 = vmatprep.subr.mxu0 0.0
    %5957 = vmatpush1.xpose.msra.mxu0 0.0
    %5958 = vmatprep.subr.mxu0 0.0
    %5959 = vmatpush1.xpose.msra.mxu0 0.0
    %5960 = vmatprep.subr.mxu0 0.0
    %5961 = vmatpush1.xpose.msra.mxu0 0.0
    %5962 = vmatprep.subr.mxu0 0.0
    %5963 = vmatpush1.xpose.msra.mxu0 0.0
    %5964 = vmatprep.subr.mxu0 0.0
    %5965 = vmatpush1.xpose.msra.mxu0 0.0
    %5966 = vmatprep.subr.mxu0 0.0
    %5967 = vmatpush1.xpose.msra.mxu0 0.0
    %5968 = vmatprep.subr.mxu0 0.0
    %5969 = vmatpush1.xpose.msra.mxu0 0.0
    %5970 = vmatprep.subr.mxu0 0.0
    %5971 = vmatpush1.xpose.msra.mxu0 0.0
    %5972 = vmatprep.subr.mxu0 0.0
    %5973 = vmatpush1.xpose.msra.mxu0 0.0
    %5974 = vmatprep.subr.mxu0 0.0
    %5975 = vmatpush1.xpose.msra.mxu0 0.0
    %5976 = vmatprep.subr.mxu0 0.0
    %5977 = vmatpush1.xpose.msra.mxu0 0.0
    %5978 = vmatprep.subr.mxu0 0.0
    %5979 = vmatpush1.xpose.msra.mxu0 0.0
    %5980 = vmatprep.subr.mxu0 0.0
    %5981 = vmatpush1.xpose.msra.mxu0 0.0
    %5982 = vmatprep.subr.mxu0 0.0
    %5983 = vmatpush1.xpose.msra.mxu0 0.0
    %5984 = vmatprep.mubr.f32.mxu0 0.0
    %5985 = vmatmul.mubr.f32.gmra.mrb[0].mxu0 %v5912
    %v5986 = vpop.f32.mrb[0].mxu0
    %v5987 = vadd.f32 %v358, %v5986
    %v5988 = vpop.f32.mrb[0].mxu0
    %5989 = vmatprep.mubr.f32.mxu0 0.0
    %5990 = vmatmul.mubr.f32.gmra.mrb[0].mxu0 %v5914
    %v5991 = vpop.f32.mrb[0].mxu0
    %v5992 = vadd.f32 %v359, %v5991
    %v5993 = vpop.f32.mrb[0].mxu0
    %5994 = vdwg.mxu0
    %v5995 = vsel %vm625, %v5987, -inf
    %5996 = vmax.xlane.f32.xlu0 %v5995
    %v5997 = vpop.xlane.xlu0 %5996
    %v5998 = vsel %vm625, %v5992, -inf
    %5999 = vmax.xlane.f32.xlu0 %v5998
    %v6000 = vpop.xlane.xlu0 %5999
    %v6001 = vsub.f32 %v5987, %v5997
    %v6002 = vsub.f32 %v5992, %v6000
    %v6003 = vmul.f32 %v6001, 1.442695
    %v6004 = vpow.pop %v6003
    %v6005 = vmul.f32 %v6002, 1.442695
    %v6006 = vpow.pop %v6005
    %v6007 = vsel %vm625, %v6004, 0.0
    %6008 = vadd.xlane.f32.xlu0 %v6007
    %v6009 = vpop.xlane.xlu0 %6008
    %v6010 = vsel %vm625, %v6006, 0.0
    %6011 = vadd.xlane.f32.xlu0 %v6010
    %v6012 = vpop.xlane.xlu0 %6011
    %v6013 = vrcp.pop %v6009
    %v6014 = vrcp.pop %v6012
    %v6015 = vmul.f32 %v6004, %v6013
    %v6016 = vmul.f32 %v6006, %v6014
    %6017 = vrot.lane.b32.xlu0 %v5055, 72
    %v6018 = vpop.permute.xlu0 %6017
    %6019 = vrot.lane.b32.xlu0 %v5060, 72
    %v6020 = vpop.permute.xlu0 %6019
    %v6024 = vsel %vm625, %v6015, 0
    %v6027 = vsel %vm625, %v6016, 0
    %6029 = vmatprep.subr.mxu0 0.0
    %6030 = vmatpush1.msra.mxu0 %v6018
    %6031 = vmatprep.subr.mxu0 0.0
    %6032 = vmatpush1.msra.mxu0 %v6020
    %6033 = vmatprep.subr.mxu0 0.0
    %6034 = vmatpush1.msra.mxu0 0.0
    %6035 = vmatprep.subr.mxu0 0.0
    %6036 = vmatpush1.msra.mxu0 0.0
    %6037 = vmatprep.subr.mxu0 0.0
    %6038 = vmatpush1.msra.mxu0 0.0
    %6039 = vmatprep.subr.mxu0 0.0
    %6040 = vmatpush1.msra.mxu0 0.0
    %6041 = vmatprep.subr.mxu0 0.0
    %6042 = vmatpush1.msra.mxu0 0.0
    %6043 = vmatprep.subr.mxu0 0.0
    %6044 = vmatpush1.msra.mxu0 0.0
    %6045 = vmatprep.subr.mxu0 0.0
    %6046 = vmatpush1.msra.mxu0 0.0
    %6047 = vmatprep.subr.mxu0 0.0
    %6048 = vmatpush1.msra.mxu0 0.0
    %6049 = vmatprep.subr.mxu0 0.0
    %6050 = vmatpush1.msra.mxu0 0.0
    %6051 = vmatprep.subr.mxu0 0.0
    %6052 = vmatpush1.msra.mxu0 0.0
    %6053 = vmatprep.subr.mxu0 0.0
    %6054 = vmatpush1.msra.mxu0 0.0
    %6055 = vmatprep.subr.mxu0 0.0
    %6056 = vmatpush1.msra.mxu0 0.0
    %6057 = vmatprep.subr.mxu0 0.0
    %6058 = vmatpush1.msra.mxu0 0.0
    %6059 = vmatprep.subr.mxu0 0.0
    %6060 = vmatpush1.msra.mxu0 0.0
    %6061 = vmatprep.subr.mxu0 0.0
    %6062 = vmatpush1.msra.mxu0 0.0
    %6063 = vmatprep.subr.mxu0 0.0
    %6064 = vmatpush1.msra.mxu0 0.0
    %6065 = vmatprep.subr.mxu0 0.0
    %6066 = vmatpush1.msra.mxu0 0.0
    %6067 = vmatprep.subr.mxu0 0.0
    %6068 = vmatpush1.msra.mxu0 0.0
    %6069 = vmatprep.subr.mxu0 0.0
    %6070 = vmatpush1.msra.mxu0 0.0
    %6071 = vmatprep.subr.mxu0 0.0
    %6072 = vmatpush1.msra.mxu0 0.0
    %6073 = vmatprep.subr.mxu0 0.0
    %6074 = vmatpush1.msra.mxu0 0.0
    %6075 = vmatprep.subr.mxu0 0.0
    %6076 = vmatpush1.msra.mxu0 0.0
    %6077 = vmatprep.subr.mxu0 0.0
    %6078 = vmatpush1.msra.mxu0 0.0
    %6079 = vmatprep.subr.mxu0 0.0
    %6080 = vmatpush1.msra.mxu0 0.0
    %6081 = vmatprep.subr.mxu0 0.0
    %6082 = vmatpush1.msra.mxu0 0.0
    %6083 = vmatprep.subr.mxu0 0.0
    %6084 = vmatpush1.msra.mxu0 0.0
    %6085 = vmatprep.subr.mxu0 0.0
    %6086 = vmatpush1.msra.mxu0 0.0
    %6087 = vmatprep.subr.mxu0 0.0
    %6088 = vmatpush1.msra.mxu0 0.0
    %6089 = vmatprep.subr.mxu0 0.0
    %6090 = vmatpush1.msra.mxu0 0.0
    %6091 = vmatprep.subr.mxu0 0.0
    %6092 = vmatpush1.msra.mxu0 0.0
    %6093 = vmatprep.mubr.f32.mxu0 0.0
    %6094 = vmatmul.mubr.f32.gmra.mrb[0].mxu0 %v6024
    %v6095 = vpop.f32.mrb[0].mxu0
    %v6096 = vadd.f32 0.0, %v6095
    %v6097 = vpop.f32.mrb[0].mxu0
    %6098 = vmatprep.mubr.f32.mxu0 0.0
    %6099 = vmatmul.mubr.f32.gmra.mrb[0].mxu0 %v6027
    %v6100 = vpop.f32.mrb[0].mxu0
    %v6101 = vadd.f32 0.0, %v6100
    %v6102 = vpop.f32.mrb[0].mxu0
    %6103 = vdwg.mxu0
    %v6105 = vsel %vm541, %v6096, 0
    %v6108 = vsel %vm541, %v6101, 0
    %6110 = vmatprep.subr.mxu0 0.0
    %6111 = vmatpush1.msra.mxu0 %v3536
    %6112 = vmatprep.subr.mxu0 0.0
    %6113 = vmatpush1.msra.mxu0 0.0
    %6114 = vmatprep.subr.mxu0 0.0
    %6115 = vmatpush1.msra.mxu0 0.0
    %6116 = vmatprep.subr.mxu0 0.0
    %6117 = vmatpush1.msra.mxu0 0.0
    %6118 = vmatprep.subr.mxu0 0.0
    %6119 = vmatpush1.msra.mxu0 0.0
    %6120 = vmatprep.subr.mxu0 0.0
    %6121 = vmatpush1.msra.mxu0 0.0
    %6122 = vmatprep.subr.mxu0 0.0
    %6123 = vmatpush1.msra.mxu0 0.0
    %6124 = vmatprep.subr.mxu0 0.0
    %6125 = vmatpush1.msra.mxu0 0.0
    %6126 = vmatprep.subr.mxu0 0.0
    %6127 = vmatpush1.msra.mxu0 0.0
    %6128 = vmatprep.subr.mxu0 0.0
    %6129 = vmatpush1.msra.mxu0 0.0
    %6130 = vmatprep.subr.mxu0 0.0
    %6131 = vmatpush1.msra.mxu0 0.0
    %6132 = vmatprep.subr.mxu0 0.0
    %6133 = vmatpush1.msra.mxu0 0.0
    %6134 = vmatprep.subr.mxu0 0.0
    %6135 = vmatpush1.msra.mxu0 0.0
    %6136 = vmatprep.subr.mxu0 0.0
    %6137 = vmatpush1.msra.mxu0 0.0
    %6138 = vmatprep.subr.mxu0 0.0
    %6139 = vmatpush1.msra.mxu0 0.0
    %6140 = vmatprep.subr.mxu0 0.0
    %6141 = vmatpush1.msra.mxu0 0.0
    %6142 = vmatprep.subr.mxu0 0.0
    %6143 = vmatpush1.msra.mxu0 0.0
    %6144 = vmatprep.subr.mxu0 0.0
    %6145 = vmatpush1.msra.mxu0 0.0
    %6146 = vmatprep.subr.mxu0 0.0
    %6147 = vmatpush1.msra.mxu0 0.0
    %6148 = vmatprep.subr.mxu0 0.0
    %6149 = vmatpush1.msra.mxu0 0.0
    %6150 = vmatprep.subr.mxu0 0.0
    %6151 = vmatpush1.msra.mxu0 0.0
    %6152 = vmatprep.subr.mxu0 0.0
    %6153 = vmatpush1.msra.mxu0 0.0
    %6154 = vmatprep.subr.mxu0 0.0
    %6155 = vmatpush1.msra.mxu0 0.0
    %6156 = vmatprep.subr.mxu0 0.0
    %6157 = vmatpush1.msra.mxu0 0.0
    %6158 = vmatprep.subr.mxu0 0.0
    %6159 = vmatpush1.msra.mxu0 0.0
    %6160 = vmatprep.subr.mxu0 0.0
    %6161 = vmatpush1.msra.mxu0 0.0
    %6162 = vmatprep.subr.mxu0 0.0
    %6163 = vmatpush1.msra.mxu0 0.0
    %6164 = vmatprep.subr.mxu0 0.0
    %6165 = vmatpush1.msra.mxu0 0.0
    %6166 = vmatprep.subr.mxu0 0.0
    %6167 = vmatpush1.msra.mxu0 0.0
    %6168 = vmatprep.subr.mxu0 0.0
    %6169 = vmatpush1.msra.mxu0 0.0
    %6170 = vmatprep.subr.mxu0 0.0
    %6171 = vmatpush1.msra.mxu0 0.0
    %6172 = vmatprep.subr.mxu0 0.0
    %6173 = vmatpush1.msra.mxu0 0.0
    %6174 = vmatprep.mubr.f32.mxu0 0.0
    %6175 = vmatmul.mubr.f32.gmra.mrb[0].mxu0 %v6105
    %v6176 = vpop.f32.mrb[0].mxu0
    %v6177 = vadd.f32 0.0, %v6176
    %v6178 = vpop.f32.mrb[0].mxu0
    %6179 = vmatprep.mubr.f32.mxu0 0.0
    %6180 = vmatmul.mubr.f32.gmra.mrb[0].mxu0 %v6108
    %v6181 = vpop.f32.mrb[0].mxu0
    %v6182 = vadd.f32 0.0, %v6181
    %v6183 = vpop.f32.mrb[0].mxu0
    %6184 = vdwg.mxu0
    %v6185 = vadd.f32 %v5902, %v6177
    %v6186 = vadd.f32 %v5903, %v6182
    %v6188 = vlaneseq
    %v6189 = vshrl.u32 %v6188, 7
    %v6190 = vsub.s32 0, %v6189
    %v6191 = vrot.slane %v3537, %v6190
    %v6193 = vadd.f32 %v6185, %v6191
    %v6194 = vadd.f32 %v6186, %v6191
    %v6195 = vadd.f32 %v4831, %v6193
    %v6196 = vadd.f32 %v4832, %v6194
    %v6197 = vsel %vm390, %v6195, 0.0
    %6198 = vadd.xlane.f32.xlu0 %v6197
    %v6199 = vpop.xlane.xlu0 %6198
    %v6200 = vsel %vm390, %v6196, 0.0
    %6201 = vadd.xlane.f32.xlu0 %v6200
    %v6202 = vpop.xlane.xlu0 %6201
    %v6203 = vmul.f32 %v6199, %v397
    %v6204 = vmul.f32 %v6202, %v397
    %v6205 = vsub.f32 %v6195, %v6203
    %v6206 = vsub.f32 %v6196, %v6204
    %v6207 = vmul.f32 %v6205, %v6205
    %v6208 = vmul.f32 %v6206, %v6206
    %v6209 = vsel %vm390, %v6207, 0.0
    %6210 = vadd.xlane.f32.xlu0 %v6209
    %v6211 = vpop.xlane.xlu0 %6210
    %v6212 = vsel %vm390, %v6208, 0.0
    %6213 = vadd.xlane.f32.xlu0 %v6212
    %v6214 = vpop.xlane.xlu0 %6213
    %v6215 = vmul.f32 %v6211, 0.032258064
    %v6216 = vmul.f32 %v6214, 0.032258064
    %v6217 = vrsqrt.pop %v6215
    %v6218 = vmul.f32 %v6215, %v6217
    %vm6219 = vcmp.eq.f32.partialorder %v6215, inf
    %v6220 = vsel %vm6219, %v6215, %v6218
    %vm6221 = vcmp.eq.f32.partialorder %v6215, 0.0
    %v6222 = vand.u32 %v6215, 2147483648
    %v6223 = vsel %vm6221, %v6222, %v6220
    %v6224 = vrsqrt.pop %v6216
    %v6225 = vmul.f32 %v6216, %v6224
    %vm6226 = vcmp.eq.f32.partialorder %v6216, inf
    %v6227 = vsel %vm6226, %v6216, %v6225
    %vm6228 = vcmp.eq.f32.partialorder %v6216, 0.0
    %v6229 = vand.u32 %v6216, 2147483648
    %v6230 = vsel %vm6228, %v6229, %v6227
    %v6231 = vadd.f32 %v6223, 1e-06
    %v6232 = vadd.f32 %v6230, 1e-06
    %v6233 = vrcp.pop %v6231
    %v6234 = vrcp.pop %v6232
    %v6236 = vlaneseq
    %v6237 = vshrl.u32 %v6236, 7
    %v6238 = vsub.s32 0, %v6237
    %v6239 = vrot.slane %v3538, %v6238
    %v6241 = vmul.f32 %v6239, %v6205
    %v6242 = vmul.f32 %v6239, %v6206
    %v6243 = vmul.f32 %v6241, %v6233
    %v6244 = vmul.f32 %v6242, %v6234
    %v6246 = vlaneseq
    %v6247 = vshrl.u32 %v6246, 7
    %v6248 = vsub.s32 0, %v6247
    %v6249 = vrot.slane %v3539, %v6248
    %v6251 = vadd.f32 %v6243, %v6249
    %v6252 = vadd.f32 %v6244, %v6249
    %v6254 = vlaneseq
    %v6255 = vshrl.u32 %v6254, 7
    %v6256 = vsub.s32 0, %v6255
    %v6257 = vrot.slane %v3544, %v6256
    %v6260 = vsel %vm390, %v6251, 0
    %v6263 = vsel %vm390, %v6252, 0
    %6265 = vmatprep.subr.mxu0 0.0
    %6266 = vmatpush1.msra.mxu0 %v3540
    %6267 = vmatprep.subr.mxu0 0.0
    %6268 = vmatpush1.msra.mxu0 %v3541
    %6269 = vmatprep.subr.mxu0 0.0
    %6270 = vmatpush1.msra.mxu0 %v3542
    %6271 = vmatprep.subr.mxu0 0.0
    %6272 = vmatpush1.msra.mxu0 %v3543
    %6273 = vmatprep.subr.mxu0 0.0
    %6274 = vmatpush1.msra.mxu0 0.0
    %6275 = vmatprep.subr.mxu0 0.0
    %6276 = vmatpush1.msra.mxu0 0.0
    %6277 = vmatprep.subr.mxu0 0.0
    %6278 = vmatpush1.msra.mxu0 0.0
    %6279 = vmatprep.subr.mxu0 0.0
    %6280 = vmatpush1.msra.mxu0 0.0
    %6281 = vmatprep.subr.mxu0 0.0
    %6282 = vmatpush1.msra.mxu0 0.0
    %6283 = vmatprep.subr.mxu0 0.0
    %6284 = vmatpush1.msra.mxu0 0.0
    %6285 = vmatprep.subr.mxu0 0.0
    %6286 = vmatpush1.msra.mxu0 0.0
    %6287 = vmatprep.subr.mxu0 0.0
    %6288 = vmatpush1.msra.mxu0 0.0
    %6289 = vmatprep.subr.mxu0 0.0
    %6290 = vmatpush1.msra.mxu0 0.0
    %6291 = vmatprep.subr.mxu0 0.0
    %6292 = vmatpush1.msra.mxu0 0.0
    %6293 = vmatprep.subr.mxu0 0.0
    %6294 = vmatpush1.msra.mxu0 0.0
    %6295 = vmatprep.subr.mxu0 0.0
    %6296 = vmatpush1.msra.mxu0 0.0
    %6297 = vmatprep.subr.mxu0 0.0
    %6298 = vmatpush1.msra.mxu0 0.0
    %6299 = vmatprep.subr.mxu0 0.0
    %6300 = vmatpush1.msra.mxu0 0.0
    %6301 = vmatprep.subr.mxu0 0.0
    %6302 = vmatpush1.msra.mxu0 0.0
    %6303 = vmatprep.subr.mxu0 0.0
    %6304 = vmatpush1.msra.mxu0 0.0
    %6305 = vmatprep.subr.mxu0 0.0
    %6306 = vmatpush1.msra.mxu0 0.0
    %6307 = vmatprep.subr.mxu0 0.0
    %6308 = vmatpush1.msra.mxu0 0.0
    %6309 = vmatprep.subr.mxu0 0.0
    %6310 = vmatpush1.msra.mxu0 0.0
    %6311 = vmatprep.subr.mxu0 0.0
    %6312 = vmatpush1.msra.mxu0 0.0
    %6313 = vmatprep.subr.mxu0 0.0
    %6314 = vmatpush1.msra.mxu0 0.0
    %6315 = vmatprep.subr.mxu0 0.0
    %6316 = vmatpush1.msra.mxu0 0.0
    %6317 = vmatprep.subr.mxu0 0.0
    %6318 = vmatpush1.msra.mxu0 0.0
    %6319 = vmatprep.subr.mxu0 0.0
    %6320 = vmatpush1.msra.mxu0 0.0
    %6321 = vmatprep.subr.mxu0 0.0
    %6322 = vmatpush1.msra.mxu0 0.0
    %6323 = vmatprep.subr.mxu0 0.0
    %6324 = vmatpush1.msra.mxu0 0.0
    %6325 = vmatprep.subr.mxu0 0.0
    %6326 = vmatpush1.msra.mxu0 0.0
    %6327 = vmatprep.subr.mxu0 0.0
    %6328 = vmatpush1.msra.mxu0 0.0
    %6329 = vmatprep.mubr.f32.mxu0 0.0
    %6330 = vmatmul.mubr.f32.gmra.mrb[0].mxu0 %v6260
    %v6331 = vpop.f32.mrb[0].mxu0
    %v6332 = vadd.f32 %v6257, %v6331
    %v6333 = vpop.f32.mrb[0].mxu0
    %6334 = vmatprep.mubr.f32.mxu0 0.0
    %6335 = vmatmul.mubr.f32.gmra.mrb[0].mxu0 %v6263
    %v6336 = vpop.f32.mrb[0].mxu0
    %v6337 = vadd.f32 %v6257, %v6336
    %v6338 = vpop.f32.mrb[0].mxu0
    %6339 = vdwg.mxu0
    %v6340 = vmax.f32 %v6332, 0.0
    %v6341 = vmax.f32 %v6337, 0.0
    %v6343 = vlaneseq
    %v6344 = vshrl.u32 %v6343, 7
    %v6345 = vsub.s32 0, %v6344
    %v6346 = vrot.slane %v3553, %v6345
    %v6349 = vsel %vm1824, %v6340, 0
    %v6352 = vsel %vm1824, %v6341, 0
    %6354 = vmatprep.subr.mxu0 0.0
    %6355 = vmatpush1.msra.mxu0 %v3545
    %6356 = vmatprep.subr.mxu0 0.0
    %6357 = vmatpush1.msra.mxu0 %v3546
    %6358 = vmatprep.subr.mxu0 0.0
    %6359 = vmatpush1.msra.mxu0 %v3547
    %6360 = vmatprep.subr.mxu0 0.0
    %6361 = vmatpush1.msra.mxu0 %v3548
    %6362 = vmatprep.subr.mxu0 0.0
    %6363 = vmatpush1.msra.mxu0 %v3549
    %6364 = vmatprep.subr.mxu0 0.0
    %6365 = vmatpush1.msra.mxu0 %v3550
    %6366 = vmatprep.subr.mxu0 0.0
    %6367 = vmatpush1.msra.mxu0 %v3551
    %6368 = vmatprep.subr.mxu0 0.0
    %6369 = vmatpush1.msra.mxu0 %v3552
    %6370 = vmatprep.subr.mxu0 0.0
    %6371 = vmatpush1.msra.mxu0 0.0
    %6372 = vmatprep.subr.mxu0 0.0
    %6373 = vmatpush1.msra.mxu0 0.0
    %6374 = vmatprep.subr.mxu0 0.0
    %6375 = vmatpush1.msra.mxu0 0.0
    %6376 = vmatprep.subr.mxu0 0.0
    %6377 = vmatpush1.msra.mxu0 0.0
    %6378 = vmatprep.subr.mxu0 0.0
    %6379 = vmatpush1.msra.mxu0 0.0
    %6380 = vmatprep.subr.mxu0 0.0
    %6381 = vmatpush1.msra.mxu0 0.0
    %6382 = vmatprep.subr.mxu0 0.0
    %6383 = vmatpush1.msra.mxu0 0.0
    %6384 = vmatprep.subr.mxu0 0.0
    %6385 = vmatpush1.msra.mxu0 0.0
    %6386 = vmatprep.subr.mxu0 0.0
    %6387 = vmatpush1.msra.mxu0 0.0
    %6388 = vmatprep.subr.mxu0 0.0
    %6389 = vmatpush1.msra.mxu0 0.0
    %6390 = vmatprep.subr.mxu0 0.0
    %6391 = vmatpush1.msra.mxu0 0.0
    %6392 = vmatprep.subr.mxu0 0.0
    %6393 = vmatpush1.msra.mxu0 0.0
    %6394 = vmatprep.subr.mxu0 0.0
    %6395 = vmatpush1.msra.mxu0 0.0
    %6396 = vmatprep.subr.mxu0 0.0
    %6397 = vmatpush1.msra.mxu0 0.0
    %6398 = vmatprep.subr.mxu0 0.0
    %6399 = vmatpush1.msra.mxu0 0.0
    %6400 = vmatprep.subr.mxu0 0.0
    %6401 = vmatpush1.msra.mxu0 0.0
    %6402 = vmatprep.subr.mxu0 0.0
    %6403 = vmatpush1.msra.mxu0 0.0
    %6404 = vmatprep.subr.mxu0 0.0
    %6405 = vmatpush1.msra.mxu0 0.0
    %6406 = vmatprep.subr.mxu0 0.0
    %6407 = vmatpush1.msra.mxu0 0.0
    %6408 = vmatprep.subr.mxu0 0.0
    %6409 = vmatpush1.msra.mxu0 0.0
    %6410 = vmatprep.subr.mxu0 0.0
    %6411 = vmatpush1.msra.mxu0 0.0
    %6412 = vmatprep.subr.mxu0 0.0
    %6413 = vmatpush1.msra.mxu0 0.0
    %6414 = vmatprep.subr.mxu0 0.0
    %6415 = vmatpush1.msra.mxu0 0.0
    %6416 = vmatprep.subr.mxu0 0.0
    %6417 = vmatpush1.msra.mxu0 0.0
    %6418 = vmatprep.mubr.f32.mxu0 0.0
    %6419 = vmatmul.mubr.f32.gmra.mrb[0].mxu0 %v6349
    %v6420 = vpop.f32.mrb[0].mxu0
    %v6421 = vadd.f32 %v6346, %v6420
    %v6422 = vpop.f32.mrb[0].mxu0
    %6423 = vmatprep.mubr.f32.mxu0 0.0
    %6424 = vmatmul.mubr.f32.gmra.mrb[0].mxu0 %v6352
    %v6425 = vpop.f32.mrb[0].mxu0
    %v6426 = vadd.f32 %v6346, %v6425
    %v6427 = vpop.f32.mrb[0].mxu0
    %6428 = vdwg.mxu0
    %v6429 = vadd.f32 %v6195, %v6421
    %v6430 = vadd.f32 %v6196, %v6426
    %v6431 = vld [vmem:[%s103] sm:$0x1]
    %v6432 = vld [vmem:[%s105] sm:$0x1]
    %v6433 = vld [vmem:[%s107] sm:$0xff]
    %v6434 = vld [vmem:[%s107 + $0x8] sm:$0xff]
    %v6435 = vld [vmem:[%s107 + $0x10] sm:$0xff]
    %v6436 = vld [vmem:[%s107 + $0x18] sm:$0xff]
    %v6437 = vld [vmem:[%s109] sm:$0x1]
    %v6438 = vld [vmem:[%s111] sm:$0xff]
    %v6439 = vld [vmem:[%s111 + $0x8] sm:$0xff]
    %v6440 = vld [vmem:[%s111 + $0x10] sm:$0xff]
    %v6441 = vld [vmem:[%s111 + $0x18] sm:$0xff]
    %v6442 = vld [vmem:[%s113] sm:$0x1]
    %v6443 = vld [vmem:[%s115] sm:$0x1]
    %v6444 = vld [vmem:[%s117] sm:$0x1]
    %v6445 = vld [vmem:[%s119] sm:$0xff]
    %v6446 = vld [vmem:[%s119 + $0x8] sm:$0xff]
    %v6447 = vld [vmem:[%s119 + $0x10] sm:$0xff]
    %v6448 = vld [vmem:[%s119 + $0x18] sm:$0xff]
    %v6449 = vld [vmem:[%s121] sm:$0x1]
    %v6450 = vld [vmem:[%s123] sm:$0xff]
    %v6451 = vld [vmem:[%s123 + $0x8] sm:$0xff]
    %v6452 = vld [vmem:[%s123 + $0x10] sm:$0xff]
    %v6453 = vld [vmem:[%s123 + $0x18] sm:$0xff]
    %v6454 = vld [vmem:[%s125] sm:$0x1]
    %v6455 = vld [vmem:[%s127] sm:$0xff]
    %v6456 = vld [vmem:[%s127 + $0x8] sm:$0xff]
    %v6457 = vld [vmem:[%s127 + $0x10] sm:$0xff]
    %v6458 = vld [vmem:[%s127 + $0x18] sm:$0xff]
    %v6459 = vld [vmem:[%s129] sm:$0x1]
    %v6460 = vld [vmem:[%s131] sm:$0x1]
    %v6461 = vld [vmem:[%s133] sm:$0x1]
    %v6462 = vld [vmem:[%s135] sm:$0xff]
    %v6463 = vld [vmem:[%s135 + $0x8] sm:$0xff]
    %v6464 = vld [vmem:[%s135 + $0x10] sm:$0xff]
    %v6465 = vld [vmem:[%s135 + $0x18] sm:$0xff]
    %v6466 = vld [vmem:[#allocation2] sm:$0x1]
    %v6467 = vld [vmem:[%s139] sm:$0xff]
    %v6468 = vld [vmem:[%s139 + $0x8] sm:$0xff]
    %v6469 = vld [vmem:[%s139 + $0x10] sm:$0xff]
    %v6470 = vld [vmem:[%s139 + $0x18] sm:$0xff]
    %v6471 = vld [vmem:[%s139 + $0x20] sm:$0xff]
    %v6472 = vld [vmem:[%s139 + $0x28] sm:$0xff]
    %v6473 = vld [vmem:[%s139 + $0x30] sm:$0xff]
    %v6474 = vld [vmem:[%s139 + $0x38] sm:$0xff]
    %v6475 = vld [vmem:[#allocation5] sm:$0x1]
    %v6476 = vsel %vm390, %v6429, 0.0
    %6477 = vadd.xlane.f32.xlu0 %v6476
    %v6478 = vpop.xlane.xlu0 %6477
    %v6479 = vsel %vm390, %v6430, 0.0
    %6480 = vadd.xlane.f32.xlu0 %v6479
    %v6481 = vpop.xlane.xlu0 %6480
    %v6482 = vmul.f32 %v6478, %v397
    %v6483 = vmul.f32 %v6481, %v397
    %v6484 = vsub.f32 %v6429, %v6482
    %v6485 = vsub.f32 %v6430, %v6483
    %v6486 = vmul.f32 %v6484, %v6484
    %v6487 = vmul.f32 %v6485, %v6485
    %v6488 = vsel %vm390, %v6486, 0.0
    %6489 = vadd.xlane.f32.xlu0 %v6488
    %v6490 = vpop.xlane.xlu0 %6489
    %v6491 = vsel %vm390, %v6487, 0.0
    %6492 = vadd.xlane.f32.xlu0 %v6491
    %v6493 = vpop.xlane.xlu0 %6492
    %v6494 = vmul.f32 %v6490, 0.032258064
    %v6495 = vmul.f32 %v6493, 0.032258064
    %v6496 = vrsqrt.pop %v6494
    %v6497 = vmul.f32 %v6494, %v6496
    %vm6498 = vcmp.eq.f32.partialorder %v6494, inf
    %v6499 = vsel %vm6498, %v6494, %v6497
    %vm6500 = vcmp.eq.f32.partialorder %v6494, 0.0
    %v6501 = vand.u32 %v6494, 2147483648
    %v6502 = vsel %vm6500, %v6501, %v6499
    %v6503 = vrsqrt.pop %v6495
    %v6504 = vmul.f32 %v6495, %v6503
    %vm6505 = vcmp.eq.f32.partialorder %v6495, inf
    %v6506 = vsel %vm6505, %v6495, %v6504
    %vm6507 = vcmp.eq.f32.partialorder %v6495, 0.0
    %v6508 = vand.u32 %v6495, 2147483648
    %v6509 = vsel %vm6507, %v6508, %v6506
    %v6510 = vadd.f32 %v6502, 1e-06
    %v6511 = vadd.f32 %v6509, 1e-06
    %v6512 = vrcp.pop %v6510
    %v6513 = vrcp.pop %v6511
    %v6515 = vlaneseq
    %v6516 = vshrl.u32 %v6515, 7
    %v6517 = vsub.s32 0, %v6516
    %v6518 = vrot.slane %v6431, %v6517
    %v6520 = vmul.f32 %v6518, %v6484
    %v6521 = vmul.f32 %v6518, %v6485
    %v6522 = vmul.f32 %v6520, %v6512
    %v6523 = vmul.f32 %v6521, %v6513
    %v6525 = vlaneseq
    %v6526 = vshrl.u32 %v6525, 7
    %v6527 = vsub.s32 0, %v6526
    %v6528 = vrot.slane %v6432, %v6527
    %v6530 = vadd.f32 %v6522, %v6528
    %v6531 = vadd.f32 %v6523, %v6528
    %v6533 = vlaneseq
    %v6534 = vshrl.u32 %v6533, 7
    %v6535 = vsub.s32 0, %v6534
    %v6536 = vrot.slane %v6437, %v6535
    %v6539 = vsel %vm390, %v6530, 0
    %v6542 = vsel %vm390, %v6531, 0
    %6544 = vmatprep.subr.mxu0 0.0
    %6545 = vmatpush1.msra.mxu0 %v6433
    %6546 = vmatprep.subr.mxu0 0.0
    %6547 = vmatpush1.msra.mxu0 %v6434
    %6548 = vmatprep.subr.mxu0 0.0
    %6549 = vmatpush1.msra.mxu0 %v6435
    %6550 = vmatprep.subr.mxu0 0.0
    %6551 = vmatpush1.msra.mxu0 %v6436
    %6552 = vmatprep.subr.mxu0 0.0
    %6553 = vmatpush1.msra.mxu0 0.0
    %6554 = vmatprep.subr.mxu0 0.0
    %6555 = vmatpush1.msra.mxu0 0.0
    %6556 = vmatprep.subr.mxu0 0.0
    %6557 = vmatpush1.msra.mxu0 0.0
    %6558 = vmatprep.subr.mxu0 0.0
    %6559 = vmatpush1.msra.mxu0 0.0
    %6560 = vmatprep.subr.mxu0 0.0
    %6561 = vmatpush1.msra.mxu0 0.0
    %6562 = vmatprep.subr.mxu0 0.0
    %6563 = vmatpush1.msra.mxu0 0.0
    %6564 = vmatprep.subr.mxu0 0.0
    %6565 = vmatpush1.msra.mxu0 0.0
    %6566 = vmatprep.subr.mxu0 0.0
    %6567 = vmatpush1.msra.mxu0 0.0
    %6568 = vmatprep.subr.mxu0 0.0
    %6569 = vmatpush1.msra.mxu0 0.0
    %6570 = vmatprep.subr.mxu0 0.0
    %6571 = vmatpush1.msra.mxu0 0.0
    %6572 = vmatprep.subr.mxu0 0.0
    %6573 = vmatpush1.msra.mxu0 0.0
    %6574 = vmatprep.subr.mxu0 0.0
    %6575 = vmatpush1.msra.mxu0 0.0
    %6576 = vmatprep.subr.mxu0 0.0
    %6577 = vmatpush1.msra.mxu0 0.0
    %6578 = vmatprep.subr.mxu0 0.0
    %6579 = vmatpush1.msra.mxu0 0.0
    %6580 = vmatprep.subr.mxu0 0.0
    %6581 = vmatpush1.msra.mxu0 0.0
    %6582 = vmatprep.subr.mxu0 0.0
    %6583 = vmatpush1.msra.mxu0 0.0
    %6584 = vmatprep.subr.mxu0 0.0
    %6585 = vmatpush1.msra.mxu0 0.0
    %6586 = vmatprep.subr.mxu0 0.0
    %6587 = vmatpush1.msra.mxu0 0.0
    %6588 = vmatprep.subr.mxu0 0.0
    %6589 = vmatpush1.msra.mxu0 0.0
    %6590 = vmatprep.subr.mxu0 0.0
    %6591 = vmatpush1.msra.mxu0 0.0
    %6592 = vmatprep.subr.mxu0 0.0
    %6593 = vmatpush1.msra.mxu0 0.0
    %6594 = vmatprep.subr.mxu0 0.0
    %6595 = vmatpush1.msra.mxu0 0.0
    %6596 = vmatprep.subr.mxu0 0.0
    %6597 = vmatpush1.msra.mxu0 0.0
    %6598 = vmatprep.subr.mxu0 0.0
    %6599 = vmatpush1.msra.mxu0 0.0
    %6600 = vmatprep.subr.mxu0 0.0
    %6601 = vmatpush1.msra.mxu0 0.0
    %6602 = vmatprep.subr.mxu0 0.0
    %6603 = vmatpush1.msra.mxu0 0.0
    %6604 = vmatprep.subr.mxu0 0.0
    %6605 = vmatpush1.msra.mxu0 0.0
    %6606 = vmatprep.subr.mxu0 0.0
    %6607 = vmatpush1.msra.mxu0 0.0
    %6608 = vmatprep.mubr.f32.mxu0 0.0
    %6609 = vmatmul.mubr.f32.gmra.mrb[0].mxu0 %v6539
    %v6610 = vpop.f32.mrb[0].mxu0
    %v6611 = vadd.f32 %v6536, %v6610
    %v6612 = vpop.f32.mrb[0].mxu0
    %6613 = vmatprep.mubr.f32.mxu0 0.0
    %6614 = vmatmul.mubr.f32.gmra.mrb[0].mxu0 %v6542
    %v6615 = vpop.f32.mrb[0].mxu0
    %v6616 = vadd.f32 %v6536, %v6615
    %v6617 = vpop.f32.mrb[0].mxu0
    %6618 = vdwg.mxu0
    %6621 = vrot.lane.b32.xlu0 %v6611, 96
    %v6622 = vpop.permute.xlu0 %6621
    %6623 = vrot.lane.b32.xlu0 %v6616, 96
    %v6624 = vpop.permute.xlu0 %6623
    %v6625 = vsel %vm541, %v6611, 0
    %v6627 = vsel %vm541, %v6616, 0
    %v6629 = vsel %vm541, %v6622, 0
    %v6631 = vsel %vm541, %v6624, 0
    %6633 = vmatprep.subr.mxu0 0.0
    %6634 = vmatpush1.xpose.msra.mxu0 %v6629
    %6635 = vmatprep.subr.mxu0 0.0
    %6636 = vmatpush1.xpose.msra.mxu0 %v6631
    %6637 = vmatprep.subr.mxu0 0.0
    %6638 = vmatpush1.xpose.msra.mxu0 0.0
    %6639 = vmatprep.subr.mxu0 0.0
    %6640 = vmatpush1.xpose.msra.mxu0 0.0
    %6641 = vmatprep.subr.mxu0 0.0
    %6642 = vmatpush1.xpose.msra.mxu0 0.0
    %6643 = vmatprep.subr.mxu0 0.0
    %6644 = vmatpush1.xpose.msra.mxu0 0.0
    %6645 = vmatprep.subr.mxu0 0.0
    %6646 = vmatpush1.xpose.msra.mxu0 0.0
    %6647 = vmatprep.subr.mxu0 0.0
    %6648 = vmatpush1.xpose.msra.mxu0 0.0
    %6649 = vmatprep.subr.mxu0 0.0
    %6650 = vmatpush1.xpose.msra.mxu0 0.0
    %6651 = vmatprep.subr.mxu0 0.0
    %6652 = vmatpush1.xpose.msra.mxu0 0.0
    %6653 = vmatprep.subr.mxu0 0.0
    %6654 = vmatpush1.xpose.msra.mxu0 0.0
    %6655 = vmatprep.subr.mxu0 0.0
    %6656 = vmatpush1.xpose.msra.mxu0 0.0
    %6657 = vmatprep.subr.mxu0 0.0
    %6658 = vmatpush1.xpose.msra.mxu0 0.0
    %6659 = vmatprep.subr.mxu0 0.0
    %6660 = vmatpush1.xpose.msra.mxu0 0.0
    %6661 = vmatprep.subr.mxu0 0.0
    %6662 = vmatpush1.xpose.msra.mxu0 0.0
    %6663 = vmatprep.subr.mxu0 0.0
    %6664 = vmatpush1.xpose.msra.mxu0 0.0
    %6665 = vmatprep.subr.mxu0 0.0
    %6666 = vmatpush1.xpose.msra.mxu0 0.0
    %6667 = vmatprep.subr.mxu0 0.0
    %6668 = vmatpush1.xpose.msra.mxu0 0.0
    %6669 = vmatprep.subr.mxu0 0.0
    %6670 = vmatpush1.xpose.msra.mxu0 0.0
    %6671 = vmatprep.subr.mxu0 0.0
    %6672 = vmatpush1.xpose.msra.mxu0 0.0
    %6673 = vmatprep.subr.mxu0 0.0
    %6674 = vmatpush1.xpose.msra.mxu0 0.0
    %6675 = vmatprep.subr.mxu0 0.0
    %6676 = vmatpush1.xpose.msra.mxu0 0.0
    %6677 = vmatprep.subr.mxu0 0.0
    %6678 = vmatpush1.xpose.msra.mxu0 0.0
    %6679 = vmatprep.subr.mxu0 0.0
    %6680 = vmatpush1.xpose.msra.mxu0 0.0
    %6681 = vmatprep.subr.mxu0 0.0
    %6682 = vmatpush1.xpose.msra.mxu0 0.0
    %6683 = vmatprep.subr.mxu0 0.0
    %6684 = vmatpush1.xpose.msra.mxu0 0.0
    %6685 = vmatprep.subr.mxu0 0.0
    %6686 = vmatpush1.xpose.msra.mxu0 0.0
    %6687 = vmatprep.subr.mxu0 0.0
    %6688 = vmatpush1.xpose.msra.mxu0 0.0
    %6689 = vmatprep.subr.mxu0 0.0
    %6690 = vmatpush1.xpose.msra.mxu0 0.0
    %6691 = vmatprep.subr.mxu0 0.0
    %6692 = vmatpush1.xpose.msra.mxu0 0.0
    %6693 = vmatprep.subr.mxu0 0.0
    %6694 = vmatpush1.xpose.msra.mxu0 0.0
    %6695 = vmatprep.subr.mxu0 0.0
    %6696 = vmatpush1.xpose.msra.mxu0 0.0
    %6697 = vmatprep.mubr.f32.mxu0 0.0
    %6698 = vmatmul.mubr.f32.gmra.mrb[0].mxu0 %v6625
    %v6699 = vpop.f32.mrb[0].mxu0
    %v6700 = vadd.f32 %v356, %v6699
    %v6701 = vpop.f32.mrb[0].mxu0
    %6702 = vmatprep.mubr.f32.mxu0 0.0
    %6703 = vmatmul.mubr.f32.gmra.mrb[0].mxu0 %v6627
    %v6704 = vpop.f32.mrb[0].mxu0
    %v6705 = vadd.f32 %v357, %v6704
    %v6706 = vpop.f32.mrb[0].mxu0
    %6707 = vdwg.mxu0
    %v6708 = vsel %vm625, %v6700, -inf
    %6709 = vmax.xlane.f32.xlu0 %v6708
    %v6710 = vpop.xlane.xlu0 %6709
    %v6711 = vsel %vm625, %v6705, -inf
    %6712 = vmax.xlane.f32.xlu0 %v6711
    %v6713 = vpop.xlane.xlu0 %6712
    %v6714 = vsub.f32 %v6700, %v6710
    %v6715 = vsub.f32 %v6705, %v6713
    %v6716 = vmul.f32 %v6714, 1.442695
    %v6717 = vpow.pop %v6716
    %v6718 = vmul.f32 %v6715, 1.442695
    %v6719 = vpow.pop %v6718
    %v6720 = vsel %vm625, %v6717, 0.0
    %6721 = vadd.xlane.f32.xlu0 %v6720
    %v6722 = vpop.xlane.xlu0 %6721
    %v6723 = vsel %vm625, %v6719, 0.0
    %6724 = vadd.xlane.f32.xlu0 %v6723
    %v6725 = vpop.xlane.xlu0 %6724
    %v6726 = vrcp.pop %v6722
    %v6727 = vrcp.pop %v6725
    %v6728 = vmul.f32 %v6717, %v6726
    %v6729 = vmul.f32 %v6719, %v6727
    %6730 = vrot.lane.b32.xlu0 %v6611, 64
    %v6731 = vpop.permute.xlu0 %6730
    %6732 = vrot.lane.b32.xlu0 %v6616, 64
    %v6733 = vpop.permute.xlu0 %6732
    %v6737 = vsel %vm625, %v6728, 0
    %v6740 = vsel %vm625, %v6729, 0
    %6742 = vmatprep.subr.mxu0 0.0
    %6743 = vmatpush1.msra.mxu0 %v6731
    %6744 = vmatprep.subr.mxu0 0.0
    %6745 = vmatpush1.msra.mxu0 %v6733
    %6746 = vmatprep.subr.mxu0 0.0
    %6747 = vmatpush1.msra.mxu0 0.0
    %6748 = vmatprep.subr.mxu0 0.0
    %6749 = vmatpush1.msra.mxu0 0.0
    %6750 = vmatprep.subr.mxu0 0.0
    %6751 = vmatpush1.msra.mxu0 0.0
    %6752 = vmatprep.subr.mxu0 0.0
    %6753 = vmatpush1.msra.mxu0 0.0
    %6754 = vmatprep.subr.mxu0 0.0
    %6755 = vmatpush1.msra.mxu0 0.0
    %6756 = vmatprep.subr.mxu0 0.0
    %6757 = vmatpush1.msra.mxu0 0.0
    %6758 = vmatprep.subr.mxu0 0.0
    %6759 = vmatpush1.msra.mxu0 0.0
    %6760 = vmatprep.subr.mxu0 0.0
    %6761 = vmatpush1.msra.mxu0 0.0
    %6762 = vmatprep.subr.mxu0 0.0
    %6763 = vmatpush1.msra.mxu0 0.0
    %6764 = vmatprep.subr.mxu0 0.0
    %6765 = vmatpush1.msra.mxu0 0.0
    %6766 = vmatprep.subr.mxu0 0.0
    %6767 = vmatpush1.msra.mxu0 0.0
    %6768 = vmatprep.subr.mxu0 0.0
    %6769 = vmatpush1.msra.mxu0 0.0
    %6770 = vmatprep.subr.mxu0 0.0
    %6771 = vmatpush1.msra.mxu0 0.0
    %6772 = vmatprep.subr.mxu0 0.0
    %6773 = vmatpush1.msra.mxu0 0.0
    %6774 = vmatprep.subr.mxu0 0.0
    %6775 = vmatpush1.msra.mxu0 0.0
    %6776 = vmatprep.subr.mxu0 0.0
    %6777 = vmatpush1.msra.mxu0 0.0
    %6778 = vmatprep.subr.mxu0 0.0
    %6779 = vmatpush1.msra.mxu0 0.0
    %6780 = vmatprep.subr.mxu0 0.0
    %6781 = vmatpush1.msra.mxu0 0.0
    %6782 = vmatprep.subr.mxu0 0.0
    %6783 = vmatpush1.msra.mxu0 0.0
    %6784 = vmatprep.subr.mxu0 0.0
    %6785 = vmatpush1.msra.mxu0 0.0
    %6786 = vmatprep.subr.mxu0 0.0
    %6787 = vmatpush1.msra.mxu0 0.0
    %6788 = vmatprep.subr.mxu0 0.0
    %6789 = vmatpush1.msra.mxu0 0.0
    %6790 = vmatprep.subr.mxu0 0.0
    %6791 = vmatpush1.msra.mxu0 0.0
    %6792 = vmatprep.subr.mxu0 0.0
    %6793 = vmatpush1.msra.mxu0 0.0
    %6794 = vmatprep.subr.mxu0 0.0
    %6795 = vmatpush1.msra.mxu0 0.0
    %6796 = vmatprep.subr.mxu0 0.0
    %6797 = vmatpush1.msra.mxu0 0.0
    %6798 = vmatprep.subr.mxu0 0.0
    %6799 = vmatpush1.msra.mxu0 0.0
    %6800 = vmatprep.subr.mxu0 0.0
    %6801 = vmatpush1.msra.mxu0 0.0
    %6802 = vmatprep.subr.mxu0 0.0
    %6803 = vmatpush1.msra.mxu0 0.0
    %6804 = vmatprep.subr.mxu0 0.0
    %6805 = vmatpush1.msra.mxu0 0.0
    %6806 = vmatprep.mubr.f32.mxu0 0.0
    %6807 = vmatmul.mubr.f32.gmra.mrb[0].mxu0 %v6737
    %v6808 = vpop.f32.mrb[0].mxu0
    %v6809 = vadd.f32 0.0, %v6808
    %v6810 = vpop.f32.mrb[0].mxu0
    %6811 = vmatprep.mubr.f32.mxu0 0.0
    %6812 = vmatmul.mubr.f32.gmra.mrb[0].mxu0 %v6740
    %v6813 = vpop.f32.mrb[0].mxu0
    %v6814 = vadd.f32 0.0, %v6813
    %v6815 = vpop.f32.mrb[0].mxu0
    %6816 = vdwg.mxu0
    %6817 = vrot.lane.b32.xlu0 %v6611, 120
    %v6818 = vpop.permute.xlu0 %6817
    %6819 = vrot.lane.b32.xlu0 %v6616, 120
    %v6820 = vpop.permute.xlu0 %6819
    %6821 = vrot.lane.b32.xlu0 %v6611, 88
    %v6822 = vpop.permute.xlu0 %6821
    %6823 = vrot.lane.b32.xlu0 %v6616, 88
    %v6824 = vpop.permute.xlu0 %6823
    %v6825 = vsel %vm541, %v6818, 0
    %v6827 = vsel %vm541, %v6820, 0
    %v6829 = vsel %vm541, %v6822, 0
    %v6831 = vsel %vm541, %v6824, 0
    %6833 = vmatprep.subr.mxu0 0.0
    %6834 = vmatpush1.xpose.msra.mxu0 %v6829
    %6835 = vmatprep.subr.mxu0 0.0
    %6836 = vmatpush1.xpose.msra.mxu0 %v6831
    %6837 = vmatprep.subr.mxu0 0.0
    %6838 = vmatpush1.xpose.msra.mxu0 0.0
    %6839 = vmatprep.subr.mxu0 0.0
    %6840 = vmatpush1.xpose.msra.mxu0 0.0
    %6841 = vmatprep.subr.mxu0 0.0
    %6842 = vmatpush1.xpose.msra.mxu0 0.0
    %6843 = vmatprep.subr.mxu0 0.0
    %6844 = vmatpush1.xpose.msra.mxu0 0.0
    %6845 = vmatprep.subr.mxu0 0.0
    %6846 = vmatpush1.xpose.msra.mxu0 0.0
    %6847 = vmatprep.subr.mxu0 0.0
    %6848 = vmatpush1.xpose.msra.mxu0 0.0
    %6849 = vmatprep.subr.mxu0 0.0
    %6850 = vmatpush1.xpose.msra.mxu0 0.0
    %6851 = vmatprep.subr.mxu0 0.0
    %6852 = vmatpush1.xpose.msra.mxu0 0.0
    %6853 = vmatprep.subr.mxu0 0.0
    %6854 = vmatpush1.xpose.msra.mxu0 0.0
    %6855 = vmatprep.subr.mxu0 0.0
    %6856 = vmatpush1.xpose.msra.mxu0 0.0
    %6857 = vmatprep.subr.mxu0 0.0
    %6858 = vmatpush1.xpose.msra.mxu0 0.0
    %6859 = vmatprep.subr.mxu0 0.0
    %6860 = vmatpush1.xpose.msra.mxu0 0.0
    %6861 = vmatprep.subr.mxu0 0.0
    %6862 = vmatpush1.xpose.msra.mxu0 0.0
    %6863 = vmatprep.subr.mxu0 0.0
    %6864 = vmatpush1.xpose.msra.mxu0 0.0
    %6865 = vmatprep.subr.mxu0 0.0
    %6866 = vmatpush1.xpose.msra.mxu0 0.0
    %6867 = vmatprep.subr.mxu0 0.0
    %6868 = vmatpush1.xpose.msra.mxu0 0.0
    %6869 = vmatprep.subr.mxu0 0.0
    %6870 = vmatpush1.xpose.msra.mxu0 0.0
    %6871 = vmatprep.subr.mxu0 0.0
    %6872 = vmatpush1.xpose.msra.mxu0 0.0
    %6873 = vmatprep.subr.mxu0 0.0
    %6874 = vmatpush1.xpose.msra.mxu0 0.0
    %6875 = vmatprep.subr.mxu0 0.0
    %6876 = vmatpush1.xpose.msra.mxu0 0.0
    %6877 = vmatprep.subr.mxu0 0.0
    %6878 = vmatpush1.xpose.msra.mxu0 0.0
    %6879 = vmatprep.subr.mxu0 0.0
    %6880 = vmatpush1.xpose.msra.mxu0 0.0
    %6881 = vmatprep.subr.mxu0 0.0
    %6882 = vmatpush1.xpose.msra.mxu0 0.0
    %6883 = vmatprep.subr.mxu0 0.0
    %6884 = vmatpush1.xpose.msra.mxu0 0.0
    %6885 = vmatprep.subr.mxu0 0.0
    %6886 = vmatpush1.xpose.msra.mxu0 0.0
    %6887 = vmatprep.subr.mxu0 0.0
    %6888 = vmatpush1.xpose.msra.mxu0 0.0
    %6889 = vmatprep.subr.mxu0 0.0
    %6890 = vmatpush1.xpose.msra.mxu0 0.0
    %6891 = vmatprep.subr.mxu0 0.0
    %6892 = vmatpush1.xpose.msra.mxu0 0.0
    %6893 = vmatprep.subr.mxu0 0.0
    %6894 = vmatpush1.xpose.msra.mxu0 0.0
    %6895 = vmatprep.subr.mxu0 0.0
    %6896 = vmatpush1.xpose.msra.mxu0 0.0
    %6897 = vmatprep.mubr.f32.mxu0 0.0
    %6898 = vmatmul.mubr.f32.gmra.mrb[0].mxu0 %v6825
    %v6899 = vpop.f32.mrb[0].mxu0
    %v6900 = vadd.f32 %v356, %v6899
    %v6901 = vpop.f32.mrb[0].mxu0
    %6902 = vmatprep.mubr.f32.mxu0 0.0
    %6903 = vmatmul.mubr.f32.gmra.mrb[0].mxu0 %v6827
    %v6904 = vpop.f32.mrb[0].mxu0
    %v6905 = vadd.f32 %v357, %v6904
    %v6906 = vpop.f32.mrb[0].mxu0
    %6907 = vdwg.mxu0
    %v6908 = vsel %vm625, %v6900, -inf
    %6909 = vmax.xlane.f32.xlu0 %v6908
    %v6910 = vpop.xlane.xlu0 %6909
    %v6911 = vsel %vm625, %v6905, -inf
    %6912 = vmax.xlane.f32.xlu0 %v6911
    %v6913 = vpop.xlane.xlu0 %6912
    %v6914 = vsub.f32 %v6900, %v6910
    %v6915 = vsub.f32 %v6905, %v6913
    %v6916 = vmul.f32 %v6914, 1.442695
    %v6917 = vpow.pop %v6916
    %v6918 = vmul.f32 %v6915, 1.442695
    %v6919 = vpow.pop %v6918
    %v6920 = vsel %vm625, %v6917, 0.0
    %6921 = vadd.xlane.f32.xlu0 %v6920
    %v6922 = vpop.xlane.xlu0 %6921
    %v6923 = vsel %vm625, %v6919, 0.0
    %6924 = vadd.xlane.f32.xlu0 %v6923
    %v6925 = vpop.xlane.xlu0 %6924
    %v6926 = vrcp.pop %v6922
    %v6927 = vrcp.pop %v6925
    %v6928 = vmul.f32 %v6917, %v6926
    %v6929 = vmul.f32 %v6919, %v6927
    %6930 = vrot.lane.b32.xlu0 %v6611, 56
    %v6931 = vpop.permute.xlu0 %6930
    %6932 = vrot.lane.b32.xlu0 %v6616, 56
    %v6933 = vpop.permute.xlu0 %6932
    %v6937 = vsel %vm625, %v6928, 0
    %v6940 = vsel %vm625, %v6929, 0
    %6942 = vmatprep.subr.mxu0 0.0
    %6943 = vmatpush1.msra.mxu0 %v6931
    %6944 = vmatprep.subr.mxu0 0.0
    %6945 = vmatpush1.msra.mxu0 %v6933
    %6946 = vmatprep.subr.mxu0 0.0
    %6947 = vmatpush1.msra.mxu0 0.0
    %6948 = vmatprep.subr.mxu0 0.0
    %6949 = vmatpush1.msra.mxu0 0.0
    %6950 = vmatprep.subr.mxu0 0.0
    %6951 = vmatpush1.msra.mxu0 0.0
    %6952 = vmatprep.subr.mxu0 0.0
    %6953 = vmatpush1.msra.mxu0 0.0
    %6954 = vmatprep.subr.mxu0 0.0
    %6955 = vmatpush1.msra.mxu0 0.0
    %6956 = vmatprep.subr.mxu0 0.0
    %6957 = vmatpush1.msra.mxu0 0.0
    %6958 = vmatprep.subr.mxu0 0.0
    %6959 = vmatpush1.msra.mxu0 0.0
    %6960 = vmatprep.subr.mxu0 0.0
    %6961 = vmatpush1.msra.mxu0 0.0
    %6962 = vmatprep.subr.mxu0 0.0
    %6963 = vmatpush1.msra.mxu0 0.0
    %6964 = vmatprep.subr.mxu0 0.0
    %6965 = vmatpush1.msra.mxu0 0.0
    %6966 = vmatprep.subr.mxu0 0.0
    %6967 = vmatpush1.msra.mxu0 0.0
    %6968 = vmatprep.subr.mxu0 0.0
    %6969 = vmatpush1.msra.mxu0 0.0
    %6970 = vmatprep.subr.mxu0 0.0
    %6971 = vmatpush1.msra.mxu0 0.0
    %6972 = vmatprep.subr.mxu0 0.0
    %6973 = vmatpush1.msra.mxu0 0.0
    %6974 = vmatprep.subr.mxu0 0.0
    %6975 = vmatpush1.msra.mxu0 0.0
    %6976 = vmatprep.subr.mxu0 0.0
    %6977 = vmatpush1.msra.mxu0 0.0
    %6978 = vmatprep.subr.mxu0 0.0
    %6979 = vmatpush1.msra.mxu0 0.0
    %6980 = vmatprep.subr.mxu0 0.0
    %6981 = vmatpush1.msra.mxu0 0.0
    %6982 = vmatprep.subr.mxu0 0.0
    %6983 = vmatpush1.msra.mxu0 0.0
    %6984 = vmatprep.subr.mxu0 0.0
    %6985 = vmatpush1.msra.mxu0 0.0
    %6986 = vmatprep.subr.mxu0 0.0
    %6987 = vmatpush1.msra.mxu0 0.0
    %6988 = vmatprep.subr.mxu0 0.0
    %6989 = vmatpush1.msra.mxu0 0.0
    %6990 = vmatprep.subr.mxu0 0.0
    %6991 = vmatpush1.msra.mxu0 0.0
    %6992 = vmatprep.subr.mxu0 0.0
    %6993 = vmatpush1.msra.mxu0 0.0
    %6994 = vmatprep.subr.mxu0 0.0
    %6995 = vmatpush1.msra.mxu0 0.0
    %6996 = vmatprep.subr.mxu0 0.0
    %6997 = vmatpush1.msra.mxu0 0.0
    %6998 = vmatprep.subr.mxu0 0.0
    %6999 = vmatpush1.msra.mxu0 0.0
    %7000 = vmatprep.subr.mxu0 0.0
    %7001 = vmatpush1.msra.mxu0 0.0
    %7002 = vmatprep.subr.mxu0 0.0
    %7003 = vmatpush1.msra.mxu0 0.0
    %7004 = vmatprep.subr.mxu0 0.0
    %7005 = vmatpush1.msra.mxu0 0.0
    %7006 = vmatprep.mubr.f32.mxu0 0.0
    %7007 = vmatmul.mubr.f32.gmra.mrb[0].mxu0 %v6937
    %v7008 = vpop.f32.mrb[0].mxu0
    %v7009 = vadd.f32 0.0, %v7008
    %v7010 = vpop.f32.mrb[0].mxu0
    %7011 = vmatprep.mubr.f32.mxu0 0.0
    %7012 = vmatmul.mubr.f32.gmra.mrb[0].mxu0 %v6940
    %v7013 = vpop.f32.mrb[0].mxu0
    %v7014 = vadd.f32 0.0, %v7013
    %v7015 = vpop.f32.mrb[0].mxu0
    %7016 = vdwg.mxu0
    %v7018 = vsel %vm541, %v7009, 0
    %v7021 = vsel %vm541, %v7014, 0
    %7023 = vmatprep.subr.mxu0 0.0
    %7024 = vmatpush1.msra.mxu0 %v6439
    %7025 = vmatprep.subr.mxu0 0.0
    %7026 = vmatpush1.msra.mxu0 0.0
    %7027 = vmatprep.subr.mxu0 0.0
    %7028 = vmatpush1.msra.mxu0 0.0
    %7029 = vmatprep.subr.mxu0 0.0
    %7030 = vmatpush1.msra.mxu0 0.0
    %7031 = vmatprep.subr.mxu0 0.0
    %7032 = vmatpush1.msra.mxu0 0.0
    %7033 = vmatprep.subr.mxu0 0.0
    %7034 = vmatpush1.msra.mxu0 0.0
    %7035 = vmatprep.subr.mxu0 0.0
    %7036 = vmatpush1.msra.mxu0 0.0
    %7037 = vmatprep.subr.mxu0 0.0
    %7038 = vmatpush1.msra.mxu0 0.0
    %7039 = vmatprep.subr.mxu0 0.0
    %7040 = vmatpush1.msra.mxu0 0.0
    %7041 = vmatprep.subr.mxu0 0.0
    %7042 = vmatpush1.msra.mxu0 0.0
    %7043 = vmatprep.subr.mxu0 0.0
    %7044 = vmatpush1.msra.mxu0 0.0
    %7045 = vmatprep.subr.mxu0 0.0
    %7046 = vmatpush1.msra.mxu0 0.0
    %7047 = vmatprep.subr.mxu0 0.0
    %7048 = vmatpush1.msra.mxu0 0.0
    %7049 = vmatprep.subr.mxu0 0.0
    %7050 = vmatpush1.msra.mxu0 0.0
    %7051 = vmatprep.subr.mxu0 0.0
    %7052 = vmatpush1.msra.mxu0 0.0
    %7053 = vmatprep.subr.mxu0 0.0
    %7054 = vmatpush1.msra.mxu0 0.0
    %7055 = vmatprep.subr.mxu0 0.0
    %7056 = vmatpush1.msra.mxu0 0.0
    %7057 = vmatprep.subr.mxu0 0.0
    %7058 = vmatpush1.msra.mxu0 0.0
    %7059 = vmatprep.subr.mxu0 0.0
    %7060 = vmatpush1.msra.mxu0 0.0
    %7061 = vmatprep.subr.mxu0 0.0
    %7062 = vmatpush1.msra.mxu0 0.0
    %7063 = vmatprep.subr.mxu0 0.0
    %7064 = vmatpush1.msra.mxu0 0.0
    %7065 = vmatprep.subr.mxu0 0.0
    %7066 = vmatpush1.msra.mxu0 0.0
    %7067 = vmatprep.subr.mxu0 0.0
    %7068 = vmatpush1.msra.mxu0 0.0
    %7069 = vmatprep.subr.mxu0 0.0
    %7070 = vmatpush1.msra.mxu0 0.0
    %7071 = vmatprep.subr.mxu0 0.0
    %7072 = vmatpush1.msra.mxu0 0.0
    %7073 = vmatprep.subr.mxu0 0.0
    %7074 = vmatpush1.msra.mxu0 0.0
    %7075 = vmatprep.subr.mxu0 0.0
    %7076 = vmatpush1.msra.mxu0 0.0
    %7077 = vmatprep.subr.mxu0 0.0
    %7078 = vmatpush1.msra.mxu0 0.0
    %7079 = vmatprep.subr.mxu0 0.0
    %7080 = vmatpush1.msra.mxu0 0.0
    %7081 = vmatprep.subr.mxu0 0.0
    %7082 = vmatpush1.msra.mxu0 0.0
    %7083 = vmatprep.subr.mxu0 0.0
    %7084 = vmatpush1.msra.mxu0 0.0
    %7085 = vmatprep.subr.mxu0 0.0
    %7086 = vmatpush1.msra.mxu0 0.0
    %7087 = vmatprep.mubr.f32.mxu0 0.0
    %7088 = vmatmul.mubr.f32.gmra.mrb[0].mxu0 %v7018
    %v7089 = vpop.f32.mrb[0].mxu0
    %v7090 = vadd.f32 0.0, %v7089
    %v7091 = vpop.f32.mrb[0].mxu0
    %7092 = vmatprep.mubr.f32.mxu0 0.0
    %7093 = vmatmul.mubr.f32.gmra.mrb[0].mxu0 %v7021
    %v7094 = vpop.f32.mrb[0].mxu0
    %v7095 = vadd.f32 0.0, %v7094
    %v7096 = vpop.f32.mrb[0].mxu0
    %7097 = vdwg.mxu0
    %v7099 = vsel %vm541, %v6809, 0
    %v7102 = vsel %vm541, %v6814, 0
    %7104 = vmatprep.subr.mxu0 0.0
    %7105 = vmatpush1.msra.mxu0 %v6438
    %7106 = vmatprep.subr.mxu0 0.0
    %7107 = vmatpush1.msra.mxu0 0.0
    %7108 = vmatprep.subr.mxu0 0.0
    %7109 = vmatpush1.msra.mxu0 0.0
    %7110 = vmatprep.subr.mxu0 0.0
    %7111 = vmatpush1.msra.mxu0 0.0
    %7112 = vmatprep.subr.mxu0 0.0
    %7113 = vmatpush1.msra.mxu0 0.0
    %7114 = vmatprep.subr.mxu0 0.0
    %7115 = vmatpush1.msra.mxu0 0.0
    %7116 = vmatprep.subr.mxu0 0.0
    %7117 = vmatpush1.msra.mxu0 0.0
    %7118 = vmatprep.subr.mxu0 0.0
    %7119 = vmatpush1.msra.mxu0 0.0
    %7120 = vmatprep.subr.mxu0 0.0
    %7121 = vmatpush1.msra.mxu0 0.0
    %7122 = vmatprep.subr.mxu0 0.0
    %7123 = vmatpush1.msra.mxu0 0.0
    %7124 = vmatprep.subr.mxu0 0.0
    %7125 = vmatpush1.msra.mxu0 0.0
    %7126 = vmatprep.subr.mxu0 0.0
    %7127 = vmatpush1.msra.mxu0 0.0
    %7128 = vmatprep.subr.mxu0 0.0
    %7129 = vmatpush1.msra.mxu0 0.0
    %7130 = vmatprep.subr.mxu0 0.0
    %7131 = vmatpush1.msra.mxu0 0.0
    %7132 = vmatprep.subr.mxu0 0.0
    %7133 = vmatpush1.msra.mxu0 0.0
    %7134 = vmatprep.subr.mxu0 0.0
    %7135 = vmatpush1.msra.mxu0 0.0
    %7136 = vmatprep.subr.mxu0 0.0
    %7137 = vmatpush1.msra.mxu0 0.0
    %7138 = vmatprep.subr.mxu0 0.0
    %7139 = vmatpush1.msra.mxu0 0.0
    %7140 = vmatprep.subr.mxu0 0.0
    %7141 = vmatpush1.msra.mxu0 0.0
    %7142 = vmatprep.subr.mxu0 0.0
    %7143 = vmatpush1.msra.mxu0 0.0
    %7144 = vmatprep.subr.mxu0 0.0
    %7145 = vmatpush1.msra.mxu0 0.0
    %7146 = vmatprep.subr.mxu0 0.0
    %7147 = vmatpush1.msra.mxu0 0.0
    %7148 = vmatprep.subr.mxu0 0.0
    %7149 = vmatpush1.msra.mxu0 0.0
    %7150 = vmatprep.subr.mxu0 0.0
    %7151 = vmatpush1.msra.mxu0 0.0
    %7152 = vmatprep.subr.mxu0 0.0
    %7153 = vmatpush1.msra.mxu0 0.0
    %7154 = vmatprep.subr.mxu0 0.0
    %7155 = vmatpush1.msra.mxu0 0.0
    %7156 = vmatprep.subr.mxu0 0.0
    %7157 = vmatpush1.msra.mxu0 0.0
    %7158 = vmatprep.subr.mxu0 0.0
    %7159 = vmatpush1.msra.mxu0 0.0
    %7160 = vmatprep.subr.mxu0 0.0
    %7161 = vmatpush1.msra.mxu0 0.0
    %7162 = vmatprep.subr.mxu0 0.0
    %7163 = vmatpush1.msra.mxu0 0.0
    %7164 = vmatprep.subr.mxu0 0.0
    %7165 = vmatpush1.msra.mxu0 0.0
    %7166 = vmatprep.subr.mxu0 0.0
    %7167 = vmatpush1.msra.mxu0 0.0
    %7168 = vmatprep.mubr.f32.mxu0 0.0
    %7169 = vmatmul.mubr.f32.gmra.mrb[0].mxu0 %v7099
    %v7170 = vpop.f32.mrb[0].mxu0
    %v7171 = vadd.f32 %v7090, %v7170
    %v7172 = vpop.f32.mrb[0].mxu0
    %7173 = vmatprep.mubr.f32.mxu0 0.0
    %7174 = vmatmul.mubr.f32.gmra.mrb[0].mxu0 %v7102
    %v7175 = vpop.f32.mrb[0].mxu0
    %v7176 = vadd.f32 %v7095, %v7175
    %v7177 = vpop.f32.mrb[0].mxu0
    %7178 = vdwg.mxu0
    %7179 = vrot.lane.b32.xlu0 %v6611, 112
    %v7180 = vpop.permute.xlu0 %7179
    %7181 = vrot.lane.b32.xlu0 %v6616, 112
    %v7182 = vpop.permute.xlu0 %7181
    %7183 = vrot.lane.b32.xlu0 %v6611, 80
    %v7184 = vpop.permute.xlu0 %7183
    %7185 = vrot.lane.b32.xlu0 %v6616, 80
    %v7186 = vpop.permute.xlu0 %7185
    %v7187 = vsel %vm541, %v7180, 0
    %v7189 = vsel %vm541, %v7182, 0
    %v7191 = vsel %vm541, %v7184, 0
    %v7193 = vsel %vm541, %v7186, 0
    %7195 = vmatprep.subr.mxu0 0.0
    %7196 = vmatpush1.xpose.msra.mxu0 %v7191
    %7197 = vmatprep.subr.mxu0 0.0
    %7198 = vmatpush1.xpose.msra.mxu0 %v7193
    %7199 = vmatprep.subr.mxu0 0.0
    %7200 = vmatpush1.xpose.msra.mxu0 0.0
    %7201 = vmatprep.subr.mxu0 0.0
    %7202 = vmatpush1.xpose.msra.mxu0 0.0
    %7203 = vmatprep.subr.mxu0 0.0
    %7204 = vmatpush1.xpose.msra.mxu0 0.0
    %7205 = vmatprep.subr.mxu0 0.0
    %7206 = vmatpush1.xpose.msra.mxu0 0.0
    %7207 = vmatprep.subr.mxu0 0.0
    %7208 = vmatpush1.xpose.msra.mxu0 0.0
    %7209 = vmatprep.subr.mxu0 0.0
    %7210 = vmatpush1.xpose.msra.mxu0 0.0
    %7211 = vmatprep.subr.mxu0 0.0
    %7212 = vmatpush1.xpose.msra.mxu0 0.0
    %7213 = vmatprep.subr.mxu0 0.0
    %7214 = vmatpush1.xpose.msra.mxu0 0.0
    %7215 = vmatprep.subr.mxu0 0.0
    %7216 = vmatpush1.xpose.msra.mxu0 0.0
    %7217 = vmatprep.subr.mxu0 0.0
    %7218 = vmatpush1.xpose.msra.mxu0 0.0
    %7219 = vmatprep.subr.mxu0 0.0
    %7220 = vmatpush1.xpose.msra.mxu0 0.0
    %7221 = vmatprep.subr.mxu0 0.0
    %7222 = vmatpush1.xpose.msra.mxu0 0.0
    %7223 = vmatprep.subr.mxu0 0.0
    %7224 = vmatpush1.xpose.msra.mxu0 0.0
    %7225 = vmatprep.subr.mxu0 0.0
    %7226 = vmatpush1.xpose.msra.mxu0 0.0
    %7227 = vmatprep.subr.mxu0 0.0
    %7228 = vmatpush1.xpose.msra.mxu0 0.0
    %7229 = vmatprep.subr.mxu0 0.0
    %7230 = vmatpush1.xpose.msra.mxu0 0.0
    %7231 = vmatprep.subr.mxu0 0.0
    %7232 = vmatpush1.xpose.msra.mxu0 0.0
    %7233 = vmatprep.subr.mxu0 0.0
    %7234 = vmatpush1.xpose.msra.mxu0 0.0
    %7235 = vmatprep.subr.mxu0 0.0
    %7236 = vmatpush1.xpose.msra.mxu0 0.0
    %7237 = vmatprep.subr.mxu0 0.0
    %7238 = vmatpush1.xpose.msra.mxu0 0.0
    %7239 = vmatprep.subr.mxu0 0.0
    %7240 = vmatpush1.xpose.msra.mxu0 0.0
    %7241 = vmatprep.subr.mxu0 0.0
    %7242 = vmatpush1.xpose.msra.mxu0 0.0
    %7243 = vmatprep.subr.mxu0 0.0
    %7244 = vmatpush1.xpose.msra.mxu0 0.0
    %7245 = vmatprep.subr.mxu0 0.0
    %7246 = vmatpush1.xpose.msra.mxu0 0.0
    %7247 = vmatprep.subr.mxu0 0.0
    %7248 = vmatpush1.xpose.msra.mxu0 0.0
    %7249 = vmatprep.subr.mxu0 0.0
    %7250 = vmatpush1.xpose.msra.mxu0 0.0
    %7251 = vmatprep.subr.mxu0 0.0
    %7252 = vmatpush1.xpose.msra.mxu0 0.0
    %7253 = vmatprep.subr.mxu0 0.0
    %7254 = vmatpush1.xpose.msra.mxu0 0.0
    %7255 = vmatprep.subr.mxu0 0.0
    %7256 = vmatpush1.xpose.msra.mxu0 0.0
    %7257 = vmatprep.subr.mxu0 0.0
    %7258 = vmatpush1.xpose.msra.mxu0 0.0
    %7259 = vmatprep.mubr.f32.mxu0 0.0
    %7260 = vmatmul.mubr.f32.gmra.mrb[0].mxu0 %v7187
    %v7261 = vpop.f32.mrb[0].mxu0
    %v7262 = vadd.f32 %v356, %v7261
    %v7263 = vpop.f32.mrb[0].mxu0
    %7264 = vmatprep.mubr.f32.mxu0 0.0
    %7265 = vmatmul.mubr.f32.gmra.mrb[0].mxu0 %v7189
    %v7266 = vpop.f32.mrb[0].mxu0
    %v7267 = vadd.f32 %v357, %v7266
    %v7268 = vpop.f32.mrb[0].mxu0
    %7269 = vdwg.mxu0
    %v7270 = vsel %vm625, %v7262, -inf
    %7271 = vmax.xlane.f32.xlu0 %v7270
    %v7272 = vpop.xlane.xlu0 %7271
    %v7273 = vsel %vm625, %v7267, -inf
    %7274 = vmax.xlane.f32.xlu0 %v7273
    %v7275 = vpop.xlane.xlu0 %7274
    %v7276 = vsub.f32 %v7262, %v7272
    %v7277 = vsub.f32 %v7267, %v7275
    %v7278 = vmul.f32 %v7276, 1.442695
    %v7279 = vpow.pop %v7278
    %v7280 = vmul.f32 %v7277, 1.442695
    %v7281 = vpow.pop %v7280
    %v7282 = vsel %vm625, %v7279, 0.0
    %7283 = vadd.xlane.f32.xlu0 %v7282
    %v7284 = vpop.xlane.xlu0 %7283
    %v7285 = vsel %vm625, %v7281, 0.0
    %7286 = vadd.xlane.f32.xlu0 %v7285
    %v7287 = vpop.xlane.xlu0 %7286
    %v7288 = vrcp.pop %v7284
    %v7289 = vrcp.pop %v7287
    %v7290 = vmul.f32 %v7279, %v7288
    %v7291 = vmul.f32 %v7281, %v7289
    %7292 = vrot.lane.b32.xlu0 %v6611, 48
    %v7293 = vpop.permute.xlu0 %7292
    %7294 = vrot.lane.b32.xlu0 %v6616, 48
    %v7295 = vpop.permute.xlu0 %7294
    %v7299 = vsel %vm625, %v7290, 0
    %v7302 = vsel %vm625, %v7291, 0
    %7304 = vmatprep.subr.mxu0 0.0
    %7305 = vmatpush1.msra.mxu0 %v7293
    %7306 = vmatprep.subr.mxu0 0.0
    %7307 = vmatpush1.msra.mxu0 %v7295
    %7308 = vmatprep.subr.mxu0 0.0
    %7309 = vmatpush1.msra.mxu0 0.0
    %7310 = vmatprep.subr.mxu0 0.0
    %7311 = vmatpush1.msra.mxu0 0.0
    %7312 = vmatprep.subr.mxu0 0.0
    %7313 = vmatpush1.msra.mxu0 0.0
    %7314 = vmatprep.subr.mxu0 0.0
    %7315 = vmatpush1.msra.mxu0 0.0
    %7316 = vmatprep.subr.mxu0 0.0
    %7317 = vmatpush1.msra.mxu0 0.0
    %7318 = vmatprep.subr.mxu0 0.0
    %7319 = vmatpush1.msra.mxu0 0.0
    %7320 = vmatprep.subr.mxu0 0.0
    %7321 = vmatpush1.msra.mxu0 0.0
    %7322 = vmatprep.subr.mxu0 0.0
    %7323 = vmatpush1.msra.mxu0 0.0
    %7324 = vmatprep.subr.mxu0 0.0
    %7325 = vmatpush1.msra.mxu0 0.0
    %7326 = vmatprep.subr.mxu0 0.0
    %7327 = vmatpush1.msra.mxu0 0.0
    %7328 = vmatprep.subr.mxu0 0.0
    %7329 = vmatpush1.msra.mxu0 0.0
    %7330 = vmatprep.subr.mxu0 0.0
    %7331 = vmatpush1.msra.mxu0 0.0
    %7332 = vmatprep.subr.mxu0 0.0
    %7333 = vmatpush1.msra.mxu0 0.0
    %7334 = vmatprep.subr.mxu0 0.0
    %7335 = vmatpush1.msra.mxu0 0.0
    %7336 = vmatprep.subr.mxu0 0.0
    %7337 = vmatpush1.msra.mxu0 0.0
    %7338 = vmatprep.subr.mxu0 0.0
    %7339 = vmatpush1.msra.mxu0 0.0
    %7340 = vmatprep.subr.mxu0 0.0
    %7341 = vmatpush1.msra.mxu0 0.0
    %7342 = vmatprep.subr.mxu0 0.0
    %7343 = vmatpush1.msra.mxu0 0.0
    %7344 = vmatprep.subr.mxu0 0.0
    %7345 = vmatpush1.msra.mxu0 0.0
    %7346 = vmatprep.subr.mxu0 0.0
    %7347 = vmatpush1.msra.mxu0 0.0
    %7348 = vmatprep.subr.mxu0 0.0
    %7349 = vmatpush1.msra.mxu0 0.0
    %7350 = vmatprep.subr.mxu0 0.0
    %7351 = vmatpush1.msra.mxu0 0.0
    %7352 = vmatprep.subr.mxu0 0.0
    %7353 = vmatpush1.msra.mxu0 0.0
    %7354 = vmatprep.subr.mxu0 0.0
    %7355 = vmatpush1.msra.mxu0 0.0
    %7356 = vmatprep.subr.mxu0 0.0
    %7357 = vmatpush1.msra.mxu0 0.0
    %7358 = vmatprep.subr.mxu0 0.0
    %7359 = vmatpush1.msra.mxu0 0.0
    %7360 = vmatprep.subr.mxu0 0.0
    %7361 = vmatpush1.msra.mxu0 0.0
    %7362 = vmatprep.subr.mxu0 0.0
    %7363 = vmatpush1.msra.mxu0 0.0
    %7364 = vmatprep.subr.mxu0 0.0
    %7365 = vmatpush1.msra.mxu0 0.0
    %7366 = vmatprep.subr.mxu0 0.0
    %7367 = vmatpush1.msra.mxu0 0.0
    %7368 = vmatprep.mubr.f32.mxu0 0.0
    %7369 = vmatmul.mubr.f32.gmra.mrb[0].mxu0 %v7299
    %v7370 = vpop.f32.mrb[0].mxu0
    %v7371 = vadd.f32 0.0, %v7370
    %v7372 = vpop.f32.mrb[0].mxu0
    %7373 = vmatprep.mubr.f32.mxu0 0.0
    %7374 = vmatmul.mubr.f32.gmra.mrb[0].mxu0 %v7302
    %v7375 = vpop.f32.mrb[0].mxu0
    %v7376 = vadd.f32 0.0, %v7375
    %v7377 = vpop.f32.mrb[0].mxu0
    %7378 = vdwg.mxu0
    %v7380 = vsel %vm541, %v7371, 0
    %v7383 = vsel %vm541, %v7376, 0
    %7385 = vmatprep.subr.mxu0 0.0
    %7386 = vmatpush1.msra.mxu0 %v6440
    %7387 = vmatprep.subr.mxu0 0.0
    %7388 = vmatpush1.msra.mxu0 0.0
    %7389 = vmatprep.subr.mxu0 0.0
    %7390 = vmatpush1.msra.mxu0 0.0
    %7391 = vmatprep.subr.mxu0 0.0
    %7392 = vmatpush1.msra.mxu0 0.0
    %7393 = vmatprep.subr.mxu0 0.0
    %7394 = vmatpush1.msra.mxu0 0.0
    %7395 = vmatprep.subr.mxu0 0.0
    %7396 = vmatpush1.msra.mxu0 0.0
    %7397 = vmatprep.subr.mxu0 0.0
    %7398 = vmatpush1.msra.mxu0 0.0
    %7399 = vmatprep.subr.mxu0 0.0
    %7400 = vmatpush1.msra.mxu0 0.0
    %7401 = vmatprep.subr.mxu0 0.0
    %7402 = vmatpush1.msra.mxu0 0.0
    %7403 = vmatprep.subr.mxu0 0.0
    %7404 = vmatpush1.msra.mxu0 0.0
    %7405 = vmatprep.subr.mxu0 0.0
    %7406 = vmatpush1.msra.mxu0 0.0
    %7407 = vmatprep.subr.mxu0 0.0
    %7408 = vmatpush1.msra.mxu0 0.0
    %7409 = vmatprep.subr.mxu0 0.0
    %7410 = vmatpush1.msra.mxu0 0.0
    %7411 = vmatprep.subr.mxu0 0.0
    %7412 = vmatpush1.msra.mxu0 0.0
    %7413 = vmatprep.subr.mxu0 0.0
    %7414 = vmatpush1.msra.mxu0 0.0
    %7415 = vmatprep.subr.mxu0 0.0
    %7416 = vmatpush1.msra.mxu0 0.0
    %7417 = vmatprep.subr.mxu0 0.0
    %7418 = vmatpush1.msra.mxu0 0.0
    %7419 = vmatprep.subr.mxu0 0.0
    %7420 = vmatpush1.msra.mxu0 0.0
    %7421 = vmatprep.subr.mxu0 0.0
    %7422 = vmatpush1.msra.mxu0 0.0
    %7423 = vmatprep.subr.mxu0 0.0
    %7424 = vmatpush1.msra.mxu0 0.0
    %7425 = vmatprep.subr.mxu0 0.0
    %7426 = vmatpush1.msra.mxu0 0.0
    %7427 = vmatprep.subr.mxu0 0.0
    %7428 = vmatpush1.msra.mxu0 0.0
    %7429 = vmatprep.subr.mxu0 0.0
    %7430 = vmatpush1.msra.mxu0 0.0
    %7431 = vmatprep.subr.mxu0 0.0
    %7432 = vmatpush1.msra.mxu0 0.0
    %7433 = vmatprep.subr.mxu0 0.0
    %7434 = vmatpush1.msra.mxu0 0.0
    %7435 = vmatprep.subr.mxu0 0.0
    %7436 = vmatpush1.msra.mxu0 0.0
    %7437 = vmatprep.subr.mxu0 0.0
    %7438 = vmatpush1.msra.mxu0 0.0
    %7439 = vmatprep.subr.mxu0 0.0
    %7440 = vmatpush1.msra.mxu0 0.0
    %7441 = vmatprep.subr.mxu0 0.0
    %7442 = vmatpush1.msra.mxu0 0.0
    %7443 = vmatprep.subr.mxu0 0.0
    %7444 = vmatpush1.msra.mxu0 0.0
    %7445 = vmatprep.subr.mxu0 0.0
    %7446 = vmatpush1.msra.mxu0 0.0
    %7447 = vmatprep.subr.mxu0 0.0
    %7448 = vmatpush1.msra.mxu0 0.0
    %7449 = vmatprep.mubr.f32.mxu0 0.0
    %7450 = vmatmul.mubr.f32.gmra.mrb[0].mxu0 %v7380
    %v7451 = vpop.f32.mrb[0].mxu0
    %v7452 = vadd.f32 0.0, %v7451
    %v7453 = vpop.f32.mrb[0].mxu0
    %7454 = vmatprep.mubr.f32.mxu0 0.0
    %7455 = vmatmul.mubr.f32.gmra.mrb[0].mxu0 %v7383
    %v7456 = vpop.f32.mrb[0].mxu0
    %v7457 = vadd.f32 0.0, %v7456
    %v7458 = vpop.f32.mrb[0].mxu0
    %7459 = vdwg.mxu0
    %v7460 = vadd.f32 %v7171, %v7452
    %v7461 = vadd.f32 %v7176, %v7457
    %7462 = vrot.lane.b32.xlu0 %v6611, 104
    %v7463 = vpop.permute.xlu0 %7462
    %7464 = vrot.lane.b32.xlu0 %v6616, 104
    %v7465 = vpop.permute.xlu0 %7464
    %7466 = vrot.lane.b32.xlu0 %v6611, 72
    %v7467 = vpop.permute.xlu0 %7466
    %7468 = vrot.lane.b32.xlu0 %v6616, 72
    %v7469 = vpop.permute.xlu0 %7468
    %v7470 = vsel %vm541, %v7463, 0
    %v7472 = vsel %vm541, %v7465, 0
    %v7474 = vsel %vm541, %v7467, 0
    %v7476 = vsel %vm541, %v7469, 0
    %7478 = vmatprep.subr.mxu0 0.0
    %7479 = vmatpush1.xpose.msra.mxu0 %v7474
    %7480 = vmatprep.subr.mxu0 0.0
    %7481 = vmatpush1.xpose.msra.mxu0 %v7476
    %7482 = vmatprep.subr.mxu0 0.0
    %7483 = vmatpush1.xpose.msra.mxu0 0.0
    %7484 = vmatprep.subr.mxu0 0.0
    %7485 = vmatpush1.xpose.msra.mxu0 0.0
    %7486 = vmatprep.subr.mxu0 0.0
    %7487 = vmatpush1.xpose.msra.mxu0 0.0
    %7488 = vmatprep.subr.mxu0 0.0
    %7489 = vmatpush1.xpose.msra.mxu0 0.0
    %7490 = vmatprep.subr.mxu0 0.0
    %7491 = vmatpush1.xpose.msra.mxu0 0.0
    %7492 = vmatprep.subr.mxu0 0.0
    %7493 = vmatpush1.xpose.msra.mxu0 0.0
    %7494 = vmatprep.subr.mxu0 0.0
    %7495 = vmatpush1.xpose.msra.mxu0 0.0
    %7496 = vmatprep.subr.mxu0 0.0
    %7497 = vmatpush1.xpose.msra.mxu0 0.0
    %7498 = vmatprep.subr.mxu0 0.0
    %7499 = vmatpush1.xpose.msra.mxu0 0.0
    %7500 = vmatprep.subr.mxu0 0.0
    %7501 = vmatpush1.xpose.msra.mxu0 0.0
    %7502 = vmatprep.subr.mxu0 0.0
    %7503 = vmatpush1.xpose.msra.mxu0 0.0
    %7504 = vmatprep.subr.mxu0 0.0
    %7505 = vmatpush1.xpose.msra.mxu0 0.0
    %7506 = vmatprep.subr.mxu0 0.0
    %7507 = vmatpush1.xpose.msra.mxu0 0.0
    %7508 = vmatprep.subr.mxu0 0.0
    %7509 = vmatpush1.xpose.msra.mxu0 0.0
    %7510 = vmatprep.subr.mxu0 0.0
    %7511 = vmatpush1.xpose.msra.mxu0 0.0
    %7512 = vmatprep.subr.mxu0 0.0
    %7513 = vmatpush1.xpose.msra.mxu0 0.0
    %7514 = vmatprep.subr.mxu0 0.0
    %7515 = vmatpush1.xpose.msra.mxu0 0.0
    %7516 = vmatprep.subr.mxu0 0.0
    %7517 = vmatpush1.xpose.msra.mxu0 0.0
    %7518 = vmatprep.subr.mxu0 0.0
    %7519 = vmatpush1.xpose.msra.mxu0 0.0
    %7520 = vmatprep.subr.mxu0 0.0
    %7521 = vmatpush1.xpose.msra.mxu0 0.0
    %7522 = vmatprep.subr.mxu0 0.0
    %7523 = vmatpush1.xpose.msra.mxu0 0.0
    %7524 = vmatprep.subr.mxu0 0.0
    %7525 = vmatpush1.xpose.msra.mxu0 0.0
    %7526 = vmatprep.subr.mxu0 0.0
    %7527 = vmatpush1.xpose.msra.mxu0 0.0
    %7528 = vmatprep.subr.mxu0 0.0
    %7529 = vmatpush1.xpose.msra.mxu0 0.0
    %7530 = vmatprep.subr.mxu0 0.0
    %7531 = vmatpush1.xpose.msra.mxu0 0.0
    %7532 = vmatprep.subr.mxu0 0.0
    %7533 = vmatpush1.xpose.msra.mxu0 0.0
    %7534 = vmatprep.subr.mxu0 0.0
    %7535 = vmatpush1.xpose.msra.mxu0 0.0
    %7536 = vmatprep.subr.mxu0 0.0
    %7537 = vmatpush1.xpose.msra.mxu0 0.0
    %7538 = vmatprep.subr.mxu0 0.0
    %7539 = vmatpush1.xpose.msra.mxu0 0.0
    %7540 = vmatprep.subr.mxu0 0.0
    %7541 = vmatpush1.xpose.msra.mxu0 0.0
    %7542 = vmatprep.mubr.f32.mxu0 0.0
    %7543 = vmatmul.mubr.f32.gmra.mrb[0].mxu0 %v7470
    %v7544 = vpop.f32.mrb[0].mxu0
    %v7545 = vadd.f32 %v356, %v7544
    %v7546 = vpop.f32.mrb[0].mxu0
    %7547 = vmatprep.mubr.f32.mxu0 0.0
    %7548 = vmatmul.mubr.f32.gmra.mrb[0].mxu0 %v7472
    %v7549 = vpop.f32.mrb[0].mxu0
    %v7550 = vadd.f32 %v357, %v7549
    %v7551 = vpop.f32.mrb[0].mxu0
    %7552 = vdwg.mxu0
    %v7553 = vsel %vm625, %v7545, -inf
    %7554 = vmax.xlane.f32.xlu0 %v7553
    %v7555 = vpop.xlane.xlu0 %7554
    %v7556 = vsel %vm625, %v7550, -inf
    %7557 = vmax.xlane.f32.xlu0 %v7556
    %v7558 = vpop.xlane.xlu0 %7557
    %v7559 = vsub.f32 %v7545, %v7555
    %v7560 = vsub.f32 %v7550, %v7558
    %v7561 = vmul.f32 %v7559, 1.442695
    %v7562 = vpow.pop %v7561
    %v7563 = vmul.f32 %v7560, 1.442695
    %v7564 = vpow.pop %v7563
    %v7565 = vsel %vm625, %v7562, 0.0
    %7566 = vadd.xlane.f32.xlu0 %v7565
    %v7567 = vpop.xlane.xlu0 %7566
    %v7568 = vsel %vm625, %v7564, 0.0
    %7569 = vadd.xlane.f32.xlu0 %v7568
    %v7570 = vpop.xlane.xlu0 %7569
    %v7571 = vrcp.pop %v7567
    %v7572 = vrcp.pop %v7570
    %v7573 = vmul.f32 %v7562, %v7571
    %v7574 = vmul.f32 %v7564, %v7572
    %7575 = vrot.lane.b32.xlu0 %v6611, 40
    %v7576 = vpop.permute.xlu0 %7575
    %7577 = vrot.lane.b32.xlu0 %v6616, 40
    %v7578 = vpop.permute.xlu0 %7577
    %v7582 = vsel %vm625, %v7573, 0
    %v7585 = vsel %vm625, %v7574, 0
    %7587 = vmatprep.subr.mxu0 0.0
    %7588 = vmatpush1.msra.mxu0 %v7576
    %7589 = vmatprep.subr.mxu0 0.0
    %7590 = vmatpush1.msra.mxu0 %v7578
    %7591 = vmatprep.subr.mxu0 0.0
    %7592 = vmatpush1.msra.mxu0 0.0
    %7593 = vmatprep.subr.mxu0 0.0
    %7594 = vmatpush1.msra.mxu0 0.0
    %7595 = vmatprep.subr.mxu0 0.0
    %7596 = vmatpush1.msra.mxu0 0.0
    %7597 = vmatprep.subr.mxu0 0.0
    %7598 = vmatpush1.msra.mxu0 0.0
    %7599 = vmatprep.subr.mxu0 0.0
    %7600 = vmatpush1.msra.mxu0 0.0
    %7601 = vmatprep.subr.mxu0 0.0
    %7602 = vmatpush1.msra.mxu0 0.0
    %7603 = vmatprep.subr.mxu0 0.0
    %7604 = vmatpush1.msra.mxu0 0.0
    %7605 = vmatprep.subr.mxu0 0.0
    %7606 = vmatpush1.msra.mxu0 0.0
    %7607 = vmatprep.subr.mxu0 0.0
    %7608 = vmatpush1.msra.mxu0 0.0
    %7609 = vmatprep.subr.mxu0 0.0
    %7610 = vmatpush1.msra.mxu0 0.0
    %7611 = vmatprep.subr.mxu0 0.0
    %7612 = vmatpush1.msra.mxu0 0.0
    %7613 = vmatprep.subr.mxu0 0.0
    %7614 = vmatpush1.msra.mxu0 0.0
    %7615 = vmatprep.subr.mxu0 0.0
    %7616 = vmatpush1.msra.mxu0 0.0
    %7617 = vmatprep.subr.mxu0 0.0
    %7618 = vmatpush1.msra.mxu0 0.0
    %7619 = vmatprep.subr.mxu0 0.0
    %7620 = vmatpush1.msra.mxu0 0.0
    %7621 = vmatprep.subr.mxu0 0.0
    %7622 = vmatpush1.msra.mxu0 0.0
    %7623 = vmatprep.subr.mxu0 0.0
    %7624 = vmatpush1.msra.mxu0 0.0
    %7625 = vmatprep.subr.mxu0 0.0
    %7626 = vmatpush1.msra.mxu0 0.0
    %7627 = vmatprep.subr.mxu0 0.0
    %7628 = vmatpush1.msra.mxu0 0.0
    %7629 = vmatprep.subr.mxu0 0.0
    %7630 = vmatpush1.msra.mxu0 0.0
    %7631 = vmatprep.subr.mxu0 0.0
    %7632 = vmatpush1.msra.mxu0 0.0
    %7633 = vmatprep.subr.mxu0 0.0
    %7634 = vmatpush1.msra.mxu0 0.0
    %7635 = vmatprep.subr.mxu0 0.0
    %7636 = vmatpush1.msra.mxu0 0.0
    %7637 = vmatprep.subr.mxu0 0.0
    %7638 = vmatpush1.msra.mxu0 0.0
    %7639 = vmatprep.subr.mxu0 0.0
    %7640 = vmatpush1.msra.mxu0 0.0
    %7641 = vmatprep.subr.mxu0 0.0
    %7642 = vmatpush1.msra.mxu0 0.0
    %7643 = vmatprep.subr.mxu0 0.0
    %7644 = vmatpush1.msra.mxu0 0.0
    %7645 = vmatprep.subr.mxu0 0.0
    %7646 = vmatpush1.msra.mxu0 0.0
    %7647 = vmatprep.subr.mxu0 0.0
    %7648 = vmatpush1.msra.mxu0 0.0
    %7649 = vmatprep.subr.mxu0 0.0
    %7650 = vmatpush1.msra.mxu0 0.0
    %7651 = vmatprep.mubr.f32.mxu0 0.0
    %7652 = vmatmul.mubr.f32.gmra.mrb[0].mxu0 %v7582
    %v7653 = vpop.f32.mrb[0].mxu0
    %v7654 = vadd.f32 0.0, %v7653
    %v7655 = vpop.f32.mrb[0].mxu0
    %7656 = vmatprep.mubr.f32.mxu0 0.0
    %7657 = vmatmul.mubr.f32.gmra.mrb[0].mxu0 %v7585
    %v7658 = vpop.f32.mrb[0].mxu0
    %v7659 = vadd.f32 0.0, %v7658
    %v7660 = vpop.f32.mrb[0].mxu0
    %7661 = vdwg.mxu0
    %v7663 = vsel %vm541, %v7654, 0
    %v7666 = vsel %vm541, %v7659, 0
    %7668 = vmatprep.subr.mxu0 0.0
    %7669 = vmatpush1.msra.mxu0 %v6441
    %7670 = vmatprep.subr.mxu0 0.0
    %7671 = vmatpush1.msra.mxu0 0.0
    %7672 = vmatprep.subr.mxu0 0.0
    %7673 = vmatpush1.msra.mxu0 0.0
    %7674 = vmatprep.subr.mxu0 0.0
    %7675 = vmatpush1.msra.mxu0 0.0
    %7676 = vmatprep.subr.mxu0 0.0
    %7677 = vmatpush1.msra.mxu0 0.0
    %7678 = vmatprep.subr.mxu0 0.0
    %7679 = vmatpush1.msra.mxu0 0.0
    %7680 = vmatprep.subr.mxu0 0.0
    %7681 = vmatpush1.msra.mxu0 0.0
    %7682 = vmatprep.subr.mxu0 0.0
    %7683 = vmatpush1.msra.mxu0 0.0
    %7684 = vmatprep.subr.mxu0 0.0
    %7685 = vmatpush1.msra.mxu0 0.0
    %7686 = vmatprep.subr.mxu0 0.0
    %7687 = vmatpush1.msra.mxu0 0.0
    %7688 = vmatprep.subr.mxu0 0.0
    %7689 = vmatpush1.msra.mxu0 0.0
    %7690 = vmatprep.subr.mxu0 0.0
    %7691 = vmatpush1.msra.mxu0 0.0
    %7692 = vmatprep.subr.mxu0 0.0
    %7693 = vmatpush1.msra.mxu0 0.0
    %7694 = vmatprep.subr.mxu0 0.0
    %7695 = vmatpush1.msra.mxu0 0.0
    %7696 = vmatprep.subr.mxu0 0.0
    %7697 = vmatpush1.msra.mxu0 0.0
    %7698 = vmatprep.subr.mxu0 0.0
    %7699 = vmatpush1.msra.mxu0 0.0
    %7700 = vmatprep.subr.mxu0 0.0
    %7701 = vmatpush1.msra.mxu0 0.0
    %7702 = vmatprep.subr.mxu0 0.0
    %7703 = vmatpush1.msra.mxu0 0.0
    %7704 = vmatprep.subr.mxu0 0.0
    %7705 = vmatpush1.msra.mxu0 0.0
    %7706 = vmatprep.subr.mxu0 0.0
    %7707 = vmatpush1.msra.mxu0 0.0
    %7708 = vmatprep.subr.mxu0 0.0
    %7709 = vmatpush1.msra.mxu0 0.0
    %7710 = vmatprep.subr.mxu0 0.0
    %7711 = vmatpush1.msra.mxu0 0.0
    %7712 = vmatprep.subr.mxu0 0.0
    %7713 = vmatpush1.msra.mxu0 0.0
    %7714 = vmatprep.subr.mxu0 0.0
    %7715 = vmatpush1.msra.mxu0 0.0
    %7716 = vmatprep.subr.mxu0 0.0
    %7717 = vmatpush1.msra.mxu0 0.0
    %7718 = vmatprep.subr.mxu0 0.0
    %7719 = vmatpush1.msra.mxu0 0.0
    %7720 = vmatprep.subr.mxu0 0.0
    %7721 = vmatpush1.msra.mxu0 0.0
    %7722 = vmatprep.subr.mxu0 0.0
    %7723 = vmatpush1.msra.mxu0 0.0
    %7724 = vmatprep.subr.mxu0 0.0
    %7725 = vmatpush1.msra.mxu0 0.0
    %7726 = vmatprep.subr.mxu0 0.0
    %7727 = vmatpush1.msra.mxu0 0.0
    %7728 = vmatprep.subr.mxu0 0.0
    %7729 = vmatpush1.msra.mxu0 0.0
    %7730 = vmatprep.subr.mxu0 0.0
    %7731 = vmatpush1.msra.mxu0 0.0
    %7732 = vmatprep.mubr.f32.mxu0 0.0
    %7733 = vmatmul.mubr.f32.gmra.mrb[0].mxu0 %v7663
    %v7734 = vpop.f32.mrb[0].mxu0
    %v7735 = vadd.f32 0.0, %v7734
    %v7736 = vpop.f32.mrb[0].mxu0
    %7737 = vmatprep.mubr.f32.mxu0 0.0
    %7738 = vmatmul.mubr.f32.gmra.mrb[0].mxu0 %v7666
    %v7739 = vpop.f32.mrb[0].mxu0
    %v7740 = vadd.f32 0.0, %v7739
    %v7741 = vpop.f32.mrb[0].mxu0
    %7742 = vdwg.mxu0
    %v7743 = vadd.f32 %v7460, %v7735
    %v7744 = vadd.f32 %v7461, %v7740
    %v7746 = vlaneseq
    %v7747 = vshrl.u32 %v7746, 7
    %v7748 = vsub.s32 0, %v7747
    %v7749 = vrot.slane %v6442, %v7748
    %v7751 = vadd.f32 %v7743, %v7749
    %v7752 = vadd.f32 %v7744, %v7749
    %v7753 = vadd.f32 %v6429, %v7751
    %v7754 = vadd.f32 %v6430, %v7752
    %v7755 = vsel %vm390, %v7753, 0.0
    %7756 = vadd.xlane.f32.xlu0 %v7755
    %v7757 = vpop.xlane.xlu0 %7756
    %v7758 = vsel %vm390, %v7754, 0.0
    %7759 = vadd.xlane.f32.xlu0 %v7758
    %v7760 = vpop.xlane.xlu0 %7759
    %v7761 = vmul.f32 %v7757, %v397
    %v7762 = vmul.f32 %v7760, %v397
    %v7763 = vsub.f32 %v7753, %v7761
    %v7764 = vsub.f32 %v7754, %v7762
    %v7765 = vmul.f32 %v7763, %v7763
    %v7766 = vmul.f32 %v7764, %v7764
    %v7767 = vsel %vm390, %v7765, 0.0
    %7768 = vadd.xlane.f32.xlu0 %v7767
    %v7769 = vpop.xlane.xlu0 %7768
    %v7770 = vsel %vm390, %v7766, 0.0
    %7771 = vadd.xlane.f32.xlu0 %v7770
    %v7772 = vpop.xlane.xlu0 %7771
    %v7773 = vmul.f32 %v7769, 0.032258064
    %v7774 = vmul.f32 %v7772, 0.032258064
    %v7775 = vrsqrt.pop %v7773
    %v7776 = vmul.f32 %v7773, %v7775
    %vm7777 = vcmp.eq.f32.partialorder %v7773, inf
    %v7778 = vsel %vm7777, %v7773, %v7776
    %vm7779 = vcmp.eq.f32.partialorder %v7773, 0.0
    %v7780 = vand.u32 %v7773, 2147483648
    %v7781 = vsel %vm7779, %v7780, %v7778
    %v7782 = vrsqrt.pop %v7774
    %v7783 = vmul.f32 %v7774, %v7782
    %vm7784 = vcmp.eq.f32.partialorder %v7774, inf
    %v7785 = vsel %vm7784, %v7774, %v7783
    %vm7786 = vcmp.eq.f32.partialorder %v7774, 0.0
    %v7787 = vand.u32 %v7774, 2147483648
    %v7788 = vsel %vm7786, %v7787, %v7785
    %v7789 = vadd.f32 %v7781, 1e-06
    %v7790 = vadd.f32 %v7788, 1e-06
    %v7791 = vrcp.pop %v7789
    %v7792 = vrcp.pop %v7790
    %v7794 = vlaneseq
    %v7795 = vshrl.u32 %v7794, 7
    %v7796 = vsub.s32 0, %v7795
    %v7797 = vrot.slane %v6443, %v7796
    %v7799 = vmul.f32 %v7797, %v7763
    %v7800 = vmul.f32 %v7797, %v7764
    %v7801 = vmul.f32 %v7799, %v7791
    %v7802 = vmul.f32 %v7800, %v7792
    %v7804 = vlaneseq
    %v7805 = vshrl.u32 %v7804, 7
    %v7806 = vsub.s32 0, %v7805
    %v7807 = vrot.slane %v6444, %v7806
    %v7809 = vadd.f32 %v7801, %v7807
    %v7810 = vadd.f32 %v7802, %v7807
    %v7812 = vlaneseq
    %v7813 = vshrl.u32 %v7812, 7
    %v7814 = vsub.s32 0, %v7813
    %v7815 = vrot.slane %v6449, %v7814
    %v7818 = vsel %vm390, %v7809, 0
    %v7821 = vsel %vm390, %v7810, 0
    %7823 = vmatprep.subr.mxu0 0.0
    %7824 = vmatpush1.msra.mxu0 %v6445
    %7825 = vmatprep.subr.mxu0 0.0
    %7826 = vmatpush1.msra.mxu0 %v6446
    %7827 = vmatprep.subr.mxu0 0.0
    %7828 = vmatpush1.msra.mxu0 %v6447
    %7829 = vmatprep.subr.mxu0 0.0
    %7830 = vmatpush1.msra.mxu0 %v6448
    %7831 = vmatprep.subr.mxu0 0.0
    %7832 = vmatpush1.msra.mxu0 0.0
    %7833 = vmatprep.subr.mxu0 0.0
    %7834 = vmatpush1.msra.mxu0 0.0
    %7835 = vmatprep.subr.mxu0 0.0
    %7836 = vmatpush1.msra.mxu0 0.0
    %7837 = vmatprep.subr.mxu0 0.0
    %7838 = vmatpush1.msra.mxu0 0.0
    %7839 = vmatprep.subr.mxu0 0.0
    %7840 = vmatpush1.msra.mxu0 0.0
    %7841 = vmatprep.subr.mxu0 0.0
    %7842 = vmatpush1.msra.mxu0 0.0
    %7843 = vmatprep.subr.mxu0 0.0
    %7844 = vmatpush1.msra.mxu0 0.0
    %7845 = vmatprep.subr.mxu0 0.0
    %7846 = vmatpush1.msra.mxu0 0.0
    %7847 = vmatprep.subr.mxu0 0.0
    %7848 = vmatpush1.msra.mxu0 0.0
    %7849 = vmatprep.subr.mxu0 0.0
    %7850 = vmatpush1.msra.mxu0 0.0
    %7851 = vmatprep.subr.mxu0 0.0
    %7852 = vmatpush1.msra.mxu0 0.0
    %7853 = vmatprep.subr.mxu0 0.0
    %7854 = vmatpush1.msra.mxu0 0.0
    %7855 = vmatprep.subr.mxu0 0.0
    %7856 = vmatpush1.msra.mxu0 0.0
    %7857 = vmatprep.subr.mxu0 0.0
    %7858 = vmatpush1.msra.mxu0 0.0
    %7859 = vmatprep.subr.mxu0 0.0
    %7860 = vmatpush1.msra.mxu0 0.0
    %7861 = vmatprep.subr.mxu0 0.0
    %7862 = vmatpush1.msra.mxu0 0.0
    %7863 = vmatprep.subr.mxu0 0.0
    %7864 = vmatpush1.msra.mxu0 0.0
    %7865 = vmatprep.subr.mxu0 0.0
    %7866 = vmatpush1.msra.mxu0 0.0
    %7867 = vmatprep.subr.mxu0 0.0
    %7868 = vmatpush1.msra.mxu0 0.0
    %7869 = vmatprep.subr.mxu0 0.0
    %7870 = vmatpush1.msra.mxu0 0.0
    %7871 = vmatprep.subr.mxu0 0.0
    %7872 = vmatpush1.msra.mxu0 0.0
    %7873 = vmatprep.subr.mxu0 0.0
    %7874 = vmatpush1.msra.mxu0 0.0
    %7875 = vmatprep.subr.mxu0 0.0
    %7876 = vmatpush1.msra.mxu0 0.0
    %7877 = vmatprep.subr.mxu0 0.0
    %7878 = vmatpush1.msra.mxu0 0.0
    %7879 = vmatprep.subr.mxu0 0.0
    %7880 = vmatpush1.msra.mxu0 0.0
    %7881 = vmatprep.subr.mxu0 0.0
    %7882 = vmatpush1.msra.mxu0 0.0
    %7883 = vmatprep.subr.mxu0 0.0
    %7884 = vmatpush1.msra.mxu0 0.0
    %7885 = vmatprep.subr.mxu0 0.0
    %7886 = vmatpush1.msra.mxu0 0.0
    %7887 = vmatprep.mubr.f32.mxu0 0.0
    %7888 = vmatmul.mubr.f32.gmra.mrb[0].mxu0 %v7818
    %v7889 = vpop.f32.mrb[0].mxu0
    %v7890 = vadd.f32 %v7815, %v7889
    %v7891 = vpop.f32.mrb[0].mxu0
    %7892 = vmatprep.mubr.f32.mxu0 0.0
    %7893 = vmatmul.mubr.f32.gmra.mrb[0].mxu0 %v7821
    %v7894 = vpop.f32.mrb[0].mxu0
    %v7895 = vadd.f32 %v7815, %v7894
    %v7896 = vpop.f32.mrb[0].mxu0
    %7897 = vdwg.mxu0
    %v7899 = vlaneseq
    %v7900 = vshrl.u32 %v7899, 7
    %v7901 = vsub.s32 0, %v7900
    %v7902 = vrot.slane %v6454, %v7901
    %7904 = vmatprep.subr.mxu0 0.0
    %7905 = vmatpush1.msra.mxu0 %v6450
    %7906 = vmatprep.subr.mxu0 0.0
    %7907 = vmatpush1.msra.mxu0 %v6451
    %7908 = vmatprep.subr.mxu0 0.0
    %7909 = vmatpush1.msra.mxu0 %v6452
    %7910 = vmatprep.subr.mxu0 0.0
    %7911 = vmatpush1.msra.mxu0 %v6453
    %7912 = vmatprep.subr.mxu0 0.0
    %7913 = vmatpush1.msra.mxu0 0.0
    %7914 = vmatprep.subr.mxu0 0.0
    %7915 = vmatpush1.msra.mxu0 0.0
    %7916 = vmatprep.subr.mxu0 0.0
    %7917 = vmatpush1.msra.mxu0 0.0
    %7918 = vmatprep.subr.mxu0 0.0
    %7919 = vmatpush1.msra.mxu0 0.0
    %7920 = vmatprep.subr.mxu0 0.0
    %7921 = vmatpush1.msra.mxu0 0.0
    %7922 = vmatprep.subr.mxu0 0.0
    %7923 = vmatpush1.msra.mxu0 0.0
    %7924 = vmatprep.subr.mxu0 0.0
    %7925 = vmatpush1.msra.mxu0 0.0
    %7926 = vmatprep.subr.mxu0 0.0
    %7927 = vmatpush1.msra.mxu0 0.0
    %7928 = vmatprep.subr.mxu0 0.0
    %7929 = vmatpush1.msra.mxu0 0.0
    %7930 = vmatprep.subr.mxu0 0.0
    %7931 = vmatpush1.msra.mxu0 0.0
    %7932 = vmatprep.subr.mxu0 0.0
    %7933 = vmatpush1.msra.mxu0 0.0
    %7934 = vmatprep.subr.mxu0 0.0
    %7935 = vmatpush1.msra.mxu0 0.0
    %7936 = vmatprep.subr.mxu0 0.0
    %7937 = vmatpush1.msra.mxu0 0.0
    %7938 = vmatprep.subr.mxu0 0.0
    %7939 = vmatpush1.msra.mxu0 0.0
    %7940 = vmatprep.subr.mxu0 0.0
    %7941 = vmatpush1.msra.mxu0 0.0
    %7942 = vmatprep.subr.mxu0 0.0
    %7943 = vmatpush1.msra.mxu0 0.0
    %7944 = vmatprep.subr.mxu0 0.0
    %7945 = vmatpush1.msra.mxu0 0.0
    %7946 = vmatprep.subr.mxu0 0.0
    %7947 = vmatpush1.msra.mxu0 0.0
    %7948 = vmatprep.subr.mxu0 0.0
    %7949 = vmatpush1.msra.mxu0 0.0
    %7950 = vmatprep.subr.mxu0 0.0
    %7951 = vmatpush1.msra.mxu0 0.0
    %7952 = vmatprep.subr.mxu0 0.0
    %7953 = vmatpush1.msra.mxu0 0.0
    %7954 = vmatprep.subr.mxu0 0.0
    %7955 = vmatpush1.msra.mxu0 0.0
    %7956 = vmatprep.subr.mxu0 0.0
    %7957 = vmatpush1.msra.mxu0 0.0
    %7958 = vmatprep.subr.mxu0 0.0
    %7959 = vmatpush1.msra.mxu0 0.0
    %7960 = vmatprep.subr.mxu0 0.0
    %7961 = vmatpush1.msra.mxu0 0.0
    %7962 = vmatprep.subr.mxu0 0.0
    %7963 = vmatpush1.msra.mxu0 0.0
    %7964 = vmatprep.subr.mxu0 0.0
    %7965 = vmatpush1.msra.mxu0 0.0
    %7966 = vmatprep.subr.mxu0 0.0
    %7967 = vmatpush1.msra.mxu0 0.0
    %7968 = vmatprep.mubr.f32.mxu0 0.0
    %7969 = vmatmul.mubr.f32.gmra.mrb[0].mxu0 %v4983
    %v7970 = vpop.f32.mrb[0].mxu0
    %v7971 = vadd.f32 %v7902, %v7970
    %v7972 = vpop.f32.mrb[0].mxu0
    %7973 = vmatprep.mubr.f32.mxu0 0.0
    %7974 = vmatmul.mubr.f32.gmra.mrb[0].mxu0 %v4986
    %v7975 = vpop.f32.mrb[0].mxu0
    %v7976 = vadd.f32 %v7902, %v7975
    %v7977 = vpop.f32.mrb[0].mxu0
    %7978 = vdwg.mxu0
    %v7980 = vsel %vm541, %v7890, 0
    %v7983 = vsel %vm541, %v7895, 0
    %v7986 = vsel %vm541, %v7971, 0
    %v7989 = vsel %vm541, %v7976, 0
    %7991 = vmatprep.subr.mxu0 0.0
    %7992 = vmatpush1.xpose.msra.mxu0 %v7986
    %7993 = vmatprep.subr.mxu0 0.0
    %7994 = vmatpush1.xpose.msra.mxu0 %v7989
    %7995 = vmatprep.subr.mxu0 0.0
    %7996 = vmatpush1.xpose.msra.mxu0 0.0
    %7997 = vmatprep.subr.mxu0 0.0
    %7998 = vmatpush1.xpose.msra.mxu0 0.0
    %7999 = vmatprep.subr.mxu0 0.0
    %8000 = vmatpush1.xpose.msra.mxu0 0.0
    %8001 = vmatprep.subr.mxu0 0.0
    %8002 = vmatpush1.xpose.msra.mxu0 0.0
    %8003 = vmatprep.subr.mxu0 0.0
    %8004 = vmatpush1.xpose.msra.mxu0 0.0
    %8005 = vmatprep.subr.mxu0 0.0
    %8006 = vmatpush1.xpose.msra.mxu0 0.0
    %8007 = vmatprep.subr.mxu0 0.0
    %8008 = vmatpush1.xpose.msra.mxu0 0.0
    %8009 = vmatprep.subr.mxu0 0.0
    %8010 = vmatpush1.xpose.msra.mxu0 0.0
    %8011 = vmatprep.subr.mxu0 0.0
    %8012 = vmatpush1.xpose.msra.mxu0 0.0
    %8013 = vmatprep.subr.mxu0 0.0
    %8014 = vmatpush1.xpose.msra.mxu0 0.0
    %8015 = vmatprep.subr.mxu0 0.0
    %8016 = vmatpush1.xpose.msra.mxu0 0.0
    %8017 = vmatprep.subr.mxu0 0.0
    %8018 = vmatpush1.xpose.msra.mxu0 0.0
    %8019 = vmatprep.subr.mxu0 0.0
    %8020 = vmatpush1.xpose.msra.mxu0 0.0
    %8021 = vmatprep.subr.mxu0 0.0
    %8022 = vmatpush1.xpose.msra.mxu0 0.0
    %8023 = vmatprep.subr.mxu0 0.0
    %8024 = vmatpush1.xpose.msra.mxu0 0.0
    %8025 = vmatprep.subr.mxu0 0.0
    %8026 = vmatpush1.xpose.msra.mxu0 0.0
    %8027 = vmatprep.subr.mxu0 0.0
    %8028 = vmatpush1.xpose.msra.mxu0 0.0
    %8029 = vmatprep.subr.mxu0 0.0
    %8030 = vmatpush1.xpose.msra.mxu0 0.0
    %8031 = vmatprep.subr.mxu0 0.0
    %8032 = vmatpush1.xpose.msra.mxu0 0.0
    %8033 = vmatprep.subr.mxu0 0.0
    %8034 = vmatpush1.xpose.msra.mxu0 0.0
    %8035 = vmatprep.subr.mxu0 0.0
    %8036 = vmatpush1.xpose.msra.mxu0 0.0
    %8037 = vmatprep.subr.mxu0 0.0
    %8038 = vmatpush1.xpose.msra.mxu0 0.0
    %8039 = vmatprep.subr.mxu0 0.0
    %8040 = vmatpush1.xpose.msra.mxu0 0.0
    %8041 = vmatprep.subr.mxu0 0.0
    %8042 = vmatpush1.xpose.msra.mxu0 0.0
    %8043 = vmatprep.subr.mxu0 0.0
    %8044 = vmatpush1.xpose.msra.mxu0 0.0
    %8045 = vmatprep.subr.mxu0 0.0
    %8046 = vmatpush1.xpose.msra.mxu0 0.0
    %8047 = vmatprep.subr.mxu0 0.0
    %8048 = vmatpush1.xpose.msra.mxu0 0.0
    %8049 = vmatprep.subr.mxu0 0.0
    %8050 = vmatpush1.xpose.msra.mxu0 0.0
    %8051 = vmatprep.subr.mxu0 0.0
    %8052 = vmatpush1.xpose.msra.mxu0 0.0
    %8053 = vmatprep.subr.mxu0 0.0
    %8054 = vmatpush1.xpose.msra.mxu0 0.0
    %8055 = vmatprep.mubr.f32.mxu0 0.0
    %8056 = vmatmul.mubr.f32.gmra.mrb[0].mxu0 %v7980
    %v8057 = vpop.f32.mrb[0].mxu0
    %v8058 = vadd.f32 %v358, %v8057
    %v8059 = vpop.f32.mrb[0].mxu0
    %8060 = vmatprep.mubr.f32.mxu0 0.0
    %8061 = vmatmul.mubr.f32.gmra.mrb[0].mxu0 %v7983
    %v8062 = vpop.f32.mrb[0].mxu0
    %v8063 = vadd.f32 %v359, %v8062
    %v8064 = vpop.f32.mrb[0].mxu0
    %8065 = vdwg.mxu0
    %v8066 = vsel %vm625, %v8058, -inf
    %8067 = vmax.xlane.f32.xlu0 %v8066
    %v8068 = vpop.xlane.xlu0 %8067
    %v8069 = vsel %vm625, %v8063, -inf
    %8070 = vmax.xlane.f32.xlu0 %v8069
    %v8071 = vpop.xlane.xlu0 %8070
    %v8072 = vsub.f32 %v8058, %v8068
    %v8073 = vsub.f32 %v8063, %v8071
    %v8074 = vmul.f32 %v8072, 1.442695
    %v8075 = vpow.pop %v8074
    %v8076 = vmul.f32 %v8073, 1.442695
    %v8077 = vpow.pop %v8076
    %v8078 = vsel %vm625, %v8075, 0.0
    %8079 = vadd.xlane.f32.xlu0 %v8078
    %v8080 = vpop.xlane.xlu0 %8079
    %v8081 = vsel %vm625, %v8077, 0.0
    %8082 = vadd.xlane.f32.xlu0 %v8081
    %v8083 = vpop.xlane.xlu0 %8082
    %v8084 = vrcp.pop %v8080
    %v8085 = vrcp.pop %v8083
    %v8086 = vmul.f32 %v8075, %v8084
    %v8087 = vmul.f32 %v8077, %v8085
    %8088 = vrot.lane.b32.xlu0 %v7971, 96
    %v8089 = vpop.permute.xlu0 %8088
    %8090 = vrot.lane.b32.xlu0 %v7976, 96
    %v8091 = vpop.permute.xlu0 %8090
    %v8095 = vsel %vm625, %v8086, 0
    %v8098 = vsel %vm625, %v8087, 0
    %8100 = vmatprep.subr.mxu0 0.0
    %8101 = vmatpush1.msra.mxu0 %v8089
    %8102 = vmatprep.subr.mxu0 0.0
    %8103 = vmatpush1.msra.mxu0 %v8091
    %8104 = vmatprep.subr.mxu0 0.0
    %8105 = vmatpush1.msra.mxu0 0.0
    %8106 = vmatprep.subr.mxu0 0.0
    %8107 = vmatpush1.msra.mxu0 0.0
    %8108 = vmatprep.subr.mxu0 0.0
    %8109 = vmatpush1.msra.mxu0 0.0
    %8110 = vmatprep.subr.mxu0 0.0
    %8111 = vmatpush1.msra.mxu0 0.0
    %8112 = vmatprep.subr.mxu0 0.0
    %8113 = vmatpush1.msra.mxu0 0.0
    %8114 = vmatprep.subr.mxu0 0.0
    %8115 = vmatpush1.msra.mxu0 0.0
    %8116 = vmatprep.subr.mxu0 0.0
    %8117 = vmatpush1.msra.mxu0 0.0
    %8118 = vmatprep.subr.mxu0 0.0
    %8119 = vmatpush1.msra.mxu0 0.0
    %8120 = vmatprep.subr.mxu0 0.0
    %8121 = vmatpush1.msra.mxu0 0.0
    %8122 = vmatprep.subr.mxu0 0.0
    %8123 = vmatpush1.msra.mxu0 0.0
    %8124 = vmatprep.subr.mxu0 0.0
    %8125 = vmatpush1.msra.mxu0 0.0
    %8126 = vmatprep.subr.mxu0 0.0
    %8127 = vmatpush1.msra.mxu0 0.0
    %8128 = vmatprep.subr.mxu0 0.0
    %8129 = vmatpush1.msra.mxu0 0.0
    %8130 = vmatprep.subr.mxu0 0.0
    %8131 = vmatpush1.msra.mxu0 0.0
    %8132 = vmatprep.subr.mxu0 0.0
    %8133 = vmatpush1.msra.mxu0 0.0
    %8134 = vmatprep.subr.mxu0 0.0
    %8135 = vmatpush1.msra.mxu0 0.0
    %8136 = vmatprep.subr.mxu0 0.0
    %8137 = vmatpush1.msra.mxu0 0.0
    %8138 = vmatprep.subr.mxu0 0.0
    %8139 = vmatpush1.msra.mxu0 0.0
    %8140 = vmatprep.subr.mxu0 0.0
    %8141 = vmatpush1.msra.mxu0 0.0
    %8142 = vmatprep.subr.mxu0 0.0
    %8143 = vmatpush1.msra.mxu0 0.0
    %8144 = vmatprep.subr.mxu0 0.0
    %8145 = vmatpush1.msra.mxu0 0.0
    %8146 = vmatprep.subr.mxu0 0.0
    %8147 = vmatpush1.msra.mxu0 0.0
    %8148 = vmatprep.subr.mxu0 0.0
    %8149 = vmatpush1.msra.mxu0 0.0
    %8150 = vmatprep.subr.mxu0 0.0
    %8151 = vmatpush1.msra.mxu0 0.0
    %8152 = vmatprep.subr.mxu0 0.0
    %8153 = vmatpush1.msra.mxu0 0.0
    %8154 = vmatprep.subr.mxu0 0.0
    %8155 = vmatpush1.msra.mxu0 0.0
    %8156 = vmatprep.subr.mxu0 0.0
    %8157 = vmatpush1.msra.mxu0 0.0
    %8158 = vmatprep.subr.mxu0 0.0
    %8159 = vmatpush1.msra.mxu0 0.0
    %8160 = vmatprep.subr.mxu0 0.0
    %8161 = vmatpush1.msra.mxu0 0.0
    %8162 = vmatprep.subr.mxu0 0.0
    %8163 = vmatpush1.msra.mxu0 0.0
    %8164 = vmatprep.mubr.f32.mxu0 0.0
    %8165 = vmatmul.mubr.f32.gmra.mrb[0].mxu0 %v8095
    %v8166 = vpop.f32.mrb[0].mxu0
    %v8167 = vadd.f32 0.0, %v8166
    %v8168 = vpop.f32.mrb[0].mxu0
    %8169 = vmatprep.mubr.f32.mxu0 0.0
    %8170 = vmatmul.mubr.f32.gmra.mrb[0].mxu0 %v8098
    %v8171 = vpop.f32.mrb[0].mxu0
    %v8172 = vadd.f32 0.0, %v8171
    %v8173 = vpop.f32.mrb[0].mxu0
    %8174 = vdwg.mxu0
    %8175 = vrot.lane.b32.xlu0 %v7890, 120
    %v8176 = vpop.permute.xlu0 %8175
    %8177 = vrot.lane.b32.xlu0 %v7895, 120
    %v8178 = vpop.permute.xlu0 %8177
    %8179 = vrot.lane.b32.xlu0 %v7971, 120
    %v8180 = vpop.permute.xlu0 %8179
    %8181 = vrot.lane.b32.xlu0 %v7976, 120
    %v8182 = vpop.permute.xlu0 %8181
    %v8183 = vsel %vm541, %v8176, 0
    %v8185 = vsel %vm541, %v8178, 0
    %v8187 = vsel %vm541, %v8180, 0
    %v8189 = vsel %vm541, %v8182, 0
    %8191 = vmatprep.subr.mxu0 0.0
    %8192 = vmatpush1.xpose.msra.mxu0 %v8187
    %8193 = vmatprep.subr.mxu0 0.0
    %8194 = vmatpush1.xpose.msra.mxu0 %v8189
    %8195 = vmatprep.subr.mxu0 0.0
    %8196 = vmatpush1.xpose.msra.mxu0 0.0
    %8197 = vmatprep.subr.mxu0 0.0
    %8198 = vmatpush1.xpose.msra.mxu0 0.0
    %8199 = vmatprep.subr.mxu0 0.0
    %8200 = vmatpush1.xpose.msra.mxu0 0.0
    %8201 = vmatprep.subr.mxu0 0.0
    %8202 = vmatpush1.xpose.msra.mxu0 0.0
    %8203 = vmatprep.subr.mxu0 0.0
    %8204 = vmatpush1.xpose.msra.mxu0 0.0
    %8205 = vmatprep.subr.mxu0 0.0
    %8206 = vmatpush1.xpose.msra.mxu0 0.0
    %8207 = vmatprep.subr.mxu0 0.0
    %8208 = vmatpush1.xpose.msra.mxu0 0.0
    %8209 = vmatprep.subr.mxu0 0.0
    %8210 = vmatpush1.xpose.msra.mxu0 0.0
    %8211 = vmatprep.subr.mxu0 0.0
    %8212 = vmatpush1.xpose.msra.mxu0 0.0
    %8213 = vmatprep.subr.mxu0 0.0
    %8214 = vmatpush1.xpose.msra.mxu0 0.0
    %8215 = vmatprep.subr.mxu0 0.0
    %8216 = vmatpush1.xpose.msra.mxu0 0.0
    %8217 = vmatprep.subr.mxu0 0.0
    %8218 = vmatpush1.xpose.msra.mxu0 0.0
    %8219 = vmatprep.subr.mxu0 0.0
    %8220 = vmatpush1.xpose.msra.mxu0 0.0
    %8221 = vmatprep.subr.mxu0 0.0
    %8222 = vmatpush1.xpose.msra.mxu0 0.0
    %8223 = vmatprep.subr.mxu0 0.0
    %8224 = vmatpush1.xpose.msra.mxu0 0.0
    %8225 = vmatprep.subr.mxu0 0.0
    %8226 = vmatpush1.xpose.msra.mxu0 0.0
    %8227 = vmatprep.subr.mxu0 0.0
    %8228 = vmatpush1.xpose.msra.mxu0 0.0
    %8229 = vmatprep.subr.mxu0 0.0
    %8230 = vmatpush1.xpose.msra.mxu0 0.0
    %8231 = vmatprep.subr.mxu0 0.0
    %8232 = vmatpush1.xpose.msra.mxu0 0.0
    %8233 = vmatprep.subr.mxu0 0.0
    %8234 = vmatpush1.xpose.msra.mxu0 0.0
    %8235 = vmatprep.subr.mxu0 0.0
    %8236 = vmatpush1.xpose.msra.mxu0 0.0
    %8237 = vmatprep.subr.mxu0 0.0
    %8238 = vmatpush1.xpose.msra.mxu0 0.0
    %8239 = vmatprep.subr.mxu0 0.0
    %8240 = vmatpush1.xpose.msra.mxu0 0.0
    %8241 = vmatprep.subr.mxu0 0.0
    %8242 = vmatpush1.xpose.msra.mxu0 0.0
    %8243 = vmatprep.subr.mxu0 0.0
    %8244 = vmatpush1.xpose.msra.mxu0 0.0
    %8245 = vmatprep.subr.mxu0 0.0
    %8246 = vmatpush1.xpose.msra.mxu0 0.0
    %8247 = vmatprep.subr.mxu0 0.0
    %8248 = vmatpush1.xpose.msra.mxu0 0.0
    %8249 = vmatprep.subr.mxu0 0.0
    %8250 = vmatpush1.xpose.msra.mxu0 0.0
    %8251 = vmatprep.subr.mxu0 0.0
    %8252 = vmatpush1.xpose.msra.mxu0 0.0
    %8253 = vmatprep.subr.mxu0 0.0
    %8254 = vmatpush1.xpose.msra.mxu0 0.0
    %8255 = vmatprep.mubr.f32.mxu0 0.0
    %8256 = vmatmul.mubr.f32.gmra.mrb[0].mxu0 %v8183
    %v8257 = vpop.f32.mrb[0].mxu0
    %v8258 = vadd.f32 %v358, %v8257
    %v8259 = vpop.f32.mrb[0].mxu0
    %8260 = vmatprep.mubr.f32.mxu0 0.0
    %8261 = vmatmul.mubr.f32.gmra.mrb[0].mxu0 %v8185
    %v8262 = vpop.f32.mrb[0].mxu0
    %v8263 = vadd.f32 %v359, %v8262
    %v8264 = vpop.f32.mrb[0].mxu0
    %8265 = vdwg.mxu0
    %v8266 = vsel %vm625, %v8258, -inf
    %8267 = vmax.xlane.f32.xlu0 %v8266
    %v8268 = vpop.xlane.xlu0 %8267
    %v8269 = vsel %vm625, %v8263, -inf
    %8270 = vmax.xlane.f32.xlu0 %v8269
    %v8271 = vpop.xlane.xlu0 %8270
    %v8272 = vsub.f32 %v8258, %v8268
    %v8273 = vsub.f32 %v8263, %v8271
    %v8274 = vmul.f32 %v8272, 1.442695
    %v8275 = vpow.pop %v8274
    %v8276 = vmul.f32 %v8273, 1.442695
    %v8277 = vpow.pop %v8276
    %v8278 = vsel %vm625, %v8275, 0.0
    %8279 = vadd.xlane.f32.xlu0 %v8278
    %v8280 = vpop.xlane.xlu0 %8279
    %v8281 = vsel %vm625, %v8277, 0.0
    %8282 = vadd.xlane.f32.xlu0 %v8281
    %v8283 = vpop.xlane.xlu0 %8282
    %v8284 = vrcp.pop %v8280
    %v8285 = vrcp.pop %v8283
    %v8286 = vmul.f32 %v8275, %v8284
    %v8287 = vmul.f32 %v8277, %v8285
    %8288 = vrot.lane.b32.xlu0 %v7971, 88
    %v8289 = vpop.permute.xlu0 %8288
    %8290 = vrot.lane.b32.xlu0 %v7976, 88
    %v8291 = vpop.permute.xlu0 %8290
    %v8295 = vsel %vm625, %v8286, 0
    %v8298 = vsel %vm625, %v8287, 0
    %8300 = vmatprep.subr.mxu0 0.0
    %8301 = vmatpush1.msra.mxu0 %v8289
    %8302 = vmatprep.subr.mxu0 0.0
    %8303 = vmatpush1.msra.mxu0 %v8291
    %8304 = vmatprep.subr.mxu0 0.0
    %8305 = vmatpush1.msra.mxu0 0.0
    %8306 = vmatprep.subr.mxu0 0.0
    %8307 = vmatpush1.msra.mxu0 0.0
    %8308 = vmatprep.subr.mxu0 0.0
    %8309 = vmatpush1.msra.mxu0 0.0
    %8310 = vmatprep.subr.mxu0 0.0
    %8311 = vmatpush1.msra.mxu0 0.0
    %8312 = vmatprep.subr.mxu0 0.0
    %8313 = vmatpush1.msra.mxu0 0.0
    %8314 = vmatprep.subr.mxu0 0.0
    %8315 = vmatpush1.msra.mxu0 0.0
    %8316 = vmatprep.subr.mxu0 0.0
    %8317 = vmatpush1.msra.mxu0 0.0
    %8318 = vmatprep.subr.mxu0 0.0
    %8319 = vmatpush1.msra.mxu0 0.0
    %8320 = vmatprep.subr.mxu0 0.0
    %8321 = vmatpush1.msra.mxu0 0.0
    %8322 = vmatprep.subr.mxu0 0.0
    %8323 = vmatpush1.msra.mxu0 0.0
    %8324 = vmatprep.subr.mxu0 0.0
    %8325 = vmatpush1.msra.mxu0 0.0
    %8326 = vmatprep.subr.mxu0 0.0
    %8327 = vmatpush1.msra.mxu0 0.0
    %8328 = vmatprep.subr.mxu0 0.0
    %8329 = vmatpush1.msra.mxu0 0.0
    %8330 = vmatprep.subr.mxu0 0.0
    %8331 = vmatpush1.msra.mxu0 0.0
    %8332 = vmatprep.subr.mxu0 0.0
    %8333 = vmatpush1.msra.mxu0 0.0
    %8334 = vmatprep.subr.mxu0 0.0
    %8335 = vmatpush1.msra.mxu0 0.0
    %8336 = vmatprep.subr.mxu0 0.0
    %8337 = vmatpush1.msra.mxu0 0.0
    %8338 = vmatprep.subr.mxu0 0.0
    %8339 = vmatpush1.msra.mxu0 0.0
    %8340 = vmatprep.subr.mxu0 0.0
    %8341 = vmatpush1.msra.mxu0 0.0
    %8342 = vmatprep.subr.mxu0 0.0
    %8343 = vmatpush1.msra.mxu0 0.0
    %8344 = vmatprep.subr.mxu0 0.0
    %8345 = vmatpush1.msra.mxu0 0.0
    %8346 = vmatprep.subr.mxu0 0.0
    %8347 = vmatpush1.msra.mxu0 0.0
    %8348 = vmatprep.subr.mxu0 0.0
    %8349 = vmatpush1.msra.mxu0 0.0
    %8350 = vmatprep.subr.mxu0 0.0
    %8351 = vmatpush1.msra.mxu0 0.0
    %8352 = vmatprep.subr.mxu0 0.0
    %8353 = vmatpush1.msra.mxu0 0.0
    %8354 = vmatprep.subr.mxu0 0.0
    %8355 = vmatpush1.msra.mxu0 0.0
    %8356 = vmatprep.subr.mxu0 0.0
    %8357 = vmatpush1.msra.mxu0 0.0
    %8358 = vmatprep.subr.mxu0 0.0
    %8359 = vmatpush1.msra.mxu0 0.0
    %8360 = vmatprep.subr.mxu0 0.0
    %8361 = vmatpush1.msra.mxu0 0.0
    %8362 = vmatprep.subr.mxu0 0.0
    %8363 = vmatpush1.msra.mxu0 0.0
    %8364 = vmatprep.mubr.f32.mxu0 0.0
    %8365 = vmatmul.mubr.f32.gmra.mrb[0].mxu0 %v8295
    %v8366 = vpop.f32.mrb[0].mxu0
    %v8367 = vadd.f32 0.0, %v8366
    %v8368 = vpop.f32.mrb[0].mxu0
    %8369 = vmatprep.mubr.f32.mxu0 0.0
    %8370 = vmatmul.mubr.f32.gmra.mrb[0].mxu0 %v8298
    %v8371 = vpop.f32.mrb[0].mxu0
    %v8372 = vadd.f32 0.0, %v8371
    %v8373 = vpop.f32.mrb[0].mxu0
    %8374 = vdwg.mxu0
    %v8376 = vsel %vm541, %v8367, 0
    %v8379 = vsel %vm541, %v8372, 0
    %8381 = vmatprep.subr.mxu0 0.0
    %8382 = vmatpush1.msra.mxu0 %v6456
    %8383 = vmatprep.subr.mxu0 0.0
    %8384 = vmatpush1.msra.mxu0 0.0
    %8385 = vmatprep.subr.mxu0 0.0
    %8386 = vmatpush1.msra.mxu0 0.0
    %8387 = vmatprep.subr.mxu0 0.0
    %8388 = vmatpush1.msra.mxu0 0.0
    %8389 = vmatprep.subr.mxu0 0.0
    %8390 = vmatpush1.msra.mxu0 0.0
    %8391 = vmatprep.subr.mxu0 0.0
    %8392 = vmatpush1.msra.mxu0 0.0
    %8393 = vmatprep.subr.mxu0 0.0
    %8394 = vmatpush1.msra.mxu0 0.0
    %8395 = vmatprep.subr.mxu0 0.0
    %8396 = vmatpush1.msra.mxu0 0.0
    %8397 = vmatprep.subr.mxu0 0.0
    %8398 = vmatpush1.msra.mxu0 0.0
    %8399 = vmatprep.subr.mxu0 0.0
    %8400 = vmatpush1.msra.mxu0 0.0
    %8401 = vmatprep.subr.mxu0 0.0
    %8402 = vmatpush1.msra.mxu0 0.0
    %8403 = vmatprep.subr.mxu0 0.0
    %8404 = vmatpush1.msra.mxu0 0.0
    %8405 = vmatprep.subr.mxu0 0.0
    %8406 = vmatpush1.msra.mxu0 0.0
    %8407 = vmatprep.subr.mxu0 0.0
    %8408 = vmatpush1.msra.mxu0 0.0
    %8409 = vmatprep.subr.mxu0 0.0
    %8410 = vmatpush1.msra.mxu0 0.0
    %8411 = vmatprep.subr.mxu0 0.0
    %8412 = vmatpush1.msra.mxu0 0.0
    %8413 = vmatprep.subr.mxu0 0.0
    %8414 = vmatpush1.msra.mxu0 0.0
    %8415 = vmatprep.subr.mxu0 0.0
    %8416 = vmatpush1.msra.mxu0 0.0
    %8417 = vmatprep.subr.mxu0 0.0
    %8418 = vmatpush1.msra.mxu0 0.0
    %8419 = vmatprep.subr.mxu0 0.0
    %8420 = vmatpush1.msra.mxu0 0.0
    %8421 = vmatprep.subr.mxu0 0.0
    %8422 = vmatpush1.msra.mxu0 0.0
    %8423 = vmatprep.subr.mxu0 0.0
    %8424 = vmatpush1.msra.mxu0 0.0
    %8425 = vmatprep.subr.mxu0 0.0
    %8426 = vmatpush1.msra.mxu0 0.0
    %8427 = vmatprep.subr.mxu0 0.0
    %8428 = vmatpush1.msra.mxu0 0.0
    %8429 = vmatprep.subr.mxu0 0.0
    %8430 = vmatpush1.msra.mxu0 0.0
    %8431 = vmatprep.subr.mxu0 0.0
    %8432 = vmatpush1.msra.mxu0 0.0
    %8433 = vmatprep.subr.mxu0 0.0
    %8434 = vmatpush1.msra.mxu0 0.0
    %8435 = vmatprep.subr.mxu0 0.0
    %8436 = vmatpush1.msra.mxu0 0.0
    %8437 = vmatprep.subr.mxu0 0.0
    %8438 = vmatpush1.msra.mxu0 0.0
    %8439 = vmatprep.subr.mxu0 0.0
    %8440 = vmatpush1.msra.mxu0 0.0
    %8441 = vmatprep.subr.mxu0 0.0
    %8442 = vmatpush1.msra.mxu0 0.0
    %8443 = vmatprep.subr.mxu0 0.0
    %8444 = vmatpush1.msra.mxu0 0.0
    %8445 = vmatprep.mubr.f32.mxu0 0.0
    %8446 = vmatmul.mubr.f32.gmra.mrb[0].mxu0 %v8376
    %v8447 = vpop.f32.mrb[0].mxu0
    %v8448 = vadd.f32 0.0, %v8447
    %v8449 = vpop.f32.mrb[0].mxu0
    %8450 = vmatprep.mubr.f32.mxu0 0.0
    %8451 = vmatmul.mubr.f32.gmra.mrb[0].mxu0 %v8379
    %v8452 = vpop.f32.mrb[0].mxu0
    %v8453 = vadd.f32 0.0, %v8452
    %v8454 = vpop.f32.mrb[0].mxu0
    %8455 = vdwg.mxu0
    %v8457 = vsel %vm541, %v8167, 0
    %v8460 = vsel %vm541, %v8172, 0
    %8462 = vmatprep.subr.mxu0 0.0
    %8463 = vmatpush1.msra.mxu0 %v6455
    %8464 = vmatprep.subr.mxu0 0.0
    %8465 = vmatpush1.msra.mxu0 0.0
    %8466 = vmatprep.subr.mxu0 0.0
    %8467 = vmatpush1.msra.mxu0 0.0
    %8468 = vmatprep.subr.mxu0 0.0
    %8469 = vmatpush1.msra.mxu0 0.0
    %8470 = vmatprep.subr.mxu0 0.0
    %8471 = vmatpush1.msra.mxu0 0.0
    %8472 = vmatprep.subr.mxu0 0.0
    %8473 = vmatpush1.msra.mxu0 0.0
    %8474 = vmatprep.subr.mxu0 0.0
    %8475 = vmatpush1.msra.mxu0 0.0
    %8476 = vmatprep.subr.mxu0 0.0
    %8477 = vmatpush1.msra.mxu0 0.0
    %8478 = vmatprep.subr.mxu0 0.0
    %8479 = vmatpush1.msra.mxu0 0.0
    %8480 = vmatprep.subr.mxu0 0.0
    %8481 = vmatpush1.msra.mxu0 0.0
    %8482 = vmatprep.subr.mxu0 0.0
    %8483 = vmatpush1.msra.mxu0 0.0
    %8484 = vmatprep.subr.mxu0 0.0
    %8485 = vmatpush1.msra.mxu0 0.0
    %8486 = vmatprep.subr.mxu0 0.0
    %8487 = vmatpush1.msra.mxu0 0.0
    %8488 = vmatprep.subr.mxu0 0.0
    %8489 = vmatpush1.msra.mxu0 0.0
    %8490 = vmatprep.subr.mxu0 0.0
    %8491 = vmatpush1.msra.mxu0 0.0
    %8492 = vmatprep.subr.mxu0 0.0
    %8493 = vmatpush1.msra.mxu0 0.0
    %8494 = vmatprep.subr.mxu0 0.0
    %8495 = vmatpush1.msra.mxu0 0.0
    %8496 = vmatprep.subr.mxu0 0.0
    %8497 = vmatpush1.msra.mxu0 0.0
    %8498 = vmatprep.subr.mxu0 0.0
    %8499 = vmatpush1.msra.mxu0 0.0
    %8500 = vmatprep.subr.mxu0 0.0
    %8501 = vmatpush1.msra.mxu0 0.0
    %8502 = vmatprep.subr.mxu0 0.0
    %8503 = vmatpush1.msra.mxu0 0.0
    %8504 = vmatprep.subr.mxu0 0.0
    %8505 = vmatpush1.msra.mxu0 0.0
    %8506 = vmatprep.subr.mxu0 0.0
    %8507 = vmatpush1.msra.mxu0 0.0
    %8508 = vmatprep.subr.mxu0 0.0
    %8509 = vmatpush1.msra.mxu0 0.0
    %8510 = vmatprep.subr.mxu0 0.0
    %8511 = vmatpush1.msra.mxu0 0.0
    %8512 = vmatprep.subr.mxu0 0.0
    %8513 = vmatpush1.msra.mxu0 0.0
    %8514 = vmatprep.subr.mxu0 0.0
    %8515 = vmatpush1.msra.mxu0 0.0
    %8516 = vmatprep.subr.mxu0 0.0
    %8517 = vmatpush1.msra.mxu0 0.0
    %8518 = vmatprep.subr.mxu0 0.0
    %8519 = vmatpush1.msra.mxu0 0.0
    %8520 = vmatprep.subr.mxu0 0.0
    %8521 = vmatpush1.msra.mxu0 0.0
    %8522 = vmatprep.subr.mxu0 0.0
    %8523 = vmatpush1.msra.mxu0 0.0
    %8524 = vmatprep.subr.mxu0 0.0
    %8525 = vmatpush1.msra.mxu0 0.0
    %8526 = vmatprep.mubr.f32.mxu0 0.0
    %8527 = vmatmul.mubr.f32.gmra.mrb[0].mxu0 %v8457
    %v8528 = vpop.f32.mrb[0].mxu0
    %v8529 = vadd.f32 %v8448, %v8528
    %v8530 = vpop.f32.mrb[0].mxu0
    %8531 = vmatprep.mubr.f32.mxu0 0.0
    %8532 = vmatmul.mubr.f32.gmra.mrb[0].mxu0 %v8460
    %v8533 = vpop.f32.mrb[0].mxu0
    %v8534 = vadd.f32 %v8453, %v8533
    %v8535 = vpop.f32.mrb[0].mxu0
    %8536 = vdwg.mxu0
    %8537 = vrot.lane.b32.xlu0 %v7890, 112
    %v8538 = vpop.permute.xlu0 %8537
    %8539 = vrot.lane.b32.xlu0 %v7895, 112
    %v8540 = vpop.permute.xlu0 %8539
    %8541 = vrot.lane.b32.xlu0 %v7971, 112
    %v8542 = vpop.permute.xlu0 %8541
    %8543 = vrot.lane.b32.xlu0 %v7976, 112
    %v8544 = vpop.permute.xlu0 %8543
    %v8545 = vsel %vm541, %v8538, 0
    %v8547 = vsel %vm541, %v8540, 0
    %v8549 = vsel %vm541, %v8542, 0
    %v8551 = vsel %vm541, %v8544, 0
    %8553 = vmatprep.subr.mxu0 0.0
    %8554 = vmatpush1.xpose.msra.mxu0 %v8549
    %8555 = vmatprep.subr.mxu0 0.0
    %8556 = vmatpush1.xpose.msra.mxu0 %v8551
    %8557 = vmatprep.subr.mxu0 0.0
    %8558 = vmatpush1.xpose.msra.mxu0 0.0
    %8559 = vmatprep.subr.mxu0 0.0
    %8560 = vmatpush1.xpose.msra.mxu0 0.0
    %8561 = vmatprep.subr.mxu0 0.0
    %8562 = vmatpush1.xpose.msra.mxu0 0.0
    %8563 = vmatprep.subr.mxu0 0.0
    %8564 = vmatpush1.xpose.msra.mxu0 0.0
    %8565 = vmatprep.subr.mxu0 0.0
    %8566 = vmatpush1.xpose.msra.mxu0 0.0
    %8567 = vmatprep.subr.mxu0 0.0
    %8568 = vmatpush1.xpose.msra.mxu0 0.0
    %8569 = vmatprep.subr.mxu0 0.0
    %8570 = vmatpush1.xpose.msra.mxu0 0.0
    %8571 = vmatprep.subr.mxu0 0.0
    %8572 = vmatpush1.xpose.msra.mxu0 0.0
    %8573 = vmatprep.subr.mxu0 0.0
    %8574 = vmatpush1.xpose.msra.mxu0 0.0
    %8575 = vmatprep.subr.mxu0 0.0
    %8576 = vmatpush1.xpose.msra.mxu0 0.0
    %8577 = vmatprep.subr.mxu0 0.0
    %8578 = vmatpush1.xpose.msra.mxu0 0.0
    %8579 = vmatprep.subr.mxu0 0.0
    %8580 = vmatpush1.xpose.msra.mxu0 0.0
    %8581 = vmatprep.subr.mxu0 0.0
    %8582 = vmatpush1.xpose.msra.mxu0 0.0
    %8583 = vmatprep.subr.mxu0 0.0
    %8584 = vmatpush1.xpose.msra.mxu0 0.0
    %8585 = vmatprep.subr.mxu0 0.0
    %8586 = vmatpush1.xpose.msra.mxu0 0.0
    %8587 = vmatprep.subr.mxu0 0.0
    %8588 = vmatpush1.xpose.msra.mxu0 0.0
    %8589 = vmatprep.subr.mxu0 0.0
    %8590 = vmatpush1.xpose.msra.mxu0 0.0
    %8591 = vmatprep.subr.mxu0 0.0
    %8592 = vmatpush1.xpose.msra.mxu0 0.0
    %8593 = vmatprep.subr.mxu0 0.0
    %8594 = vmatpush1.xpose.msra.mxu0 0.0
    %8595 = vmatprep.subr.mxu0 0.0
    %8596 = vmatpush1.xpose.msra.mxu0 0.0
    %8597 = vmatprep.subr.mxu0 0.0
    %8598 = vmatpush1.xpose.msra.mxu0 0.0
    %8599 = vmatprep.subr.mxu0 0.0
    %8600 = vmatpush1.xpose.msra.mxu0 0.0
    %8601 = vmatprep.subr.mxu0 0.0
    %8602 = vmatpush1.xpose.msra.mxu0 0.0
    %8603 = vmatprep.subr.mxu0 0.0
    %8604 = vmatpush1.xpose.msra.mxu0 0.0
    %8605 = vmatprep.subr.mxu0 0.0
    %8606 = vmatpush1.xpose.msra.mxu0 0.0
    %8607 = vmatprep.subr.mxu0 0.0
    %8608 = vmatpush1.xpose.msra.mxu0 0.0
    %8609 = vmatprep.subr.mxu0 0.0
    %8610 = vmatpush1.xpose.msra.mxu0 0.0
    %8611 = vmatprep.subr.mxu0 0.0
    %8612 = vmatpush1.xpose.msra.mxu0 0.0
    %8613 = vmatprep.subr.mxu0 0.0
    %8614 = vmatpush1.xpose.msra.mxu0 0.0
    %8615 = vmatprep.subr.mxu0 0.0
    %8616 = vmatpush1.xpose.msra.mxu0 0.0
    %8617 = vmatprep.mubr.f32.mxu0 0.0
    %8618 = vmatmul.mubr.f32.gmra.mrb[0].mxu0 %v8545
    %v8619 = vpop.f32.mrb[0].mxu0
    %v8620 = vadd.f32 %v358, %v8619
    %v8621 = vpop.f32.mrb[0].mxu0
    %8622 = vmatprep.mubr.f32.mxu0 0.0
    %8623 = vmatmul.mubr.f32.gmra.mrb[0].mxu0 %v8547
    %v8624 = vpop.f32.mrb[0].mxu0
    %v8625 = vadd.f32 %v359, %v8624
    %v8626 = vpop.f32.mrb[0].mxu0
    %8627 = vdwg.mxu0
    %v8628 = vsel %vm625, %v8620, -inf
    %8629 = vmax.xlane.f32.xlu0 %v8628
    %v8630 = vpop.xlane.xlu0 %8629
    %v8631 = vsel %vm625, %v8625, -inf
    %8632 = vmax.xlane.f32.xlu0 %v8631
    %v8633 = vpop.xlane.xlu0 %8632
    %v8634 = vsub.f32 %v8620, %v8630
    %v8635 = vsub.f32 %v8625, %v8633
    %v8636 = vmul.f32 %v8634, 1.442695
    %v8637 = vpow.pop %v8636
    %v8638 = vmul.f32 %v8635, 1.442695
    %v8639 = vpow.pop %v8638
    %v8640 = vsel %vm625, %v8637, 0.0
    %8641 = vadd.xlane.f32.xlu0 %v8640
    %v8642 = vpop.xlane.xlu0 %8641
    %v8643 = vsel %vm625, %v8639, 0.0
    %8644 = vadd.xlane.f32.xlu0 %v8643
    %v8645 = vpop.xlane.xlu0 %8644
    %v8646 = vrcp.pop %v8642
    %v8647 = vrcp.pop %v8645
    %v8648 = vmul.f32 %v8637, %v8646
    %v8649 = vmul.f32 %v8639, %v8647
    %8650 = vrot.lane.b32.xlu0 %v7971, 80
    %v8651 = vpop.permute.xlu0 %8650
    %8652 = vrot.lane.b32.xlu0 %v7976, 80
    %v8653 = vpop.permute.xlu0 %8652
    %v8657 = vsel %vm625, %v8648, 0
    %v8660 = vsel %vm625, %v8649, 0
    %8662 = vmatprep.subr.mxu0 0.0
    %8663 = vmatpush1.msra.mxu0 %v8651
    %8664 = vmatprep.subr.mxu0 0.0
    %8665 = vmatpush1.msra.mxu0 %v8653
    %8666 = vmatprep.subr.mxu0 0.0
    %8667 = vmatpush1.msra.mxu0 0.0
    %8668 = vmatprep.subr.mxu0 0.0
    %8669 = vmatpush1.msra.mxu0 0.0
    %8670 = vmatprep.subr.mxu0 0.0
    %8671 = vmatpush1.msra.mxu0 0.0
    %8672 = vmatprep.subr.mxu0 0.0
    %8673 = vmatpush1.msra.mxu0 0.0
    %8674 = vmatprep.subr.mxu0 0.0
    %8675 = vmatpush1.msra.mxu0 0.0
    %8676 = vmatprep.subr.mxu0 0.0
    %8677 = vmatpush1.msra.mxu0 0.0
    %8678 = vmatprep.subr.mxu0 0.0
    %8679 = vmatpush1.msra.mxu0 0.0
    %8680 = vmatprep.subr.mxu0 0.0
    %8681 = vmatpush1.msra.mxu0 0.0
    %8682 = vmatprep.subr.mxu0 0.0
    %8683 = vmatpush1.msra.mxu0 0.0
    %8684 = vmatprep.subr.mxu0 0.0
    %8685 = vmatpush1.msra.mxu0 0.0
    %8686 = vmatprep.subr.mxu0 0.0
    %8687 = vmatpush1.msra.mxu0 0.0
    %8688 = vmatprep.subr.mxu0 0.0
    %8689 = vmatpush1.msra.mxu0 0.0
    %8690 = vmatprep.subr.mxu0 0.0
    %8691 = vmatpush1.msra.mxu0 0.0
    %8692 = vmatprep.subr.mxu0 0.0
    %8693 = vmatpush1.msra.mxu0 0.0
    %8694 = vmatprep.subr.mxu0 0.0
    %8695 = vmatpush1.msra.mxu0 0.0
    %8696 = vmatprep.subr.mxu0 0.0
    %8697 = vmatpush1.msra.mxu0 0.0
    %8698 = vmatprep.subr.mxu0 0.0
    %8699 = vmatpush1.msra.mxu0 0.0
    %8700 = vmatprep.subr.mxu0 0.0
    %8701 = vmatpush1.msra.mxu0 0.0
    %8702 = vmatprep.subr.mxu0 0.0
    %8703 = vmatpush1.msra.mxu0 0.0
    %8704 = vmatprep.subr.mxu0 0.0
    %8705 = vmatpush1.msra.mxu0 0.0
    %8706 = vmatprep.subr.mxu0 0.0
    %8707 = vmatpush1.msra.mxu0 0.0
    %8708 = vmatprep.subr.mxu0 0.0
    %8709 = vmatpush1.msra.mxu0 0.0
    %8710 = vmatprep.subr.mxu0 0.0
    %8711 = vmatpush1.msra.mxu0 0.0
    %8712 = vmatprep.subr.mxu0 0.0
    %8713 = vmatpush1.msra.mxu0 0.0
    %8714 = vmatprep.subr.mxu0 0.0
    %8715 = vmatpush1.msra.mxu0 0.0
    %8716 = vmatprep.subr.mxu0 0.0
    %8717 = vmatpush1.msra.mxu0 0.0
    %8718 = vmatprep.subr.mxu0 0.0
    %8719 = vmatpush1.msra.mxu0 0.0
    %8720 = vmatprep.subr.mxu0 0.0
    %8721 = vmatpush1.msra.mxu0 0.0
    %8722 = vmatprep.subr.mxu0 0.0
    %8723 = vmatpush1.msra.mxu0 0.0
    %8724 = vmatprep.subr.mxu0 0.0
    %8725 = vmatpush1.msra.mxu0 0.0
    %8726 = vmatprep.mubr.f32.mxu0 0.0
    %8727 = vmatmul.mubr.f32.gmra.mrb[0].mxu0 %v8657
    %v8728 = vpop.f32.mrb[0].mxu0
    %v8729 = vadd.f32 0.0, %v8728
    %v8730 = vpop.f32.mrb[0].mxu0
    %8731 = vmatprep.mubr.f32.mxu0 0.0
    %8732 = vmatmul.mubr.f32.gmra.mrb[0].mxu0 %v8660
    %v8733 = vpop.f32.mrb[0].mxu0
    %v8734 = vadd.f32 0.0, %v8733
    %v8735 = vpop.f32.mrb[0].mxu0
    %8736 = vdwg.mxu0
    %v8738 = vsel %vm541, %v8729, 0
    %v8741 = vsel %vm541, %v8734, 0
    %8743 = vmatprep.subr.mxu0 0.0
    %8744 = vmatpush1.msra.mxu0 %v6457
    %8745 = vmatprep.subr.mxu0 0.0
    %8746 = vmatpush1.msra.mxu0 0.0
    %8747 = vmatprep.subr.mxu0 0.0
    %8748 = vmatpush1.msra.mxu0 0.0
    %8749 = vmatprep.subr.mxu0 0.0
    %8750 = vmatpush1.msra.mxu0 0.0
    %8751 = vmatprep.subr.mxu0 0.0
    %8752 = vmatpush1.msra.mxu0 0.0
    %8753 = vmatprep.subr.mxu0 0.0
    %8754 = vmatpush1.msra.mxu0 0.0
    %8755 = vmatprep.subr.mxu0 0.0
    %8756 = vmatpush1.msra.mxu0 0.0
    %8757 = vmatprep.subr.mxu0 0.0
    %8758 = vmatpush1.msra.mxu0 0.0
    %8759 = vmatprep.subr.mxu0 0.0
    %8760 = vmatpush1.msra.mxu0 0.0
    %8761 = vmatprep.subr.mxu0 0.0
    %8762 = vmatpush1.msra.mxu0 0.0
    %8763 = vmatprep.subr.mxu0 0.0
    %8764 = vmatpush1.msra.mxu0 0.0
    %8765 = vmatprep.subr.mxu0 0.0
    %8766 = vmatpush1.msra.mxu0 0.0
    %8767 = vmatprep.subr.mxu0 0.0
    %8768 = vmatpush1.msra.mxu0 0.0
    %8769 = vmatprep.subr.mxu0 0.0
    %8770 = vmatpush1.msra.mxu0 0.0
    %8771 = vmatprep.subr.mxu0 0.0
    %8772 = vmatpush1.msra.mxu0 0.0
    %8773 = vmatprep.subr.mxu0 0.0
    %8774 = vmatpush1.msra.mxu0 0.0
    %8775 = vmatprep.subr.mxu0 0.0
    %8776 = vmatpush1.msra.mxu0 0.0
    %8777 = vmatprep.subr.mxu0 0.0
    %8778 = vmatpush1.msra.mxu0 0.0
    %8779 = vmatprep.subr.mxu0 0.0
    %8780 = vmatpush1.msra.mxu0 0.0
    %8781 = vmatprep.subr.mxu0 0.0
    %8782 = vmatpush1.msra.mxu0 0.0
    %8783 = vmatprep.subr.mxu0 0.0
    %8784 = vmatpush1.msra.mxu0 0.0
    %8785 = vmatprep.subr.mxu0 0.0
    %8786 = vmatpush1.msra.mxu0 0.0
    %8787 = vmatprep.subr.mxu0 0.0
    %8788 = vmatpush1.msra.mxu0 0.0
    %8789 = vmatprep.subr.mxu0 0.0
    %8790 = vmatpush1.msra.mxu0 0.0
    %8791 = vmatprep.subr.mxu0 0.0
    %8792 = vmatpush1.msra.mxu0 0.0
    %8793 = vmatprep.subr.mxu0 0.0
    %8794 = vmatpush1.msra.mxu0 0.0
    %8795 = vmatprep.subr.mxu0 0.0
    %8796 = vmatpush1.msra.mxu0 0.0
    %8797 = vmatprep.subr.mxu0 0.0
    %8798 = vmatpush1.msra.mxu0 0.0
    %8799 = vmatprep.subr.mxu0 0.0
    %8800 = vmatpush1.msra.mxu0 0.0
    %8801 = vmatprep.subr.mxu0 0.0
    %8802 = vmatpush1.msra.mxu0 0.0
    %8803 = vmatprep.subr.mxu0 0.0
    %8804 = vmatpush1.msra.mxu0 0.0
    %8805 = vmatprep.subr.mxu0 0.0
    %8806 = vmatpush1.msra.mxu0 0.0
    %8807 = vmatprep.mubr.f32.mxu0 0.0
    %8808 = vmatmul.mubr.f32.gmra.mrb[0].mxu0 %v8738
    %v8809 = vpop.f32.mrb[0].mxu0
    %v8810 = vadd.f32 0.0, %v8809
    %v8811 = vpop.f32.mrb[0].mxu0
    %8812 = vmatprep.mubr.f32.mxu0 0.0
    %8813 = vmatmul.mubr.f32.gmra.mrb[0].mxu0 %v8741
    %v8814 = vpop.f32.mrb[0].mxu0
    %v8815 = vadd.f32 0.0, %v8814
    %v8816 = vpop.f32.mrb[0].mxu0
    %8817 = vdwg.mxu0
    %v8818 = vadd.f32 %v8529, %v8810
    %v8819 = vadd.f32 %v8534, %v8815
    %8820 = vrot.lane.b32.xlu0 %v7890, 104
    %v8821 = vpop.permute.xlu0 %8820
    %8822 = vrot.lane.b32.xlu0 %v7895, 104
    %v8823 = vpop.permute.xlu0 %8822
    %8824 = vrot.lane.b32.xlu0 %v7971, 104
    %v8825 = vpop.permute.xlu0 %8824
    %8826 = vrot.lane.b32.xlu0 %v7976, 104
    %v8827 = vpop.permute.xlu0 %8826
    %v8828 = vsel %vm541, %v8821, 0
    %v8830 = vsel %vm541, %v8823, 0
    %v8832 = vsel %vm541, %v8825, 0
    %v8834 = vsel %vm541, %v8827, 0
    %8836 = vmatprep.subr.mxu0 0.0
    %8837 = vmatpush1.xpose.msra.mxu0 %v8832
    %8838 = vmatprep.subr.mxu0 0.0
    %8839 = vmatpush1.xpose.msra.mxu0 %v8834
    %8840 = vmatprep.subr.mxu0 0.0
    %8841 = vmatpush1.xpose.msra.mxu0 0.0
    %8842 = vmatprep.subr.mxu0 0.0
    %8843 = vmatpush1.xpose.msra.mxu0 0.0
    %8844 = vmatprep.subr.mxu0 0.0
    %8845 = vmatpush1.xpose.msra.mxu0 0.0
    %8846 = vmatprep.subr.mxu0 0.0
    %8847 = vmatpush1.xpose.msra.mxu0 0.0
    %8848 = vmatprep.subr.mxu0 0.0
    %8849 = vmatpush1.xpose.msra.mxu0 0.0
    %8850 = vmatprep.subr.mxu0 0.0
    %8851 = vmatpush1.xpose.msra.mxu0 0.0
    %8852 = vmatprep.subr.mxu0 0.0
    %8853 = vmatpush1.xpose.msra.mxu0 0.0
    %8854 = vmatprep.subr.mxu0 0.0
    %8855 = vmatpush1.xpose.msra.mxu0 0.0
    %8856 = vmatprep.subr.mxu0 0.0
    %8857 = vmatpush1.xpose.msra.mxu0 0.0
    %8858 = vmatprep.subr.mxu0 0.0
    %8859 = vmatpush1.xpose.msra.mxu0 0.0
    %8860 = vmatprep.subr.mxu0 0.0
    %8861 = vmatpush1.xpose.msra.mxu0 0.0
    %8862 = vmatprep.subr.mxu0 0.0
    %8863 = vmatpush1.xpose.msra.mxu0 0.0
    %8864 = vmatprep.subr.mxu0 0.0
    %8865 = vmatpush1.xpose.msra.mxu0 0.0
    %8866 = vmatprep.subr.mxu0 0.0
    %8867 = vmatpush1.xpose.msra.mxu0 0.0
    %8868 = vmatprep.subr.mxu0 0.0
    %8869 = vmatpush1.xpose.msra.mxu0 0.0
    %8870 = vmatprep.subr.mxu0 0.0
    %8871 = vmatpush1.xpose.msra.mxu0 0.0
    %8872 = vmatprep.subr.mxu0 0.0
    %8873 = vmatpush1.xpose.msra.mxu0 0.0
    %8874 = vmatprep.subr.mxu0 0.0
    %8875 = vmatpush1.xpose.msra.mxu0 0.0
    %8876 = vmatprep.subr.mxu0 0.0
    %8877 = vmatpush1.xpose.msra.mxu0 0.0
    %8878 = vmatprep.subr.mxu0 0.0
    %8879 = vmatpush1.xpose.msra.mxu0 0.0
    %8880 = vmatprep.subr.mxu0 0.0
    %8881 = vmatpush1.xpose.msra.mxu0 0.0
    %8882 = vmatprep.subr.mxu0 0.0
    %8883 = vmatpush1.xpose.msra.mxu0 0.0
    %8884 = vmatprep.subr.mxu0 0.0
    %8885 = vmatpush1.xpose.msra.mxu0 0.0
    %8886 = vmatprep.subr.mxu0 0.0
    %8887 = vmatpush1.xpose.msra.mxu0 0.0
    %8888 = vmatprep.subr.mxu0 0.0
    %8889 = vmatpush1.xpose.msra.mxu0 0.0
    %8890 = vmatprep.subr.mxu0 0.0
    %8891 = vmatpush1.xpose.msra.mxu0 0.0
    %8892 = vmatprep.subr.mxu0 0.0
    %8893 = vmatpush1.xpose.msra.mxu0 0.0
    %8894 = vmatprep.subr.mxu0 0.0
    %8895 = vmatpush1.xpose.msra.mxu0 0.0
    %8896 = vmatprep.subr.mxu0 0.0
    %8897 = vmatpush1.xpose.msra.mxu0 0.0
    %8898 = vmatprep.subr.mxu0 0.0
    %8899 = vmatpush1.xpose.msra.mxu0 0.0
    %8900 = vmatprep.mubr.f32.mxu0 0.0
    %8901 = vmatmul.mubr.f32.gmra.mrb[0].mxu0 %v8828
    %v8902 = vpop.f32.mrb[0].mxu0
    %v8903 = vadd.f32 %v358, %v8902
    %v8904 = vpop.f32.mrb[0].mxu0
    %8905 = vmatprep.mubr.f32.mxu0 0.0
    %8906 = vmatmul.mubr.f32.gmra.mrb[0].mxu0 %v8830
    %v8907 = vpop.f32.mrb[0].mxu0
    %v8908 = vadd.f32 %v359, %v8907
    %v8909 = vpop.f32.mrb[0].mxu0
    %8910 = vdwg.mxu0
    %v8911 = vsel %vm625, %v8903, -inf
    %8912 = vmax.xlane.f32.xlu0 %v8911
    %v8913 = vpop.xlane.xlu0 %8912
    %v8914 = vsel %vm625, %v8908, -inf
    %8915 = vmax.xlane.f32.xlu0 %v8914
    %v8916 = vpop.xlane.xlu0 %8915
    %v8917 = vsub.f32 %v8903, %v8913
    %v8918 = vsub.f32 %v8908, %v8916
    %v8919 = vmul.f32 %v8917, 1.442695
    %v8920 = vpow.pop %v8919
    %v8921 = vmul.f32 %v8918, 1.442695
    %v8922 = vpow.pop %v8921
    %v8923 = vsel %vm625, %v8920, 0.0
    %8924 = vadd.xlane.f32.xlu0 %v8923
    %v8925 = vpop.xlane.xlu0 %8924
    %v8926 = vsel %vm625, %v8922, 0.0
    %8927 = vadd.xlane.f32.xlu0 %v8926
    %v8928 = vpop.xlane.xlu0 %8927
    %v8929 = vrcp.pop %v8925
    %v8930 = vrcp.pop %v8928
    %v8931 = vmul.f32 %v8920, %v8929
    %v8932 = vmul.f32 %v8922, %v8930
    %8933 = vrot.lane.b32.xlu0 %v7971, 72
    %v8934 = vpop.permute.xlu0 %8933
    %8935 = vrot.lane.b32.xlu0 %v7976, 72
    %v8936 = vpop.permute.xlu0 %8935
    %v8940 = vsel %vm625, %v8931, 0
    %v8943 = vsel %vm625, %v8932, 0
    %8945 = vmatprep.subr.mxu0 0.0
    %8946 = vmatpush1.msra.mxu0 %v8934
    %8947 = vmatprep.subr.mxu0 0.0
    %8948 = vmatpush1.msra.mxu0 %v8936
    %8949 = vmatprep.subr.mxu0 0.0
    %8950 = vmatpush1.msra.mxu0 0.0
    %8951 = vmatprep.subr.mxu0 0.0
    %8952 = vmatpush1.msra.mxu0 0.0
    %8953 = vmatprep.subr.mxu0 0.0
    %8954 = vmatpush1.msra.mxu0 0.0
    %8955 = vmatprep.subr.mxu0 0.0
    %8956 = vmatpush1.msra.mxu0 0.0
    %8957 = vmatprep.subr.mxu0 0.0
    %8958 = vmatpush1.msra.mxu0 0.0
    %8959 = vmatprep.subr.mxu0 0.0
    %8960 = vmatpush1.msra.mxu0 0.0
    %8961 = vmatprep.subr.mxu0 0.0
    %8962 = vmatpush1.msra.mxu0 0.0
    %8963 = vmatprep.subr.mxu0 0.0
    %8964 = vmatpush1.msra.mxu0 0.0
    %8965 = vmatprep.subr.mxu0 0.0
    %8966 = vmatpush1.msra.mxu0 0.0
    %8967 = vmatprep.subr.mxu0 0.0
    %8968 = vmatpush1.msra.mxu0 0.0
    %8969 = vmatprep.subr.mxu0 0.0
    %8970 = vmatpush1.msra.mxu0 0.0
    %8971 = vmatprep.subr.mxu0 0.0
    %8972 = vmatpush1.msra.mxu0 0.0
    %8973 = vmatprep.subr.mxu0 0.0
    %8974 = vmatpush1.msra.mxu0 0.0
    %8975 = vmatprep.subr.mxu0 0.0
    %8976 = vmatpush1.msra.mxu0 0.0
    %8977 = vmatprep.subr.mxu0 0.0
    %8978 = vmatpush1.msra.mxu0 0.0
    %8979 = vmatprep.subr.mxu0 0.0
    %8980 = vmatpush1.msra.mxu0 0.0
    %8981 = vmatprep.subr.mxu0 0.0
    %8982 = vmatpush1.msra.mxu0 0.0
    %8983 = vmatprep.subr.mxu0 0.0
    %8984 = vmatpush1.msra.mxu0 0.0
    %8985 = vmatprep.subr.mxu0 0.0
    %8986 = vmatpush1.msra.mxu0 0.0
    %8987 = vmatprep.subr.mxu0 0.0
    %8988 = vmatpush1.msra.mxu0 0.0
    %8989 = vmatprep.subr.mxu0 0.0
    %8990 = vmatpush1.msra.mxu0 0.0
    %8991 = vmatprep.subr.mxu0 0.0
    %8992 = vmatpush1.msra.mxu0 0.0
    %8993 = vmatprep.subr.mxu0 0.0
    %8994 = vmatpush1.msra.mxu0 0.0
    %8995 = vmatprep.subr.mxu0 0.0
    %8996 = vmatpush1.msra.mxu0 0.0
    %8997 = vmatprep.subr.mxu0 0.0
    %8998 = vmatpush1.msra.mxu0 0.0
    %8999 = vmatprep.subr.mxu0 0.0
    %9000 = vmatpush1.msra.mxu0 0.0
    %9001 = vmatprep.subr.mxu0 0.0
    %9002 = vmatpush1.msra.mxu0 0.0
    %9003 = vmatprep.subr.mxu0 0.0
    %9004 = vmatpush1.msra.mxu0 0.0
    %9005 = vmatprep.subr.mxu0 0.0
    %9006 = vmatpush1.msra.mxu0 0.0
    %9007 = vmatprep.subr.mxu0 0.0
    %9008 = vmatpush1.msra.mxu0 0.0
    %9009 = vmatprep.mubr.f32.mxu0 0.0
    %9010 = vmatmul.mubr.f32.gmra.mrb[0].mxu0 %v8940
    %v9011 = vpop.f32.mrb[0].mxu0
    %v9012 = vadd.f32 0.0, %v9011
    %v9013 = vpop.f32.mrb[0].mxu0
    %9014 = vmatprep.mubr.f32.mxu0 0.0
    %9015 = vmatmul.mubr.f32.gmra.mrb[0].mxu0 %v8943
    %v9016 = vpop.f32.mrb[0].mxu0
    %v9017 = vadd.f32 0.0, %v9016
    %v9018 = vpop.f32.mrb[0].mxu0
    %9019 = vdwg.mxu0
    %v9021 = vsel %vm541, %v9012, 0
    %v9024 = vsel %vm541, %v9017, 0
    %9026 = vmatprep.subr.mxu0 0.0
    %9027 = vmatpush1.msra.mxu0 %v6458
    %9028 = vmatprep.subr.mxu0 0.0
    %9029 = vmatpush1.msra.mxu0 0.0
    %9030 = vmatprep.subr.mxu0 0.0
    %9031 = vmatpush1.msra.mxu0 0.0
    %9032 = vmatprep.subr.mxu0 0.0
    %9033 = vmatpush1.msra.mxu0 0.0
    %9034 = vmatprep.subr.mxu0 0.0
    %9035 = vmatpush1.msra.mxu0 0.0
    %9036 = vmatprep.subr.mxu0 0.0
    %9037 = vmatpush1.msra.mxu0 0.0
    %9038 = vmatprep.subr.mxu0 0.0
    %9039 = vmatpush1.msra.mxu0 0.0
    %9040 = vmatprep.subr.mxu0 0.0
    %9041 = vmatpush1.msra.mxu0 0.0
    %9042 = vmatprep.subr.mxu0 0.0
    %9043 = vmatpush1.msra.mxu0 0.0
    %9044 = vmatprep.subr.mxu0 0.0
    %9045 = vmatpush1.msra.mxu0 0.0
    %9046 = vmatprep.subr.mxu0 0.0
    %9047 = vmatpush1.msra.mxu0 0.0
    %9048 = vmatprep.subr.mxu0 0.0
    %9049 = vmatpush1.msra.mxu0 0.0
    %9050 = vmatprep.subr.mxu0 0.0
    %9051 = vmatpush1.msra.mxu0 0.0
    %9052 = vmatprep.subr.mxu0 0.0
    %9053 = vmatpush1.msra.mxu0 0.0
    %9054 = vmatprep.subr.mxu0 0.0
    %9055 = vmatpush1.msra.mxu0 0.0
    %9056 = vmatprep.subr.mxu0 0.0
    %9057 = vmatpush1.msra.mxu0 0.0
    %9058 = vmatprep.subr.mxu0 0.0
    %9059 = vmatpush1.msra.mxu0 0.0
    %9060 = vmatprep.subr.mxu0 0.0
    %9061 = vmatpush1.msra.mxu0 0.0
    %9062 = vmatprep.subr.mxu0 0.0
    %9063 = vmatpush1.msra.mxu0 0.0
    %9064 = vmatprep.subr.mxu0 0.0
    %9065 = vmatpush1.msra.mxu0 0.0
    %9066 = vmatprep.subr.mxu0 0.0
    %9067 = vmatpush1.msra.mxu0 0.0
    %9068 = vmatprep.subr.mxu0 0.0
    %9069 = vmatpush1.msra.mxu0 0.0
    %9070 = vmatprep.subr.mxu0 0.0
    %9071 = vmatpush1.msra.mxu0 0.0
    %9072 = vmatprep.subr.mxu0 0.0
    %9073 = vmatpush1.msra.mxu0 0.0
    %9074 = vmatprep.subr.mxu0 0.0
    %9075 = vmatpush1.msra.mxu0 0.0
    %9076 = vmatprep.subr.mxu0 0.0
    %9077 = vmatpush1.msra.mxu0 0.0
    %9078 = vmatprep.subr.mxu0 0.0
    %9079 = vmatpush1.msra.mxu0 0.0
    %9080 = vmatprep.subr.mxu0 0.0
    %9081 = vmatpush1.msra.mxu0 0.0
    %9082 = vmatprep.subr.mxu0 0.0
    %9083 = vmatpush1.msra.mxu0 0.0
    %9084 = vmatprep.subr.mxu0 0.0
    %9085 = vmatpush1.msra.mxu0 0.0
    %9086 = vmatprep.subr.mxu0 0.0
    %9087 = vmatpush1.msra.mxu0 0.0
    %9088 = vmatprep.subr.mxu0 0.0
    %9089 = vmatpush1.msra.mxu0 0.0
    %9090 = vmatprep.mubr.f32.mxu0 0.0
    %9091 = vmatmul.mubr.f32.gmra.mrb[0].mxu0 %v9021
    %v9092 = vpop.f32.mrb[0].mxu0
    %v9093 = vadd.f32 0.0, %v9092
    %v9094 = vpop.f32.mrb[0].mxu0
    %9095 = vmatprep.mubr.f32.mxu0 0.0
    %9096 = vmatmul.mubr.f32.gmra.mrb[0].mxu0 %v9024
    %v9097 = vpop.f32.mrb[0].mxu0
    %v9098 = vadd.f32 0.0, %v9097
    %v9099 = vpop.f32.mrb[0].mxu0
    %9100 = vdwg.mxu0
    %v9101 = vadd.f32 %v8818, %v9093
    %v9102 = vadd.f32 %v8819, %v9098
    %v9104 = vlaneseq
    %v9105 = vshrl.u32 %v9104, 7
    %v9106 = vsub.s32 0, %v9105
    %v9107 = vrot.slane %v6459, %v9106
    %v9109 = vadd.f32 %v9101, %v9107
    %v9110 = vadd.f32 %v9102, %v9107
    %v9111 = vadd.f32 %v7753, %v9109
    %v9112 = vadd.f32 %v7754, %v9110
    %v9113 = vsel %vm390, %v9111, 0.0
    %9114 = vadd.xlane.f32.xlu0 %v9113
    %v9115 = vpop.xlane.xlu0 %9114
    %v9116 = vsel %vm390, %v9112, 0.0
    %9117 = vadd.xlane.f32.xlu0 %v9116
    %v9118 = vpop.xlane.xlu0 %9117
    %v9119 = vmul.f32 %v9115, %v397
    %v9120 = vmul.f32 %v9118, %v397
    %v9121 = vsub.f32 %v9111, %v9119
    %v9122 = vsub.f32 %v9112, %v9120
    %v9123 = vmul.f32 %v9121, %v9121
    %v9124 = vmul.f32 %v9122, %v9122
    %v9125 = vsel %vm390, %v9123, 0.0
    %9126 = vadd.xlane.f32.xlu0 %v9125
    %v9127 = vpop.xlane.xlu0 %9126
    %v9128 = vsel %vm390, %v9124, 0.0
    %9129 = vadd.xlane.f32.xlu0 %v9128
    %v9130 = vpop.xlane.xlu0 %9129
    %v9131 = vmul.f32 %v9127, 0.032258064
    %v9132 = vmul.f32 %v9130, 0.032258064
    %v9133 = vrsqrt.pop %v9131
    %v9134 = vmul.f32 %v9131, %v9133
    %vm9135 = vcmp.eq.f32.partialorder %v9131, inf
    %v9136 = vsel %vm9135, %v9131, %v9134
    %vm9137 = vcmp.eq.f32.partialorder %v9131, 0.0
    %v9138 = vand.u32 %v9131, 2147483648
    %v9139 = vsel %vm9137, %v9138, %v9136
    %v9140 = vrsqrt.pop %v9132
    %v9141 = vmul.f32 %v9132, %v9140
    %vm9142 = vcmp.eq.f32.partialorder %v9132, inf
    %v9143 = vsel %vm9142, %v9132, %v9141
    %vm9144 = vcmp.eq.f32.partialorder %v9132, 0.0
    %v9145 = vand.u32 %v9132, 2147483648
    %v9146 = vsel %vm9144, %v9145, %v9143
    %v9147 = vadd.f32 %v9139, 1e-06
    %v9148 = vadd.f32 %v9146, 1e-06
    %v9149 = vrcp.pop %v9147
    %v9150 = vrcp.pop %v9148
    %v9152 = vlaneseq
    %v9153 = vshrl.u32 %v9152, 7
    %v9154 = vsub.s32 0, %v9153
    %v9155 = vrot.slane %v6460, %v9154
    %v9157 = vmul.f32 %v9155, %v9121
    %v9158 = vmul.f32 %v9155, %v9122
    %v9159 = vmul.f32 %v9157, %v9149
    %v9160 = vmul.f32 %v9158, %v9150
    %v9162 = vlaneseq
    %v9163 = vshrl.u32 %v9162, 7
    %v9164 = vsub.s32 0, %v9163
    %v9165 = vrot.slane %v6461, %v9164
    %v9167 = vadd.f32 %v9159, %v9165
    %v9168 = vadd.f32 %v9160, %v9165
    %v9170 = vlaneseq
    %v9171 = vshrl.u32 %v9170, 7
    %v9172 = vsub.s32 0, %v9171
    %v9173 = vrot.slane %v6466, %v9172
    %v9176 = vsel %vm390, %v9167, 0
    %v9179 = vsel %vm390, %v9168, 0
    %9181 = vmatprep.subr.mxu0 0.0
    %9182 = vmatpush1.msra.mxu0 %v6462
    %9183 = vmatprep.subr.mxu0 0.0
    %9184 = vmatpush1.msra.mxu0 %v6463
    %9185 = vmatprep.subr.mxu0 0.0
    %9186 = vmatpush1.msra.mxu0 %v6464
    %9187 = vmatprep.subr.mxu0 0.0
    %9188 = vmatpush1.msra.mxu0 %v6465
    %9189 = vmatprep.subr.mxu0 0.0
    %9190 = vmatpush1.msra.mxu0 0.0
    %9191 = vmatprep.subr.mxu0 0.0
    %9192 = vmatpush1.msra.mxu0 0.0
    %9193 = vmatprep.subr.mxu0 0.0
    %9194 = vmatpush1.msra.mxu0 0.0
    %9195 = vmatprep.subr.mxu0 0.0
    %9196 = vmatpush1.msra.mxu0 0.0
    %9197 = vmatprep.subr.mxu0 0.0
    %9198 = vmatpush1.msra.mxu0 0.0
    %9199 = vmatprep.subr.mxu0 0.0
    %9200 = vmatpush1.msra.mxu0 0.0
    %9201 = vmatprep.subr.mxu0 0.0
    %9202 = vmatpush1.msra.mxu0 0.0
    %9203 = vmatprep.subr.mxu0 0.0
    %9204 = vmatpush1.msra.mxu0 0.0
    %9205 = vmatprep.subr.mxu0 0.0
    %9206 = vmatpush1.msra.mxu0 0.0
    %9207 = vmatprep.subr.mxu0 0.0
    %9208 = vmatpush1.msra.mxu0 0.0
    %9209 = vmatprep.subr.mxu0 0.0
    %9210 = vmatpush1.msra.mxu0 0.0
    %9211 = vmatprep.subr.mxu0 0.0
    %9212 = vmatpush1.msra.mxu0 0.0
    %9213 = vmatprep.subr.mxu0 0.0
    %9214 = vmatpush1.msra.mxu0 0.0
    %9215 = vmatprep.subr.mxu0 0.0
    %9216 = vmatpush1.msra.mxu0 0.0
    %9217 = vmatprep.subr.mxu0 0.0
    %9218 = vmatpush1.msra.mxu0 0.0
    %9219 = vmatprep.subr.mxu0 0.0
    %9220 = vmatpush1.msra.mxu0 0.0
    %9221 = vmatprep.subr.mxu0 0.0
    %9222 = vmatpush1.msra.mxu0 0.0
    %9223 = vmatprep.subr.mxu0 0.0
    %9224 = vmatpush1.msra.mxu0 0.0
    %9225 = vmatprep.subr.mxu0 0.0
    %9226 = vmatpush1.msra.mxu0 0.0
    %9227 = vmatprep.subr.mxu0 0.0
    %9228 = vmatpush1.msra.mxu0 0.0
    %9229 = vmatprep.subr.mxu0 0.0
    %9230 = vmatpush1.msra.mxu0 0.0
    %9231 = vmatprep.subr.mxu0 0.0
    %9232 = vmatpush1.msra.mxu0 0.0
    %9233 = vmatprep.subr.mxu0 0.0
    %9234 = vmatpush1.msra.mxu0 0.0
    %9235 = vmatprep.subr.mxu0 0.0
    %9236 = vmatpush1.msra.mxu0 0.0
    %9237 = vmatprep.subr.mxu0 0.0
    %9238 = vmatpush1.msra.mxu0 0.0
    %9239 = vmatprep.subr.mxu0 0.0
    %9240 = vmatpush1.msra.mxu0 0.0
    %9241 = vmatprep.subr.mxu0 0.0
    %9242 = vmatpush1.msra.mxu0 0.0
    %9243 = vmatprep.subr.mxu0 0.0
    %9244 = vmatpush1.msra.mxu0 0.0
    %9245 = vmatprep.mubr.f32.mxu0 0.0
    %9246 = vmatmul.mubr.f32.gmra.mrb[0].mxu0 %v9176
    %v9247 = vpop.f32.mrb[0].mxu0
    %v9248 = vadd.f32 %v9173, %v9247
    %v9249 = vpop.f32.mrb[0].mxu0
    %9250 = vmatprep.mubr.f32.mxu0 0.0
    %9251 = vmatmul.mubr.f32.gmra.mrb[0].mxu0 %v9179
    %v9252 = vpop.f32.mrb[0].mxu0
    %v9253 = vadd.f32 %v9173, %v9252
    %v9254 = vpop.f32.mrb[0].mxu0
    %9255 = vdwg.mxu0
    %v9256 = vmax.f32 %v9248, 0.0
    %v9257 = vmax.f32 %v9253, 0.0
    %v9259 = vlaneseq
    %v9260 = vshrl.u32 %v9259, 7
    %v9261 = vsub.s32 0, %v9260
    %v9262 = vrot.slane %v6475, %v9261
    %v9265 = vsel %vm1824, %v9256, 0
    %v9268 = vsel %vm1824, %v9257, 0
    %9270 = vmatprep.subr.mxu0 0.0
    %9271 = vmatpush1.msra.mxu0 %v6467
    %9272 = vmatprep.subr.mxu0 0.0
    %9273 = vmatpush1.msra.mxu0 %v6468
    %9274 = vmatprep.subr.mxu0 0.0
    %9275 = vmatpush1.msra.mxu0 %v6469
    %9276 = vmatprep.subr.mxu0 0.0
    %9277 = vmatpush1.msra.mxu0 %v6470
    %9278 = vmatprep.subr.mxu0 0.0
    %9279 = vmatpush1.msra.mxu0 %v6471
    %9280 = vmatprep.subr.mxu0 0.0
    %9281 = vmatpush1.msra.mxu0 %v6472
    %9282 = vmatprep.subr.mxu0 0.0
    %9283 = vmatpush1.msra.mxu0 %v6473
    %9284 = vmatprep.subr.mxu0 0.0
    %9285 = vmatpush1.msra.mxu0 %v6474
    %9286 = vmatprep.subr.mxu0 0.0
    %9287 = vmatpush1.msra.mxu0 0.0
    %9288 = vmatprep.subr.mxu0 0.0
    %9289 = vmatpush1.msra.mxu0 0.0
    %9290 = vmatprep.subr.mxu0 0.0
    %9291 = vmatpush1.msra.mxu0 0.0
    %9292 = vmatprep.subr.mxu0 0.0
    %9293 = vmatpush1.msra.mxu0 0.0
    %9294 = vmatprep.subr.mxu0 0.0
    %9295 = vmatpush1.msra.mxu0 0.0
    %9296 = vmatprep.subr.mxu0 0.0
    %9297 = vmatpush1.msra.mxu0 0.0
    %9298 = vmatprep.subr.mxu0 0.0
    %9299 = vmatpush1.msra.mxu0 0.0
    %9300 = vmatprep.subr.mxu0 0.0
    %9301 = vmatpush1.msra.mxu0 0.0
    %9302 = vmatprep.subr.mxu0 0.0
    %9303 = vmatpush1.msra.mxu0 0.0
    %9304 = vmatprep.subr.mxu0 0.0
    %9305 = vmatpush1.msra.mxu0 0.0
    %9306 = vmatprep.subr.mxu0 0.0
    %9307 = vmatpush1.msra.mxu0 0.0
    %9308 = vmatprep.subr.mxu0 0.0
    %9309 = vmatpush1.msra.mxu0 0.0
    %9310 = vmatprep.subr.mxu0 0.0
    %9311 = vmatpush1.msra.mxu0 0.0
    %9312 = vmatprep.subr.mxu0 0.0
    %9313 = vmatpush1.msra.mxu0 0.0
    %9314 = vmatprep.subr.mxu0 0.0
    %9315 = vmatpush1.msra.mxu0 0.0
    %9316 = vmatprep.subr.mxu0 0.0
    %9317 = vmatpush1.msra.mxu0 0.0
    %9318 = vmatprep.subr.mxu0 0.0
    %9319 = vmatpush1.msra.mxu0 0.0
    %9320 = vmatprep.subr.mxu0 0.0
    %9321 = vmatpush1.msra.mxu0 0.0
    %9322 = vmatprep.subr.mxu0 0.0
    %9323 = vmatpush1.msra.mxu0 0.0
    %9324 = vmatprep.subr.mxu0 0.0
    %9325 = vmatpush1.msra.mxu0 0.0
    %9326 = vmatprep.subr.mxu0 0.0
    %9327 = vmatpush1.msra.mxu0 0.0
    %9328 = vmatprep.subr.mxu0 0.0
    %9329 = vmatpush1.msra.mxu0 0.0
    %9330 = vmatprep.subr.mxu0 0.0
    %9331 = vmatpush1.msra.mxu0 0.0
    %9332 = vmatprep.subr.mxu0 0.0
    %9333 = vmatpush1.msra.mxu0 0.0
    %9334 = vmatprep.mubr.f32.mxu0 0.0
    %9335 = vmatmul.mubr.f32.gmra.mrb[0].mxu0 %v9265
    %v9336 = vpop.f32.mrb[0].mxu0
    %v9337 = vadd.f32 %v9262, %v9336
    %v9338 = vpop.f32.mrb[0].mxu0
    %9339 = vmatprep.mubr.f32.mxu0 0.0
    %9340 = vmatmul.mubr.f32.gmra.mrb[0].mxu0 %v9268
    %v9341 = vpop.f32.mrb[0].mxu0
    %v9342 = vadd.f32 %v9262, %v9341
    %v9343 = vpop.f32.mrb[0].mxu0
    %9344 = vdwg.mxu0
    %v9345 = vadd.f32 %v9111, %v9337
    %v9346 = vadd.f32 %v9112, %v9342
    %v9347 = vld [vmem:[#allocation7] sm:$0x1]
    %v9348 = vld [vmem:[#allocation8] sm:$0x1]
    %v9349 = vsel %vm390, %v9345, 0.0
    %9350 = vadd.xlane.f32.xlu0 %v9349
    %v9351 = vpop.xlane.xlu0 %9350
    %v9352 = vsel %vm390, %v9346, 0.0
    %9353 = vadd.xlane.f32.xlu0 %v9352
    %v9354 = vpop.xlane.xlu0 %9353
    %v9355 = vmul.f32 %v9351, %v397
    %v9356 = vmul.f32 %v9354, %v397
    %v9357 = vsub.f32 %v9345, %v9355
    %v9358 = vsub.f32 %v9346, %v9356
    %v9359 = vmul.f32 %v9357, %v9357
    %v9360 = vmul.f32 %v9358, %v9358
    %v9361 = vsel %vm390, %v9359, 0.0
    %9362 = vadd.xlane.f32.xlu0 %v9361
    %v9363 = vpop.xlane.xlu0 %9362
    %v9364 = vsel %vm390, %v9360, 0.0
    %9365 = vadd.xlane.f32.xlu0 %v9364
    %v9366 = vpop.xlane.xlu0 %9365
    %v9367 = vmul.f32 %v9363, 0.032258064
    %v9368 = vmul.f32 %v9366, 0.032258064
    %v9369 = vrsqrt.pop %v9367
    %v9370 = vmul.f32 %v9367, %v9369
    %vm9371 = vcmp.eq.f32.partialorder %v9367, inf
    %v9372 = vsel %vm9371, %v9367, %v9370
    %vm9373 = vcmp.eq.f32.partialorder %v9367, 0.0
    %v9374 = vand.u32 %v9367, 2147483648
    %v9375 = vsel %vm9373, %v9374, %v9372
    %v9376 = vrsqrt.pop %v9368
    %v9377 = vmul.f32 %v9368, %v9376
    %vm9378 = vcmp.eq.f32.partialorder %v9368, inf
    %v9379 = vsel %vm9378, %v9368, %v9377
    %vm9380 = vcmp.eq.f32.partialorder %v9368, 0.0
    %v9381 = vand.u32 %v9368, 2147483648
    %v9382 = vsel %vm9380, %v9381, %v9379
    %v9383 = vadd.f32 %v9375, 1e-06
    %v9384 = vadd.f32 %v9382, 1e-06
    %v9385 = vrcp.pop %v9383
    %v9386 = vrcp.pop %v9384
    %v9388 = vlaneseq
    %v9389 = vshrl.u32 %v9388, 7
    %v9390 = vsub.s32 0, %v9389
    %v9391 = vrot.slane %v9347, %v9390
    %v9393 = vmul.f32 %v9391, %v9357
    %v9394 = vmul.f32 %v9391, %v9358
    %v9395 = vmul.f32 %v9393, %v9385
    %v9396 = vmul.f32 %v9394, %v9386
    %v9398 = vlaneseq
    %v9399 = vshrl.u32 %v9398, 7
    %v9400 = vsub.s32 0, %v9399
    %v9401 = vrot.slane %v9348, %v9400
    %v9403 = vadd.f32 %v9395, %v9401
    %v9404 = vadd.f32 %v9396, %v9401
    %v9405 = vld [vmem:[%s147] sm:$0xff]
    %v9406 = vld [vmem:[%s147 + $0x8] sm:$0xff]
    %v9407 = vld [vmem:[%s147 + $0x10] sm:$0xff]
    %v9408 = vld [vmem:[%s147 + $0x18] sm:$0xff]
    %v9409 = vld [vmem:[%s149] sm:$0x1]
    %v9411 = vlaneseq
    %v9412 = vshrl.u32 %v9411, 7
    %v9413 = vsub.s32 0, %v9412
    %v9414 = vrot.slane %v9409, %v9413
    %v9417 = vsel %vm390, %v9403, 0
    %v9420 = vsel %vm390, %v9404, 0
    %9422 = vmatprep.subr.mxu0 0.0
    %9423 = vmatpush1.msra.mxu0 %v9405
    %9424 = vmatprep.subr.mxu0 0.0
    %9425 = vmatpush1.msra.mxu0 %v9406
    %9426 = vmatprep.subr.mxu0 0.0
    %9427 = vmatpush1.msra.mxu0 %v9407
    %9428 = vmatprep.subr.mxu0 0.0
    %9429 = vmatpush1.msra.mxu0 %v9408
    %9430 = vmatprep.subr.mxu0 0.0
    %9431 = vmatpush1.msra.mxu0 0.0
    %9432 = vmatprep.subr.mxu0 0.0
    %9433 = vmatpush1.msra.mxu0 0.0
    %9434 = vmatprep.subr.mxu0 0.0
    %9435 = vmatpush1.msra.mxu0 0.0
    %9436 = vmatprep.subr.mxu0 0.0
    %9437 = vmatpush1.msra.mxu0 0.0
    %9438 = vmatprep.subr.mxu0 0.0
    %9439 = vmatpush1.msra.mxu0 0.0
    %9440 = vmatprep.subr.mxu0 0.0
    %9441 = vmatpush1.msra.mxu0 0.0
    %9442 = vmatprep.subr.mxu0 0.0
    %9443 = vmatpush1.msra.mxu0 0.0
    %9444 = vmatprep.subr.mxu0 0.0
    %9445 = vmatpush1.msra.mxu0 0.0
    %9446 = vmatprep.subr.mxu0 0.0
    %9447 = vmatpush1.msra.mxu0 0.0
    %9448 = vmatprep.subr.mxu0 0.0
    %9449 = vmatpush1.msra.mxu0 0.0
    %9450 = vmatprep.subr.mxu0 0.0
    %9451 = vmatpush1.msra.mxu0 0.0
    %9452 = vmatprep.subr.mxu0 0.0
    %9453 = vmatpush1.msra.mxu0 0.0
    %9454 = vmatprep.subr.mxu0 0.0
    %9455 = vmatpush1.msra.mxu0 0.0
    %9456 = vmatprep.subr.mxu0 0.0
    %9457 = vmatpush1.msra.mxu0 0.0
    %9458 = vmatprep.subr.mxu0 0.0
    %9459 = vmatpush1.msra.mxu0 0.0
    %9460 = vmatprep.subr.mxu0 0.0
    %9461 = vmatpush1.msra.mxu0 0.0
    %9462 = vmatprep.subr.mxu0 0.0
    %9463 = vmatpush1.msra.mxu0 0.0
    %9464 = vmatprep.subr.mxu0 0.0
    %9465 = vmatpush1.msra.mxu0 0.0
    %9466 = vmatprep.subr.mxu0 0.0
    %9467 = vmatpush1.msra.mxu0 0.0
    %9468 = vmatprep.subr.mxu0 0.0
    %9469 = vmatpush1.msra.mxu0 0.0
    %9470 = vmatprep.subr.mxu0 0.0
    %9471 = vmatpush1.msra.mxu0 0.0
    %9472 = vmatprep.subr.mxu0 0.0
    %9473 = vmatpush1.msra.mxu0 0.0
    %9474 = vmatprep.subr.mxu0 0.0
    %9475 = vmatpush1.msra.mxu0 0.0
    %9476 = vmatprep.subr.mxu0 0.0
    %9477 = vmatpush1.msra.mxu0 0.0
    %9478 = vmatprep.subr.mxu0 0.0
    %9479 = vmatpush1.msra.mxu0 0.0
    %9480 = vmatprep.subr.mxu0 0.0
    %9481 = vmatpush1.msra.mxu0 0.0
    %9482 = vmatprep.subr.mxu0 0.0
    %9483 = vmatpush1.msra.mxu0 0.0
    %9484 = vmatprep.subr.mxu0 0.0
    %9485 = vmatpush1.msra.mxu0 0.0
    %9486 = vmatprep.mubr.f32.mxu0 0.0
    %9487 = vmatmul.mubr.f32.gmra.mrb[0].mxu0 %v9417
    %v9488 = vpop.f32.mrb[0].mxu0
    %v9489 = vadd.f32 %v9414, %v9488
    %v9490 = vpop.f32.mrb[0].mxu0
    %9491 = vmatprep.mubr.f32.mxu0 0.0
    %9492 = vmatmul.mubr.f32.gmra.mrb[0].mxu0 %v9420
    %v9493 = vpop.f32.mrb[0].mxu0
    %v9494 = vadd.f32 %v9414, %v9493
    %v9495 = vpop.f32.mrb[0].mxu0
    %9496 = vdwg.mxu0
    %9497 = vmax.xlane.f32.xlu0 %v9489
    %v9498 = vpop.xlane.xlu0 %9497
    %9499 = vmax.xlane.f32.xlu0 %v9494
    %v9500 = vpop.xlane.xlu0 %9499
    %v9501 = vsub.f32 %v9489, %v9498
    %v9502 = vsub.f32 %v9494, %v9500
    %v9503 = vmul.f32 %v9501, 1.442695
    %v9504 = vpow.pop %v9503
    %v9505 = vmul.f32 %v9502, 1.442695
    %v9506 = vpow.pop %v9505
    %9507 = vadd.xlane.f32.xlu0 %v9504
    %v9508 = vpop.xlane.xlu0 %9507
    %9509 = vadd.xlane.f32.xlu0 %v9506
    %v9510 = vpop.xlane.xlu0 %9509
    %v9511 = vlog2.pop %v9508
    %v9512 = vmul.f32 %v9511, 0.6931472
    %v9513 = vlog2.pop %v9510
    %v9514 = vmul.f32 %v9513, 0.6931472
    %v9515 = vsub.f32 %v9501, %v9512
    %v9516 = vsub.f32 %v9502, %v9514
    %9517 = vst [vmem:[#allocation10] sm:$0xff] %v9515
    %9518 = vst [vmem:[#allocation10 + $0x8] sm:$0xff] %v9516
    // Predicated region
    $region318: #{encoder_decoder_forward.1} parent=1 // pred_check
      _
    $region319: #{encoder_decoder_forward.1} parent=1 // pred_check_branch
      %9520 = sbr.rel (0) target = $region321
    $region320: #{encoder_decoder_forward.1} parent=1 // pred_region
      %s9522 = ssub.s32 256, 256
      %9523 = vsyncadd [#allocation4], %s9522
      %s9524 = sshll.u32 [#allocation10], 4
      %s9525 = int_to_ptr.vmem [resolvable:$true] %s9524
      %9530 = dma.vmem_to_hbm [thread:$0]  %s9525, 256, %s151, [#allocation4], 128, 128, 8
    $region321: #{encoder_decoder_forward.1} parent=1 // pred_fallthru
      _
    // Predicated region
    $region322: #{encoder_decoder_forward.1} parent=1 // pred_check
      _
    $region323: #{encoder_decoder_forward.1} parent=1 // pred_check_branch
      %9532 = sbr.rel (0) target = $region325
    $region324: #{encoder_decoder_forward.1} parent=1 // pred_region
      %9533 = dma.done [#allocation4], 256
    $region325: #{encoder_decoder_forward.1} parent=1 // pred_fallthru
      _
    %9534 = vsyncpa [#allocation3], 1
    %9535 = vsyncpa [#allocation6], 1
    %9536 = vsyncpa [#allocation9], 1
    %9537 = vsyncpa [#allocation4], 1

</llo_original>
